<compile_context>
chip_gen: v7x
topology: tpu7x:2x2x1
jax: 0.10.0
libtpu: 0.0.40
codegen_flags: <defaults>
</compile_context>

<pallas_src>
import math
import functools

import jax
import jax.numpy as jnp
from jax import lax
from jax.experimental import pallas as pl
from jax.experimental.pallas import tpu as pltpu


def mha_kernel(x_ref, wqkv_ref, bqkv_ref, wot_ref, bo_ref, out_ref, *,
               inv_sqrt_kd, tb, seq_len, model_dim, matmul_dtype):
    TB, L, D = tb, seq_len, model_dim
    md = matmul_dtype

    # (TB, L, 3D) -> (TB*L, 3D): last (lane) dim unchanged -> layout no-op.
    x = x_ref[...].reshape(TB * L, 3 * D)

    # Fused Q/K/V projection: one block-diagonal (TB*L, 3D) x (3D, 3D) matmul.
    qkv = jnp.dot(x.astype(md), wqkv_ref[...].astype(md),
                  preferred_element_type=jnp.float32) + bqkv_ref[...]

    q3 = qkv[:, :D].reshape(TB, L, D)           # Q[b, m, j]
    k3 = qkv[:, D:2 * D].reshape(TB, L, D)      # K[b, i, m]
    v3 = qkv[:, 2 * D:].reshape(TB, L, D)       # V[b, j, d]

    # Scores in the natural orientation A[b, i, j] = (K[b] @ Q[b])[i, j].
    # Standard contraction dims -> clean MXU lowering (no hidden transposes).
    a = lax.dot_general(k3.astype(md), q3.astype(md),
                        dimension_numbers=(((2,), (1,)), ((0,), (0,))),
                        preferred_element_type=jnp.float32)

    # softmax over torch dim=1 (the i / sublane axis); the positive
    # 1/sqrt(key_dim) scale is fused into the exp argument (max commutes).
    a_max = jnp.max(a, axis=1, keepdims=True)
    e = jnp.exp((a - a_max) * inv_sqrt_kd)
    denom = jnp.sum(e, axis=1, keepdims=True)
    s = e * pl.reciprocal(denom, approx=True)   # S[b, i, j]

    # O[b, i, d] = sum_j S[b, i, j] V[b, j, d] -- again a standard contraction.
    o3 = lax.dot_general(s.astype(md), v3.astype(md),
                         dimension_numbers=(((2,), (1,)), ((0,), (0,))),
                         preferred_element_type=jnp.float32)

    # Final linear transform as one (TB*L, D) x (D, D) matmul.
    o = o3.reshape(TB * L, D)
    y = jnp.dot(o.astype(md), wot_ref[...].astype(md),
                preferred_element_type=jnp.float32) + bo_ref[...]

    # Store in the matmul-native (TB*L, D) layout; the (N, L, D) reshape is a
    # free contiguous reshape in the wrapper (no in-kernel cross-tile relayout).
    out_ref[...] = y


def multi_head_attention(xq, xk, xv, params, *, num_head, key_dim,
                         block_batch=None, matmul_dtype=jnp.float32):
    """xq/xk/xv: [B, L, D] float32 with L == D and B >= num_head*key_dim.

    Only the first N = num_head*key_dim batch rows contribute to the output
    (rows N..B-1 are dropped), exactly like the reference forward.
    """
    Wq, bq, Wk, bk, Wv, bv, Wo, bo = params
    B, L, D = xq.shape
    N = num_head * key_dim
    assert L == D, "reference forward requires seq_len == model_dimension"
    assert B >= N, "batch must cover h * key_dim rows"

    # One grid step by default: v5e/v6e have a single TensorCore, so multiple
    # grid steps are just serialized overhead and shrink the fused matmul M.
    # TODO(synk): on v7x (2 TCs) benchmark block_batch=N//2 with "parallel";
    #             only keep the split if it measures faster than grid=(1,).
    if block_batch is None:
        block_batch = N
    TB = block_batch
    assert N % TB == 0, "block_batch must divide num_head * key_dim"
    grid = (N // TB,)

    # Wrapper glue: concat inputs along the feature axis and build the fused
    # block-diagonal W^T and concatenated bias (kernel computes x @ W^T + b).
    x_cat = jnp.concatenate([xq, xk, xv], axis=-1)             # (B, L, 3D)
    Z = jnp.zeros((D, D), jnp.float32)
    w_qkv = jnp.concatenate([
        jnp.concatenate([Wq.T, Z, Z], axis=1),
        jnp.concatenate([Z, Wk.T, Z], axis=1),
        jnp.concatenate([Z, Z, Wv.T], axis=1)], axis=0)        # (3D, 3D)
    b_qkv = jnp.concatenate([bq, bk, bv]).reshape(1, 3 * D)
    wot = Wo.T
    bo2 = bo.reshape(1, D)

    kernel = functools.partial(
        mha_kernel,
        inv_sqrt_kd=1.0 / math.sqrt(key_dim),
        tb=TB, seq_len=L, model_dim=D, matmul_dtype=matmul_dtype)

    x_spec = pl.BlockSpec((TB, L, 3 * D), lambda b: (b, 0, 0))
    # TODO(synk): with >1 grid step the constant-index weight/bias blocks could
    # use pipeline_mode=pl.Buffered(1) to avoid pointless double-buffering
    # (irrelevant at D=32, matters if scaled up on 64 MiB-VMEM v7x).
    wqkv_spec = pl.BlockSpec((3 * D, 3 * D), lambda b: (0, 0))
    bqkv_spec = pl.BlockSpec((1, 3 * D), lambda b: (0, 0))
    wo_spec = pl.BlockSpec((D, D), lambda b: (0, 0))
    bo_spec = pl.BlockSpec((1, D), lambda b: (0, 0))
    out_spec = pl.BlockSpec((TB * L, D), lambda b: (b, 0))

    cost = pl.CostEstimate(
        flops=(2 * N * L * (3 * D) * (3 * D)       # fused QKV projection
               + 2 * N * L * L * D * 2             # K@Q and S@V
               + 2 * N * L * D * D),               # output linear
        transcendentals=N * L * L,
        bytes_accessed=4 * (N * L * 3 * D + (3 * D) * (3 * D) + 3 * D
                            + D * D + D + N * L * D))

    out_flat = pl.pallas_call(
        kernel,
        out_shape=jax.ShapeDtypeStruct((N * L, D), jnp.float32),
        grid_spec=pltpu.PrefetchScalarGridSpec(
            num_scalar_prefetch=0,
            grid=grid,
            in_specs=[x_spec, wqkv_spec, bqkv_spec, wo_spec, bo_spec],
            out_specs=out_spec,
        ),
        compiler_params=pltpu.CompilerParams(
            dimension_semantics=("parallel",)),
        cost_estimate=cost,
    )(x_cat, w_qkv, b_qkv, wot, bo2)

    # Free contiguous reshape back to the reference's (N, L, D) layout.
    return out_flat.reshape(N, L, D)


def reference_forward(xq, xk, xv, params, *, num_head, key_dim):
    """Direct JAX transcription of the PyTorch forward (head-slice loop & all)."""
    Wq, bq, Wk, bk, Wv, bv, Wo, bo = params
    Q = xq @ Wq.T + bq
    K = xk @ Wk.T + bk
    V = xv @ Wv.T + bv
    outs = []
    for i in range(num_head):
        q = Q[i * key_dim:(i + 1) * key_dim]
        k = K[i * key_dim:(i + 1) * key_dim]
        v = V[i * key_dim:(i + 1) * key_dim]
        a = jnp.matmul(k, q) / math.sqrt(key_dim)
        s = jax.nn.softmax(a, axis=1)
        outs.append(jnp.matmul(s, v))
    o = jnp.concatenate(outs, axis=0)
    return o @ Wo.T + bo


def init_linear(key, dim):
    k1, k2 = jax.random.split(key)
    bound = 1.0 / math.sqrt(dim)
    W = jax.random.uniform(k1, (dim, dim), jnp.float32, -bound, bound)
    b = jax.random.uniform(k2, (dim,), jnp.float32, -bound, bound)
    return W, b


if __name__ == "__main__":
    # Small but consistent shapes: model_dimension=32, h=8 -> key_dim=4,
    # batch = h*key_dim = 32, seq_len = model_dim = 32.
    model_dimension, h = 32, 8
    key_dim = model_dimension // h
    B = h * key_dim
    L = D = model_dimension

    root = jax.random.PRNGKey(0)
    kq, kk, kv, ko, kxq, kxk, kxv = jax.random.split(root, 7)
    Wq, bq = init_linear(kq, D)
    Wk, bk = init_linear(kk, D)
    Wv, bv = init_linear(kv, D)
    Wo, bo = init_linear(ko, D)
    params = (Wq, bq, Wk, bk, Wv, bv, Wo, bo)

    xq = jax.random.normal(kxq, (B, L, D), jnp.float32)
    xk = jax.random.normal(kxk, (B, L, D), jnp.float32)
    xv = jax.random.normal(kxv, (B, L, D), jnp.float32)

    out = multi_head_attention(xq, xk, xv, params,
                               num_head=h, key_dim=key_dim)
    out = jax.block_until_ready(out)

    ref = reference_forward(xq, xk, xv, params, num_head=h, key_dim=key_dim)
    ref = jax.block_until_ready(ref)

    assert out.shape == (h * key_dim, L, D)
    assert jnp.allclose(out, ref, rtol=2e-2, atol=2e-2), (
        f"max abs err = {jnp.max(jnp.abs(out - ref))}")
    print("KERNEL_OK")
</pallas_src>

<mosaic_0001>
module attributes {stable_mosaic.version = 11 : i64} {
  func.func @mha_kernel(%arg0: i32, %arg1: memref<32x32x96xf32, #tpu.memory_space<vmem>>, %arg2: memref<96x96xf32, #tpu.memory_space<vmem>>, %arg3: memref<1x96xf32, #tpu.memory_space<vmem>>, %arg4: memref<32x32xf32, #tpu.memory_space<vmem>>, %arg5: memref<1x32xf32, #tpu.memory_space<vmem>>, %arg6: memref<1024x32xf32, #tpu.memory_space<vmem>>) attributes {dimension_semantics = [#tpu.dimension_semantics<parallel>], iteration_bounds = array<i64: 1>, scalar_prefetch = 0 : i64, scratch_operands = 0 : i64, tpu.core_type = #tpu.core_type<tc>, window_params = [{transform_indices = @transform_0, window_bounds = array<i64: 32, 32, 96>}, {pipeline_mode = #tpu.pipeline_mode<synchronous>, transform_indices = @transform_1, window_bounds = array<i64: 96, 96>}, {pipeline_mode = #tpu.pipeline_mode<synchronous>, transform_indices = @transform_2, window_bounds = array<i64: 1, 96>}, {pipeline_mode = #tpu.pipeline_mode<synchronous>, transform_indices = @transform_3, window_bounds = array<i64: 32, 32>}, {pipeline_mode = #tpu.pipeline_mode<synchronous>, transform_indices = @transform_4, window_bounds = array<i64: 1, 32>}, {transform_indices = @transform_5, window_bounds = array<i64: 1024, 32>}]} {
    %c0 = arith.constant 0 : index
    %c0_0 = arith.constant 0 : index
    %c0_1 = arith.constant 0 : index
    %0 = vector.load %arg1[%c0, %c0_0, %c0_1] : memref<32x32x96xf32, #tpu.memory_space<vmem>>, vector<32x32x96xf32>
    %1 = vector.shape_cast %0 : vector<32x32x96xf32> to vector<1024x96xf32>
    %c0_2 = arith.constant 0 : index
    %c0_3 = arith.constant 0 : index
    %2 = vector.load %arg2[%c0_2, %c0_3] : memref<96x96xf32, #tpu.memory_space<vmem>>, vector<96x96xf32>
    %cst = arith.constant dense<0.000000e+00> : vector<1024x96xf32>
    %3 = tpu.matmul %1, %2, %cst {dimension_numbers = #tpu.dot_dimension_numbers<[1], [0], [0], [1], [0, 0, 1, 1], [], []>} : vector<1024x96xf32>, vector<96x96xf32>, vector<1024x96xf32> -> vector<1024x96xf32>
    %c0_4 = arith.constant 0 : index
    %c0_5 = arith.constant 0 : index
    %4 = vector.load %arg3[%c0_4, %c0_5] : memref<1x96xf32, #tpu.memory_space<vmem>>, vector<1x96xf32>
    %5 = vector.broadcast %4 : vector<1x96xf32> to vector<1024x96xf32>
    %6 = arith.addf %3, %5 : vector<1024x96xf32>
    %7 = vector.extract_strided_slice %6 {offsets = [0, 0], sizes = [1024, 32], strides = [1, 1]} : vector<1024x96xf32> to vector<1024x32xf32>
    %8 = vector.shape_cast %7 : vector<1024x32xf32> to vector<32x32x32xf32>
    %9 = vector.extract_strided_slice %6 {offsets = [0, 32], sizes = [1024, 32], strides = [1, 1]} : vector<1024x96xf32> to vector<1024x32xf32>
    %10 = vector.shape_cast %9 : vector<1024x32xf32> to vector<32x32x32xf32>
    %11 = vector.extract_strided_slice %6 {offsets = [0, 64], sizes = [1024, 32], strides = [1, 1]} : vector<1024x96xf32> to vector<1024x32xf32>
    %12 = vector.shape_cast %11 : vector<1024x32xf32> to vector<32x32x32xf32>
    %cst_6 = arith.constant dense<0.000000e+00> : vector<32x32x32xf32>
    %13 = tpu.matmul %10, %8, %cst_6 {dimension_numbers = #tpu.dot_dimension_numbers<[2], [1], [1], [2], [0, 0, 0, 1, 1, 2], [0], [0]>} : vector<32x32x32xf32>, vector<32x32x32xf32>, vector<32x32x32xf32> -> vector<32x32x32xf32>
    %cst_7 = arith.constant dense<0xFF800000> : vector<32x32xf32>
    %14 = vector.multi_reduction <maximumf>, %13, %cst_7 [1] : vector<32x32x32xf32> to vector<32x32xf32>
    %15 = vector.shape_cast %14 : vector<32x32xf32> to vector<32x1x32xf32>
    %16 = vector.broadcast %15 : vector<32x1x32xf32> to vector<32x32x32xf32>
    %17 = arith.subf %13, %16 : vector<32x32x32xf32>
    %cst_8 = arith.constant 5.000000e-01 : f32
    %18 = vector.broadcast %cst_8 : f32 to vector<32x32x32xf32>
    %19 = arith.mulf %17, %18 : vector<32x32x32xf32>
    %20 = math.exp %19 : vector<32x32x32xf32>
    %cst_9 = arith.constant dense<0.000000e+00> : vector<32x32xf32>
    %21 = vector.multi_reduction <add>, %20, %cst_9 [1] : vector<32x32x32xf32> to vector<32x32xf32>
    %22 = vector.shape_cast %21 : vector<32x32xf32> to vector<32x1x32xf32>
    %23 = tpu.reciprocal %22 {approx = true} : vector<32x1x32xf32> -> vector<32x1x32xf32>
    %24 = vector.broadcast %23 : vector<32x1x32xf32> to vector<32x32x32xf32>
    %25 = arith.mulf %20, %24 : vector<32x32x32xf32>
    %cst_10 = arith.constant dense<0.000000e+00> : vector<32x32x32xf32>
    %26 = tpu.matmul %25, %12, %cst_10 {dimension_numbers = #tpu.dot_dimension_numbers<[2], [1], [1], [2], [0, 0, 0, 1, 1, 2], [0], [0]>} : vector<32x32x32xf32>, vector<32x32x32xf32>, vector<32x32x32xf32> -> vector<32x32x32xf32>
    %27 = vector.shape_cast %26 : vector<32x32x32xf32> to vector<1024x32xf32>
    %c0_11 = arith.constant 0 : index
    %c0_12 = arith.constant 0 : index
    %28 = vector.load %arg4[%c0_11, %c0_12] : memref<32x32xf32, #tpu.memory_space<vmem>>, vector<32x32xf32>
    %cst_13 = arith.constant dense<0.000000e+00> : vector<1024x32xf32>
    %29 = tpu.matmul %27, %28, %cst_13 {dimension_numbers = #tpu.dot_dimension_numbers<[1], [0], [0], [1], [0, 0, 1, 1], [], []>} : vector<1024x32xf32>, vector<32x32xf32>, vector<1024x32xf32> -> vector<1024x32xf32>
    %c0_14 = arith.constant 0 : index
    %c0_15 = arith.constant 0 : index
    %30 = vector.load %arg5[%c0_14, %c0_15] : memref<1x32xf32, #tpu.memory_space<vmem>>, vector<1x32xf32>
    %31 = vector.broadcast %30 : vector<1x32xf32> to vector<1024x32xf32>
    %32 = arith.addf %29, %31 : vector<1024x32xf32>
    %c0_16 = arith.constant 0 : index
    %c0_17 = arith.constant 0 : index
    %33 = vector.load %arg6[%c0_16, %c0_17] : memref<1024x32xf32, #tpu.memory_space<vmem>>, vector<1024x32xf32>
    tpu.vector_store %arg6[%c0_16, %c0_17], %32 {strides = array<i32>} : memref<1024x32xf32, #tpu.memory_space<vmem>>, vector<1024x32xf32>,
    return
  }
  func.func @transform_0(%arg0: i32) -> (i32, i32, i32) {
    %c0_i32 = arith.constant 0 : i32
    %c0_i32_0 = arith.constant 0 : i32
    %c0_i32_1 = arith.constant 0 : i32
    return %arg0, %c0_i32, %c0_i32_0 : i32, i32, i32
  }
  func.func @transform_1(%arg0: i32) -> (i32, i32) {
    %c0_i32 = arith.constant 0 : i32
    %c0_i32_0 = arith.constant 0 : i32
    %c0_i32_1 = arith.constant 0 : i32
    return %c0_i32, %c0_i32_0 : i32, i32
  }
  func.func @transform_2(%arg0: i32) -> (i32, i32) {
    %c0_i32 = arith.constant 0 : i32
    %c0_i32_0 = arith.constant 0 : i32
    %c0_i32_1 = arith.constant 0 : i32
    return %c0_i32, %c0_i32_0 : i32, i32
  }
  func.func @transform_3(%arg0: i32) -> (i32, i32) {
    %c0_i32 = arith.constant 0 : i32
    %c0_i32_0 = arith.constant 0 : i32
    %c0_i32_1 = arith.constant 0 : i32
    return %c0_i32, %c0_i32_0 : i32, i32
  }
  func.func @transform_4(%arg0: i32) -> (i32, i32) {
    %c0_i32 = arith.constant 0 : i32
    %c0_i32_0 = arith.constant 0 : i32
    %c0_i32_1 = arith.constant 0 : i32
    return %c0_i32, %c0_i32_0 : i32, i32
  }
  func.func @transform_5(%arg0: i32) -> (i32, i32) {
    %c0_i32 = arith.constant 0 : i32
    %c0_i32_0 = arith.constant 0 : i32
    return %arg0, %c0_i32 : i32, i32
  }
}

</mosaic_0001>

<llo_original>
// kernel: tpu_custom_call.1
$region0: #{tpu_custom_call.1}
  #allocation0 [shape = 'u32[]', space=smem, size = 0x4, offset = 0x4, fixed_abs, tag = 'smem constant byte address 0x4 - core index']
  #allocation1 [shape = 'u32[144,128]{1,0:T(1,128)}', space=vmem, size = 0x12000, scoped, tag = 'internal scratch']
  %s0 = inlined_call_operand.hbm [shape: f32[32,32,96], index: 0, kind: input, shape index: {}]
  %s1 = inlined_call_operand.hbm [shape: f32[96,96], index: 1, kind: input, shape index: {}]
  %s2 = inlined_call_operand.vmem [shape: f32[1,96], index: 2, kind: input, shape index: {}]
  %s3 = inlined_call_operand.hbm [shape: f32[32,32], index: 3, kind: input, shape index: {}]
  %s4 = inlined_call_operand.vmem [shape: f32[1,32], index: 4, kind: input, shape index: {}]
  %s5 = inlined_call_operand.vmem [shape: f32[1024,32], index: 5, kind: output, shape index: {}]
  %s6 = sld [smem:[#allocation0]]
  $region42: #{tpu_custom_call.1} parent=0
    _
  %s8 = ssub.s32 1, %s6
  %s9 = scalar_select 0, %s8, %s6
  $region1: #{tpu_custom_call.1} parent=0
    #allocation2 [shape = 'u8[524288]{0}', space=vmem, size = 0x80000, scoped, tag = 'input window, operand 0, single buffered']
    #allocation3 [shape = 's32[1]{0}', space=sflag, size = 0x4, scoped, tag = 'scoped memory for tpu_custom_call.1']
    #allocation4 [shape = 'u8[49152]{0}', space=vmem, size = 0xc000, scoped, tag = 'input window, operand 1, single buffered']
    #allocation5 [shape = 's32[1]{0}', space=sflag, size = 0x4, scoped, tag = 'scoped memory for tpu_custom_call.1']
    #allocation6 [shape = 'u8[16384]{0}', space=vmem, size = 0x4000, scoped, tag = 'input window, operand 3, single buffered']
    %10 = vsyncpa [#allocation3], 0
    %11 = vsyncpa [#allocation5], 0
    // Predicated region
    $region2: #{tpu_custom_call.1} parent=1 // pred_check
      _
    $region3: #{tpu_custom_call.1} parent=1 // pred_check_branch
      %13 = sbr.rel (0) target = $region5
    $region4: #{tpu_custom_call.1} parent=1 // pred_region
      %s15 = ssub.s32 16384, 16384
      %16 = vsyncadd [#allocation3], %s15
      %s17 = sshll.u32 [#allocation2], 4
      %s18 = int_to_ptr.vmem [resolvable:$true] %s17
      %23 = dma.hbm_to_vmem [thread:$0]  %s0, 16384, %s18, [#allocation3], 128, 128, 8
    $region5: #{tpu_custom_call.1} parent=1 // pred_fallthru
      _
    // Predicated region
    $region6: #{tpu_custom_call.1} parent=1 // pred_check
      _
    $region7: #{tpu_custom_call.1} parent=1 // pred_check_branch
      %25 = sbr.rel (0) target = $region9
    $region8: #{tpu_custom_call.1} parent=1 // pred_region
      %s27 = ssub.s32 1536, 1536
      %28 = vsyncadd [#allocation5], %s27
      %s29 = sshll.u32 [#allocation4], 4
      %s30 = int_to_ptr.vmem [resolvable:$true] %s29
      %35 = dma.hbm_to_vmem [thread:$0]  %s1, 1536, %s30, [#allocation5], 128, 128, 8
    $region9: #{tpu_custom_call.1} parent=1 // pred_fallthru
      _
    // Predicated region
    $region10: #{tpu_custom_call.1} parent=1 // pred_check
      _
    $region11: #{tpu_custom_call.1} parent=1 // pred_check_branch
      %37 = sbr.rel (0) target = $region13
    $region12: #{tpu_custom_call.1} parent=1 // pred_region
      _
    $region13: #{tpu_custom_call.1} parent=1 // pred_fallthru
      _
    // Predicated region
    $region14: #{tpu_custom_call.1} parent=1 // pred_check
      _
    $region15: #{tpu_custom_call.1} parent=1 // pred_check_branch
      %39 = sbr.rel (0) target = $region17
    $region16: #{tpu_custom_call.1} parent=1 // pred_region
      %s41 = ssub.s32 512, 512
      %42 = vsyncadd [#allocation5], %s41
      %s43 = sshll.u32 [#allocation6], 4
      %s44 = int_to_ptr.vmem [resolvable:$true] %s43
      %49 = dma.hbm_to_vmem [thread:$0]  %s3, 512, %s44, [#allocation5], 128, 128, 8
    $region17: #{tpu_custom_call.1} parent=1 // pred_fallthru
      _
    // Predicated region
    $region18: #{tpu_custom_call.1} parent=1 // pred_check
      _
    $region19: #{tpu_custom_call.1} parent=1 // pred_check_branch
      %51 = sbr.rel (0) target = $region21
    $region20: #{tpu_custom_call.1} parent=1 // pred_region
      _
    $region21: #{tpu_custom_call.1} parent=1 // pred_fallthru
      _
    // Predicated region
    $region22: #{tpu_custom_call.1} parent=1 // pred_check
      _
    $region23: #{tpu_custom_call.1} parent=1 // pred_check_branch
      %53 = sbr.rel (0) target = $region25
    $region24: #{tpu_custom_call.1} parent=1 // pred_region
      %54 = dma.done [#allocation3], 16384
    $region25: #{tpu_custom_call.1} parent=1 // pred_fallthru
      _
    // Predicated region
    $region26: #{tpu_custom_call.1} parent=1 // pred_check
      _
    $region27: #{tpu_custom_call.1} parent=1 // pred_check_branch
      %56 = sbr.rel (0) target = $region29
    $region28: #{tpu_custom_call.1} parent=1 // pred_region
      %57 = dma.done [#allocation5], 1536
    $region29: #{tpu_custom_call.1} parent=1 // pred_fallthru
      _
    // Predicated region
    $region30: #{tpu_custom_call.1} parent=1 // pred_check
      _
    $region31: #{tpu_custom_call.1} parent=1 // pred_check_branch
      %59 = sbr.rel (0) target = $region33
    $region32: #{tpu_custom_call.1} parent=1 // pred_region
      %60 = dma.done [#allocation5], 512
    $region33: #{tpu_custom_call.1} parent=1 // pred_fallthru
      _
    %v61 = vld [vmem:[#allocation2] sm:$0xff]
    %v62 = vld [vmem:[#allocation2 + $0x8] sm:$0xff]
    %v63 = vld [vmem:[#allocation2 + $0x10] sm:$0xff]
    %v64 = vld [vmem:[#allocation2 + $0x18] sm:$0xff]
    %v65 = vld [vmem:[#allocation2 + $0x20] sm:$0xff]
    %v66 = vld [vmem:[#allocation2 + $0x28] sm:$0xff]
    %v67 = vld [vmem:[#allocation2 + $0x30] sm:$0xff]
    %v68 = vld [vmem:[#allocation2 + $0x38] sm:$0xff]
    %v69 = vld [vmem:[#allocation2 + $0x40] sm:$0xff]
    %v70 = vld [vmem:[#allocation2 + $0x48] sm:$0xff]
    %v71 = vld [vmem:[#allocation2 + $0x50] sm:$0xff]
    %v72 = vld [vmem:[#allocation2 + $0x58] sm:$0xff]
    %v73 = vld [vmem:[#allocation2 + $0x60] sm:$0xff]
    %v74 = vld [vmem:[#allocation2 + $0x68] sm:$0xff]
    %v75 = vld [vmem:[#allocation2 + $0x70] sm:$0xff]
    %v76 = vld [vmem:[#allocation2 + $0x78] sm:$0xff]
    %v77 = vld [vmem:[#allocation2 + $0x80] sm:$0xff]
    %v78 = vld [vmem:[#allocation2 + $0x88] sm:$0xff]
    %v79 = vld [vmem:[#allocation2 + $0x90] sm:$0xff]
    %v80 = vld [vmem:[#allocation2 + $0x98] sm:$0xff]
    %v81 = vld [vmem:[#allocation2 + $0xa0] sm:$0xff]
    %v82 = vld [vmem:[#allocation2 + $0xa8] sm:$0xff]
    %v83 = vld [vmem:[#allocation2 + $0xb0] sm:$0xff]
    %v84 = vld [vmem:[#allocation2 + $0xb8] sm:$0xff]
    %v85 = vld [vmem:[#allocation2 + $0xc0] sm:$0xff]
    %v86 = vld [vmem:[#allocation2 + $0xc8] sm:$0xff]
    %v87 = vld [vmem:[#allocation2 + $0xd0] sm:$0xff]
    %v88 = vld [vmem:[#allocation2 + $0xd8] sm:$0xff]
    %v89 = vld [vmem:[#allocation2 + $0xe0] sm:$0xff]
    %v90 = vld [vmem:[#allocation2 + $0xe8] sm:$0xff]
    %v91 = vld [vmem:[#allocation2 + $0xf0] sm:$0xff]
    %v92 = vld [vmem:[#allocation2 + $0xf8] sm:$0xff]
    %v93 = vld [vmem:[#allocation2 + $0x100] sm:$0xff]
    %v94 = vld [vmem:[#allocation2 + $0x108] sm:$0xff]
    %v95 = vld [vmem:[#allocation2 + $0x110] sm:$0xff]
    %v96 = vld [vmem:[#allocation2 + $0x118] sm:$0xff]
    %v97 = vld [vmem:[#allocation2 + $0x120] sm:$0xff]
    %v98 = vld [vmem:[#allocation2 + $0x128] sm:$0xff]
    %v99 = vld [vmem:[#allocation2 + $0x130] sm:$0xff]
    %v100 = vld [vmem:[#allocation2 + $0x138] sm:$0xff]
    %v101 = vld [vmem:[#allocation2 + $0x140] sm:$0xff]
    %v102 = vld [vmem:[#allocation2 + $0x148] sm:$0xff]
    %v103 = vld [vmem:[#allocation2 + $0x150] sm:$0xff]
    %v104 = vld [vmem:[#allocation2 + $0x158] sm:$0xff]
    %v105 = vld [vmem:[#allocation2 + $0x160] sm:$0xff]
    %v106 = vld [vmem:[#allocation2 + $0x168] sm:$0xff]
    %v107 = vld [vmem:[#allocation2 + $0x170] sm:$0xff]
    %v108 = vld [vmem:[#allocation2 + $0x178] sm:$0xff]
    %v109 = vld [vmem:[#allocation2 + $0x180] sm:$0xff]
    %v110 = vld [vmem:[#allocation2 + $0x188] sm:$0xff]
    %v111 = vld [vmem:[#allocation2 + $0x190] sm:$0xff]
    %v112 = vld [vmem:[#allocation2 + $0x198] sm:$0xff]
    %v113 = vld [vmem:[#allocation2 + $0x1a0] sm:$0xff]
    %v114 = vld [vmem:[#allocation2 + $0x1a8] sm:$0xff]
    %v115 = vld [vmem:[#allocation2 + $0x1b0] sm:$0xff]
    %v116 = vld [vmem:[#allocation2 + $0x1b8] sm:$0xff]
    %v117 = vld [vmem:[#allocation2 + $0x1c0] sm:$0xff]
    %v118 = vld [vmem:[#allocation2 + $0x1c8] sm:$0xff]
    %v119 = vld [vmem:[#allocation2 + $0x1d0] sm:$0xff]
    %v120 = vld [vmem:[#allocation2 + $0x1d8] sm:$0xff]
    %v121 = vld [vmem:[#allocation2 + $0x1e0] sm:$0xff]
    %v122 = vld [vmem:[#allocation2 + $0x1e8] sm:$0xff]
    %v123 = vld [vmem:[#allocation2 + $0x1f0] sm:$0xff]
    %v124 = vld [vmem:[#allocation2 + $0x1f8] sm:$0xff]
    %v125 = vld [vmem:[#allocation2 + $0x200] sm:$0xff]
    %v126 = vld [vmem:[#allocation2 + $0x208] sm:$0xff]
    %v127 = vld [vmem:[#allocation2 + $0x210] sm:$0xff]
    %v128 = vld [vmem:[#allocation2 + $0x218] sm:$0xff]
    %v129 = vld [vmem:[#allocation2 + $0x220] sm:$0xff]
    %v130 = vld [vmem:[#allocation2 + $0x228] sm:$0xff]
    %v131 = vld [vmem:[#allocation2 + $0x230] sm:$0xff]
    %v132 = vld [vmem:[#allocation2 + $0x238] sm:$0xff]
    %v133 = vld [vmem:[#allocation2 + $0x240] sm:$0xff]
    %v134 = vld [vmem:[#allocation2 + $0x248] sm:$0xff]
    %v135 = vld [vmem:[#allocation2 + $0x250] sm:$0xff]
    %v136 = vld [vmem:[#allocation2 + $0x258] sm:$0xff]
    %v137 = vld [vmem:[#allocation2 + $0x260] sm:$0xff]
    %v138 = vld [vmem:[#allocation2 + $0x268] sm:$0xff]
    %v139 = vld [vmem:[#allocation2 + $0x270] sm:$0xff]
    %v140 = vld [vmem:[#allocation2 + $0x278] sm:$0xff]
    %v141 = vld [vmem:[#allocation2 + $0x280] sm:$0xff]
    %v142 = vld [vmem:[#allocation2 + $0x288] sm:$0xff]
    %v143 = vld [vmem:[#allocation2 + $0x290] sm:$0xff]
    %v144 = vld [vmem:[#allocation2 + $0x298] sm:$0xff]
    %v145 = vld [vmem:[#allocation2 + $0x2a0] sm:$0xff]
    %v146 = vld [vmem:[#allocation2 + $0x2a8] sm:$0xff]
    %v147 = vld [vmem:[#allocation2 + $0x2b0] sm:$0xff]
    %v148 = vld [vmem:[#allocation2 + $0x2b8] sm:$0xff]
    %v149 = vld [vmem:[#allocation2 + $0x2c0] sm:$0xff]
    %v150 = vld [vmem:[#allocation2 + $0x2c8] sm:$0xff]
    %v151 = vld [vmem:[#allocation2 + $0x2d0] sm:$0xff]
    %v152 = vld [vmem:[#allocation2 + $0x2d8] sm:$0xff]
    %v153 = vld [vmem:[#allocation2 + $0x2e0] sm:$0xff]
    %v154 = vld [vmem:[#allocation2 + $0x2e8] sm:$0xff]
    %v155 = vld [vmem:[#allocation2 + $0x2f0] sm:$0xff]
    %v156 = vld [vmem:[#allocation2 + $0x2f8] sm:$0xff]
    %v157 = vld [vmem:[#allocation2 + $0x300] sm:$0xff]
    %v158 = vld [vmem:[#allocation2 + $0x308] sm:$0xff]
    %v159 = vld [vmem:[#allocation2 + $0x310] sm:$0xff]
    %v160 = vld [vmem:[#allocation2 + $0x318] sm:$0xff]
    %v161 = vld [vmem:[#allocation2 + $0x320] sm:$0xff]
    %v162 = vld [vmem:[#allocation2 + $0x328] sm:$0xff]
    %v163 = vld [vmem:[#allocation2 + $0x330] sm:$0xff]
    %v164 = vld [vmem:[#allocation2 + $0x338] sm:$0xff]
    %v165 = vld [vmem:[#allocation2 + $0x340] sm:$0xff]
    %v166 = vld [vmem:[#allocation2 + $0x348] sm:$0xff]
    %v167 = vld [vmem:[#allocation2 + $0x350] sm:$0xff]
    %v168 = vld [vmem:[#allocation2 + $0x358] sm:$0xff]
    %v169 = vld [vmem:[#allocation2 + $0x360] sm:$0xff]
    %v170 = vld [vmem:[#allocation2 + $0x368] sm:$0xff]
    %v171 = vld [vmem:[#allocation2 + $0x370] sm:$0xff]
    %v172 = vld [vmem:[#allocation2 + $0x378] sm:$0xff]
    %v173 = vld [vmem:[#allocation2 + $0x380] sm:$0xff]
    %v174 = vld [vmem:[#allocation2 + $0x388] sm:$0xff]
    %v175 = vld [vmem:[#allocation2 + $0x390] sm:$0xff]
    %v176 = vld [vmem:[#allocation2 + $0x398] sm:$0xff]
    %v177 = vld [vmem:[#allocation2 + $0x3a0] sm:$0xff]
    %v178 = vld [vmem:[#allocation2 + $0x3a8] sm:$0xff]
    %v179 = vld [vmem:[#allocation2 + $0x3b0] sm:$0xff]
    %v180 = vld [vmem:[#allocation2 + $0x3b8] sm:$0xff]
    %v181 = vld [vmem:[#allocation2 + $0x3c0] sm:$0xff]
    %v182 = vld [vmem:[#allocation2 + $0x3c8] sm:$0xff]
    %v183 = vld [vmem:[#allocation2 + $0x3d0] sm:$0xff]
    %v184 = vld [vmem:[#allocation2 + $0x3d8] sm:$0xff]
    %v185 = vld [vmem:[#allocation2 + $0x3e0] sm:$0xff]
    %v186 = vld [vmem:[#allocation2 + $0x3e8] sm:$0xff]
    %v187 = vld [vmem:[#allocation2 + $0x3f0] sm:$0xff]
    %v188 = vld [vmem:[#allocation2 + $0x3f8] sm:$0xff]
    %v189 = vld [vmem:[#allocation4] sm:$0xff]
    %v190 = vld [vmem:[#allocation4 + $0x8] sm:$0xff]
    %v191 = vld [vmem:[#allocation4 + $0x10] sm:$0xff]
    %v192 = vld [vmem:[#allocation4 + $0x18] sm:$0xff]
    %v193 = vld [vmem:[#allocation4 + $0x20] sm:$0xff]
    %v194 = vld [vmem:[#allocation4 + $0x28] sm:$0xff]
    %v195 = vld [vmem:[#allocation4 + $0x30] sm:$0xff]
    %v196 = vld [vmem:[#allocation4 + $0x38] sm:$0xff]
    %v197 = vld [vmem:[#allocation4 + $0x40] sm:$0xff]
    %v198 = vld [vmem:[#allocation4 + $0x48] sm:$0xff]
    %v199 = vld [vmem:[#allocation4 + $0x50] sm:$0xff]
    %v200 = vld [vmem:[#allocation4 + $0x58] sm:$0xff]
    %v201 = vld [vmem:[%s2] sm:$0x1]
    %v203 = vlaneseq
    %v204 = vshrl.u32 %v203, 7
    %v205 = vsub.s32 0, %v204
    %v206 = vrot.slane %v201, %v205
    %vm208 = vcmask 785408
    %v210 = vsel %vm208, %v61, 0
    %v213 = vsel %vm208, %v62, 0
    %v216 = vsel %vm208, %v63, 0
    %v219 = vsel %vm208, %v64, 0
    %v222 = vsel %vm208, %v65, 0
    %v225 = vsel %vm208, %v66, 0
    %v228 = vsel %vm208, %v67, 0
    %v231 = vsel %vm208, %v68, 0
    %v234 = vsel %vm208, %v69, 0
    %v237 = vsel %vm208, %v70, 0
    %v240 = vsel %vm208, %v71, 0
    %v243 = vsel %vm208, %v72, 0
    %v246 = vsel %vm208, %v73, 0
    %v249 = vsel %vm208, %v74, 0
    %v252 = vsel %vm208, %v75, 0
    %v255 = vsel %vm208, %v76, 0
    %v258 = vsel %vm208, %v77, 0
    %v261 = vsel %vm208, %v78, 0
    %v264 = vsel %vm208, %v79, 0
    %v267 = vsel %vm208, %v80, 0
    %v270 = vsel %vm208, %v81, 0
    %v273 = vsel %vm208, %v82, 0
    %v276 = vsel %vm208, %v83, 0
    %v279 = vsel %vm208, %v84, 0
    %v282 = vsel %vm208, %v85, 0
    %v285 = vsel %vm208, %v86, 0
    %v288 = vsel %vm208, %v87, 0
    %v291 = vsel %vm208, %v88, 0
    %v294 = vsel %vm208, %v89, 0
    %v297 = vsel %vm208, %v90, 0
    %v300 = vsel %vm208, %v91, 0
    %v303 = vsel %vm208, %v92, 0
    %v306 = vsel %vm208, %v93, 0
    %v309 = vsel %vm208, %v94, 0
    %v312 = vsel %vm208, %v95, 0
    %v315 = vsel %vm208, %v96, 0
    %v318 = vsel %vm208, %v97, 0
    %v321 = vsel %vm208, %v98, 0
    %v324 = vsel %vm208, %v99, 0
    %v327 = vsel %vm208, %v100, 0
    %v330 = vsel %vm208, %v101, 0
    %v333 = vsel %vm208, %v102, 0
    %v336 = vsel %vm208, %v103, 0
    %v339 = vsel %vm208, %v104, 0
    %v342 = vsel %vm208, %v105, 0
    %v345 = vsel %vm208, %v106, 0
    %v348 = vsel %vm208, %v107, 0
    %v351 = vsel %vm208, %v108, 0
    %v354 = vsel %vm208, %v109, 0
    %v357 = vsel %vm208, %v110, 0
    %v360 = vsel %vm208, %v111, 0
    %v363 = vsel %vm208, %v112, 0
    %v366 = vsel %vm208, %v113, 0
    %v369 = vsel %vm208, %v114, 0
    %v372 = vsel %vm208, %v115, 0
    %v375 = vsel %vm208, %v116, 0
    %v378 = vsel %vm208, %v117, 0
    %v381 = vsel %vm208, %v118, 0
    %v384 = vsel %vm208, %v119, 0
    %v387 = vsel %vm208, %v120, 0
    %v390 = vsel %vm208, %v121, 0
    %v393 = vsel %vm208, %v122, 0
    %v396 = vsel %vm208, %v123, 0
    %v399 = vsel %vm208, %v124, 0
    %v402 = vsel %vm208, %v125, 0
    %v405 = vsel %vm208, %v126, 0
    %v408 = vsel %vm208, %v127, 0
    %v411 = vsel %vm208, %v128, 0
    %v414 = vsel %vm208, %v129, 0
    %v417 = vsel %vm208, %v130, 0
    %v420 = vsel %vm208, %v131, 0
    %v423 = vsel %vm208, %v132, 0
    %v426 = vsel %vm208, %v133, 0
    %v429 = vsel %vm208, %v134, 0
    %v432 = vsel %vm208, %v135, 0
    %v435 = vsel %vm208, %v136, 0
    %v438 = vsel %vm208, %v137, 0
    %v441 = vsel %vm208, %v138, 0
    %v444 = vsel %vm208, %v139, 0
    %v447 = vsel %vm208, %v140, 0
    %v450 = vsel %vm208, %v141, 0
    %v453 = vsel %vm208, %v142, 0
    %v456 = vsel %vm208, %v143, 0
    %v459 = vsel %vm208, %v144, 0
    %v462 = vsel %vm208, %v145, 0
    %v465 = vsel %vm208, %v146, 0
    %v468 = vsel %vm208, %v147, 0
    %v471 = vsel %vm208, %v148, 0
    %v474 = vsel %vm208, %v149, 0
    %v477 = vsel %vm208, %v150, 0
    %v480 = vsel %vm208, %v151, 0
    %v483 = vsel %vm208, %v152, 0
    %v486 = vsel %vm208, %v153, 0
    %v489 = vsel %vm208, %v154, 0
    %v492 = vsel %vm208, %v155, 0
    %v495 = vsel %vm208, %v156, 0
    %v498 = vsel %vm208, %v157, 0
    %v501 = vsel %vm208, %v158, 0
    %v504 = vsel %vm208, %v159, 0
    %v507 = vsel %vm208, %v160, 0
    %v510 = vsel %vm208, %v161, 0
    %v513 = vsel %vm208, %v162, 0
    %v516 = vsel %vm208, %v163, 0
    %v519 = vsel %vm208, %v164, 0
    %v522 = vsel %vm208, %v165, 0
    %v525 = vsel %vm208, %v166, 0
    %v528 = vsel %vm208, %v167, 0
    %v531 = vsel %vm208, %v168, 0
    %v534 = vsel %vm208, %v169, 0
    %v537 = vsel %vm208, %v170, 0
    %v540 = vsel %vm208, %v171, 0
    %v543 = vsel %vm208, %v172, 0
    %v546 = vsel %vm208, %v173, 0
    %v549 = vsel %vm208, %v174, 0
    %v552 = vsel %vm208, %v175, 0
    %v555 = vsel %vm208, %v176, 0
    %v558 = vsel %vm208, %v177, 0
    %v561 = vsel %vm208, %v178, 0
    %v564 = vsel %vm208, %v179, 0
    %v567 = vsel %vm208, %v180, 0
    %v570 = vsel %vm208, %v181, 0
    %v573 = vsel %vm208, %v182, 0
    %v576 = vsel %vm208, %v183, 0
    %v579 = vsel %vm208, %v184, 0
    %v582 = vsel %vm208, %v185, 0
    %v585 = vsel %vm208, %v186, 0
    %v588 = vsel %vm208, %v187, 0
    %v591 = vsel %vm208, %v188, 0
    %593 = vmatprep.subr.mxu0 0.0
    %594 = vmatpush1.msra.mxu0 %v189
    %595 = vmatprep.subr.mxu0 0.0
    %596 = vmatpush1.msra.mxu0 %v190
    %597 = vmatprep.subr.mxu0 0.0
    %598 = vmatpush1.msra.mxu0 %v191
    %599 = vmatprep.subr.mxu0 0.0
    %600 = vmatpush1.msra.mxu0 %v192
    %601 = vmatprep.subr.mxu0 0.0
    %602 = vmatpush1.msra.mxu0 %v193
    %603 = vmatprep.subr.mxu0 0.0
    %604 = vmatpush1.msra.mxu0 %v194
    %605 = vmatprep.subr.mxu0 0.0
    %606 = vmatpush1.msra.mxu0 %v195
    %607 = vmatprep.subr.mxu0 0.0
    %608 = vmatpush1.msra.mxu0 %v196
    %609 = vmatprep.subr.mxu0 0.0
    %610 = vmatpush1.msra.mxu0 %v197
    %611 = vmatprep.subr.mxu0 0.0
    %612 = vmatpush1.msra.mxu0 %v198
    %613 = vmatprep.subr.mxu0 0.0
    %614 = vmatpush1.msra.mxu0 %v199
    %615 = vmatprep.subr.mxu0 0.0
    %616 = vmatpush1.msra.mxu0 %v200
    %617 = vmatprep.subr.mxu0 0.0
    %618 = vmatpush1.msra.mxu0 0.0
    %619 = vmatprep.subr.mxu0 0.0
    %620 = vmatpush1.msra.mxu0 0.0
    %621 = vmatprep.subr.mxu0 0.0
    %622 = vmatpush1.msra.mxu0 0.0
    %623 = vmatprep.subr.mxu0 0.0
    %624 = vmatpush1.msra.mxu0 0.0
    %625 = vmatprep.subr.mxu0 0.0
    %626 = vmatpush1.msra.mxu0 0.0
    %627 = vmatprep.subr.mxu0 0.0
    %628 = vmatpush1.msra.mxu0 0.0
    %629 = vmatprep.subr.mxu0 0.0
    %630 = vmatpush1.msra.mxu0 0.0
    %631 = vmatprep.subr.mxu0 0.0
    %632 = vmatpush1.msra.mxu0 0.0
    %633 = vmatprep.subr.mxu0 0.0
    %634 = vmatpush1.msra.mxu0 0.0
    %635 = vmatprep.subr.mxu0 0.0
    %636 = vmatpush1.msra.mxu0 0.0
    %637 = vmatprep.subr.mxu0 0.0
    %638 = vmatpush1.msra.mxu0 0.0
    %639 = vmatprep.subr.mxu0 0.0
    %640 = vmatpush1.msra.mxu0 0.0
    %641 = vmatprep.subr.mxu0 0.0
    %642 = vmatpush1.msra.mxu0 0.0
    %643 = vmatprep.subr.mxu0 0.0
    %644 = vmatpush1.msra.mxu0 0.0
    %645 = vmatprep.subr.mxu0 0.0
    %646 = vmatpush1.msra.mxu0 0.0
    %647 = vmatprep.subr.mxu0 0.0
    %648 = vmatpush1.msra.mxu0 0.0
    %649 = vmatprep.subr.mxu0 0.0
    %650 = vmatpush1.msra.mxu0 0.0
    %651 = vmatprep.subr.mxu0 0.0
    %652 = vmatpush1.msra.mxu0 0.0
    %653 = vmatprep.subr.mxu0 0.0
    %654 = vmatpush1.msra.mxu0 0.0
    %655 = vmatprep.subr.mxu0 0.0
    %656 = vmatpush1.msra.mxu0 0.0
    %657 = vmatprep.mubr.f32.mxu0 0.0
    %658 = vmatmul.mubr.f32.gmra.mrb[0].mxu0 %v210
    %v659 = vpop.f32.mrb[0].mxu0
    %v660 = vadd.f32 %v206, %v659
    %v661 = vpop.f32.mrb[0].mxu0
    %662 = vmatprep.mubr.f32.mxu0 0.0
    %663 = vmatmul.mubr.f32.gmra.mrb[0].mxu0 %v213
    %v664 = vpop.f32.mrb[0].mxu0
    %v665 = vadd.f32 %v206, %v664
    %v666 = vpop.f32.mrb[0].mxu0
    %667 = vmatprep.mubr.f32.mxu0 0.0
    %668 = vmatmul.mubr.f32.gmra.mrb[0].mxu0 %v216
    %v669 = vpop.f32.mrb[0].mxu0
    %v670 = vadd.f32 %v206, %v669
    %v671 = vpop.f32.mrb[0].mxu0
    %672 = vmatprep.mubr.f32.mxu0 0.0
    %673 = vmatmul.mubr.f32.gmra.mrb[0].mxu0 %v219
    %v674 = vpop.f32.mrb[0].mxu0
    %v675 = vadd.f32 %v206, %v674
    %v676 = vpop.f32.mrb[0].mxu0
    %677 = vmatprep.mubr.f32.mxu0 0.0
    %678 = vmatmul.mubr.f32.gmra.mrb[0].mxu0 %v222
    %v679 = vpop.f32.mrb[0].mxu0
    %v680 = vadd.f32 %v206, %v679
    %v681 = vpop.f32.mrb[0].mxu0
    %682 = vmatprep.mubr.f32.mxu0 0.0
    %683 = vmatmul.mubr.f32.gmra.mrb[0].mxu0 %v225
    %v684 = vpop.f32.mrb[0].mxu0
    %v685 = vadd.f32 %v206, %v684
    %v686 = vpop.f32.mrb[0].mxu0
    %687 = vmatprep.mubr.f32.mxu0 0.0
    %688 = vmatmul.mubr.f32.gmra.mrb[0].mxu0 %v228
    %v689 = vpop.f32.mrb[0].mxu0
    %v690 = vadd.f32 %v206, %v689
    %v691 = vpop.f32.mrb[0].mxu0
    %692 = vmatprep.mubr.f32.mxu0 0.0
    %693 = vmatmul.mubr.f32.gmra.mrb[0].mxu0 %v231
    %v694 = vpop.f32.mrb[0].mxu0
    %v695 = vadd.f32 %v206, %v694
    %v696 = vpop.f32.mrb[0].mxu0
    %697 = vmatprep.mubr.f32.mxu0 0.0
    %698 = vmatmul.mubr.f32.gmra.mrb[0].mxu0 %v234
    %v699 = vpop.f32.mrb[0].mxu0
    %v700 = vadd.f32 %v206, %v699
    %v701 = vpop.f32.mrb[0].mxu0
    %702 = vmatprep.mubr.f32.mxu0 0.0
    %703 = vmatmul.mubr.f32.gmra.mrb[0].mxu0 %v237
    %v704 = vpop.f32.mrb[0].mxu0
    %v705 = vadd.f32 %v206, %v704
    %v706 = vpop.f32.mrb[0].mxu0
    %707 = vmatprep.mubr.f32.mxu0 0.0
    %708 = vmatmul.mubr.f32.gmra.mrb[0].mxu0 %v240
    %v709 = vpop.f32.mrb[0].mxu0
    %v710 = vadd.f32 %v206, %v709
    %v711 = vpop.f32.mrb[0].mxu0
    %712 = vmatprep.mubr.f32.mxu0 0.0
    %713 = vmatmul.mubr.f32.gmra.mrb[0].mxu0 %v243
    %v714 = vpop.f32.mrb[0].mxu0
    %v715 = vadd.f32 %v206, %v714
    %v716 = vpop.f32.mrb[0].mxu0
    %717 = vmatprep.mubr.f32.mxu0 0.0
    %718 = vmatmul.mubr.f32.gmra.mrb[0].mxu0 %v246
    %v719 = vpop.f32.mrb[0].mxu0
    %v720 = vadd.f32 %v206, %v719
    %v721 = vpop.f32.mrb[0].mxu0
    %722 = vmatprep.mubr.f32.mxu0 0.0
    %723 = vmatmul.mubr.f32.gmra.mrb[0].mxu0 %v249
    %v724 = vpop.f32.mrb[0].mxu0
    %v725 = vadd.f32 %v206, %v724
    %v726 = vpop.f32.mrb[0].mxu0
    %727 = vmatprep.mubr.f32.mxu0 0.0
    %728 = vmatmul.mubr.f32.gmra.mrb[0].mxu0 %v252
    %v729 = vpop.f32.mrb[0].mxu0
    %v730 = vadd.f32 %v206, %v729
    %v731 = vpop.f32.mrb[0].mxu0
    %732 = vmatprep.mubr.f32.mxu0 0.0
    %733 = vmatmul.mubr.f32.gmra.mrb[0].mxu0 %v255
    %v734 = vpop.f32.mrb[0].mxu0
    %v735 = vadd.f32 %v206, %v734
    %v736 = vpop.f32.mrb[0].mxu0
    %737 = vmatprep.mubr.f32.mxu0 0.0
    %738 = vmatmul.mubr.f32.gmra.mrb[0].mxu0 %v258
    %v739 = vpop.f32.mrb[0].mxu0
    %v740 = vadd.f32 %v206, %v739
    %v741 = vpop.f32.mrb[0].mxu0
    %742 = vmatprep.mubr.f32.mxu0 0.0
    %743 = vmatmul.mubr.f32.gmra.mrb[0].mxu0 %v261
    %v744 = vpop.f32.mrb[0].mxu0
    %v745 = vadd.f32 %v206, %v744
    %v746 = vpop.f32.mrb[0].mxu0
    %747 = vmatprep.mubr.f32.mxu0 0.0
    %748 = vmatmul.mubr.f32.gmra.mrb[0].mxu0 %v264
    %v749 = vpop.f32.mrb[0].mxu0
    %v750 = vadd.f32 %v206, %v749
    %v751 = vpop.f32.mrb[0].mxu0
    %752 = vmatprep.mubr.f32.mxu0 0.0
    %753 = vmatmul.mubr.f32.gmra.mrb[0].mxu0 %v267
    %v754 = vpop.f32.mrb[0].mxu0
    %v755 = vadd.f32 %v206, %v754
    %v756 = vpop.f32.mrb[0].mxu0
    %757 = vmatprep.mubr.f32.mxu0 0.0
    %758 = vmatmul.mubr.f32.gmra.mrb[0].mxu0 %v270
    %v759 = vpop.f32.mrb[0].mxu0
    %v760 = vadd.f32 %v206, %v759
    %v761 = vpop.f32.mrb[0].mxu0
    %762 = vmatprep.mubr.f32.mxu0 0.0
    %763 = vmatmul.mubr.f32.gmra.mrb[0].mxu0 %v273
    %v764 = vpop.f32.mrb[0].mxu0
    %v765 = vadd.f32 %v206, %v764
    %v766 = vpop.f32.mrb[0].mxu0
    %767 = vmatprep.mubr.f32.mxu0 0.0
    %768 = vmatmul.mubr.f32.gmra.mrb[0].mxu0 %v276
    %v769 = vpop.f32.mrb[0].mxu0
    %v770 = vadd.f32 %v206, %v769
    %v771 = vpop.f32.mrb[0].mxu0
    %772 = vmatprep.mubr.f32.mxu0 0.0
    %773 = vmatmul.mubr.f32.gmra.mrb[0].mxu0 %v279
    %v774 = vpop.f32.mrb[0].mxu0
    %v775 = vadd.f32 %v206, %v774
    %v776 = vpop.f32.mrb[0].mxu0
    %777 = vmatprep.mubr.f32.mxu0 0.0
    %778 = vmatmul.mubr.f32.gmra.mrb[0].mxu0 %v282
    %v779 = vpop.f32.mrb[0].mxu0
    %v780 = vadd.f32 %v206, %v779
    %v781 = vpop.f32.mrb[0].mxu0
    %782 = vmatprep.mubr.f32.mxu0 0.0
    %783 = vmatmul.mubr.f32.gmra.mrb[0].mxu0 %v285
    %v784 = vpop.f32.mrb[0].mxu0
    %v785 = vadd.f32 %v206, %v784
    %v786 = vpop.f32.mrb[0].mxu0
    %787 = vmatprep.mubr.f32.mxu0 0.0
    %788 = vmatmul.mubr.f32.gmra.mrb[0].mxu0 %v288
    %v789 = vpop.f32.mrb[0].mxu0
    %v790 = vadd.f32 %v206, %v789
    %v791 = vpop.f32.mrb[0].mxu0
    %792 = vmatprep.mubr.f32.mxu0 0.0
    %793 = vmatmul.mubr.f32.gmra.mrb[0].mxu0 %v291
    %v794 = vpop.f32.mrb[0].mxu0
    %v795 = vadd.f32 %v206, %v794
    %v796 = vpop.f32.mrb[0].mxu0
    %797 = vmatprep.mubr.f32.mxu0 0.0
    %798 = vmatmul.mubr.f32.gmra.mrb[0].mxu0 %v294
    %v799 = vpop.f32.mrb[0].mxu0
    %v800 = vadd.f32 %v206, %v799
    %v801 = vpop.f32.mrb[0].mxu0
    %802 = vmatprep.mubr.f32.mxu0 0.0
    %803 = vmatmul.mubr.f32.gmra.mrb[0].mxu0 %v297
    %v804 = vpop.f32.mrb[0].mxu0
    %v805 = vadd.f32 %v206, %v804
    %v806 = vpop.f32.mrb[0].mxu0
    %807 = vmatprep.mubr.f32.mxu0 0.0
    %808 = vmatmul.mubr.f32.gmra.mrb[0].mxu0 %v300
    %v809 = vpop.f32.mrb[0].mxu0
    %v810 = vadd.f32 %v206, %v809
    %v811 = vpop.f32.mrb[0].mxu0
    %812 = vmatprep.mubr.f32.mxu0 0.0
    %813 = vmatmul.mubr.f32.gmra.mrb[0].mxu0 %v303
    %v814 = vpop.f32.mrb[0].mxu0
    %v815 = vadd.f32 %v206, %v814
    %v816 = vpop.f32.mrb[0].mxu0
    %817 = vmatprep.mubr.f32.mxu0 0.0
    %818 = vmatmul.mubr.f32.gmra.mrb[0].mxu0 %v306
    %v819 = vpop.f32.mrb[0].mxu0
    %v820 = vadd.f32 %v206, %v819
    %v821 = vpop.f32.mrb[0].mxu0
    %822 = vmatprep.mubr.f32.mxu0 0.0
    %823 = vmatmul.mubr.f32.gmra.mrb[0].mxu0 %v309
    %v824 = vpop.f32.mrb[0].mxu0
    %v825 = vadd.f32 %v206, %v824
    %v826 = vpop.f32.mrb[0].mxu0
    %827 = vmatprep.mubr.f32.mxu0 0.0
    %828 = vmatmul.mubr.f32.gmra.mrb[0].mxu0 %v312
    %v829 = vpop.f32.mrb[0].mxu0
    %v830 = vadd.f32 %v206, %v829
    %v831 = vpop.f32.mrb[0].mxu0
    %832 = vmatprep.mubr.f32.mxu0 0.0
    %833 = vmatmul.mubr.f32.gmra.mrb[0].mxu0 %v315
    %v834 = vpop.f32.mrb[0].mxu0
    %v835 = vadd.f32 %v206, %v834
    %v836 = vpop.f32.mrb[0].mxu0
    %837 = vmatprep.mubr.f32.mxu0 0.0
    %838 = vmatmul.mubr.f32.gmra.mrb[0].mxu0 %v318
    %v839 = vpop.f32.mrb[0].mxu0
    %v840 = vadd.f32 %v206, %v839
    %v841 = vpop.f32.mrb[0].mxu0
    %842 = vmatprep.mubr.f32.mxu0 0.0
    %843 = vmatmul.mubr.f32.gmra.mrb[0].mxu0 %v321
    %v844 = vpop.f32.mrb[0].mxu0
    %v845 = vadd.f32 %v206, %v844
    %v846 = vpop.f32.mrb[0].mxu0
    %847 = vmatprep.mubr.f32.mxu0 0.0
    %848 = vmatmul.mubr.f32.gmra.mrb[0].mxu0 %v324
    %v849 = vpop.f32.mrb[0].mxu0
    %v850 = vadd.f32 %v206, %v849
    %v851 = vpop.f32.mrb[0].mxu0
    %852 = vmatprep.mubr.f32.mxu0 0.0
    %853 = vmatmul.mubr.f32.gmra.mrb[0].mxu0 %v327
    %v854 = vpop.f32.mrb[0].mxu0
    %v855 = vadd.f32 %v206, %v854
    %v856 = vpop.f32.mrb[0].mxu0
    %857 = vmatprep.mubr.f32.mxu0 0.0
    %858 = vmatmul.mubr.f32.gmra.mrb[0].mxu0 %v330
    %v859 = vpop.f32.mrb[0].mxu0
    %v860 = vadd.f32 %v206, %v859
    %v861 = vpop.f32.mrb[0].mxu0
    %862 = vmatprep.mubr.f32.mxu0 0.0
    %863 = vmatmul.mubr.f32.gmra.mrb[0].mxu0 %v333
    %v864 = vpop.f32.mrb[0].mxu0
    %v865 = vadd.f32 %v206, %v864
    %v866 = vpop.f32.mrb[0].mxu0
    %867 = vmatprep.mubr.f32.mxu0 0.0
    %868 = vmatmul.mubr.f32.gmra.mrb[0].mxu0 %v336
    %v869 = vpop.f32.mrb[0].mxu0
    %v870 = vadd.f32 %v206, %v869
    %v871 = vpop.f32.mrb[0].mxu0
    %872 = vmatprep.mubr.f32.mxu0 0.0
    %873 = vmatmul.mubr.f32.gmra.mrb[0].mxu0 %v339
    %v874 = vpop.f32.mrb[0].mxu0
    %v875 = vadd.f32 %v206, %v874
    %v876 = vpop.f32.mrb[0].mxu0
    %877 = vmatprep.mubr.f32.mxu0 0.0
    %878 = vmatmul.mubr.f32.gmra.mrb[0].mxu0 %v342
    %v879 = vpop.f32.mrb[0].mxu0
    %v880 = vadd.f32 %v206, %v879
    %v881 = vpop.f32.mrb[0].mxu0
    %882 = vmatprep.mubr.f32.mxu0 0.0
    %883 = vmatmul.mubr.f32.gmra.mrb[0].mxu0 %v345
    %v884 = vpop.f32.mrb[0].mxu0
    %v885 = vadd.f32 %v206, %v884
    %v886 = vpop.f32.mrb[0].mxu0
    %887 = vmatprep.mubr.f32.mxu0 0.0
    %888 = vmatmul.mubr.f32.gmra.mrb[0].mxu0 %v348
    %v889 = vpop.f32.mrb[0].mxu0
    %v890 = vadd.f32 %v206, %v889
    %v891 = vpop.f32.mrb[0].mxu0
    %892 = vmatprep.mubr.f32.mxu0 0.0
    %893 = vmatmul.mubr.f32.gmra.mrb[0].mxu0 %v351
    %v894 = vpop.f32.mrb[0].mxu0
    %v895 = vadd.f32 %v206, %v894
    %v896 = vpop.f32.mrb[0].mxu0
    %897 = vmatprep.mubr.f32.mxu0 0.0
    %898 = vmatmul.mubr.f32.gmra.mrb[0].mxu0 %v354
    %v899 = vpop.f32.mrb[0].mxu0
    %v900 = vadd.f32 %v206, %v899
    %v901 = vpop.f32.mrb[0].mxu0
    %902 = vmatprep.mubr.f32.mxu0 0.0
    %903 = vmatmul.mubr.f32.gmra.mrb[0].mxu0 %v357
    %v904 = vpop.f32.mrb[0].mxu0
    %v905 = vadd.f32 %v206, %v904
    %v906 = vpop.f32.mrb[0].mxu0
    %907 = vmatprep.mubr.f32.mxu0 0.0
    %908 = vmatmul.mubr.f32.gmra.mrb[0].mxu0 %v360
    %v909 = vpop.f32.mrb[0].mxu0
    %v910 = vadd.f32 %v206, %v909
    %v911 = vpop.f32.mrb[0].mxu0
    %912 = vmatprep.mubr.f32.mxu0 0.0
    %913 = vmatmul.mubr.f32.gmra.mrb[0].mxu0 %v363
    %v914 = vpop.f32.mrb[0].mxu0
    %v915 = vadd.f32 %v206, %v914
    %v916 = vpop.f32.mrb[0].mxu0
    %917 = vmatprep.mubr.f32.mxu0 0.0
    %918 = vmatmul.mubr.f32.gmra.mrb[0].mxu0 %v366
    %v919 = vpop.f32.mrb[0].mxu0
    %v920 = vadd.f32 %v206, %v919
    %v921 = vpop.f32.mrb[0].mxu0
    %922 = vmatprep.mubr.f32.mxu0 0.0
    %923 = vmatmul.mubr.f32.gmra.mrb[0].mxu0 %v369
    %v924 = vpop.f32.mrb[0].mxu0
    %v925 = vadd.f32 %v206, %v924
    %v926 = vpop.f32.mrb[0].mxu0
    %927 = vmatprep.mubr.f32.mxu0 0.0
    %928 = vmatmul.mubr.f32.gmra.mrb[0].mxu0 %v372
    %v929 = vpop.f32.mrb[0].mxu0
    %v930 = vadd.f32 %v206, %v929
    %v931 = vpop.f32.mrb[0].mxu0
    %932 = vmatprep.mubr.f32.mxu0 0.0
    %933 = vmatmul.mubr.f32.gmra.mrb[0].mxu0 %v375
    %v934 = vpop.f32.mrb[0].mxu0
    %v935 = vadd.f32 %v206, %v934
    %v936 = vpop.f32.mrb[0].mxu0
    %937 = vmatprep.mubr.f32.mxu0 0.0
    %938 = vmatmul.mubr.f32.gmra.mrb[0].mxu0 %v378
    %v939 = vpop.f32.mrb[0].mxu0
    %v940 = vadd.f32 %v206, %v939
    %v941 = vpop.f32.mrb[0].mxu0
    %942 = vmatprep.mubr.f32.mxu0 0.0
    %943 = vmatmul.mubr.f32.gmra.mrb[0].mxu0 %v381
    %v944 = vpop.f32.mrb[0].mxu0
    %v945 = vadd.f32 %v206, %v944
    %v946 = vpop.f32.mrb[0].mxu0
    %947 = vmatprep.mubr.f32.mxu0 0.0
    %948 = vmatmul.mubr.f32.gmra.mrb[0].mxu0 %v384
    %v949 = vpop.f32.mrb[0].mxu0
    %v950 = vadd.f32 %v206, %v949
    %v951 = vpop.f32.mrb[0].mxu0
    %952 = vmatprep.mubr.f32.mxu0 0.0
    %953 = vmatmul.mubr.f32.gmra.mrb[0].mxu0 %v387
    %v954 = vpop.f32.mrb[0].mxu0
    %v955 = vadd.f32 %v206, %v954
    %v956 = vpop.f32.mrb[0].mxu0
    %957 = vmatprep.mubr.f32.mxu0 0.0
    %958 = vmatmul.mubr.f32.gmra.mrb[0].mxu0 %v390
    %v959 = vpop.f32.mrb[0].mxu0
    %v960 = vadd.f32 %v206, %v959
    %v961 = vpop.f32.mrb[0].mxu0
    %962 = vmatprep.mubr.f32.mxu0 0.0
    %963 = vmatmul.mubr.f32.gmra.mrb[0].mxu0 %v393
    %v964 = vpop.f32.mrb[0].mxu0
    %v965 = vadd.f32 %v206, %v964
    %v966 = vpop.f32.mrb[0].mxu0
    %967 = vmatprep.mubr.f32.mxu0 0.0
    %968 = vmatmul.mubr.f32.gmra.mrb[0].mxu0 %v396
    %v969 = vpop.f32.mrb[0].mxu0
    %v970 = vadd.f32 %v206, %v969
    %v971 = vpop.f32.mrb[0].mxu0
    %972 = vmatprep.mubr.f32.mxu0 0.0
    %973 = vmatmul.mubr.f32.gmra.mrb[0].mxu0 %v399
    %v974 = vpop.f32.mrb[0].mxu0
    %v975 = vadd.f32 %v206, %v974
    %v976 = vpop.f32.mrb[0].mxu0
    %977 = vmatprep.mubr.f32.mxu0 0.0
    %978 = vmatmul.mubr.f32.gmra.mrb[0].mxu0 %v402
    %v979 = vpop.f32.mrb[0].mxu0
    %v980 = vadd.f32 %v206, %v979
    %v981 = vpop.f32.mrb[0].mxu0
    %982 = vmatprep.mubr.f32.mxu0 0.0
    %983 = vmatmul.mubr.f32.gmra.mrb[0].mxu0 %v405
    %v984 = vpop.f32.mrb[0].mxu0
    %v985 = vadd.f32 %v206, %v984
    %v986 = vpop.f32.mrb[0].mxu0
    %987 = vmatprep.mubr.f32.mxu0 0.0
    %988 = vmatmul.mubr.f32.gmra.mrb[0].mxu0 %v408
    %v989 = vpop.f32.mrb[0].mxu0
    %v990 = vadd.f32 %v206, %v989
    %v991 = vpop.f32.mrb[0].mxu0
    %992 = vmatprep.mubr.f32.mxu0 0.0
    %993 = vmatmul.mubr.f32.gmra.mrb[0].mxu0 %v411
    %v994 = vpop.f32.mrb[0].mxu0
    %v995 = vadd.f32 %v206, %v994
    %v996 = vpop.f32.mrb[0].mxu0
    %997 = vmatprep.mubr.f32.mxu0 0.0
    %998 = vmatmul.mubr.f32.gmra.mrb[0].mxu0 %v414
    %v999 = vpop.f32.mrb[0].mxu0
    %v1000 = vadd.f32 %v206, %v999
    %v1001 = vpop.f32.mrb[0].mxu0
    %1002 = vmatprep.mubr.f32.mxu0 0.0
    %1003 = vmatmul.mubr.f32.gmra.mrb[0].mxu0 %v417
    %v1004 = vpop.f32.mrb[0].mxu0
    %v1005 = vadd.f32 %v206, %v1004
    %v1006 = vpop.f32.mrb[0].mxu0
    %1007 = vmatprep.mubr.f32.mxu0 0.0
    %1008 = vmatmul.mubr.f32.gmra.mrb[0].mxu0 %v420
    %v1009 = vpop.f32.mrb[0].mxu0
    %v1010 = vadd.f32 %v206, %v1009
    %v1011 = vpop.f32.mrb[0].mxu0
    %1012 = vmatprep.mubr.f32.mxu0 0.0
    %1013 = vmatmul.mubr.f32.gmra.mrb[0].mxu0 %v423
    %v1014 = vpop.f32.mrb[0].mxu0
    %v1015 = vadd.f32 %v206, %v1014
    %v1016 = vpop.f32.mrb[0].mxu0
    %1017 = vmatprep.mubr.f32.mxu0 0.0
    %1018 = vmatmul.mubr.f32.gmra.mrb[0].mxu0 %v426
    %v1019 = vpop.f32.mrb[0].mxu0
    %v1020 = vadd.f32 %v206, %v1019
    %v1021 = vpop.f32.mrb[0].mxu0
    %1022 = vmatprep.mubr.f32.mxu0 0.0
    %1023 = vmatmul.mubr.f32.gmra.mrb[0].mxu0 %v429
    %v1024 = vpop.f32.mrb[0].mxu0
    %v1025 = vadd.f32 %v206, %v1024
    %v1026 = vpop.f32.mrb[0].mxu0
    %1027 = vmatprep.mubr.f32.mxu0 0.0
    %1028 = vmatmul.mubr.f32.gmra.mrb[0].mxu0 %v432
    %v1029 = vpop.f32.mrb[0].mxu0
    %v1030 = vadd.f32 %v206, %v1029
    %v1031 = vpop.f32.mrb[0].mxu0
    %1032 = vmatprep.mubr.f32.mxu0 0.0
    %1033 = vmatmul.mubr.f32.gmra.mrb[0].mxu0 %v435
    %v1034 = vpop.f32.mrb[0].mxu0
    %v1035 = vadd.f32 %v206, %v1034
    %v1036 = vpop.f32.mrb[0].mxu0
    %1037 = vmatprep.mubr.f32.mxu0 0.0
    %1038 = vmatmul.mubr.f32.gmra.mrb[0].mxu0 %v438
    %v1039 = vpop.f32.mrb[0].mxu0
    %v1040 = vadd.f32 %v206, %v1039
    %v1041 = vpop.f32.mrb[0].mxu0
    %1042 = vmatprep.mubr.f32.mxu0 0.0
    %1043 = vmatmul.mubr.f32.gmra.mrb[0].mxu0 %v441
    %v1044 = vpop.f32.mrb[0].mxu0
    %v1045 = vadd.f32 %v206, %v1044
    %v1046 = vpop.f32.mrb[0].mxu0
    %1047 = vmatprep.mubr.f32.mxu0 0.0
    %1048 = vmatmul.mubr.f32.gmra.mrb[0].mxu0 %v444
    %v1049 = vpop.f32.mrb[0].mxu0
    %v1050 = vadd.f32 %v206, %v1049
    %v1051 = vpop.f32.mrb[0].mxu0
    %1052 = vmatprep.mubr.f32.mxu0 0.0
    %1053 = vmatmul.mubr.f32.gmra.mrb[0].mxu0 %v447
    %v1054 = vpop.f32.mrb[0].mxu0
    %v1055 = vadd.f32 %v206, %v1054
    %v1056 = vpop.f32.mrb[0].mxu0
    %1057 = vmatprep.mubr.f32.mxu0 0.0
    %1058 = vmatmul.mubr.f32.gmra.mrb[0].mxu0 %v450
    %v1059 = vpop.f32.mrb[0].mxu0
    %v1060 = vadd.f32 %v206, %v1059
    %v1061 = vpop.f32.mrb[0].mxu0
    %1062 = vmatprep.mubr.f32.mxu0 0.0
    %1063 = vmatmul.mubr.f32.gmra.mrb[0].mxu0 %v453
    %v1064 = vpop.f32.mrb[0].mxu0
    %v1065 = vadd.f32 %v206, %v1064
    %v1066 = vpop.f32.mrb[0].mxu0
    %1067 = vmatprep.mubr.f32.mxu0 0.0
    %1068 = vmatmul.mubr.f32.gmra.mrb[0].mxu0 %v456
    %v1069 = vpop.f32.mrb[0].mxu0
    %v1070 = vadd.f32 %v206, %v1069
    %v1071 = vpop.f32.mrb[0].mxu0
    %1072 = vmatprep.mubr.f32.mxu0 0.0
    %1073 = vmatmul.mubr.f32.gmra.mrb[0].mxu0 %v459
    %v1074 = vpop.f32.mrb[0].mxu0
    %v1075 = vadd.f32 %v206, %v1074
    %v1076 = vpop.f32.mrb[0].mxu0
    %1077 = vmatprep.mubr.f32.mxu0 0.0
    %1078 = vmatmul.mubr.f32.gmra.mrb[0].mxu0 %v462
    %v1079 = vpop.f32.mrb[0].mxu0
    %v1080 = vadd.f32 %v206, %v1079
    %v1081 = vpop.f32.mrb[0].mxu0
    %1082 = vmatprep.mubr.f32.mxu0 0.0
    %1083 = vmatmul.mubr.f32.gmra.mrb[0].mxu0 %v465
    %v1084 = vpop.f32.mrb[0].mxu0
    %v1085 = vadd.f32 %v206, %v1084
    %v1086 = vpop.f32.mrb[0].mxu0
    %1087 = vmatprep.mubr.f32.mxu0 0.0
    %1088 = vmatmul.mubr.f32.gmra.mrb[0].mxu0 %v468
    %v1089 = vpop.f32.mrb[0].mxu0
    %v1090 = vadd.f32 %v206, %v1089
    %v1091 = vpop.f32.mrb[0].mxu0
    %1092 = vmatprep.mubr.f32.mxu0 0.0
    %1093 = vmatmul.mubr.f32.gmra.mrb[0].mxu0 %v471
    %v1094 = vpop.f32.mrb[0].mxu0
    %v1095 = vadd.f32 %v206, %v1094
    %v1096 = vpop.f32.mrb[0].mxu0
    %1097 = vmatprep.mubr.f32.mxu0 0.0
    %1098 = vmatmul.mubr.f32.gmra.mrb[0].mxu0 %v474
    %v1099 = vpop.f32.mrb[0].mxu0
    %v1100 = vadd.f32 %v206, %v1099
    %v1101 = vpop.f32.mrb[0].mxu0
    %1102 = vmatprep.mubr.f32.mxu0 0.0
    %1103 = vmatmul.mubr.f32.gmra.mrb[0].mxu0 %v477
    %v1104 = vpop.f32.mrb[0].mxu0
    %v1105 = vadd.f32 %v206, %v1104
    %v1106 = vpop.f32.mrb[0].mxu0
    %1107 = vmatprep.mubr.f32.mxu0 0.0
    %1108 = vmatmul.mubr.f32.gmra.mrb[0].mxu0 %v480
    %v1109 = vpop.f32.mrb[0].mxu0
    %v1110 = vadd.f32 %v206, %v1109
    %v1111 = vpop.f32.mrb[0].mxu0
    %1112 = vmatprep.mubr.f32.mxu0 0.0
    %1113 = vmatmul.mubr.f32.gmra.mrb[0].mxu0 %v483
    %v1114 = vpop.f32.mrb[0].mxu0
    %v1115 = vadd.f32 %v206, %v1114
    %v1116 = vpop.f32.mrb[0].mxu0
    %1117 = vmatprep.mubr.f32.mxu0 0.0
    %1118 = vmatmul.mubr.f32.gmra.mrb[0].mxu0 %v486
    %v1119 = vpop.f32.mrb[0].mxu0
    %v1120 = vadd.f32 %v206, %v1119
    %v1121 = vpop.f32.mrb[0].mxu0
    %1122 = vmatprep.mubr.f32.mxu0 0.0
    %1123 = vmatmul.mubr.f32.gmra.mrb[0].mxu0 %v489
    %v1124 = vpop.f32.mrb[0].mxu0
    %v1125 = vadd.f32 %v206, %v1124
    %v1126 = vpop.f32.mrb[0].mxu0
    %1127 = vmatprep.mubr.f32.mxu0 0.0
    %1128 = vmatmul.mubr.f32.gmra.mrb[0].mxu0 %v492
    %v1129 = vpop.f32.mrb[0].mxu0
    %v1130 = vadd.f32 %v206, %v1129
    %v1131 = vpop.f32.mrb[0].mxu0
    %1132 = vmatprep.mubr.f32.mxu0 0.0
    %1133 = vmatmul.mubr.f32.gmra.mrb[0].mxu0 %v495
    %v1134 = vpop.f32.mrb[0].mxu0
    %v1135 = vadd.f32 %v206, %v1134
    %v1136 = vpop.f32.mrb[0].mxu0
    %1137 = vmatprep.mubr.f32.mxu0 0.0
    %1138 = vmatmul.mubr.f32.gmra.mrb[0].mxu0 %v498
    %v1139 = vpop.f32.mrb[0].mxu0
    %v1140 = vadd.f32 %v206, %v1139
    %v1141 = vpop.f32.mrb[0].mxu0
    %1142 = vmatprep.mubr.f32.mxu0 0.0
    %1143 = vmatmul.mubr.f32.gmra.mrb[0].mxu0 %v501
    %v1144 = vpop.f32.mrb[0].mxu0
    %v1145 = vadd.f32 %v206, %v1144
    %v1146 = vpop.f32.mrb[0].mxu0
    %1147 = vmatprep.mubr.f32.mxu0 0.0
    %1148 = vmatmul.mubr.f32.gmra.mrb[0].mxu0 %v504
    %v1149 = vpop.f32.mrb[0].mxu0
    %v1150 = vadd.f32 %v206, %v1149
    %v1151 = vpop.f32.mrb[0].mxu0
    %1152 = vmatprep.mubr.f32.mxu0 0.0
    %1153 = vmatmul.mubr.f32.gmra.mrb[0].mxu0 %v507
    %v1154 = vpop.f32.mrb[0].mxu0
    %v1155 = vadd.f32 %v206, %v1154
    %v1156 = vpop.f32.mrb[0].mxu0
    %1157 = vmatprep.mubr.f32.mxu0 0.0
    %1158 = vmatmul.mubr.f32.gmra.mrb[0].mxu0 %v510
    %v1159 = vpop.f32.mrb[0].mxu0
    %v1160 = vadd.f32 %v206, %v1159
    %v1161 = vpop.f32.mrb[0].mxu0
    %1162 = vmatprep.mubr.f32.mxu0 0.0
    %1163 = vmatmul.mubr.f32.gmra.mrb[0].mxu0 %v513
    %v1164 = vpop.f32.mrb[0].mxu0
    %v1165 = vadd.f32 %v206, %v1164
    %v1166 = vpop.f32.mrb[0].mxu0
    %1167 = vmatprep.mubr.f32.mxu0 0.0
    %1168 = vmatmul.mubr.f32.gmra.mrb[0].mxu0 %v516
    %v1169 = vpop.f32.mrb[0].mxu0
    %v1170 = vadd.f32 %v206, %v1169
    %v1171 = vpop.f32.mrb[0].mxu0
    %1172 = vmatprep.mubr.f32.mxu0 0.0
    %1173 = vmatmul.mubr.f32.gmra.mrb[0].mxu0 %v519
    %v1174 = vpop.f32.mrb[0].mxu0
    %v1175 = vadd.f32 %v206, %v1174
    %v1176 = vpop.f32.mrb[0].mxu0
    %1177 = vmatprep.mubr.f32.mxu0 0.0
    %1178 = vmatmul.mubr.f32.gmra.mrb[0].mxu0 %v522
    %v1179 = vpop.f32.mrb[0].mxu0
    %v1180 = vadd.f32 %v206, %v1179
    %v1181 = vpop.f32.mrb[0].mxu0
    %1182 = vmatprep.mubr.f32.mxu0 0.0
    %1183 = vmatmul.mubr.f32.gmra.mrb[0].mxu0 %v525
    %v1184 = vpop.f32.mrb[0].mxu0
    %v1185 = vadd.f32 %v206, %v1184
    %v1186 = vpop.f32.mrb[0].mxu0
    %1187 = vmatprep.mubr.f32.mxu0 0.0
    %1188 = vmatmul.mubr.f32.gmra.mrb[0].mxu0 %v528
    %v1189 = vpop.f32.mrb[0].mxu0
    %v1190 = vadd.f32 %v206, %v1189
    %v1191 = vpop.f32.mrb[0].mxu0
    %1192 = vmatprep.mubr.f32.mxu0 0.0
    %1193 = vmatmul.mubr.f32.gmra.mrb[0].mxu0 %v531
    %v1194 = vpop.f32.mrb[0].mxu0
    %v1195 = vadd.f32 %v206, %v1194
    %v1196 = vpop.f32.mrb[0].mxu0
    %1197 = vmatprep.mubr.f32.mxu0 0.0
    %1198 = vmatmul.mubr.f32.gmra.mrb[0].mxu0 %v534
    %v1199 = vpop.f32.mrb[0].mxu0
    %v1200 = vadd.f32 %v206, %v1199
    %v1201 = vpop.f32.mrb[0].mxu0
    %1202 = vmatprep.mubr.f32.mxu0 0.0
    %1203 = vmatmul.mubr.f32.gmra.mrb[0].mxu0 %v537
    %v1204 = vpop.f32.mrb[0].mxu0
    %v1205 = vadd.f32 %v206, %v1204
    %v1206 = vpop.f32.mrb[0].mxu0
    %1207 = vmatprep.mubr.f32.mxu0 0.0
    %1208 = vmatmul.mubr.f32.gmra.mrb[0].mxu0 %v540
    %v1209 = vpop.f32.mrb[0].mxu0
    %v1210 = vadd.f32 %v206, %v1209
    %v1211 = vpop.f32.mrb[0].mxu0
    %1212 = vmatprep.mubr.f32.mxu0 0.0
    %1213 = vmatmul.mubr.f32.gmra.mrb[0].mxu0 %v543
    %v1214 = vpop.f32.mrb[0].mxu0
    %v1215 = vadd.f32 %v206, %v1214
    %v1216 = vpop.f32.mrb[0].mxu0
    %1217 = vmatprep.mubr.f32.mxu0 0.0
    %1218 = vmatmul.mubr.f32.gmra.mrb[0].mxu0 %v546
    %v1219 = vpop.f32.mrb[0].mxu0
    %v1220 = vadd.f32 %v206, %v1219
    %v1221 = vpop.f32.mrb[0].mxu0
    %1222 = vmatprep.mubr.f32.mxu0 0.0
    %1223 = vmatmul.mubr.f32.gmra.mrb[0].mxu0 %v549
    %v1224 = vpop.f32.mrb[0].mxu0
    %v1225 = vadd.f32 %v206, %v1224
    %v1226 = vpop.f32.mrb[0].mxu0
    %1227 = vmatprep.mubr.f32.mxu0 0.0
    %1228 = vmatmul.mubr.f32.gmra.mrb[0].mxu0 %v552
    %v1229 = vpop.f32.mrb[0].mxu0
    %v1230 = vadd.f32 %v206, %v1229
    %v1231 = vpop.f32.mrb[0].mxu0
    %1232 = vmatprep.mubr.f32.mxu0 0.0
    %1233 = vmatmul.mubr.f32.gmra.mrb[0].mxu0 %v555
    %v1234 = vpop.f32.mrb[0].mxu0
    %v1235 = vadd.f32 %v206, %v1234
    %v1236 = vpop.f32.mrb[0].mxu0
    %1237 = vmatprep.mubr.f32.mxu0 0.0
    %1238 = vmatmul.mubr.f32.gmra.mrb[0].mxu0 %v558
    %v1239 = vpop.f32.mrb[0].mxu0
    %v1240 = vadd.f32 %v206, %v1239
    %v1241 = vpop.f32.mrb[0].mxu0
    %1242 = vmatprep.mubr.f32.mxu0 0.0
    %1243 = vmatmul.mubr.f32.gmra.mrb[0].mxu0 %v561
    %v1244 = vpop.f32.mrb[0].mxu0
    %v1245 = vadd.f32 %v206, %v1244
    %v1246 = vpop.f32.mrb[0].mxu0
    %1247 = vmatprep.mubr.f32.mxu0 0.0
    %1248 = vmatmul.mubr.f32.gmra.mrb[0].mxu0 %v564
    %v1249 = vpop.f32.mrb[0].mxu0
    %v1250 = vadd.f32 %v206, %v1249
    %v1251 = vpop.f32.mrb[0].mxu0
    %1252 = vmatprep.mubr.f32.mxu0 0.0
    %1253 = vmatmul.mubr.f32.gmra.mrb[0].mxu0 %v567
    %v1254 = vpop.f32.mrb[0].mxu0
    %v1255 = vadd.f32 %v206, %v1254
    %v1256 = vpop.f32.mrb[0].mxu0
    %1257 = vmatprep.mubr.f32.mxu0 0.0
    %1258 = vmatmul.mubr.f32.gmra.mrb[0].mxu0 %v570
    %v1259 = vpop.f32.mrb[0].mxu0
    %v1260 = vadd.f32 %v206, %v1259
    %v1261 = vpop.f32.mrb[0].mxu0
    %1262 = vmatprep.mubr.f32.mxu0 0.0
    %1263 = vmatmul.mubr.f32.gmra.mrb[0].mxu0 %v573
    %v1264 = vpop.f32.mrb[0].mxu0
    %v1265 = vadd.f32 %v206, %v1264
    %v1266 = vpop.f32.mrb[0].mxu0
    %1267 = vmatprep.mubr.f32.mxu0 0.0
    %1268 = vmatmul.mubr.f32.gmra.mrb[0].mxu0 %v576
    %v1269 = vpop.f32.mrb[0].mxu0
    %v1270 = vadd.f32 %v206, %v1269
    %v1271 = vpop.f32.mrb[0].mxu0
    %1272 = vmatprep.mubr.f32.mxu0 0.0
    %1273 = vmatmul.mubr.f32.gmra.mrb[0].mxu0 %v579
    %v1274 = vpop.f32.mrb[0].mxu0
    %v1275 = vadd.f32 %v206, %v1274
    %v1276 = vpop.f32.mrb[0].mxu0
    %1277 = vmatprep.mubr.f32.mxu0 0.0
    %1278 = vmatmul.mubr.f32.gmra.mrb[0].mxu0 %v582
    %v1279 = vpop.f32.mrb[0].mxu0
    %v1280 = vadd.f32 %v206, %v1279
    %v1281 = vpop.f32.mrb[0].mxu0
    %1282 = vmatprep.mubr.f32.mxu0 0.0
    %1283 = vmatmul.mubr.f32.gmra.mrb[0].mxu0 %v585
    %v1284 = vpop.f32.mrb[0].mxu0
    %v1285 = vadd.f32 %v206, %v1284
    %v1286 = vpop.f32.mrb[0].mxu0
    %1287 = vmatprep.mubr.f32.mxu0 0.0
    %1288 = vmatmul.mubr.f32.gmra.mrb[0].mxu0 %v588
    %v1289 = vpop.f32.mrb[0].mxu0
    %v1290 = vadd.f32 %v206, %v1289
    %v1291 = vpop.f32.mrb[0].mxu0
    %1292 = vmatprep.mubr.f32.mxu0 0.0
    %1293 = vmatmul.mubr.f32.gmra.mrb[0].mxu0 %v591
    %v1294 = vpop.f32.mrb[0].mxu0
    %v1295 = vadd.f32 %v206, %v1294
    %v1296 = vpop.f32.mrb[0].mxu0
    %1297 = vdwg.mxu0
    %1302 = vrot.lane.b32.xlu0 %v660, 96
    %v1303 = vpop.permute.xlu0 %1302
    %1304 = vrot.lane.b32.xlu0 %v665, 96
    %v1305 = vpop.permute.xlu0 %1304
    %1306 = vrot.lane.b32.xlu0 %v670, 96
    %v1307 = vpop.permute.xlu0 %1306
    %1308 = vrot.lane.b32.xlu0 %v675, 96
    %v1309 = vpop.permute.xlu0 %1308
    %vm1310 = vcmask 261120
    %v1311 = vsel %vm1310, %v1303, 0
    %v1313 = vsel %vm1310, %v1305, 0
    %v1315 = vsel %vm1310, %v1307, 0
    %v1317 = vsel %vm1310, %v1309, 0
    %1319 = vmatprep.subr.mxu0 0.0
    %1320 = vmatpush1.msra.mxu0 %v660
    %1321 = vmatprep.subr.mxu0 0.0
    %1322 = vmatpush1.msra.mxu0 %v665
    %1323 = vmatprep.subr.mxu0 0.0
    %1324 = vmatpush1.msra.mxu0 %v670
    %1325 = vmatprep.subr.mxu0 0.0
    %1326 = vmatpush1.msra.mxu0 %v675
    %1327 = vmatprep.subr.mxu0 0.0
    %1328 = vmatpush1.msra.mxu0 0.0
    %1329 = vmatprep.subr.mxu0 0.0
    %1330 = vmatpush1.msra.mxu0 0.0
    %1331 = vmatprep.subr.mxu0 0.0
    %1332 = vmatpush1.msra.mxu0 0.0
    %1333 = vmatprep.subr.mxu0 0.0
    %1334 = vmatpush1.msra.mxu0 0.0
    %1335 = vmatprep.subr.mxu0 0.0
    %1336 = vmatpush1.msra.mxu0 0.0
    %1337 = vmatprep.subr.mxu0 0.0
    %1338 = vmatpush1.msra.mxu0 0.0
    %1339 = vmatprep.subr.mxu0 0.0
    %1340 = vmatpush1.msra.mxu0 0.0
    %1341 = vmatprep.subr.mxu0 0.0
    %1342 = vmatpush1.msra.mxu0 0.0
    %1343 = vmatprep.subr.mxu0 0.0
    %1344 = vmatpush1.msra.mxu0 0.0
    %1345 = vmatprep.subr.mxu0 0.0
    %1346 = vmatpush1.msra.mxu0 0.0
    %1347 = vmatprep.subr.mxu0 0.0
    %1348 = vmatpush1.msra.mxu0 0.0
    %1349 = vmatprep.subr.mxu0 0.0
    %1350 = vmatpush1.msra.mxu0 0.0
    %1351 = vmatprep.subr.mxu0 0.0
    %1352 = vmatpush1.msra.mxu0 0.0
    %1353 = vmatprep.subr.mxu0 0.0
    %1354 = vmatpush1.msra.mxu0 0.0
    %1355 = vmatprep.subr.mxu0 0.0
    %1356 = vmatpush1.msra.mxu0 0.0
    %1357 = vmatprep.subr.mxu0 0.0
    %1358 = vmatpush1.msra.mxu0 0.0
    %1359 = vmatprep.subr.mxu0 0.0
    %1360 = vmatpush1.msra.mxu0 0.0
    %1361 = vmatprep.subr.mxu0 0.0
    %1362 = vmatpush1.msra.mxu0 0.0
    %1363 = vmatprep.subr.mxu0 0.0
    %1364 = vmatpush1.msra.mxu0 0.0
    %1365 = vmatprep.subr.mxu0 0.0
    %1366 = vmatpush1.msra.mxu0 0.0
    %1367 = vmatprep.subr.mxu0 0.0
    %1368 = vmatpush1.msra.mxu0 0.0
    %1369 = vmatprep.subr.mxu0 0.0
    %1370 = vmatpush1.msra.mxu0 0.0
    %1371 = vmatprep.subr.mxu0 0.0
    %1372 = vmatpush1.msra.mxu0 0.0
    %1373 = vmatprep.subr.mxu0 0.0
    %1374 = vmatpush1.msra.mxu0 0.0
    %1375 = vmatprep.subr.mxu0 0.0
    %1376 = vmatpush1.msra.mxu0 0.0
    %1377 = vmatprep.subr.mxu0 0.0
    %1378 = vmatpush1.msra.mxu0 0.0
    %1379 = vmatprep.subr.mxu0 0.0
    %1380 = vmatpush1.msra.mxu0 0.0
    %1381 = vmatprep.subr.mxu0 0.0
    %1382 = vmatpush1.msra.mxu0 0.0
    %1383 = vmatprep.mubr.f32.mxu0 0.0
    %1384 = vmatmul.mubr.f32.gmra.mrb[0].mxu0 %v1311
    %v1385 = vpop.f32.mrb[0].mxu0
    %v1386 = vadd.f32 0.0, %v1385
    %v1387 = vpop.f32.mrb[0].mxu0
    %1388 = vmatprep.mubr.f32.mxu0 0.0
    %1389 = vmatmul.mubr.f32.gmra.mrb[0].mxu0 %v1313
    %v1390 = vpop.f32.mrb[0].mxu0
    %v1391 = vadd.f32 0.0, %v1390
    %v1392 = vpop.f32.mrb[0].mxu0
    %1393 = vmatprep.mubr.f32.mxu0 0.0
    %1394 = vmatmul.mubr.f32.gmra.mrb[0].mxu0 %v1315
    %v1395 = vpop.f32.mrb[0].mxu0
    %v1396 = vadd.f32 0.0, %v1395
    %v1397 = vpop.f32.mrb[0].mxu0
    %1398 = vmatprep.mubr.f32.mxu0 0.0
    %1399 = vmatmul.mubr.f32.gmra.mrb[0].mxu0 %v1317
    %v1400 = vpop.f32.mrb[0].mxu0
    %v1401 = vadd.f32 0.0, %v1400
    %v1402 = vpop.f32.mrb[0].mxu0
    %1403 = vdwg.mxu0
    %1408 = vrot.lane.b32.xlu0 %v680, 96
    %v1409 = vpop.permute.xlu0 %1408
    %1410 = vrot.lane.b32.xlu0 %v685, 96
    %v1411 = vpop.permute.xlu0 %1410
    %1412 = vrot.lane.b32.xlu0 %v690, 96
    %v1413 = vpop.permute.xlu0 %1412
    %1414 = vrot.lane.b32.xlu0 %v695, 96
    %v1415 = vpop.permute.xlu0 %1414
    %v1416 = vsel %vm1310, %v1409, 0
    %v1418 = vsel %vm1310, %v1411, 0
    %v1420 = vsel %vm1310, %v1413, 0
    %v1422 = vsel %vm1310, %v1415, 0
    %1424 = vmatprep.subr.mxu0 0.0
    %1425 = vmatpush1.msra.mxu0 %v680
    %1426 = vmatprep.subr.mxu0 0.0
    %1427 = vmatpush1.msra.mxu0 %v685
    %1428 = vmatprep.subr.mxu0 0.0
    %1429 = vmatpush1.msra.mxu0 %v690
    %1430 = vmatprep.subr.mxu0 0.0
    %1431 = vmatpush1.msra.mxu0 %v695
    %1432 = vmatprep.subr.mxu0 0.0
    %1433 = vmatpush1.msra.mxu0 0.0
    %1434 = vmatprep.subr.mxu0 0.0
    %1435 = vmatpush1.msra.mxu0 0.0
    %1436 = vmatprep.subr.mxu0 0.0
    %1437 = vmatpush1.msra.mxu0 0.0
    %1438 = vmatprep.subr.mxu0 0.0
    %1439 = vmatpush1.msra.mxu0 0.0
    %1440 = vmatprep.subr.mxu0 0.0
    %1441 = vmatpush1.msra.mxu0 0.0
    %1442 = vmatprep.subr.mxu0 0.0
    %1443 = vmatpush1.msra.mxu0 0.0
    %1444 = vmatprep.subr.mxu0 0.0
    %1445 = vmatpush1.msra.mxu0 0.0
    %1446 = vmatprep.subr.mxu0 0.0
    %1447 = vmatpush1.msra.mxu0 0.0
    %1448 = vmatprep.subr.mxu0 0.0
    %1449 = vmatpush1.msra.mxu0 0.0
    %1450 = vmatprep.subr.mxu0 0.0
    %1451 = vmatpush1.msra.mxu0 0.0
    %1452 = vmatprep.subr.mxu0 0.0
    %1453 = vmatpush1.msra.mxu0 0.0
    %1454 = vmatprep.subr.mxu0 0.0
    %1455 = vmatpush1.msra.mxu0 0.0
    %1456 = vmatprep.subr.mxu0 0.0
    %1457 = vmatpush1.msra.mxu0 0.0
    %1458 = vmatprep.subr.mxu0 0.0
    %1459 = vmatpush1.msra.mxu0 0.0
    %1460 = vmatprep.subr.mxu0 0.0
    %1461 = vmatpush1.msra.mxu0 0.0
    %1462 = vmatprep.subr.mxu0 0.0
    %1463 = vmatpush1.msra.mxu0 0.0
    %1464 = vmatprep.subr.mxu0 0.0
    %1465 = vmatpush1.msra.mxu0 0.0
    %1466 = vmatprep.subr.mxu0 0.0
    %1467 = vmatpush1.msra.mxu0 0.0
    %1468 = vmatprep.subr.mxu0 0.0
    %1469 = vmatpush1.msra.mxu0 0.0
    %1470 = vmatprep.subr.mxu0 0.0
    %1471 = vmatpush1.msra.mxu0 0.0
    %1472 = vmatprep.subr.mxu0 0.0
    %1473 = vmatpush1.msra.mxu0 0.0
    %1474 = vmatprep.subr.mxu0 0.0
    %1475 = vmatpush1.msra.mxu0 0.0
    %1476 = vmatprep.subr.mxu0 0.0
    %1477 = vmatpush1.msra.mxu0 0.0
    %1478 = vmatprep.subr.mxu0 0.0
    %1479 = vmatpush1.msra.mxu0 0.0
    %1480 = vmatprep.subr.mxu0 0.0
    %1481 = vmatpush1.msra.mxu0 0.0
    %1482 = vmatprep.subr.mxu0 0.0
    %1483 = vmatpush1.msra.mxu0 0.0
    %1484 = vmatprep.subr.mxu0 0.0
    %1485 = vmatpush1.msra.mxu0 0.0
    %1486 = vmatprep.subr.mxu0 0.0
    %1487 = vmatpush1.msra.mxu0 0.0
    %1488 = vmatprep.mubr.f32.mxu0 0.0
    %1489 = vmatmul.mubr.f32.gmra.mrb[0].mxu0 %v1416
    %v1490 = vpop.f32.mrb[0].mxu0
    %v1491 = vadd.f32 0.0, %v1490
    %v1492 = vpop.f32.mrb[0].mxu0
    %1493 = vmatprep.mubr.f32.mxu0 0.0
    %1494 = vmatmul.mubr.f32.gmra.mrb[0].mxu0 %v1418
    %v1495 = vpop.f32.mrb[0].mxu0
    %v1496 = vadd.f32 0.0, %v1495
    %v1497 = vpop.f32.mrb[0].mxu0
    %1498 = vmatprep.mubr.f32.mxu0 0.0
    %1499 = vmatmul.mubr.f32.gmra.mrb[0].mxu0 %v1420
    %v1500 = vpop.f32.mrb[0].mxu0
    %v1501 = vadd.f32 0.0, %v1500
    %v1502 = vpop.f32.mrb[0].mxu0
    %1503 = vmatprep.mubr.f32.mxu0 0.0
    %1504 = vmatmul.mubr.f32.gmra.mrb[0].mxu0 %v1422
    %v1505 = vpop.f32.mrb[0].mxu0
    %v1506 = vadd.f32 0.0, %v1505
    %v1507 = vpop.f32.mrb[0].mxu0
    %1508 = vdwg.mxu0
    %1513 = vrot.lane.b32.xlu0 %v700, 96
    %v1514 = vpop.permute.xlu0 %1513
    %1515 = vrot.lane.b32.xlu0 %v705, 96
    %v1516 = vpop.permute.xlu0 %1515
    %1517 = vrot.lane.b32.xlu0 %v710, 96
    %v1518 = vpop.permute.xlu0 %1517
    %1519 = vrot.lane.b32.xlu0 %v715, 96
    %v1520 = vpop.permute.xlu0 %1519
    %v1521 = vsel %vm1310, %v1514, 0
    %v1523 = vsel %vm1310, %v1516, 0
    %v1525 = vsel %vm1310, %v1518, 0
    %v1527 = vsel %vm1310, %v1520, 0
    %1529 = vmatprep.subr.mxu0 0.0
    %1530 = vmatpush1.msra.mxu0 %v700
    %1531 = vmatprep.subr.mxu0 0.0
    %1532 = vmatpush1.msra.mxu0 %v705
    %1533 = vmatprep.subr.mxu0 0.0
    %1534 = vmatpush1.msra.mxu0 %v710
    %1535 = vmatprep.subr.mxu0 0.0
    %1536 = vmatpush1.msra.mxu0 %v715
    %1537 = vmatprep.subr.mxu0 0.0
    %1538 = vmatpush1.msra.mxu0 0.0
    %1539 = vmatprep.subr.mxu0 0.0
    %1540 = vmatpush1.msra.mxu0 0.0
    %1541 = vmatprep.subr.mxu0 0.0
    %1542 = vmatpush1.msra.mxu0 0.0
    %1543 = vmatprep.subr.mxu0 0.0
    %1544 = vmatpush1.msra.mxu0 0.0
    %1545 = vmatprep.subr.mxu0 0.0
    %1546 = vmatpush1.msra.mxu0 0.0
    %1547 = vmatprep.subr.mxu0 0.0
    %1548 = vmatpush1.msra.mxu0 0.0
    %1549 = vmatprep.subr.mxu0 0.0
    %1550 = vmatpush1.msra.mxu0 0.0
    %1551 = vmatprep.subr.mxu0 0.0
    %1552 = vmatpush1.msra.mxu0 0.0
    %1553 = vmatprep.subr.mxu0 0.0
    %1554 = vmatpush1.msra.mxu0 0.0
    %1555 = vmatprep.subr.mxu0 0.0
    %1556 = vmatpush1.msra.mxu0 0.0
    %1557 = vmatprep.subr.mxu0 0.0
    %1558 = vmatpush1.msra.mxu0 0.0
    %1559 = vmatprep.subr.mxu0 0.0
    %1560 = vmatpush1.msra.mxu0 0.0
    %1561 = vmatprep.subr.mxu0 0.0
    %1562 = vmatpush1.msra.mxu0 0.0
    %1563 = vmatprep.subr.mxu0 0.0
    %1564 = vmatpush1.msra.mxu0 0.0
    %1565 = vmatprep.subr.mxu0 0.0
    %1566 = vmatpush1.msra.mxu0 0.0
    %1567 = vmatprep.subr.mxu0 0.0
    %1568 = vmatpush1.msra.mxu0 0.0
    %1569 = vmatprep.subr.mxu0 0.0
    %1570 = vmatpush1.msra.mxu0 0.0
    %1571 = vmatprep.subr.mxu0 0.0
    %1572 = vmatpush1.msra.mxu0 0.0
    %1573 = vmatprep.subr.mxu0 0.0
    %1574 = vmatpush1.msra.mxu0 0.0
    %1575 = vmatprep.subr.mxu0 0.0
    %1576 = vmatpush1.msra.mxu0 0.0
    %1577 = vmatprep.subr.mxu0 0.0
    %1578 = vmatpush1.msra.mxu0 0.0
    %1579 = vmatprep.subr.mxu0 0.0
    %1580 = vmatpush1.msra.mxu0 0.0
    %1581 = vmatprep.subr.mxu0 0.0
    %1582 = vmatpush1.msra.mxu0 0.0
    %1583 = vmatprep.subr.mxu0 0.0
    %1584 = vmatpush1.msra.mxu0 0.0
    %1585 = vmatprep.subr.mxu0 0.0
    %1586 = vmatpush1.msra.mxu0 0.0
    %1587 = vmatprep.subr.mxu0 0.0
    %1588 = vmatpush1.msra.mxu0 0.0
    %1589 = vmatprep.subr.mxu0 0.0
    %1590 = vmatpush1.msra.mxu0 0.0
    %1591 = vmatprep.subr.mxu0 0.0
    %1592 = vmatpush1.msra.mxu0 0.0
    %1593 = vmatprep.mubr.f32.mxu0 0.0
    %1594 = vmatmul.mubr.f32.gmra.mrb[0].mxu0 %v1521
    %v1595 = vpop.f32.mrb[0].mxu0
    %v1596 = vadd.f32 0.0, %v1595
    %v1597 = vpop.f32.mrb[0].mxu0
    %1598 = vmatprep.mubr.f32.mxu0 0.0
    %1599 = vmatmul.mubr.f32.gmra.mrb[0].mxu0 %v1523
    %v1600 = vpop.f32.mrb[0].mxu0
    %v1601 = vadd.f32 0.0, %v1600
    %v1602 = vpop.f32.mrb[0].mxu0
    %1603 = vmatprep.mubr.f32.mxu0 0.0
    %1604 = vmatmul.mubr.f32.gmra.mrb[0].mxu0 %v1525
    %v1605 = vpop.f32.mrb[0].mxu0
    %v1606 = vadd.f32 0.0, %v1605
    %v1607 = vpop.f32.mrb[0].mxu0
    %1608 = vmatprep.mubr.f32.mxu0 0.0
    %1609 = vmatmul.mubr.f32.gmra.mrb[0].mxu0 %v1527
    %v1610 = vpop.f32.mrb[0].mxu0
    %v1611 = vadd.f32 0.0, %v1610
    %v1612 = vpop.f32.mrb[0].mxu0
    %1613 = vdwg.mxu0
    %1618 = vrot.lane.b32.xlu0 %v720, 96
    %v1619 = vpop.permute.xlu0 %1618
    %1620 = vrot.lane.b32.xlu0 %v725, 96
    %v1621 = vpop.permute.xlu0 %1620
    %1622 = vrot.lane.b32.xlu0 %v730, 96
    %v1623 = vpop.permute.xlu0 %1622
    %1624 = vrot.lane.b32.xlu0 %v735, 96
    %v1625 = vpop.permute.xlu0 %1624
    %v1626 = vsel %vm1310, %v1619, 0
    %v1628 = vsel %vm1310, %v1621, 0
    %v1630 = vsel %vm1310, %v1623, 0
    %v1632 = vsel %vm1310, %v1625, 0
    %1634 = vmatprep.subr.mxu0 0.0
    %1635 = vmatpush1.msra.mxu0 %v720
    %1636 = vmatprep.subr.mxu0 0.0
    %1637 = vmatpush1.msra.mxu0 %v725
    %1638 = vmatprep.subr.mxu0 0.0
    %1639 = vmatpush1.msra.mxu0 %v730
    %1640 = vmatprep.subr.mxu0 0.0
    %1641 = vmatpush1.msra.mxu0 %v735
    %1642 = vmatprep.subr.mxu0 0.0
    %1643 = vmatpush1.msra.mxu0 0.0
    %1644 = vmatprep.subr.mxu0 0.0
    %1645 = vmatpush1.msra.mxu0 0.0
    %1646 = vmatprep.subr.mxu0 0.0
    %1647 = vmatpush1.msra.mxu0 0.0
    %1648 = vmatprep.subr.mxu0 0.0
    %1649 = vmatpush1.msra.mxu0 0.0
    %1650 = vmatprep.subr.mxu0 0.0
    %1651 = vmatpush1.msra.mxu0 0.0
    %1652 = vmatprep.subr.mxu0 0.0
    %1653 = vmatpush1.msra.mxu0 0.0
    %1654 = vmatprep.subr.mxu0 0.0
    %1655 = vmatpush1.msra.mxu0 0.0
    %1656 = vmatprep.subr.mxu0 0.0
    %1657 = vmatpush1.msra.mxu0 0.0
    %1658 = vmatprep.subr.mxu0 0.0
    %1659 = vmatpush1.msra.mxu0 0.0
    %1660 = vmatprep.subr.mxu0 0.0
    %1661 = vmatpush1.msra.mxu0 0.0
    %1662 = vmatprep.subr.mxu0 0.0
    %1663 = vmatpush1.msra.mxu0 0.0
    %1664 = vmatprep.subr.mxu0 0.0
    %1665 = vmatpush1.msra.mxu0 0.0
    %1666 = vmatprep.subr.mxu0 0.0
    %1667 = vmatpush1.msra.mxu0 0.0
    %1668 = vmatprep.subr.mxu0 0.0
    %1669 = vmatpush1.msra.mxu0 0.0
    %1670 = vmatprep.subr.mxu0 0.0
    %1671 = vmatpush1.msra.mxu0 0.0
    %1672 = vmatprep.subr.mxu0 0.0
    %1673 = vmatpush1.msra.mxu0 0.0
    %1674 = vmatprep.subr.mxu0 0.0
    %1675 = vmatpush1.msra.mxu0 0.0
    %1676 = vmatprep.subr.mxu0 0.0
    %1677 = vmatpush1.msra.mxu0 0.0
    %1678 = vmatprep.subr.mxu0 0.0
    %1679 = vmatpush1.msra.mxu0 0.0
    %1680 = vmatprep.subr.mxu0 0.0
    %1681 = vmatpush1.msra.mxu0 0.0
    %1682 = vmatprep.subr.mxu0 0.0
    %1683 = vmatpush1.msra.mxu0 0.0
    %1684 = vmatprep.subr.mxu0 0.0
    %1685 = vmatpush1.msra.mxu0 0.0
    %1686 = vmatprep.subr.mxu0 0.0
    %1687 = vmatpush1.msra.mxu0 0.0
    %1688 = vmatprep.subr.mxu0 0.0
    %1689 = vmatpush1.msra.mxu0 0.0
    %1690 = vmatprep.subr.mxu0 0.0
    %1691 = vmatpush1.msra.mxu0 0.0
    %1692 = vmatprep.subr.mxu0 0.0
    %1693 = vmatpush1.msra.mxu0 0.0
    %1694 = vmatprep.subr.mxu0 0.0
    %1695 = vmatpush1.msra.mxu0 0.0
    %1696 = vmatprep.subr.mxu0 0.0
    %1697 = vmatpush1.msra.mxu0 0.0
    %1698 = vmatprep.mubr.f32.mxu0 0.0
    %1699 = vmatmul.mubr.f32.gmra.mrb[0].mxu0 %v1626
    %v1700 = vpop.f32.mrb[0].mxu0
    %v1701 = vadd.f32 0.0, %v1700
    %v1702 = vpop.f32.mrb[0].mxu0
    %1703 = vmatprep.mubr.f32.mxu0 0.0
    %1704 = vmatmul.mubr.f32.gmra.mrb[0].mxu0 %v1628
    %v1705 = vpop.f32.mrb[0].mxu0
    %v1706 = vadd.f32 0.0, %v1705
    %v1707 = vpop.f32.mrb[0].mxu0
    %1708 = vmatprep.mubr.f32.mxu0 0.0
    %1709 = vmatmul.mubr.f32.gmra.mrb[0].mxu0 %v1630
    %v1710 = vpop.f32.mrb[0].mxu0
    %v1711 = vadd.f32 0.0, %v1710
    %v1712 = vpop.f32.mrb[0].mxu0
    %1713 = vmatprep.mubr.f32.mxu0 0.0
    %1714 = vmatmul.mubr.f32.gmra.mrb[0].mxu0 %v1632
    %v1715 = vpop.f32.mrb[0].mxu0
    %v1716 = vadd.f32 0.0, %v1715
    %v1717 = vpop.f32.mrb[0].mxu0
    %1718 = vdwg.mxu0
    %1723 = vrot.lane.b32.xlu0 %v740, 96
    %v1724 = vpop.permute.xlu0 %1723
    %1725 = vrot.lane.b32.xlu0 %v745, 96
    %v1726 = vpop.permute.xlu0 %1725
    %1727 = vrot.lane.b32.xlu0 %v750, 96
    %v1728 = vpop.permute.xlu0 %1727
    %1729 = vrot.lane.b32.xlu0 %v755, 96
    %v1730 = vpop.permute.xlu0 %1729
    %v1731 = vsel %vm1310, %v1724, 0
    %v1733 = vsel %vm1310, %v1726, 0
    %v1735 = vsel %vm1310, %v1728, 0
    %v1737 = vsel %vm1310, %v1730, 0
    %1739 = vmatprep.subr.mxu0 0.0
    %1740 = vmatpush1.msra.mxu0 %v740
    %1741 = vmatprep.subr.mxu0 0.0
    %1742 = vmatpush1.msra.mxu0 %v745
    %1743 = vmatprep.subr.mxu0 0.0
    %1744 = vmatpush1.msra.mxu0 %v750
    %1745 = vmatprep.subr.mxu0 0.0
    %1746 = vmatpush1.msra.mxu0 %v755
    %1747 = vmatprep.subr.mxu0 0.0
    %1748 = vmatpush1.msra.mxu0 0.0
    %1749 = vmatprep.subr.mxu0 0.0
    %1750 = vmatpush1.msra.mxu0 0.0
    %1751 = vmatprep.subr.mxu0 0.0
    %1752 = vmatpush1.msra.mxu0 0.0
    %1753 = vmatprep.subr.mxu0 0.0
    %1754 = vmatpush1.msra.mxu0 0.0
    %1755 = vmatprep.subr.mxu0 0.0
    %1756 = vmatpush1.msra.mxu0 0.0
    %1757 = vmatprep.subr.mxu0 0.0
    %1758 = vmatpush1.msra.mxu0 0.0
    %1759 = vmatprep.subr.mxu0 0.0
    %1760 = vmatpush1.msra.mxu0 0.0
    %1761 = vmatprep.subr.mxu0 0.0
    %1762 = vmatpush1.msra.mxu0 0.0
    %1763 = vmatprep.subr.mxu0 0.0
    %1764 = vmatpush1.msra.mxu0 0.0
    %1765 = vmatprep.subr.mxu0 0.0
    %1766 = vmatpush1.msra.mxu0 0.0
    %1767 = vmatprep.subr.mxu0 0.0
    %1768 = vmatpush1.msra.mxu0 0.0
    %1769 = vmatprep.subr.mxu0 0.0
    %1770 = vmatpush1.msra.mxu0 0.0
    %1771 = vmatprep.subr.mxu0 0.0
    %1772 = vmatpush1.msra.mxu0 0.0
    %1773 = vmatprep.subr.mxu0 0.0
    %1774 = vmatpush1.msra.mxu0 0.0
    %1775 = vmatprep.subr.mxu0 0.0
    %1776 = vmatpush1.msra.mxu0 0.0
    %1777 = vmatprep.subr.mxu0 0.0
    %1778 = vmatpush1.msra.mxu0 0.0
    %1779 = vmatprep.subr.mxu0 0.0
    %1780 = vmatpush1.msra.mxu0 0.0
    %1781 = vmatprep.subr.mxu0 0.0
    %1782 = vmatpush1.msra.mxu0 0.0
    %1783 = vmatprep.subr.mxu0 0.0
    %1784 = vmatpush1.msra.mxu0 0.0
    %1785 = vmatprep.subr.mxu0 0.0
    %1786 = vmatpush1.msra.mxu0 0.0
    %1787 = vmatprep.subr.mxu0 0.0
    %1788 = vmatpush1.msra.mxu0 0.0
    %1789 = vmatprep.subr.mxu0 0.0
    %1790 = vmatpush1.msra.mxu0 0.0
    %1791 = vmatprep.subr.mxu0 0.0
    %1792 = vmatpush1.msra.mxu0 0.0
    %1793 = vmatprep.subr.mxu0 0.0
    %1794 = vmatpush1.msra.mxu0 0.0
    %1795 = vmatprep.subr.mxu0 0.0
    %1796 = vmatpush1.msra.mxu0 0.0
    %1797 = vmatprep.subr.mxu0 0.0
    %1798 = vmatpush1.msra.mxu0 0.0
    %1799 = vmatprep.subr.mxu0 0.0
    %1800 = vmatpush1.msra.mxu0 0.0
    %1801 = vmatprep.subr.mxu0 0.0
    %1802 = vmatpush1.msra.mxu0 0.0
    %1803 = vmatprep.mubr.f32.mxu0 0.0
    %1804 = vmatmul.mubr.f32.gmra.mrb[0].mxu0 %v1731
    %v1805 = vpop.f32.mrb[0].mxu0
    %v1806 = vadd.f32 0.0, %v1805
    %v1807 = vpop.f32.mrb[0].mxu0
    %1808 = vmatprep.mubr.f32.mxu0 0.0
    %1809 = vmatmul.mubr.f32.gmra.mrb[0].mxu0 %v1733
    %v1810 = vpop.f32.mrb[0].mxu0
    %v1811 = vadd.f32 0.0, %v1810
    %v1812 = vpop.f32.mrb[0].mxu0
    %1813 = vmatprep.mubr.f32.mxu0 0.0
    %1814 = vmatmul.mubr.f32.gmra.mrb[0].mxu0 %v1735
    %v1815 = vpop.f32.mrb[0].mxu0
    %v1816 = vadd.f32 0.0, %v1815
    %v1817 = vpop.f32.mrb[0].mxu0
    %1818 = vmatprep.mubr.f32.mxu0 0.0
    %1819 = vmatmul.mubr.f32.gmra.mrb[0].mxu0 %v1737
    %v1820 = vpop.f32.mrb[0].mxu0
    %v1821 = vadd.f32 0.0, %v1820
    %v1822 = vpop.f32.mrb[0].mxu0
    %1823 = vdwg.mxu0
    %1828 = vrot.lane.b32.xlu0 %v760, 96
    %v1829 = vpop.permute.xlu0 %1828
    %1830 = vrot.lane.b32.xlu0 %v765, 96
    %v1831 = vpop.permute.xlu0 %1830
    %1832 = vrot.lane.b32.xlu0 %v770, 96
    %v1833 = vpop.permute.xlu0 %1832
    %1834 = vrot.lane.b32.xlu0 %v775, 96
    %v1835 = vpop.permute.xlu0 %1834
    %v1836 = vsel %vm1310, %v1829, 0
    %v1838 = vsel %vm1310, %v1831, 0
    %v1840 = vsel %vm1310, %v1833, 0
    %v1842 = vsel %vm1310, %v1835, 0
    %1844 = vmatprep.subr.mxu0 0.0
    %1845 = vmatpush1.msra.mxu0 %v760
    %1846 = vmatprep.subr.mxu0 0.0
    %1847 = vmatpush1.msra.mxu0 %v765
    %1848 = vmatprep.subr.mxu0 0.0
    %1849 = vmatpush1.msra.mxu0 %v770
    %1850 = vmatprep.subr.mxu0 0.0
    %1851 = vmatpush1.msra.mxu0 %v775
    %1852 = vmatprep.subr.mxu0 0.0
    %1853 = vmatpush1.msra.mxu0 0.0
    %1854 = vmatprep.subr.mxu0 0.0
    %1855 = vmatpush1.msra.mxu0 0.0
    %1856 = vmatprep.subr.mxu0 0.0
    %1857 = vmatpush1.msra.mxu0 0.0
    %1858 = vmatprep.subr.mxu0 0.0
    %1859 = vmatpush1.msra.mxu0 0.0
    %1860 = vmatprep.subr.mxu0 0.0
    %1861 = vmatpush1.msra.mxu0 0.0
    %1862 = vmatprep.subr.mxu0 0.0
    %1863 = vmatpush1.msra.mxu0 0.0
    %1864 = vmatprep.subr.mxu0 0.0
    %1865 = vmatpush1.msra.mxu0 0.0
    %1866 = vmatprep.subr.mxu0 0.0
    %1867 = vmatpush1.msra.mxu0 0.0
    %1868 = vmatprep.subr.mxu0 0.0
    %1869 = vmatpush1.msra.mxu0 0.0
    %1870 = vmatprep.subr.mxu0 0.0
    %1871 = vmatpush1.msra.mxu0 0.0
    %1872 = vmatprep.subr.mxu0 0.0
    %1873 = vmatpush1.msra.mxu0 0.0
    %1874 = vmatprep.subr.mxu0 0.0
    %1875 = vmatpush1.msra.mxu0 0.0
    %1876 = vmatprep.subr.mxu0 0.0
    %1877 = vmatpush1.msra.mxu0 0.0
    %1878 = vmatprep.subr.mxu0 0.0
    %1879 = vmatpush1.msra.mxu0 0.0
    %1880 = vmatprep.subr.mxu0 0.0
    %1881 = vmatpush1.msra.mxu0 0.0
    %1882 = vmatprep.subr.mxu0 0.0
    %1883 = vmatpush1.msra.mxu0 0.0
    %1884 = vmatprep.subr.mxu0 0.0
    %1885 = vmatpush1.msra.mxu0 0.0
    %1886 = vmatprep.subr.mxu0 0.0
    %1887 = vmatpush1.msra.mxu0 0.0
    %1888 = vmatprep.subr.mxu0 0.0
    %1889 = vmatpush1.msra.mxu0 0.0
    %1890 = vmatprep.subr.mxu0 0.0
    %1891 = vmatpush1.msra.mxu0 0.0
    %1892 = vmatprep.subr.mxu0 0.0
    %1893 = vmatpush1.msra.mxu0 0.0
    %1894 = vmatprep.subr.mxu0 0.0
    %1895 = vmatpush1.msra.mxu0 0.0
    %1896 = vmatprep.subr.mxu0 0.0
    %1897 = vmatpush1.msra.mxu0 0.0
    %1898 = vmatprep.subr.mxu0 0.0
    %1899 = vmatpush1.msra.mxu0 0.0
    %1900 = vmatprep.subr.mxu0 0.0
    %1901 = vmatpush1.msra.mxu0 0.0
    %1902 = vmatprep.subr.mxu0 0.0
    %1903 = vmatpush1.msra.mxu0 0.0
    %1904 = vmatprep.subr.mxu0 0.0
    %1905 = vmatpush1.msra.mxu0 0.0
    %1906 = vmatprep.subr.mxu0 0.0
    %1907 = vmatpush1.msra.mxu0 0.0
    %1908 = vmatprep.mubr.f32.mxu0 0.0
    %1909 = vmatmul.mubr.f32.gmra.mrb[0].mxu0 %v1836
    %v1910 = vpop.f32.mrb[0].mxu0
    %v1911 = vadd.f32 0.0, %v1910
    %v1912 = vpop.f32.mrb[0].mxu0
    %1913 = vmatprep.mubr.f32.mxu0 0.0
    %1914 = vmatmul.mubr.f32.gmra.mrb[0].mxu0 %v1838
    %v1915 = vpop.f32.mrb[0].mxu0
    %v1916 = vadd.f32 0.0, %v1915
    %v1917 = vpop.f32.mrb[0].mxu0
    %1918 = vmatprep.mubr.f32.mxu0 0.0
    %1919 = vmatmul.mubr.f32.gmra.mrb[0].mxu0 %v1840
    %v1920 = vpop.f32.mrb[0].mxu0
    %v1921 = vadd.f32 0.0, %v1920
    %v1922 = vpop.f32.mrb[0].mxu0
    %1923 = vmatprep.mubr.f32.mxu0 0.0
    %1924 = vmatmul.mubr.f32.gmra.mrb[0].mxu0 %v1842
    %v1925 = vpop.f32.mrb[0].mxu0
    %v1926 = vadd.f32 0.0, %v1925
    %v1927 = vpop.f32.mrb[0].mxu0
    %1928 = vdwg.mxu0
    %1933 = vrot.lane.b32.xlu0 %v780, 96
    %v1934 = vpop.permute.xlu0 %1933
    %1935 = vrot.lane.b32.xlu0 %v785, 96
    %v1936 = vpop.permute.xlu0 %1935
    %1937 = vrot.lane.b32.xlu0 %v790, 96
    %v1938 = vpop.permute.xlu0 %1937
    %1939 = vrot.lane.b32.xlu0 %v795, 96
    %v1940 = vpop.permute.xlu0 %1939
    %v1941 = vsel %vm1310, %v1934, 0
    %v1943 = vsel %vm1310, %v1936, 0
    %v1945 = vsel %vm1310, %v1938, 0
    %v1947 = vsel %vm1310, %v1940, 0
    %1949 = vmatprep.subr.mxu0 0.0
    %1950 = vmatpush1.msra.mxu0 %v780
    %1951 = vmatprep.subr.mxu0 0.0
    %1952 = vmatpush1.msra.mxu0 %v785
    %1953 = vmatprep.subr.mxu0 0.0
    %1954 = vmatpush1.msra.mxu0 %v790
    %1955 = vmatprep.subr.mxu0 0.0
    %1956 = vmatpush1.msra.mxu0 %v795
    %1957 = vmatprep.subr.mxu0 0.0
    %1958 = vmatpush1.msra.mxu0 0.0
    %1959 = vmatprep.subr.mxu0 0.0
    %1960 = vmatpush1.msra.mxu0 0.0
    %1961 = vmatprep.subr.mxu0 0.0
    %1962 = vmatpush1.msra.mxu0 0.0
    %1963 = vmatprep.subr.mxu0 0.0
    %1964 = vmatpush1.msra.mxu0 0.0
    %1965 = vmatprep.subr.mxu0 0.0
    %1966 = vmatpush1.msra.mxu0 0.0
    %1967 = vmatprep.subr.mxu0 0.0
    %1968 = vmatpush1.msra.mxu0 0.0
    %1969 = vmatprep.subr.mxu0 0.0
    %1970 = vmatpush1.msra.mxu0 0.0
    %1971 = vmatprep.subr.mxu0 0.0
    %1972 = vmatpush1.msra.mxu0 0.0
    %1973 = vmatprep.subr.mxu0 0.0
    %1974 = vmatpush1.msra.mxu0 0.0
    %1975 = vmatprep.subr.mxu0 0.0
    %1976 = vmatpush1.msra.mxu0 0.0
    %1977 = vmatprep.subr.mxu0 0.0
    %1978 = vmatpush1.msra.mxu0 0.0
    %1979 = vmatprep.subr.mxu0 0.0
    %1980 = vmatpush1.msra.mxu0 0.0
    %1981 = vmatprep.subr.mxu0 0.0
    %1982 = vmatpush1.msra.mxu0 0.0
    %1983 = vmatprep.subr.mxu0 0.0
    %1984 = vmatpush1.msra.mxu0 0.0
    %1985 = vmatprep.subr.mxu0 0.0
    %1986 = vmatpush1.msra.mxu0 0.0
    %1987 = vmatprep.subr.mxu0 0.0
    %1988 = vmatpush1.msra.mxu0 0.0
    %1989 = vmatprep.subr.mxu0 0.0
    %1990 = vmatpush1.msra.mxu0 0.0
    %1991 = vmatprep.subr.mxu0 0.0
    %1992 = vmatpush1.msra.mxu0 0.0
    %1993 = vmatprep.subr.mxu0 0.0
    %1994 = vmatpush1.msra.mxu0 0.0
    %1995 = vmatprep.subr.mxu0 0.0
    %1996 = vmatpush1.msra.mxu0 0.0
    %1997 = vmatprep.subr.mxu0 0.0
    %1998 = vmatpush1.msra.mxu0 0.0
    %1999 = vmatprep.subr.mxu0 0.0
    %2000 = vmatpush1.msra.mxu0 0.0
    %2001 = vmatprep.subr.mxu0 0.0
    %2002 = vmatpush1.msra.mxu0 0.0
    %2003 = vmatprep.subr.mxu0 0.0
    %2004 = vmatpush1.msra.mxu0 0.0
    %2005 = vmatprep.subr.mxu0 0.0
    %2006 = vmatpush1.msra.mxu0 0.0
    %2007 = vmatprep.subr.mxu0 0.0
    %2008 = vmatpush1.msra.mxu0 0.0
    %2009 = vmatprep.subr.mxu0 0.0
    %2010 = vmatpush1.msra.mxu0 0.0
    %2011 = vmatprep.subr.mxu0 0.0
    %2012 = vmatpush1.msra.mxu0 0.0
    %2013 = vmatprep.mubr.f32.mxu0 0.0
    %2014 = vmatmul.mubr.f32.gmra.mrb[0].mxu0 %v1941
    %v2015 = vpop.f32.mrb[0].mxu0
    %v2016 = vadd.f32 0.0, %v2015
    %v2017 = vpop.f32.mrb[0].mxu0
    %2018 = vmatprep.mubr.f32.mxu0 0.0
    %2019 = vmatmul.mubr.f32.gmra.mrb[0].mxu0 %v1943
    %v2020 = vpop.f32.mrb[0].mxu0
    %v2021 = vadd.f32 0.0, %v2020
    %v2022 = vpop.f32.mrb[0].mxu0
    %2023 = vmatprep.mubr.f32.mxu0 0.0
    %2024 = vmatmul.mubr.f32.gmra.mrb[0].mxu0 %v1945
    %v2025 = vpop.f32.mrb[0].mxu0
    %v2026 = vadd.f32 0.0, %v2025
    %v2027 = vpop.f32.mrb[0].mxu0
    %2028 = vmatprep.mubr.f32.mxu0 0.0
    %2029 = vmatmul.mubr.f32.gmra.mrb[0].mxu0 %v1947
    %v2030 = vpop.f32.mrb[0].mxu0
    %v2031 = vadd.f32 0.0, %v2030
    %v2032 = vpop.f32.mrb[0].mxu0
    %2033 = vdwg.mxu0
    %2038 = vrot.lane.b32.xlu0 %v800, 96
    %v2039 = vpop.permute.xlu0 %2038
    %2040 = vrot.lane.b32.xlu0 %v805, 96
    %v2041 = vpop.permute.xlu0 %2040
    %2042 = vrot.lane.b32.xlu0 %v810, 96
    %v2043 = vpop.permute.xlu0 %2042
    %2044 = vrot.lane.b32.xlu0 %v815, 96
    %v2045 = vpop.permute.xlu0 %2044
    %v2046 = vsel %vm1310, %v2039, 0
    %v2048 = vsel %vm1310, %v2041, 0
    %v2050 = vsel %vm1310, %v2043, 0
    %v2052 = vsel %vm1310, %v2045, 0
    %2054 = vmatprep.subr.mxu0 0.0
    %2055 = vmatpush1.msra.mxu0 %v800
    %2056 = vmatprep.subr.mxu0 0.0
    %2057 = vmatpush1.msra.mxu0 %v805
    %2058 = vmatprep.subr.mxu0 0.0
    %2059 = vmatpush1.msra.mxu0 %v810
    %2060 = vmatprep.subr.mxu0 0.0
    %2061 = vmatpush1.msra.mxu0 %v815
    %2062 = vmatprep.subr.mxu0 0.0
    %2063 = vmatpush1.msra.mxu0 0.0
    %2064 = vmatprep.subr.mxu0 0.0
    %2065 = vmatpush1.msra.mxu0 0.0
    %2066 = vmatprep.subr.mxu0 0.0
    %2067 = vmatpush1.msra.mxu0 0.0
    %2068 = vmatprep.subr.mxu0 0.0
    %2069 = vmatpush1.msra.mxu0 0.0
    %2070 = vmatprep.subr.mxu0 0.0
    %2071 = vmatpush1.msra.mxu0 0.0
    %2072 = vmatprep.subr.mxu0 0.0
    %2073 = vmatpush1.msra.mxu0 0.0
    %2074 = vmatprep.subr.mxu0 0.0
    %2075 = vmatpush1.msra.mxu0 0.0
    %2076 = vmatprep.subr.mxu0 0.0
    %2077 = vmatpush1.msra.mxu0 0.0
    %2078 = vmatprep.subr.mxu0 0.0
    %2079 = vmatpush1.msra.mxu0 0.0
    %2080 = vmatprep.subr.mxu0 0.0
    %2081 = vmatpush1.msra.mxu0 0.0
    %2082 = vmatprep.subr.mxu0 0.0
    %2083 = vmatpush1.msra.mxu0 0.0
    %2084 = vmatprep.subr.mxu0 0.0
    %2085 = vmatpush1.msra.mxu0 0.0
    %2086 = vmatprep.subr.mxu0 0.0
    %2087 = vmatpush1.msra.mxu0 0.0
    %2088 = vmatprep.subr.mxu0 0.0
    %2089 = vmatpush1.msra.mxu0 0.0
    %2090 = vmatprep.subr.mxu0 0.0
    %2091 = vmatpush1.msra.mxu0 0.0
    %2092 = vmatprep.subr.mxu0 0.0
    %2093 = vmatpush1.msra.mxu0 0.0
    %2094 = vmatprep.subr.mxu0 0.0
    %2095 = vmatpush1.msra.mxu0 0.0
    %2096 = vmatprep.subr.mxu0 0.0
    %2097 = vmatpush1.msra.mxu0 0.0
    %2098 = vmatprep.subr.mxu0 0.0
    %2099 = vmatpush1.msra.mxu0 0.0
    %2100 = vmatprep.subr.mxu0 0.0
    %2101 = vmatpush1.msra.mxu0 0.0
    %2102 = vmatprep.subr.mxu0 0.0
    %2103 = vmatpush1.msra.mxu0 0.0
    %2104 = vmatprep.subr.mxu0 0.0
    %2105 = vmatpush1.msra.mxu0 0.0
    %2106 = vmatprep.subr.mxu0 0.0
    %2107 = vmatpush1.msra.mxu0 0.0
    %2108 = vmatprep.subr.mxu0 0.0
    %2109 = vmatpush1.msra.mxu0 0.0
    %2110 = vmatprep.subr.mxu0 0.0
    %2111 = vmatpush1.msra.mxu0 0.0
    %2112 = vmatprep.subr.mxu0 0.0
    %2113 = vmatpush1.msra.mxu0 0.0
    %2114 = vmatprep.subr.mxu0 0.0
    %2115 = vmatpush1.msra.mxu0 0.0
    %2116 = vmatprep.subr.mxu0 0.0
    %2117 = vmatpush1.msra.mxu0 0.0
    %2118 = vmatprep.mubr.f32.mxu0 0.0
    %2119 = vmatmul.mubr.f32.gmra.mrb[0].mxu0 %v2046
    %v2120 = vpop.f32.mrb[0].mxu0
    %v2121 = vadd.f32 0.0, %v2120
    %v2122 = vpop.f32.mrb[0].mxu0
    %2123 = vmatprep.mubr.f32.mxu0 0.0
    %2124 = vmatmul.mubr.f32.gmra.mrb[0].mxu0 %v2048
    %v2125 = vpop.f32.mrb[0].mxu0
    %v2126 = vadd.f32 0.0, %v2125
    %v2127 = vpop.f32.mrb[0].mxu0
    %2128 = vmatprep.mubr.f32.mxu0 0.0
    %2129 = vmatmul.mubr.f32.gmra.mrb[0].mxu0 %v2050
    %v2130 = vpop.f32.mrb[0].mxu0
    %v2131 = vadd.f32 0.0, %v2130
    %v2132 = vpop.f32.mrb[0].mxu0
    %2133 = vmatprep.mubr.f32.mxu0 0.0
    %2134 = vmatmul.mubr.f32.gmra.mrb[0].mxu0 %v2052
    %v2135 = vpop.f32.mrb[0].mxu0
    %v2136 = vadd.f32 0.0, %v2135
    %v2137 = vpop.f32.mrb[0].mxu0
    %2138 = vdwg.mxu0
    %2143 = vrot.lane.b32.xlu0 %v820, 96
    %v2144 = vpop.permute.xlu0 %2143
    %2145 = vrot.lane.b32.xlu0 %v825, 96
    %v2146 = vpop.permute.xlu0 %2145
    %2147 = vrot.lane.b32.xlu0 %v830, 96
    %v2148 = vpop.permute.xlu0 %2147
    %2149 = vrot.lane.b32.xlu0 %v835, 96
    %v2150 = vpop.permute.xlu0 %2149
    %v2151 = vsel %vm1310, %v2144, 0
    %v2153 = vsel %vm1310, %v2146, 0
    %v2155 = vsel %vm1310, %v2148, 0
    %v2157 = vsel %vm1310, %v2150, 0
    %2159 = vmatprep.subr.mxu0 0.0
    %2160 = vmatpush1.msra.mxu0 %v820
    %2161 = vmatprep.subr.mxu0 0.0
    %2162 = vmatpush1.msra.mxu0 %v825
    %2163 = vmatprep.subr.mxu0 0.0
    %2164 = vmatpush1.msra.mxu0 %v830
    %2165 = vmatprep.subr.mxu0 0.0
    %2166 = vmatpush1.msra.mxu0 %v835
    %2167 = vmatprep.subr.mxu0 0.0
    %2168 = vmatpush1.msra.mxu0 0.0
    %2169 = vmatprep.subr.mxu0 0.0
    %2170 = vmatpush1.msra.mxu0 0.0
    %2171 = vmatprep.subr.mxu0 0.0
    %2172 = vmatpush1.msra.mxu0 0.0
    %2173 = vmatprep.subr.mxu0 0.0
    %2174 = vmatpush1.msra.mxu0 0.0
    %2175 = vmatprep.subr.mxu0 0.0
    %2176 = vmatpush1.msra.mxu0 0.0
    %2177 = vmatprep.subr.mxu0 0.0
    %2178 = vmatpush1.msra.mxu0 0.0
    %2179 = vmatprep.subr.mxu0 0.0
    %2180 = vmatpush1.msra.mxu0 0.0
    %2181 = vmatprep.subr.mxu0 0.0
    %2182 = vmatpush1.msra.mxu0 0.0
    %2183 = vmatprep.subr.mxu0 0.0
    %2184 = vmatpush1.msra.mxu0 0.0
    %2185 = vmatprep.subr.mxu0 0.0
    %2186 = vmatpush1.msra.mxu0 0.0
    %2187 = vmatprep.subr.mxu0 0.0
    %2188 = vmatpush1.msra.mxu0 0.0
    %2189 = vmatprep.subr.mxu0 0.0
    %2190 = vmatpush1.msra.mxu0 0.0
    %2191 = vmatprep.subr.mxu0 0.0
    %2192 = vmatpush1.msra.mxu0 0.0
    %2193 = vmatprep.subr.mxu0 0.0
    %2194 = vmatpush1.msra.mxu0 0.0
    %2195 = vmatprep.subr.mxu0 0.0
    %2196 = vmatpush1.msra.mxu0 0.0
    %2197 = vmatprep.subr.mxu0 0.0
    %2198 = vmatpush1.msra.mxu0 0.0
    %2199 = vmatprep.subr.mxu0 0.0
    %2200 = vmatpush1.msra.mxu0 0.0
    %2201 = vmatprep.subr.mxu0 0.0
    %2202 = vmatpush1.msra.mxu0 0.0
    %2203 = vmatprep.subr.mxu0 0.0
    %2204 = vmatpush1.msra.mxu0 0.0
    %2205 = vmatprep.subr.mxu0 0.0
    %2206 = vmatpush1.msra.mxu0 0.0
    %2207 = vmatprep.subr.mxu0 0.0
    %2208 = vmatpush1.msra.mxu0 0.0
    %2209 = vmatprep.subr.mxu0 0.0
    %2210 = vmatpush1.msra.mxu0 0.0
    %2211 = vmatprep.subr.mxu0 0.0
    %2212 = vmatpush1.msra.mxu0 0.0
    %2213 = vmatprep.subr.mxu0 0.0
    %2214 = vmatpush1.msra.mxu0 0.0
    %2215 = vmatprep.subr.mxu0 0.0
    %2216 = vmatpush1.msra.mxu0 0.0
    %2217 = vmatprep.subr.mxu0 0.0
    %2218 = vmatpush1.msra.mxu0 0.0
    %2219 = vmatprep.subr.mxu0 0.0
    %2220 = vmatpush1.msra.mxu0 0.0
    %2221 = vmatprep.subr.mxu0 0.0
    %2222 = vmatpush1.msra.mxu0 0.0
    %2223 = vmatprep.mubr.f32.mxu0 0.0
    %2224 = vmatmul.mubr.f32.gmra.mrb[0].mxu0 %v2151
    %v2225 = vpop.f32.mrb[0].mxu0
    %v2226 = vadd.f32 0.0, %v2225
    %v2227 = vpop.f32.mrb[0].mxu0
    %2228 = vmatprep.mubr.f32.mxu0 0.0
    %2229 = vmatmul.mubr.f32.gmra.mrb[0].mxu0 %v2153
    %v2230 = vpop.f32.mrb[0].mxu0
    %v2231 = vadd.f32 0.0, %v2230
    %v2232 = vpop.f32.mrb[0].mxu0
    %2233 = vmatprep.mubr.f32.mxu0 0.0
    %2234 = vmatmul.mubr.f32.gmra.mrb[0].mxu0 %v2155
    %v2235 = vpop.f32.mrb[0].mxu0
    %v2236 = vadd.f32 0.0, %v2235
    %v2237 = vpop.f32.mrb[0].mxu0
    %2238 = vmatprep.mubr.f32.mxu0 0.0
    %2239 = vmatmul.mubr.f32.gmra.mrb[0].mxu0 %v2157
    %v2240 = vpop.f32.mrb[0].mxu0
    %v2241 = vadd.f32 0.0, %v2240
    %v2242 = vpop.f32.mrb[0].mxu0
    %2243 = vdwg.mxu0
    %2248 = vrot.lane.b32.xlu0 %v840, 96
    %v2249 = vpop.permute.xlu0 %2248
    %2250 = vrot.lane.b32.xlu0 %v845, 96
    %v2251 = vpop.permute.xlu0 %2250
    %2252 = vrot.lane.b32.xlu0 %v850, 96
    %v2253 = vpop.permute.xlu0 %2252
    %2254 = vrot.lane.b32.xlu0 %v855, 96
    %v2255 = vpop.permute.xlu0 %2254
    %v2256 = vsel %vm1310, %v2249, 0
    %v2258 = vsel %vm1310, %v2251, 0
    %v2260 = vsel %vm1310, %v2253, 0
    %v2262 = vsel %vm1310, %v2255, 0
    %2264 = vmatprep.subr.mxu0 0.0
    %2265 = vmatpush1.msra.mxu0 %v840
    %2266 = vmatprep.subr.mxu0 0.0
    %2267 = vmatpush1.msra.mxu0 %v845
    %2268 = vmatprep.subr.mxu0 0.0
    %2269 = vmatpush1.msra.mxu0 %v850
    %2270 = vmatprep.subr.mxu0 0.0
    %2271 = vmatpush1.msra.mxu0 %v855
    %2272 = vmatprep.subr.mxu0 0.0
    %2273 = vmatpush1.msra.mxu0 0.0
    %2274 = vmatprep.subr.mxu0 0.0
    %2275 = vmatpush1.msra.mxu0 0.0
    %2276 = vmatprep.subr.mxu0 0.0
    %2277 = vmatpush1.msra.mxu0 0.0
    %2278 = vmatprep.subr.mxu0 0.0
    %2279 = vmatpush1.msra.mxu0 0.0
    %2280 = vmatprep.subr.mxu0 0.0
    %2281 = vmatpush1.msra.mxu0 0.0
    %2282 = vmatprep.subr.mxu0 0.0
    %2283 = vmatpush1.msra.mxu0 0.0
    %2284 = vmatprep.subr.mxu0 0.0
    %2285 = vmatpush1.msra.mxu0 0.0
    %2286 = vmatprep.subr.mxu0 0.0
    %2287 = vmatpush1.msra.mxu0 0.0
    %2288 = vmatprep.subr.mxu0 0.0
    %2289 = vmatpush1.msra.mxu0 0.0
    %2290 = vmatprep.subr.mxu0 0.0
    %2291 = vmatpush1.msra.mxu0 0.0
    %2292 = vmatprep.subr.mxu0 0.0
    %2293 = vmatpush1.msra.mxu0 0.0
    %2294 = vmatprep.subr.mxu0 0.0
    %2295 = vmatpush1.msra.mxu0 0.0
    %2296 = vmatprep.subr.mxu0 0.0
    %2297 = vmatpush1.msra.mxu0 0.0
    %2298 = vmatprep.subr.mxu0 0.0
    %2299 = vmatpush1.msra.mxu0 0.0
    %2300 = vmatprep.subr.mxu0 0.0
    %2301 = vmatpush1.msra.mxu0 0.0
    %2302 = vmatprep.subr.mxu0 0.0
    %2303 = vmatpush1.msra.mxu0 0.0
    %2304 = vmatprep.subr.mxu0 0.0
    %2305 = vmatpush1.msra.mxu0 0.0
    %2306 = vmatprep.subr.mxu0 0.0
    %2307 = vmatpush1.msra.mxu0 0.0
    %2308 = vmatprep.subr.mxu0 0.0
    %2309 = vmatpush1.msra.mxu0 0.0
    %2310 = vmatprep.subr.mxu0 0.0
    %2311 = vmatpush1.msra.mxu0 0.0
    %2312 = vmatprep.subr.mxu0 0.0
    %2313 = vmatpush1.msra.mxu0 0.0
    %2314 = vmatprep.subr.mxu0 0.0
    %2315 = vmatpush1.msra.mxu0 0.0
    %2316 = vmatprep.subr.mxu0 0.0
    %2317 = vmatpush1.msra.mxu0 0.0
    %2318 = vmatprep.subr.mxu0 0.0
    %2319 = vmatpush1.msra.mxu0 0.0
    %2320 = vmatprep.subr.mxu0 0.0
    %2321 = vmatpush1.msra.mxu0 0.0
    %2322 = vmatprep.subr.mxu0 0.0
    %2323 = vmatpush1.msra.mxu0 0.0
    %2324 = vmatprep.subr.mxu0 0.0
    %2325 = vmatpush1.msra.mxu0 0.0
    %2326 = vmatprep.subr.mxu0 0.0
    %2327 = vmatpush1.msra.mxu0 0.0
    %2328 = vmatprep.mubr.f32.mxu0 0.0
    %2329 = vmatmul.mubr.f32.gmra.mrb[0].mxu0 %v2256
    %v2330 = vpop.f32.mrb[0].mxu0
    %v2331 = vadd.f32 0.0, %v2330
    %v2332 = vpop.f32.mrb[0].mxu0
    %2333 = vmatprep.mubr.f32.mxu0 0.0
    %2334 = vmatmul.mubr.f32.gmra.mrb[0].mxu0 %v2258
    %v2335 = vpop.f32.mrb[0].mxu0
    %v2336 = vadd.f32 0.0, %v2335
    %v2337 = vpop.f32.mrb[0].mxu0
    %2338 = vmatprep.mubr.f32.mxu0 0.0
    %2339 = vmatmul.mubr.f32.gmra.mrb[0].mxu0 %v2260
    %v2340 = vpop.f32.mrb[0].mxu0
    %v2341 = vadd.f32 0.0, %v2340
    %v2342 = vpop.f32.mrb[0].mxu0
    %2343 = vmatprep.mubr.f32.mxu0 0.0
    %2344 = vmatmul.mubr.f32.gmra.mrb[0].mxu0 %v2262
    %v2345 = vpop.f32.mrb[0].mxu0
    %v2346 = vadd.f32 0.0, %v2345
    %v2347 = vpop.f32.mrb[0].mxu0
    %2348 = vdwg.mxu0
    %2353 = vrot.lane.b32.xlu0 %v860, 96
    %v2354 = vpop.permute.xlu0 %2353
    %2355 = vrot.lane.b32.xlu0 %v865, 96
    %v2356 = vpop.permute.xlu0 %2355
    %2357 = vrot.lane.b32.xlu0 %v870, 96
    %v2358 = vpop.permute.xlu0 %2357
    %2359 = vrot.lane.b32.xlu0 %v875, 96
    %v2360 = vpop.permute.xlu0 %2359
    %v2361 = vsel %vm1310, %v2354, 0
    %v2363 = vsel %vm1310, %v2356, 0
    %v2365 = vsel %vm1310, %v2358, 0
    %v2367 = vsel %vm1310, %v2360, 0
    %2369 = vmatprep.subr.mxu0 0.0
    %2370 = vmatpush1.msra.mxu0 %v860
    %2371 = vmatprep.subr.mxu0 0.0
    %2372 = vmatpush1.msra.mxu0 %v865
    %2373 = vmatprep.subr.mxu0 0.0
    %2374 = vmatpush1.msra.mxu0 %v870
    %2375 = vmatprep.subr.mxu0 0.0
    %2376 = vmatpush1.msra.mxu0 %v875
    %2377 = vmatprep.subr.mxu0 0.0
    %2378 = vmatpush1.msra.mxu0 0.0
    %2379 = vmatprep.subr.mxu0 0.0
    %2380 = vmatpush1.msra.mxu0 0.0
    %2381 = vmatprep.subr.mxu0 0.0
    %2382 = vmatpush1.msra.mxu0 0.0
    %2383 = vmatprep.subr.mxu0 0.0
    %2384 = vmatpush1.msra.mxu0 0.0
    %2385 = vmatprep.subr.mxu0 0.0
    %2386 = vmatpush1.msra.mxu0 0.0
    %2387 = vmatprep.subr.mxu0 0.0
    %2388 = vmatpush1.msra.mxu0 0.0
    %2389 = vmatprep.subr.mxu0 0.0
    %2390 = vmatpush1.msra.mxu0 0.0
    %2391 = vmatprep.subr.mxu0 0.0
    %2392 = vmatpush1.msra.mxu0 0.0
    %2393 = vmatprep.subr.mxu0 0.0
    %2394 = vmatpush1.msra.mxu0 0.0
    %2395 = vmatprep.subr.mxu0 0.0
    %2396 = vmatpush1.msra.mxu0 0.0
    %2397 = vmatprep.subr.mxu0 0.0
    %2398 = vmatpush1.msra.mxu0 0.0
    %2399 = vmatprep.subr.mxu0 0.0
    %2400 = vmatpush1.msra.mxu0 0.0
    %2401 = vmatprep.subr.mxu0 0.0
    %2402 = vmatpush1.msra.mxu0 0.0
    %2403 = vmatprep.subr.mxu0 0.0
    %2404 = vmatpush1.msra.mxu0 0.0
    %2405 = vmatprep.subr.mxu0 0.0
    %2406 = vmatpush1.msra.mxu0 0.0
    %2407 = vmatprep.subr.mxu0 0.0
    %2408 = vmatpush1.msra.mxu0 0.0
    %2409 = vmatprep.subr.mxu0 0.0
    %2410 = vmatpush1.msra.mxu0 0.0
    %2411 = vmatprep.subr.mxu0 0.0
    %2412 = vmatpush1.msra.mxu0 0.0
    %2413 = vmatprep.subr.mxu0 0.0
    %2414 = vmatpush1.msra.mxu0 0.0
    %2415 = vmatprep.subr.mxu0 0.0
    %2416 = vmatpush1.msra.mxu0 0.0
    %2417 = vmatprep.subr.mxu0 0.0
    %2418 = vmatpush1.msra.mxu0 0.0
    %2419 = vmatprep.subr.mxu0 0.0
    %2420 = vmatpush1.msra.mxu0 0.0
    %2421 = vmatprep.subr.mxu0 0.0
    %2422 = vmatpush1.msra.mxu0 0.0
    %2423 = vmatprep.subr.mxu0 0.0
    %2424 = vmatpush1.msra.mxu0 0.0
    %2425 = vmatprep.subr.mxu0 0.0
    %2426 = vmatpush1.msra.mxu0 0.0
    %2427 = vmatprep.subr.mxu0 0.0
    %2428 = vmatpush1.msra.mxu0 0.0
    %2429 = vmatprep.subr.mxu0 0.0
    %2430 = vmatpush1.msra.mxu0 0.0
    %2431 = vmatprep.subr.mxu0 0.0
    %2432 = vmatpush1.msra.mxu0 0.0
    %2433 = vmatprep.mubr.f32.mxu0 0.0
    %2434 = vmatmul.mubr.f32.gmra.mrb[0].mxu0 %v2361
    %v2435 = vpop.f32.mrb[0].mxu0
    %v2436 = vadd.f32 0.0, %v2435
    %v2437 = vpop.f32.mrb[0].mxu0
    %2438 = vmatprep.mubr.f32.mxu0 0.0
    %2439 = vmatmul.mubr.f32.gmra.mrb[0].mxu0 %v2363
    %v2440 = vpop.f32.mrb[0].mxu0
    %v2441 = vadd.f32 0.0, %v2440
    %v2442 = vpop.f32.mrb[0].mxu0
    %2443 = vmatprep.mubr.f32.mxu0 0.0
    %2444 = vmatmul.mubr.f32.gmra.mrb[0].mxu0 %v2365
    %v2445 = vpop.f32.mrb[0].mxu0
    %v2446 = vadd.f32 0.0, %v2445
    %v2447 = vpop.f32.mrb[0].mxu0
    %2448 = vmatprep.mubr.f32.mxu0 0.0
    %2449 = vmatmul.mubr.f32.gmra.mrb[0].mxu0 %v2367
    %v2450 = vpop.f32.mrb[0].mxu0
    %v2451 = vadd.f32 0.0, %v2450
    %v2452 = vpop.f32.mrb[0].mxu0
    %2453 = vdwg.mxu0
    %2458 = vrot.lane.b32.xlu0 %v880, 96
    %v2459 = vpop.permute.xlu0 %2458
    %2460 = vrot.lane.b32.xlu0 %v885, 96
    %v2461 = vpop.permute.xlu0 %2460
    %2462 = vrot.lane.b32.xlu0 %v890, 96
    %v2463 = vpop.permute.xlu0 %2462
    %2464 = vrot.lane.b32.xlu0 %v895, 96
    %v2465 = vpop.permute.xlu0 %2464
    %v2466 = vsel %vm1310, %v2459, 0
    %v2468 = vsel %vm1310, %v2461, 0
    %v2470 = vsel %vm1310, %v2463, 0
    %v2472 = vsel %vm1310, %v2465, 0
    %2474 = vmatprep.subr.mxu0 0.0
    %2475 = vmatpush1.msra.mxu0 %v880
    %2476 = vmatprep.subr.mxu0 0.0
    %2477 = vmatpush1.msra.mxu0 %v885
    %2478 = vmatprep.subr.mxu0 0.0
    %2479 = vmatpush1.msra.mxu0 %v890
    %2480 = vmatprep.subr.mxu0 0.0
    %2481 = vmatpush1.msra.mxu0 %v895
    %2482 = vmatprep.subr.mxu0 0.0
    %2483 = vmatpush1.msra.mxu0 0.0
    %2484 = vmatprep.subr.mxu0 0.0
    %2485 = vmatpush1.msra.mxu0 0.0
    %2486 = vmatprep.subr.mxu0 0.0
    %2487 = vmatpush1.msra.mxu0 0.0
    %2488 = vmatprep.subr.mxu0 0.0
    %2489 = vmatpush1.msra.mxu0 0.0
    %2490 = vmatprep.subr.mxu0 0.0
    %2491 = vmatpush1.msra.mxu0 0.0
    %2492 = vmatprep.subr.mxu0 0.0
    %2493 = vmatpush1.msra.mxu0 0.0
    %2494 = vmatprep.subr.mxu0 0.0
    %2495 = vmatpush1.msra.mxu0 0.0
    %2496 = vmatprep.subr.mxu0 0.0
    %2497 = vmatpush1.msra.mxu0 0.0
    %2498 = vmatprep.subr.mxu0 0.0
    %2499 = vmatpush1.msra.mxu0 0.0
    %2500 = vmatprep.subr.mxu0 0.0
    %2501 = vmatpush1.msra.mxu0 0.0
    %2502 = vmatprep.subr.mxu0 0.0
    %2503 = vmatpush1.msra.mxu0 0.0
    %2504 = vmatprep.subr.mxu0 0.0
    %2505 = vmatpush1.msra.mxu0 0.0
    %2506 = vmatprep.subr.mxu0 0.0
    %2507 = vmatpush1.msra.mxu0 0.0
    %2508 = vmatprep.subr.mxu0 0.0
    %2509 = vmatpush1.msra.mxu0 0.0
    %2510 = vmatprep.subr.mxu0 0.0
    %2511 = vmatpush1.msra.mxu0 0.0
    %2512 = vmatprep.subr.mxu0 0.0
    %2513 = vmatpush1.msra.mxu0 0.0
    %2514 = vmatprep.subr.mxu0 0.0
    %2515 = vmatpush1.msra.mxu0 0.0
    %2516 = vmatprep.subr.mxu0 0.0
    %2517 = vmatpush1.msra.mxu0 0.0
    %2518 = vmatprep.subr.mxu0 0.0
    %2519 = vmatpush1.msra.mxu0 0.0
    %2520 = vmatprep.subr.mxu0 0.0
    %2521 = vmatpush1.msra.mxu0 0.0
    %2522 = vmatprep.subr.mxu0 0.0
    %2523 = vmatpush1.msra.mxu0 0.0
    %2524 = vmatprep.subr.mxu0 0.0
    %2525 = vmatpush1.msra.mxu0 0.0
    %2526 = vmatprep.subr.mxu0 0.0
    %2527 = vmatpush1.msra.mxu0 0.0
    %2528 = vmatprep.subr.mxu0 0.0
    %2529 = vmatpush1.msra.mxu0 0.0
    %2530 = vmatprep.subr.mxu0 0.0
    %2531 = vmatpush1.msra.mxu0 0.0
    %2532 = vmatprep.subr.mxu0 0.0
    %2533 = vmatpush1.msra.mxu0 0.0
    %2534 = vmatprep.subr.mxu0 0.0
    %2535 = vmatpush1.msra.mxu0 0.0
    %2536 = vmatprep.subr.mxu0 0.0
    %2537 = vmatpush1.msra.mxu0 0.0
    %2538 = vmatprep.mubr.f32.mxu0 0.0
    %2539 = vmatmul.mubr.f32.gmra.mrb[0].mxu0 %v2466
    %v2540 = vpop.f32.mrb[0].mxu0
    %v2541 = vadd.f32 0.0, %v2540
    %v2542 = vpop.f32.mrb[0].mxu0
    %2543 = vmatprep.mubr.f32.mxu0 0.0
    %2544 = vmatmul.mubr.f32.gmra.mrb[0].mxu0 %v2468
    %v2545 = vpop.f32.mrb[0].mxu0
    %v2546 = vadd.f32 0.0, %v2545
    %v2547 = vpop.f32.mrb[0].mxu0
    %2548 = vmatprep.mubr.f32.mxu0 0.0
    %2549 = vmatmul.mubr.f32.gmra.mrb[0].mxu0 %v2470
    %v2550 = vpop.f32.mrb[0].mxu0
    %v2551 = vadd.f32 0.0, %v2550
    %v2552 = vpop.f32.mrb[0].mxu0
    %2553 = vmatprep.mubr.f32.mxu0 0.0
    %2554 = vmatmul.mubr.f32.gmra.mrb[0].mxu0 %v2472
    %v2555 = vpop.f32.mrb[0].mxu0
    %v2556 = vadd.f32 0.0, %v2555
    %v2557 = vpop.f32.mrb[0].mxu0
    %2558 = vdwg.mxu0
    %2563 = vrot.lane.b32.xlu0 %v900, 96
    %v2564 = vpop.permute.xlu0 %2563
    %2565 = vrot.lane.b32.xlu0 %v905, 96
    %v2566 = vpop.permute.xlu0 %2565
    %2567 = vrot.lane.b32.xlu0 %v910, 96
    %v2568 = vpop.permute.xlu0 %2567
    %2569 = vrot.lane.b32.xlu0 %v915, 96
    %v2570 = vpop.permute.xlu0 %2569
    %v2571 = vsel %vm1310, %v2564, 0
    %v2573 = vsel %vm1310, %v2566, 0
    %v2575 = vsel %vm1310, %v2568, 0
    %v2577 = vsel %vm1310, %v2570, 0
    %2579 = vmatprep.subr.mxu0 0.0
    %2580 = vmatpush1.msra.mxu0 %v900
    %2581 = vmatprep.subr.mxu0 0.0
    %2582 = vmatpush1.msra.mxu0 %v905
    %2583 = vmatprep.subr.mxu0 0.0
    %2584 = vmatpush1.msra.mxu0 %v910
    %2585 = vmatprep.subr.mxu0 0.0
    %2586 = vmatpush1.msra.mxu0 %v915
    %2587 = vmatprep.subr.mxu0 0.0
    %2588 = vmatpush1.msra.mxu0 0.0
    %2589 = vmatprep.subr.mxu0 0.0
    %2590 = vmatpush1.msra.mxu0 0.0
    %2591 = vmatprep.subr.mxu0 0.0
    %2592 = vmatpush1.msra.mxu0 0.0
    %2593 = vmatprep.subr.mxu0 0.0
    %2594 = vmatpush1.msra.mxu0 0.0
    %2595 = vmatprep.subr.mxu0 0.0
    %2596 = vmatpush1.msra.mxu0 0.0
    %2597 = vmatprep.subr.mxu0 0.0
    %2598 = vmatpush1.msra.mxu0 0.0
    %2599 = vmatprep.subr.mxu0 0.0
    %2600 = vmatpush1.msra.mxu0 0.0
    %2601 = vmatprep.subr.mxu0 0.0
    %2602 = vmatpush1.msra.mxu0 0.0
    %2603 = vmatprep.subr.mxu0 0.0
    %2604 = vmatpush1.msra.mxu0 0.0
    %2605 = vmatprep.subr.mxu0 0.0
    %2606 = vmatpush1.msra.mxu0 0.0
    %2607 = vmatprep.subr.mxu0 0.0
    %2608 = vmatpush1.msra.mxu0 0.0
    %2609 = vmatprep.subr.mxu0 0.0
    %2610 = vmatpush1.msra.mxu0 0.0
    %2611 = vmatprep.subr.mxu0 0.0
    %2612 = vmatpush1.msra.mxu0 0.0
    %2613 = vmatprep.subr.mxu0 0.0
    %2614 = vmatpush1.msra.mxu0 0.0
    %2615 = vmatprep.subr.mxu0 0.0
    %2616 = vmatpush1.msra.mxu0 0.0
    %2617 = vmatprep.subr.mxu0 0.0
    %2618 = vmatpush1.msra.mxu0 0.0
    %2619 = vmatprep.subr.mxu0 0.0
    %2620 = vmatpush1.msra.mxu0 0.0
    %2621 = vmatprep.subr.mxu0 0.0
    %2622 = vmatpush1.msra.mxu0 0.0
    %2623 = vmatprep.subr.mxu0 0.0
    %2624 = vmatpush1.msra.mxu0 0.0
    %2625 = vmatprep.subr.mxu0 0.0
    %2626 = vmatpush1.msra.mxu0 0.0
    %2627 = vmatprep.subr.mxu0 0.0
    %2628 = vmatpush1.msra.mxu0 0.0
    %2629 = vmatprep.subr.mxu0 0.0
    %2630 = vmatpush1.msra.mxu0 0.0
    %2631 = vmatprep.subr.mxu0 0.0
    %2632 = vmatpush1.msra.mxu0 0.0
    %2633 = vmatprep.subr.mxu0 0.0
    %2634 = vmatpush1.msra.mxu0 0.0
    %2635 = vmatprep.subr.mxu0 0.0
    %2636 = vmatpush1.msra.mxu0 0.0
    %2637 = vmatprep.subr.mxu0 0.0
    %2638 = vmatpush1.msra.mxu0 0.0
    %2639 = vmatprep.subr.mxu0 0.0
    %2640 = vmatpush1.msra.mxu0 0.0
    %2641 = vmatprep.subr.mxu0 0.0
    %2642 = vmatpush1.msra.mxu0 0.0
    %2643 = vmatprep.mubr.f32.mxu0 0.0
    %2644 = vmatmul.mubr.f32.gmra.mrb[0].mxu0 %v2571
    %v2645 = vpop.f32.mrb[0].mxu0
    %v2646 = vadd.f32 0.0, %v2645
    %v2647 = vpop.f32.mrb[0].mxu0
    %2648 = vmatprep.mubr.f32.mxu0 0.0
    %2649 = vmatmul.mubr.f32.gmra.mrb[0].mxu0 %v2573
    %v2650 = vpop.f32.mrb[0].mxu0
    %v2651 = vadd.f32 0.0, %v2650
    %v2652 = vpop.f32.mrb[0].mxu0
    %2653 = vmatprep.mubr.f32.mxu0 0.0
    %2654 = vmatmul.mubr.f32.gmra.mrb[0].mxu0 %v2575
    %v2655 = vpop.f32.mrb[0].mxu0
    %v2656 = vadd.f32 0.0, %v2655
    %v2657 = vpop.f32.mrb[0].mxu0
    %2658 = vmatprep.mubr.f32.mxu0 0.0
    %2659 = vmatmul.mubr.f32.gmra.mrb[0].mxu0 %v2577
    %v2660 = vpop.f32.mrb[0].mxu0
    %v2661 = vadd.f32 0.0, %v2660
    %v2662 = vpop.f32.mrb[0].mxu0
    %2663 = vdwg.mxu0
    %2668 = vrot.lane.b32.xlu0 %v920, 96
    %v2669 = vpop.permute.xlu0 %2668
    %2670 = vrot.lane.b32.xlu0 %v925, 96
    %v2671 = vpop.permute.xlu0 %2670
    %2672 = vrot.lane.b32.xlu0 %v930, 96
    %v2673 = vpop.permute.xlu0 %2672
    %2674 = vrot.lane.b32.xlu0 %v935, 96
    %v2675 = vpop.permute.xlu0 %2674
    %v2676 = vsel %vm1310, %v2669, 0
    %v2678 = vsel %vm1310, %v2671, 0
    %v2680 = vsel %vm1310, %v2673, 0
    %v2682 = vsel %vm1310, %v2675, 0
    %2684 = vmatprep.subr.mxu0 0.0
    %2685 = vmatpush1.msra.mxu0 %v920
    %2686 = vmatprep.subr.mxu0 0.0
    %2687 = vmatpush1.msra.mxu0 %v925
    %2688 = vmatprep.subr.mxu0 0.0
    %2689 = vmatpush1.msra.mxu0 %v930
    %2690 = vmatprep.subr.mxu0 0.0
    %2691 = vmatpush1.msra.mxu0 %v935
    %2692 = vmatprep.subr.mxu0 0.0
    %2693 = vmatpush1.msra.mxu0 0.0
    %2694 = vmatprep.subr.mxu0 0.0
    %2695 = vmatpush1.msra.mxu0 0.0
    %2696 = vmatprep.subr.mxu0 0.0
    %2697 = vmatpush1.msra.mxu0 0.0
    %2698 = vmatprep.subr.mxu0 0.0
    %2699 = vmatpush1.msra.mxu0 0.0
    %2700 = vmatprep.subr.mxu0 0.0
    %2701 = vmatpush1.msra.mxu0 0.0
    %2702 = vmatprep.subr.mxu0 0.0
    %2703 = vmatpush1.msra.mxu0 0.0
    %2704 = vmatprep.subr.mxu0 0.0
    %2705 = vmatpush1.msra.mxu0 0.0
    %2706 = vmatprep.subr.mxu0 0.0
    %2707 = vmatpush1.msra.mxu0 0.0
    %2708 = vmatprep.subr.mxu0 0.0
    %2709 = vmatpush1.msra.mxu0 0.0
    %2710 = vmatprep.subr.mxu0 0.0
    %2711 = vmatpush1.msra.mxu0 0.0
    %2712 = vmatprep.subr.mxu0 0.0
    %2713 = vmatpush1.msra.mxu0 0.0
    %2714 = vmatprep.subr.mxu0 0.0
    %2715 = vmatpush1.msra.mxu0 0.0
    %2716 = vmatprep.subr.mxu0 0.0
    %2717 = vmatpush1.msra.mxu0 0.0
    %2718 = vmatprep.subr.mxu0 0.0
    %2719 = vmatpush1.msra.mxu0 0.0
    %2720 = vmatprep.subr.mxu0 0.0
    %2721 = vmatpush1.msra.mxu0 0.0
    %2722 = vmatprep.subr.mxu0 0.0
    %2723 = vmatpush1.msra.mxu0 0.0
    %2724 = vmatprep.subr.mxu0 0.0
    %2725 = vmatpush1.msra.mxu0 0.0
    %2726 = vmatprep.subr.mxu0 0.0
    %2727 = vmatpush1.msra.mxu0 0.0
    %2728 = vmatprep.subr.mxu0 0.0
    %2729 = vmatpush1.msra.mxu0 0.0
    %2730 = vmatprep.subr.mxu0 0.0
    %2731 = vmatpush1.msra.mxu0 0.0
    %2732 = vmatprep.subr.mxu0 0.0
    %2733 = vmatpush1.msra.mxu0 0.0
    %2734 = vmatprep.subr.mxu0 0.0
    %2735 = vmatpush1.msra.mxu0 0.0
    %2736 = vmatprep.subr.mxu0 0.0
    %2737 = vmatpush1.msra.mxu0 0.0
    %2738 = vmatprep.subr.mxu0 0.0
    %2739 = vmatpush1.msra.mxu0 0.0
    %2740 = vmatprep.subr.mxu0 0.0
    %2741 = vmatpush1.msra.mxu0 0.0
    %2742 = vmatprep.subr.mxu0 0.0
    %2743 = vmatpush1.msra.mxu0 0.0
    %2744 = vmatprep.subr.mxu0 0.0
    %2745 = vmatpush1.msra.mxu0 0.0
    %2746 = vmatprep.subr.mxu0 0.0
    %2747 = vmatpush1.msra.mxu0 0.0
    %2748 = vmatprep.mubr.f32.mxu0 0.0
    %2749 = vmatmul.mubr.f32.gmra.mrb[0].mxu0 %v2676
    %v2750 = vpop.f32.mrb[0].mxu0
    %v2751 = vadd.f32 0.0, %v2750
    %v2752 = vpop.f32.mrb[0].mxu0
    %2753 = vmatprep.mubr.f32.mxu0 0.0
    %2754 = vmatmul.mubr.f32.gmra.mrb[0].mxu0 %v2678
    %v2755 = vpop.f32.mrb[0].mxu0
    %v2756 = vadd.f32 0.0, %v2755
    %v2757 = vpop.f32.mrb[0].mxu0
    %2758 = vmatprep.mubr.f32.mxu0 0.0
    %2759 = vmatmul.mubr.f32.gmra.mrb[0].mxu0 %v2680
    %v2760 = vpop.f32.mrb[0].mxu0
    %v2761 = vadd.f32 0.0, %v2760
    %v2762 = vpop.f32.mrb[0].mxu0
    %2763 = vmatprep.mubr.f32.mxu0 0.0
    %2764 = vmatmul.mubr.f32.gmra.mrb[0].mxu0 %v2682
    %v2765 = vpop.f32.mrb[0].mxu0
    %v2766 = vadd.f32 0.0, %v2765
    %v2767 = vpop.f32.mrb[0].mxu0
    %2768 = vdwg.mxu0
    %2773 = vrot.lane.b32.xlu0 %v940, 96
    %v2774 = vpop.permute.xlu0 %2773
    %2775 = vrot.lane.b32.xlu0 %v945, 96
    %v2776 = vpop.permute.xlu0 %2775
    %2777 = vrot.lane.b32.xlu0 %v950, 96
    %v2778 = vpop.permute.xlu0 %2777
    %2779 = vrot.lane.b32.xlu0 %v955, 96
    %v2780 = vpop.permute.xlu0 %2779
    %v2781 = vsel %vm1310, %v2774, 0
    %v2783 = vsel %vm1310, %v2776, 0
    %v2785 = vsel %vm1310, %v2778, 0
    %v2787 = vsel %vm1310, %v2780, 0
    %2789 = vmatprep.subr.mxu0 0.0
    %2790 = vmatpush1.msra.mxu0 %v940
    %2791 = vmatprep.subr.mxu0 0.0
    %2792 = vmatpush1.msra.mxu0 %v945
    %2793 = vmatprep.subr.mxu0 0.0
    %2794 = vmatpush1.msra.mxu0 %v950
    %2795 = vmatprep.subr.mxu0 0.0
    %2796 = vmatpush1.msra.mxu0 %v955
    %2797 = vmatprep.subr.mxu0 0.0
    %2798 = vmatpush1.msra.mxu0 0.0
    %2799 = vmatprep.subr.mxu0 0.0
    %2800 = vmatpush1.msra.mxu0 0.0
    %2801 = vmatprep.subr.mxu0 0.0
    %2802 = vmatpush1.msra.mxu0 0.0
    %2803 = vmatprep.subr.mxu0 0.0
    %2804 = vmatpush1.msra.mxu0 0.0
    %2805 = vmatprep.subr.mxu0 0.0
    %2806 = vmatpush1.msra.mxu0 0.0
    %2807 = vmatprep.subr.mxu0 0.0
    %2808 = vmatpush1.msra.mxu0 0.0
    %2809 = vmatprep.subr.mxu0 0.0
    %2810 = vmatpush1.msra.mxu0 0.0
    %2811 = vmatprep.subr.mxu0 0.0
    %2812 = vmatpush1.msra.mxu0 0.0
    %2813 = vmatprep.subr.mxu0 0.0
    %2814 = vmatpush1.msra.mxu0 0.0
    %2815 = vmatprep.subr.mxu0 0.0
    %2816 = vmatpush1.msra.mxu0 0.0
    %2817 = vmatprep.subr.mxu0 0.0
    %2818 = vmatpush1.msra.mxu0 0.0
    %2819 = vmatprep.subr.mxu0 0.0
    %2820 = vmatpush1.msra.mxu0 0.0
    %2821 = vmatprep.subr.mxu0 0.0
    %2822 = vmatpush1.msra.mxu0 0.0
    %2823 = vmatprep.subr.mxu0 0.0
    %2824 = vmatpush1.msra.mxu0 0.0
    %2825 = vmatprep.subr.mxu0 0.0
    %2826 = vmatpush1.msra.mxu0 0.0
    %2827 = vmatprep.subr.mxu0 0.0
    %2828 = vmatpush1.msra.mxu0 0.0
    %2829 = vmatprep.subr.mxu0 0.0
    %2830 = vmatpush1.msra.mxu0 0.0
    %2831 = vmatprep.subr.mxu0 0.0
    %2832 = vmatpush1.msra.mxu0 0.0
    %2833 = vmatprep.subr.mxu0 0.0
    %2834 = vmatpush1.msra.mxu0 0.0
    %2835 = vmatprep.subr.mxu0 0.0
    %2836 = vmatpush1.msra.mxu0 0.0
    %2837 = vmatprep.subr.mxu0 0.0
    %2838 = vmatpush1.msra.mxu0 0.0
    %2839 = vmatprep.subr.mxu0 0.0
    %2840 = vmatpush1.msra.mxu0 0.0
    %2841 = vmatprep.subr.mxu0 0.0
    %2842 = vmatpush1.msra.mxu0 0.0
    %2843 = vmatprep.subr.mxu0 0.0
    %2844 = vmatpush1.msra.mxu0 0.0
    %2845 = vmatprep.subr.mxu0 0.0
    %2846 = vmatpush1.msra.mxu0 0.0
    %2847 = vmatprep.subr.mxu0 0.0
    %2848 = vmatpush1.msra.mxu0 0.0
    %2849 = vmatprep.subr.mxu0 0.0
    %2850 = vmatpush1.msra.mxu0 0.0
    %2851 = vmatprep.subr.mxu0 0.0
    %2852 = vmatpush1.msra.mxu0 0.0
    %2853 = vmatprep.mubr.f32.mxu0 0.0
    %2854 = vmatmul.mubr.f32.gmra.mrb[0].mxu0 %v2781
    %v2855 = vpop.f32.mrb[0].mxu0
    %v2856 = vadd.f32 0.0, %v2855
    %v2857 = vpop.f32.mrb[0].mxu0
    %2858 = vmatprep.mubr.f32.mxu0 0.0
    %2859 = vmatmul.mubr.f32.gmra.mrb[0].mxu0 %v2783
    %v2860 = vpop.f32.mrb[0].mxu0
    %v2861 = vadd.f32 0.0, %v2860
    %v2862 = vpop.f32.mrb[0].mxu0
    %2863 = vmatprep.mubr.f32.mxu0 0.0
    %2864 = vmatmul.mubr.f32.gmra.mrb[0].mxu0 %v2785
    %v2865 = vpop.f32.mrb[0].mxu0
    %v2866 = vadd.f32 0.0, %v2865
    %v2867 = vpop.f32.mrb[0].mxu0
    %2868 = vmatprep.mubr.f32.mxu0 0.0
    %2869 = vmatmul.mubr.f32.gmra.mrb[0].mxu0 %v2787
    %v2870 = vpop.f32.mrb[0].mxu0
    %v2871 = vadd.f32 0.0, %v2870
    %v2872 = vpop.f32.mrb[0].mxu0
    %2873 = vdwg.mxu0
    %2878 = vrot.lane.b32.xlu0 %v960, 96
    %v2879 = vpop.permute.xlu0 %2878
    %2880 = vrot.lane.b32.xlu0 %v965, 96
    %v2881 = vpop.permute.xlu0 %2880
    %2882 = vrot.lane.b32.xlu0 %v970, 96
    %v2883 = vpop.permute.xlu0 %2882
    %2884 = vrot.lane.b32.xlu0 %v975, 96
    %v2885 = vpop.permute.xlu0 %2884
    %v2886 = vsel %vm1310, %v2879, 0
    %v2888 = vsel %vm1310, %v2881, 0
    %v2890 = vsel %vm1310, %v2883, 0
    %v2892 = vsel %vm1310, %v2885, 0
    %2894 = vmatprep.subr.mxu0 0.0
    %2895 = vmatpush1.msra.mxu0 %v960
    %2896 = vmatprep.subr.mxu0 0.0
    %2897 = vmatpush1.msra.mxu0 %v965
    %2898 = vmatprep.subr.mxu0 0.0
    %2899 = vmatpush1.msra.mxu0 %v970
    %2900 = vmatprep.subr.mxu0 0.0
    %2901 = vmatpush1.msra.mxu0 %v975
    %2902 = vmatprep.subr.mxu0 0.0
    %2903 = vmatpush1.msra.mxu0 0.0
    %2904 = vmatprep.subr.mxu0 0.0
    %2905 = vmatpush1.msra.mxu0 0.0
    %2906 = vmatprep.subr.mxu0 0.0
    %2907 = vmatpush1.msra.mxu0 0.0
    %2908 = vmatprep.subr.mxu0 0.0
    %2909 = vmatpush1.msra.mxu0 0.0
    %2910 = vmatprep.subr.mxu0 0.0
    %2911 = vmatpush1.msra.mxu0 0.0
    %2912 = vmatprep.subr.mxu0 0.0
    %2913 = vmatpush1.msra.mxu0 0.0
    %2914 = vmatprep.subr.mxu0 0.0
    %2915 = vmatpush1.msra.mxu0 0.0
    %2916 = vmatprep.subr.mxu0 0.0
    %2917 = vmatpush1.msra.mxu0 0.0
    %2918 = vmatprep.subr.mxu0 0.0
    %2919 = vmatpush1.msra.mxu0 0.0
    %2920 = vmatprep.subr.mxu0 0.0
    %2921 = vmatpush1.msra.mxu0 0.0
    %2922 = vmatprep.subr.mxu0 0.0
    %2923 = vmatpush1.msra.mxu0 0.0
    %2924 = vmatprep.subr.mxu0 0.0
    %2925 = vmatpush1.msra.mxu0 0.0
    %2926 = vmatprep.subr.mxu0 0.0
    %2927 = vmatpush1.msra.mxu0 0.0
    %2928 = vmatprep.subr.mxu0 0.0
    %2929 = vmatpush1.msra.mxu0 0.0
    %2930 = vmatprep.subr.mxu0 0.0
    %2931 = vmatpush1.msra.mxu0 0.0
    %2932 = vmatprep.subr.mxu0 0.0
    %2933 = vmatpush1.msra.mxu0 0.0
    %2934 = vmatprep.subr.mxu0 0.0
    %2935 = vmatpush1.msra.mxu0 0.0
    %2936 = vmatprep.subr.mxu0 0.0
    %2937 = vmatpush1.msra.mxu0 0.0
    %2938 = vmatprep.subr.mxu0 0.0
    %2939 = vmatpush1.msra.mxu0 0.0
    %2940 = vmatprep.subr.mxu0 0.0
    %2941 = vmatpush1.msra.mxu0 0.0
    %2942 = vmatprep.subr.mxu0 0.0
    %2943 = vmatpush1.msra.mxu0 0.0
    %2944 = vmatprep.subr.mxu0 0.0
    %2945 = vmatpush1.msra.mxu0 0.0
    %2946 = vmatprep.subr.mxu0 0.0
    %2947 = vmatpush1.msra.mxu0 0.0
    %2948 = vmatprep.subr.mxu0 0.0
    %2949 = vmatpush1.msra.mxu0 0.0
    %2950 = vmatprep.subr.mxu0 0.0
    %2951 = vmatpush1.msra.mxu0 0.0
    %2952 = vmatprep.subr.mxu0 0.0
    %2953 = vmatpush1.msra.mxu0 0.0
    %2954 = vmatprep.subr.mxu0 0.0
    %2955 = vmatpush1.msra.mxu0 0.0
    %2956 = vmatprep.subr.mxu0 0.0
    %2957 = vmatpush1.msra.mxu0 0.0
    %2958 = vmatprep.mubr.f32.mxu0 0.0
    %2959 = vmatmul.mubr.f32.gmra.mrb[0].mxu0 %v2886
    %v2960 = vpop.f32.mrb[0].mxu0
    %v2961 = vadd.f32 0.0, %v2960
    %v2962 = vpop.f32.mrb[0].mxu0
    %2963 = vmatprep.mubr.f32.mxu0 0.0
    %2964 = vmatmul.mubr.f32.gmra.mrb[0].mxu0 %v2888
    %v2965 = vpop.f32.mrb[0].mxu0
    %v2966 = vadd.f32 0.0, %v2965
    %v2967 = vpop.f32.mrb[0].mxu0
    %2968 = vmatprep.mubr.f32.mxu0 0.0
    %2969 = vmatmul.mubr.f32.gmra.mrb[0].mxu0 %v2890
    %v2970 = vpop.f32.mrb[0].mxu0
    %v2971 = vadd.f32 0.0, %v2970
    %v2972 = vpop.f32.mrb[0].mxu0
    %2973 = vmatprep.mubr.f32.mxu0 0.0
    %2974 = vmatmul.mubr.f32.gmra.mrb[0].mxu0 %v2892
    %v2975 = vpop.f32.mrb[0].mxu0
    %v2976 = vadd.f32 0.0, %v2975
    %v2977 = vpop.f32.mrb[0].mxu0
    %2978 = vdwg.mxu0
    %2983 = vrot.lane.b32.xlu0 %v980, 96
    %v2984 = vpop.permute.xlu0 %2983
    %2985 = vrot.lane.b32.xlu0 %v985, 96
    %v2986 = vpop.permute.xlu0 %2985
    %2987 = vrot.lane.b32.xlu0 %v990, 96
    %v2988 = vpop.permute.xlu0 %2987
    %2989 = vrot.lane.b32.xlu0 %v995, 96
    %v2990 = vpop.permute.xlu0 %2989
    %v2991 = vsel %vm1310, %v2984, 0
    %v2993 = vsel %vm1310, %v2986, 0
    %v2995 = vsel %vm1310, %v2988, 0
    %v2997 = vsel %vm1310, %v2990, 0
    %2999 = vmatprep.subr.mxu0 0.0
    %3000 = vmatpush1.msra.mxu0 %v980
    %3001 = vmatprep.subr.mxu0 0.0
    %3002 = vmatpush1.msra.mxu0 %v985
    %3003 = vmatprep.subr.mxu0 0.0
    %3004 = vmatpush1.msra.mxu0 %v990
    %3005 = vmatprep.subr.mxu0 0.0
    %3006 = vmatpush1.msra.mxu0 %v995
    %3007 = vmatprep.subr.mxu0 0.0
    %3008 = vmatpush1.msra.mxu0 0.0
    %3009 = vmatprep.subr.mxu0 0.0
    %3010 = vmatpush1.msra.mxu0 0.0
    %3011 = vmatprep.subr.mxu0 0.0
    %3012 = vmatpush1.msra.mxu0 0.0
    %3013 = vmatprep.subr.mxu0 0.0
    %3014 = vmatpush1.msra.mxu0 0.0
    %3015 = vmatprep.subr.mxu0 0.0
    %3016 = vmatpush1.msra.mxu0 0.0
    %3017 = vmatprep.subr.mxu0 0.0
    %3018 = vmatpush1.msra.mxu0 0.0
    %3019 = vmatprep.subr.mxu0 0.0
    %3020 = vmatpush1.msra.mxu0 0.0
    %3021 = vmatprep.subr.mxu0 0.0
    %3022 = vmatpush1.msra.mxu0 0.0
    %3023 = vmatprep.subr.mxu0 0.0
    %3024 = vmatpush1.msra.mxu0 0.0
    %3025 = vmatprep.subr.mxu0 0.0
    %3026 = vmatpush1.msra.mxu0 0.0
    %3027 = vmatprep.subr.mxu0 0.0
    %3028 = vmatpush1.msra.mxu0 0.0
    %3029 = vmatprep.subr.mxu0 0.0
    %3030 = vmatpush1.msra.mxu0 0.0
    %3031 = vmatprep.subr.mxu0 0.0
    %3032 = vmatpush1.msra.mxu0 0.0
    %3033 = vmatprep.subr.mxu0 0.0
    %3034 = vmatpush1.msra.mxu0 0.0
    %3035 = vmatprep.subr.mxu0 0.0
    %3036 = vmatpush1.msra.mxu0 0.0
    %3037 = vmatprep.subr.mxu0 0.0
    %3038 = vmatpush1.msra.mxu0 0.0
    %3039 = vmatprep.subr.mxu0 0.0
    %3040 = vmatpush1.msra.mxu0 0.0
    %3041 = vmatprep.subr.mxu0 0.0
    %3042 = vmatpush1.msra.mxu0 0.0
    %3043 = vmatprep.subr.mxu0 0.0
    %3044 = vmatpush1.msra.mxu0 0.0
    %3045 = vmatprep.subr.mxu0 0.0
    %3046 = vmatpush1.msra.mxu0 0.0
    %3047 = vmatprep.subr.mxu0 0.0
    %3048 = vmatpush1.msra.mxu0 0.0
    %3049 = vmatprep.subr.mxu0 0.0
    %3050 = vmatpush1.msra.mxu0 0.0
    %3051 = vmatprep.subr.mxu0 0.0
    %3052 = vmatpush1.msra.mxu0 0.0
    %3053 = vmatprep.subr.mxu0 0.0
    %3054 = vmatpush1.msra.mxu0 0.0
    %3055 = vmatprep.subr.mxu0 0.0
    %3056 = vmatpush1.msra.mxu0 0.0
    %3057 = vmatprep.subr.mxu0 0.0
    %3058 = vmatpush1.msra.mxu0 0.0
    %3059 = vmatprep.subr.mxu0 0.0
    %3060 = vmatpush1.msra.mxu0 0.0
    %3061 = vmatprep.subr.mxu0 0.0
    %3062 = vmatpush1.msra.mxu0 0.0
    %3063 = vmatprep.mubr.f32.mxu0 0.0
    %3064 = vmatmul.mubr.f32.gmra.mrb[0].mxu0 %v2991
    %v3065 = vpop.f32.mrb[0].mxu0
    %v3066 = vadd.f32 0.0, %v3065
    %v3067 = vpop.f32.mrb[0].mxu0
    %3068 = vmatprep.mubr.f32.mxu0 0.0
    %3069 = vmatmul.mubr.f32.gmra.mrb[0].mxu0 %v2993
    %v3070 = vpop.f32.mrb[0].mxu0
    %v3071 = vadd.f32 0.0, %v3070
    %v3072 = vpop.f32.mrb[0].mxu0
    %3073 = vmatprep.mubr.f32.mxu0 0.0
    %3074 = vmatmul.mubr.f32.gmra.mrb[0].mxu0 %v2995
    %v3075 = vpop.f32.mrb[0].mxu0
    %v3076 = vadd.f32 0.0, %v3075
    %v3077 = vpop.f32.mrb[0].mxu0
    %3078 = vmatprep.mubr.f32.mxu0 0.0
    %3079 = vmatmul.mubr.f32.gmra.mrb[0].mxu0 %v2997
    %v3080 = vpop.f32.mrb[0].mxu0
    %v3081 = vadd.f32 0.0, %v3080
    %v3082 = vpop.f32.mrb[0].mxu0
    %3083 = vdwg.mxu0
    %3088 = vrot.lane.b32.xlu0 %v1000, 96
    %v3089 = vpop.permute.xlu0 %3088
    %3090 = vrot.lane.b32.xlu0 %v1005, 96
    %v3091 = vpop.permute.xlu0 %3090
    %3092 = vrot.lane.b32.xlu0 %v1010, 96
    %v3093 = vpop.permute.xlu0 %3092
    %3094 = vrot.lane.b32.xlu0 %v1015, 96
    %v3095 = vpop.permute.xlu0 %3094
    %v3096 = vsel %vm1310, %v3089, 0
    %v3098 = vsel %vm1310, %v3091, 0
    %v3100 = vsel %vm1310, %v3093, 0
    %v3102 = vsel %vm1310, %v3095, 0
    %3104 = vmatprep.subr.mxu0 0.0
    %3105 = vmatpush1.msra.mxu0 %v1000
    %3106 = vmatprep.subr.mxu0 0.0
    %3107 = vmatpush1.msra.mxu0 %v1005
    %3108 = vmatprep.subr.mxu0 0.0
    %3109 = vmatpush1.msra.mxu0 %v1010
    %3110 = vmatprep.subr.mxu0 0.0
    %3111 = vmatpush1.msra.mxu0 %v1015
    %3112 = vmatprep.subr.mxu0 0.0
    %3113 = vmatpush1.msra.mxu0 0.0
    %3114 = vmatprep.subr.mxu0 0.0
    %3115 = vmatpush1.msra.mxu0 0.0
    %3116 = vmatprep.subr.mxu0 0.0
    %3117 = vmatpush1.msra.mxu0 0.0
    %3118 = vmatprep.subr.mxu0 0.0
    %3119 = vmatpush1.msra.mxu0 0.0
    %3120 = vmatprep.subr.mxu0 0.0
    %3121 = vmatpush1.msra.mxu0 0.0
    %3122 = vmatprep.subr.mxu0 0.0
    %3123 = vmatpush1.msra.mxu0 0.0
    %3124 = vmatprep.subr.mxu0 0.0
    %3125 = vmatpush1.msra.mxu0 0.0
    %3126 = vmatprep.subr.mxu0 0.0
    %3127 = vmatpush1.msra.mxu0 0.0
    %3128 = vmatprep.subr.mxu0 0.0
    %3129 = vmatpush1.msra.mxu0 0.0
    %3130 = vmatprep.subr.mxu0 0.0
    %3131 = vmatpush1.msra.mxu0 0.0
    %3132 = vmatprep.subr.mxu0 0.0
    %3133 = vmatpush1.msra.mxu0 0.0
    %3134 = vmatprep.subr.mxu0 0.0
    %3135 = vmatpush1.msra.mxu0 0.0
    %3136 = vmatprep.subr.mxu0 0.0
    %3137 = vmatpush1.msra.mxu0 0.0
    %3138 = vmatprep.subr.mxu0 0.0
    %3139 = vmatpush1.msra.mxu0 0.0
    %3140 = vmatprep.subr.mxu0 0.0
    %3141 = vmatpush1.msra.mxu0 0.0
    %3142 = vmatprep.subr.mxu0 0.0
    %3143 = vmatpush1.msra.mxu0 0.0
    %3144 = vmatprep.subr.mxu0 0.0
    %3145 = vmatpush1.msra.mxu0 0.0
    %3146 = vmatprep.subr.mxu0 0.0
    %3147 = vmatpush1.msra.mxu0 0.0
    %3148 = vmatprep.subr.mxu0 0.0
    %3149 = vmatpush1.msra.mxu0 0.0
    %3150 = vmatprep.subr.mxu0 0.0
    %3151 = vmatpush1.msra.mxu0 0.0
    %3152 = vmatprep.subr.mxu0 0.0
    %3153 = vmatpush1.msra.mxu0 0.0
    %3154 = vmatprep.subr.mxu0 0.0
    %3155 = vmatpush1.msra.mxu0 0.0
    %3156 = vmatprep.subr.mxu0 0.0
    %3157 = vmatpush1.msra.mxu0 0.0
    %3158 = vmatprep.subr.mxu0 0.0
    %3159 = vmatpush1.msra.mxu0 0.0
    %3160 = vmatprep.subr.mxu0 0.0
    %3161 = vmatpush1.msra.mxu0 0.0
    %3162 = vmatprep.subr.mxu0 0.0
    %3163 = vmatpush1.msra.mxu0 0.0
    %3164 = vmatprep.subr.mxu0 0.0
    %3165 = vmatpush1.msra.mxu0 0.0
    %3166 = vmatprep.subr.mxu0 0.0
    %3167 = vmatpush1.msra.mxu0 0.0
    %3168 = vmatprep.mubr.f32.mxu0 0.0
    %3169 = vmatmul.mubr.f32.gmra.mrb[0].mxu0 %v3096
    %v3170 = vpop.f32.mrb[0].mxu0
    %v3171 = vadd.f32 0.0, %v3170
    %v3172 = vpop.f32.mrb[0].mxu0
    %3173 = vmatprep.mubr.f32.mxu0 0.0
    %3174 = vmatmul.mubr.f32.gmra.mrb[0].mxu0 %v3098
    %v3175 = vpop.f32.mrb[0].mxu0
    %v3176 = vadd.f32 0.0, %v3175
    %v3177 = vpop.f32.mrb[0].mxu0
    %3178 = vmatprep.mubr.f32.mxu0 0.0
    %3179 = vmatmul.mubr.f32.gmra.mrb[0].mxu0 %v3100
    %v3180 = vpop.f32.mrb[0].mxu0
    %v3181 = vadd.f32 0.0, %v3180
    %v3182 = vpop.f32.mrb[0].mxu0
    %3183 = vmatprep.mubr.f32.mxu0 0.0
    %3184 = vmatmul.mubr.f32.gmra.mrb[0].mxu0 %v3102
    %v3185 = vpop.f32.mrb[0].mxu0
    %v3186 = vadd.f32 0.0, %v3185
    %v3187 = vpop.f32.mrb[0].mxu0
    %3188 = vdwg.mxu0
    %3193 = vrot.lane.b32.xlu0 %v1020, 96
    %v3194 = vpop.permute.xlu0 %3193
    %3195 = vrot.lane.b32.xlu0 %v1025, 96
    %v3196 = vpop.permute.xlu0 %3195
    %3197 = vrot.lane.b32.xlu0 %v1030, 96
    %v3198 = vpop.permute.xlu0 %3197
    %3199 = vrot.lane.b32.xlu0 %v1035, 96
    %v3200 = vpop.permute.xlu0 %3199
    %v3201 = vsel %vm1310, %v3194, 0
    %v3203 = vsel %vm1310, %v3196, 0
    %v3205 = vsel %vm1310, %v3198, 0
    %v3207 = vsel %vm1310, %v3200, 0
    %3209 = vmatprep.subr.mxu0 0.0
    %3210 = vmatpush1.msra.mxu0 %v1020
    %3211 = vmatprep.subr.mxu0 0.0
    %3212 = vmatpush1.msra.mxu0 %v1025
    %3213 = vmatprep.subr.mxu0 0.0
    %3214 = vmatpush1.msra.mxu0 %v1030
    %3215 = vmatprep.subr.mxu0 0.0
    %3216 = vmatpush1.msra.mxu0 %v1035
    %3217 = vmatprep.subr.mxu0 0.0
    %3218 = vmatpush1.msra.mxu0 0.0
    %3219 = vmatprep.subr.mxu0 0.0
    %3220 = vmatpush1.msra.mxu0 0.0
    %3221 = vmatprep.subr.mxu0 0.0
    %3222 = vmatpush1.msra.mxu0 0.0
    %3223 = vmatprep.subr.mxu0 0.0
    %3224 = vmatpush1.msra.mxu0 0.0
    %3225 = vmatprep.subr.mxu0 0.0
    %3226 = vmatpush1.msra.mxu0 0.0
    %3227 = vmatprep.subr.mxu0 0.0
    %3228 = vmatpush1.msra.mxu0 0.0
    %3229 = vmatprep.subr.mxu0 0.0
    %3230 = vmatpush1.msra.mxu0 0.0
    %3231 = vmatprep.subr.mxu0 0.0
    %3232 = vmatpush1.msra.mxu0 0.0
    %3233 = vmatprep.subr.mxu0 0.0
    %3234 = vmatpush1.msra.mxu0 0.0
    %3235 = vmatprep.subr.mxu0 0.0
    %3236 = vmatpush1.msra.mxu0 0.0
    %3237 = vmatprep.subr.mxu0 0.0
    %3238 = vmatpush1.msra.mxu0 0.0
    %3239 = vmatprep.subr.mxu0 0.0
    %3240 = vmatpush1.msra.mxu0 0.0
    %3241 = vmatprep.subr.mxu0 0.0
    %3242 = vmatpush1.msra.mxu0 0.0
    %3243 = vmatprep.subr.mxu0 0.0
    %3244 = vmatpush1.msra.mxu0 0.0
    %3245 = vmatprep.subr.mxu0 0.0
    %3246 = vmatpush1.msra.mxu0 0.0
    %3247 = vmatprep.subr.mxu0 0.0
    %3248 = vmatpush1.msra.mxu0 0.0
    %3249 = vmatprep.subr.mxu0 0.0
    %3250 = vmatpush1.msra.mxu0 0.0
    %3251 = vmatprep.subr.mxu0 0.0
    %3252 = vmatpush1.msra.mxu0 0.0
    %3253 = vmatprep.subr.mxu0 0.0
    %3254 = vmatpush1.msra.mxu0 0.0
    %3255 = vmatprep.subr.mxu0 0.0
    %3256 = vmatpush1.msra.mxu0 0.0
    %3257 = vmatprep.subr.mxu0 0.0
    %3258 = vmatpush1.msra.mxu0 0.0
    %3259 = vmatprep.subr.mxu0 0.0
    %3260 = vmatpush1.msra.mxu0 0.0
    %3261 = vmatprep.subr.mxu0 0.0
    %3262 = vmatpush1.msra.mxu0 0.0
    %3263 = vmatprep.subr.mxu0 0.0
    %3264 = vmatpush1.msra.mxu0 0.0
    %3265 = vmatprep.subr.mxu0 0.0
    %3266 = vmatpush1.msra.mxu0 0.0
    %3267 = vmatprep.subr.mxu0 0.0
    %3268 = vmatpush1.msra.mxu0 0.0
    %3269 = vmatprep.subr.mxu0 0.0
    %3270 = vmatpush1.msra.mxu0 0.0
    %3271 = vmatprep.subr.mxu0 0.0
    %3272 = vmatpush1.msra.mxu0 0.0
    %3273 = vmatprep.mubr.f32.mxu0 0.0
    %3274 = vmatmul.mubr.f32.gmra.mrb[0].mxu0 %v3201
    %v3275 = vpop.f32.mrb[0].mxu0
    %v3276 = vadd.f32 0.0, %v3275
    %v3277 = vpop.f32.mrb[0].mxu0
    %3278 = vmatprep.mubr.f32.mxu0 0.0
    %3279 = vmatmul.mubr.f32.gmra.mrb[0].mxu0 %v3203
    %v3280 = vpop.f32.mrb[0].mxu0
    %v3281 = vadd.f32 0.0, %v3280
    %v3282 = vpop.f32.mrb[0].mxu0
    %3283 = vmatprep.mubr.f32.mxu0 0.0
    %3284 = vmatmul.mubr.f32.gmra.mrb[0].mxu0 %v3205
    %v3285 = vpop.f32.mrb[0].mxu0
    %v3286 = vadd.f32 0.0, %v3285
    %v3287 = vpop.f32.mrb[0].mxu0
    %3288 = vmatprep.mubr.f32.mxu0 0.0
    %3289 = vmatmul.mubr.f32.gmra.mrb[0].mxu0 %v3207
    %v3290 = vpop.f32.mrb[0].mxu0
    %v3291 = vadd.f32 0.0, %v3290
    %v3292 = vpop.f32.mrb[0].mxu0
    %3293 = vdwg.mxu0
    %3298 = vrot.lane.b32.xlu0 %v1040, 96
    %v3299 = vpop.permute.xlu0 %3298
    %3300 = vrot.lane.b32.xlu0 %v1045, 96
    %v3301 = vpop.permute.xlu0 %3300
    %3302 = vrot.lane.b32.xlu0 %v1050, 96
    %v3303 = vpop.permute.xlu0 %3302
    %3304 = vrot.lane.b32.xlu0 %v1055, 96
    %v3305 = vpop.permute.xlu0 %3304
    %v3306 = vsel %vm1310, %v3299, 0
    %v3308 = vsel %vm1310, %v3301, 0
    %v3310 = vsel %vm1310, %v3303, 0
    %v3312 = vsel %vm1310, %v3305, 0
    %3314 = vmatprep.subr.mxu0 0.0
    %3315 = vmatpush1.msra.mxu0 %v1040
    %3316 = vmatprep.subr.mxu0 0.0
    %3317 = vmatpush1.msra.mxu0 %v1045
    %3318 = vmatprep.subr.mxu0 0.0
    %3319 = vmatpush1.msra.mxu0 %v1050
    %3320 = vmatprep.subr.mxu0 0.0
    %3321 = vmatpush1.msra.mxu0 %v1055
    %3322 = vmatprep.subr.mxu0 0.0
    %3323 = vmatpush1.msra.mxu0 0.0
    %3324 = vmatprep.subr.mxu0 0.0
    %3325 = vmatpush1.msra.mxu0 0.0
    %3326 = vmatprep.subr.mxu0 0.0
    %3327 = vmatpush1.msra.mxu0 0.0
    %3328 = vmatprep.subr.mxu0 0.0
    %3329 = vmatpush1.msra.mxu0 0.0
    %3330 = vmatprep.subr.mxu0 0.0
    %3331 = vmatpush1.msra.mxu0 0.0
    %3332 = vmatprep.subr.mxu0 0.0
    %3333 = vmatpush1.msra.mxu0 0.0
    %3334 = vmatprep.subr.mxu0 0.0
    %3335 = vmatpush1.msra.mxu0 0.0
    %3336 = vmatprep.subr.mxu0 0.0
    %3337 = vmatpush1.msra.mxu0 0.0
    %3338 = vmatprep.subr.mxu0 0.0
    %3339 = vmatpush1.msra.mxu0 0.0
    %3340 = vmatprep.subr.mxu0 0.0
    %3341 = vmatpush1.msra.mxu0 0.0
    %3342 = vmatprep.subr.mxu0 0.0
    %3343 = vmatpush1.msra.mxu0 0.0
    %3344 = vmatprep.subr.mxu0 0.0
    %3345 = vmatpush1.msra.mxu0 0.0
    %3346 = vmatprep.subr.mxu0 0.0
    %3347 = vmatpush1.msra.mxu0 0.0
    %3348 = vmatprep.subr.mxu0 0.0
    %3349 = vmatpush1.msra.mxu0 0.0
    %3350 = vmatprep.subr.mxu0 0.0
    %3351 = vmatpush1.msra.mxu0 0.0
    %3352 = vmatprep.subr.mxu0 0.0
    %3353 = vmatpush1.msra.mxu0 0.0
    %3354 = vmatprep.subr.mxu0 0.0
    %3355 = vmatpush1.msra.mxu0 0.0
    %3356 = vmatprep.subr.mxu0 0.0
    %3357 = vmatpush1.msra.mxu0 0.0
    %3358 = vmatprep.subr.mxu0 0.0
    %3359 = vmatpush1.msra.mxu0 0.0
    %3360 = vmatprep.subr.mxu0 0.0
    %3361 = vmatpush1.msra.mxu0 0.0
    %3362 = vmatprep.subr.mxu0 0.0
    %3363 = vmatpush1.msra.mxu0 0.0
    %3364 = vmatprep.subr.mxu0 0.0
    %3365 = vmatpush1.msra.mxu0 0.0
    %3366 = vmatprep.subr.mxu0 0.0
    %3367 = vmatpush1.msra.mxu0 0.0
    %3368 = vmatprep.subr.mxu0 0.0
    %3369 = vmatpush1.msra.mxu0 0.0
    %3370 = vmatprep.subr.mxu0 0.0
    %3371 = vmatpush1.msra.mxu0 0.0
    %3372 = vmatprep.subr.mxu0 0.0
    %3373 = vmatpush1.msra.mxu0 0.0
    %3374 = vmatprep.subr.mxu0 0.0
    %3375 = vmatpush1.msra.mxu0 0.0
    %3376 = vmatprep.subr.mxu0 0.0
    %3377 = vmatpush1.msra.mxu0 0.0
    %3378 = vmatprep.mubr.f32.mxu0 0.0
    %3379 = vmatmul.mubr.f32.gmra.mrb[0].mxu0 %v3306
    %v3380 = vpop.f32.mrb[0].mxu0
    %v3381 = vadd.f32 0.0, %v3380
    %v3382 = vpop.f32.mrb[0].mxu0
    %3383 = vmatprep.mubr.f32.mxu0 0.0
    %3384 = vmatmul.mubr.f32.gmra.mrb[0].mxu0 %v3308
    %v3385 = vpop.f32.mrb[0].mxu0
    %v3386 = vadd.f32 0.0, %v3385
    %v3387 = vpop.f32.mrb[0].mxu0
    %3388 = vmatprep.mubr.f32.mxu0 0.0
    %3389 = vmatmul.mubr.f32.gmra.mrb[0].mxu0 %v3310
    %v3390 = vpop.f32.mrb[0].mxu0
    %v3391 = vadd.f32 0.0, %v3390
    %v3392 = vpop.f32.mrb[0].mxu0
    %3393 = vmatprep.mubr.f32.mxu0 0.0
    %3394 = vmatmul.mubr.f32.gmra.mrb[0].mxu0 %v3312
    %v3395 = vpop.f32.mrb[0].mxu0
    %v3396 = vadd.f32 0.0, %v3395
    %v3397 = vpop.f32.mrb[0].mxu0
    %3398 = vdwg.mxu0
    %3403 = vrot.lane.b32.xlu0 %v1060, 96
    %v3404 = vpop.permute.xlu0 %3403
    %3405 = vrot.lane.b32.xlu0 %v1065, 96
    %v3406 = vpop.permute.xlu0 %3405
    %3407 = vrot.lane.b32.xlu0 %v1070, 96
    %v3408 = vpop.permute.xlu0 %3407
    %3409 = vrot.lane.b32.xlu0 %v1075, 96
    %v3410 = vpop.permute.xlu0 %3409
    %v3411 = vsel %vm1310, %v3404, 0
    %v3413 = vsel %vm1310, %v3406, 0
    %v3415 = vsel %vm1310, %v3408, 0
    %v3417 = vsel %vm1310, %v3410, 0
    %3419 = vmatprep.subr.mxu0 0.0
    %3420 = vmatpush1.msra.mxu0 %v1060
    %3421 = vmatprep.subr.mxu0 0.0
    %3422 = vmatpush1.msra.mxu0 %v1065
    %3423 = vmatprep.subr.mxu0 0.0
    %3424 = vmatpush1.msra.mxu0 %v1070
    %3425 = vmatprep.subr.mxu0 0.0
    %3426 = vmatpush1.msra.mxu0 %v1075
    %3427 = vmatprep.subr.mxu0 0.0
    %3428 = vmatpush1.msra.mxu0 0.0
    %3429 = vmatprep.subr.mxu0 0.0
    %3430 = vmatpush1.msra.mxu0 0.0
    %3431 = vmatprep.subr.mxu0 0.0
    %3432 = vmatpush1.msra.mxu0 0.0
    %3433 = vmatprep.subr.mxu0 0.0
    %3434 = vmatpush1.msra.mxu0 0.0
    %3435 = vmatprep.subr.mxu0 0.0
    %3436 = vmatpush1.msra.mxu0 0.0
    %3437 = vmatprep.subr.mxu0 0.0
    %3438 = vmatpush1.msra.mxu0 0.0
    %3439 = vmatprep.subr.mxu0 0.0
    %3440 = vmatpush1.msra.mxu0 0.0
    %3441 = vmatprep.subr.mxu0 0.0
    %3442 = vmatpush1.msra.mxu0 0.0
    %3443 = vmatprep.subr.mxu0 0.0
    %3444 = vmatpush1.msra.mxu0 0.0
    %3445 = vmatprep.subr.mxu0 0.0
    %3446 = vmatpush1.msra.mxu0 0.0
    %3447 = vmatprep.subr.mxu0 0.0
    %3448 = vmatpush1.msra.mxu0 0.0
    %3449 = vmatprep.subr.mxu0 0.0
    %3450 = vmatpush1.msra.mxu0 0.0
    %3451 = vmatprep.subr.mxu0 0.0
    %3452 = vmatpush1.msra.mxu0 0.0
    %3453 = vmatprep.subr.mxu0 0.0
    %3454 = vmatpush1.msra.mxu0 0.0
    %3455 = vmatprep.subr.mxu0 0.0
    %3456 = vmatpush1.msra.mxu0 0.0
    %3457 = vmatprep.subr.mxu0 0.0
    %3458 = vmatpush1.msra.mxu0 0.0
    %3459 = vmatprep.subr.mxu0 0.0
    %3460 = vmatpush1.msra.mxu0 0.0
    %3461 = vmatprep.subr.mxu0 0.0
    %3462 = vmatpush1.msra.mxu0 0.0
    %3463 = vmatprep.subr.mxu0 0.0
    %3464 = vmatpush1.msra.mxu0 0.0
    %3465 = vmatprep.subr.mxu0 0.0
    %3466 = vmatpush1.msra.mxu0 0.0
    %3467 = vmatprep.subr.mxu0 0.0
    %3468 = vmatpush1.msra.mxu0 0.0
    %3469 = vmatprep.subr.mxu0 0.0
    %3470 = vmatpush1.msra.mxu0 0.0
    %3471 = vmatprep.subr.mxu0 0.0
    %3472 = vmatpush1.msra.mxu0 0.0
    %3473 = vmatprep.subr.mxu0 0.0
    %3474 = vmatpush1.msra.mxu0 0.0
    %3475 = vmatprep.subr.mxu0 0.0
    %3476 = vmatpush1.msra.mxu0 0.0
    %3477 = vmatprep.subr.mxu0 0.0
    %3478 = vmatpush1.msra.mxu0 0.0
    %3479 = vmatprep.subr.mxu0 0.0
    %3480 = vmatpush1.msra.mxu0 0.0
    %3481 = vmatprep.subr.mxu0 0.0
    %3482 = vmatpush1.msra.mxu0 0.0
    %3483 = vmatprep.mubr.f32.mxu0 0.0
    %3484 = vmatmul.mubr.f32.gmra.mrb[0].mxu0 %v3411
    %v3485 = vpop.f32.mrb[0].mxu0
    %v3486 = vadd.f32 0.0, %v3485
    %v3487 = vpop.f32.mrb[0].mxu0
    %3488 = vmatprep.mubr.f32.mxu0 0.0
    %3489 = vmatmul.mubr.f32.gmra.mrb[0].mxu0 %v3413
    %v3490 = vpop.f32.mrb[0].mxu0
    %v3491 = vadd.f32 0.0, %v3490
    %v3492 = vpop.f32.mrb[0].mxu0
    %3493 = vmatprep.mubr.f32.mxu0 0.0
    %3494 = vmatmul.mubr.f32.gmra.mrb[0].mxu0 %v3415
    %v3495 = vpop.f32.mrb[0].mxu0
    %v3496 = vadd.f32 0.0, %v3495
    %v3497 = vpop.f32.mrb[0].mxu0
    %3498 = vmatprep.mubr.f32.mxu0 0.0
    %3499 = vmatmul.mubr.f32.gmra.mrb[0].mxu0 %v3417
    %v3500 = vpop.f32.mrb[0].mxu0
    %v3501 = vadd.f32 0.0, %v3500
    %v3502 = vpop.f32.mrb[0].mxu0
    %3503 = vdwg.mxu0
    %3508 = vrot.lane.b32.xlu0 %v1080, 96
    %v3509 = vpop.permute.xlu0 %3508
    %3510 = vrot.lane.b32.xlu0 %v1085, 96
    %v3511 = vpop.permute.xlu0 %3510
    %3512 = vrot.lane.b32.xlu0 %v1090, 96
    %v3513 = vpop.permute.xlu0 %3512
    %3514 = vrot.lane.b32.xlu0 %v1095, 96
    %v3515 = vpop.permute.xlu0 %3514
    %v3516 = vsel %vm1310, %v3509, 0
    %v3518 = vsel %vm1310, %v3511, 0
    %v3520 = vsel %vm1310, %v3513, 0
    %v3522 = vsel %vm1310, %v3515, 0
    %3524 = vmatprep.subr.mxu0 0.0
    %3525 = vmatpush1.msra.mxu0 %v1080
    %3526 = vmatprep.subr.mxu0 0.0
    %3527 = vmatpush1.msra.mxu0 %v1085
    %3528 = vmatprep.subr.mxu0 0.0
    %3529 = vmatpush1.msra.mxu0 %v1090
    %3530 = vmatprep.subr.mxu0 0.0
    %3531 = vmatpush1.msra.mxu0 %v1095
    %3532 = vmatprep.subr.mxu0 0.0
    %3533 = vmatpush1.msra.mxu0 0.0
    %3534 = vmatprep.subr.mxu0 0.0
    %3535 = vmatpush1.msra.mxu0 0.0
    %3536 = vmatprep.subr.mxu0 0.0
    %3537 = vmatpush1.msra.mxu0 0.0
    %3538 = vmatprep.subr.mxu0 0.0
    %3539 = vmatpush1.msra.mxu0 0.0
    %3540 = vmatprep.subr.mxu0 0.0
    %3541 = vmatpush1.msra.mxu0 0.0
    %3542 = vmatprep.subr.mxu0 0.0
    %3543 = vmatpush1.msra.mxu0 0.0
    %3544 = vmatprep.subr.mxu0 0.0
    %3545 = vmatpush1.msra.mxu0 0.0
    %3546 = vmatprep.subr.mxu0 0.0
    %3547 = vmatpush1.msra.mxu0 0.0
    %3548 = vmatprep.subr.mxu0 0.0
    %3549 = vmatpush1.msra.mxu0 0.0
    %3550 = vmatprep.subr.mxu0 0.0
    %3551 = vmatpush1.msra.mxu0 0.0
    %3552 = vmatprep.subr.mxu0 0.0
    %3553 = vmatpush1.msra.mxu0 0.0
    %3554 = vmatprep.subr.mxu0 0.0
    %3555 = vmatpush1.msra.mxu0 0.0
    %3556 = vmatprep.subr.mxu0 0.0
    %3557 = vmatpush1.msra.mxu0 0.0
    %3558 = vmatprep.subr.mxu0 0.0
    %3559 = vmatpush1.msra.mxu0 0.0
    %3560 = vmatprep.subr.mxu0 0.0
    %3561 = vmatpush1.msra.mxu0 0.0
    %3562 = vmatprep.subr.mxu0 0.0
    %3563 = vmatpush1.msra.mxu0 0.0
    %3564 = vmatprep.subr.mxu0 0.0
    %3565 = vmatpush1.msra.mxu0 0.0
    %3566 = vmatprep.subr.mxu0 0.0
    %3567 = vmatpush1.msra.mxu0 0.0
    %3568 = vmatprep.subr.mxu0 0.0
    %3569 = vmatpush1.msra.mxu0 0.0
    %3570 = vmatprep.subr.mxu0 0.0
    %3571 = vmatpush1.msra.mxu0 0.0
    %3572 = vmatprep.subr.mxu0 0.0
    %3573 = vmatpush1.msra.mxu0 0.0
    %3574 = vmatprep.subr.mxu0 0.0
    %3575 = vmatpush1.msra.mxu0 0.0
    %3576 = vmatprep.subr.mxu0 0.0
    %3577 = vmatpush1.msra.mxu0 0.0
    %3578 = vmatprep.subr.mxu0 0.0
    %3579 = vmatpush1.msra.mxu0 0.0
    %3580 = vmatprep.subr.mxu0 0.0
    %3581 = vmatpush1.msra.mxu0 0.0
    %3582 = vmatprep.subr.mxu0 0.0
    %3583 = vmatpush1.msra.mxu0 0.0
    %3584 = vmatprep.subr.mxu0 0.0
    %3585 = vmatpush1.msra.mxu0 0.0
    %3586 = vmatprep.subr.mxu0 0.0
    %3587 = vmatpush1.msra.mxu0 0.0
    %3588 = vmatprep.mubr.f32.mxu0 0.0
    %3589 = vmatmul.mubr.f32.gmra.mrb[0].mxu0 %v3516
    %v3590 = vpop.f32.mrb[0].mxu0
    %v3591 = vadd.f32 0.0, %v3590
    %v3592 = vpop.f32.mrb[0].mxu0
    %3593 = vmatprep.mubr.f32.mxu0 0.0
    %3594 = vmatmul.mubr.f32.gmra.mrb[0].mxu0 %v3518
    %v3595 = vpop.f32.mrb[0].mxu0
    %v3596 = vadd.f32 0.0, %v3595
    %v3597 = vpop.f32.mrb[0].mxu0
    %3598 = vmatprep.mubr.f32.mxu0 0.0
    %3599 = vmatmul.mubr.f32.gmra.mrb[0].mxu0 %v3520
    %v3600 = vpop.f32.mrb[0].mxu0
    %v3601 = vadd.f32 0.0, %v3600
    %v3602 = vpop.f32.mrb[0].mxu0
    %3603 = vmatprep.mubr.f32.mxu0 0.0
    %3604 = vmatmul.mubr.f32.gmra.mrb[0].mxu0 %v3522
    %v3605 = vpop.f32.mrb[0].mxu0
    %v3606 = vadd.f32 0.0, %v3605
    %v3607 = vpop.f32.mrb[0].mxu0
    %3608 = vdwg.mxu0
    %3613 = vrot.lane.b32.xlu0 %v1100, 96
    %v3614 = vpop.permute.xlu0 %3613
    %3615 = vrot.lane.b32.xlu0 %v1105, 96
    %v3616 = vpop.permute.xlu0 %3615
    %3617 = vrot.lane.b32.xlu0 %v1110, 96
    %v3618 = vpop.permute.xlu0 %3617
    %3619 = vrot.lane.b32.xlu0 %v1115, 96
    %v3620 = vpop.permute.xlu0 %3619
    %v3621 = vsel %vm1310, %v3614, 0
    %v3623 = vsel %vm1310, %v3616, 0
    %v3625 = vsel %vm1310, %v3618, 0
    %v3627 = vsel %vm1310, %v3620, 0
    %3629 = vmatprep.subr.mxu0 0.0
    %3630 = vmatpush1.msra.mxu0 %v1100
    %3631 = vmatprep.subr.mxu0 0.0
    %3632 = vmatpush1.msra.mxu0 %v1105
    %3633 = vmatprep.subr.mxu0 0.0
    %3634 = vmatpush1.msra.mxu0 %v1110
    %3635 = vmatprep.subr.mxu0 0.0
    %3636 = vmatpush1.msra.mxu0 %v1115
    %3637 = vmatprep.subr.mxu0 0.0
    %3638 = vmatpush1.msra.mxu0 0.0
    %3639 = vmatprep.subr.mxu0 0.0
    %3640 = vmatpush1.msra.mxu0 0.0
    %3641 = vmatprep.subr.mxu0 0.0
    %3642 = vmatpush1.msra.mxu0 0.0
    %3643 = vmatprep.subr.mxu0 0.0
    %3644 = vmatpush1.msra.mxu0 0.0
    %3645 = vmatprep.subr.mxu0 0.0
    %3646 = vmatpush1.msra.mxu0 0.0
    %3647 = vmatprep.subr.mxu0 0.0
    %3648 = vmatpush1.msra.mxu0 0.0
    %3649 = vmatprep.subr.mxu0 0.0
    %3650 = vmatpush1.msra.mxu0 0.0
    %3651 = vmatprep.subr.mxu0 0.0
    %3652 = vmatpush1.msra.mxu0 0.0
    %3653 = vmatprep.subr.mxu0 0.0
    %3654 = vmatpush1.msra.mxu0 0.0
    %3655 = vmatprep.subr.mxu0 0.0
    %3656 = vmatpush1.msra.mxu0 0.0
    %3657 = vmatprep.subr.mxu0 0.0
    %3658 = vmatpush1.msra.mxu0 0.0
    %3659 = vmatprep.subr.mxu0 0.0
    %3660 = vmatpush1.msra.mxu0 0.0
    %3661 = vmatprep.subr.mxu0 0.0
    %3662 = vmatpush1.msra.mxu0 0.0
    %3663 = vmatprep.subr.mxu0 0.0
    %3664 = vmatpush1.msra.mxu0 0.0
    %3665 = vmatprep.subr.mxu0 0.0
    %3666 = vmatpush1.msra.mxu0 0.0
    %3667 = vmatprep.subr.mxu0 0.0
    %3668 = vmatpush1.msra.mxu0 0.0
    %3669 = vmatprep.subr.mxu0 0.0
    %3670 = vmatpush1.msra.mxu0 0.0
    %3671 = vmatprep.subr.mxu0 0.0
    %3672 = vmatpush1.msra.mxu0 0.0
    %3673 = vmatprep.subr.mxu0 0.0
    %3674 = vmatpush1.msra.mxu0 0.0
    %3675 = vmatprep.subr.mxu0 0.0
    %3676 = vmatpush1.msra.mxu0 0.0
    %3677 = vmatprep.subr.mxu0 0.0
    %3678 = vmatpush1.msra.mxu0 0.0
    %3679 = vmatprep.subr.mxu0 0.0
    %3680 = vmatpush1.msra.mxu0 0.0
    %3681 = vmatprep.subr.mxu0 0.0
    %3682 = vmatpush1.msra.mxu0 0.0
    %3683 = vmatprep.subr.mxu0 0.0
    %3684 = vmatpush1.msra.mxu0 0.0
    %3685 = vmatprep.subr.mxu0 0.0
    %3686 = vmatpush1.msra.mxu0 0.0
    %3687 = vmatprep.subr.mxu0 0.0
    %3688 = vmatpush1.msra.mxu0 0.0
    %3689 = vmatprep.subr.mxu0 0.0
    %3690 = vmatpush1.msra.mxu0 0.0
    %3691 = vmatprep.subr.mxu0 0.0
    %3692 = vmatpush1.msra.mxu0 0.0
    %3693 = vmatprep.mubr.f32.mxu0 0.0
    %3694 = vmatmul.mubr.f32.gmra.mrb[0].mxu0 %v3621
    %v3695 = vpop.f32.mrb[0].mxu0
    %v3696 = vadd.f32 0.0, %v3695
    %v3697 = vpop.f32.mrb[0].mxu0
    %3698 = vmatprep.mubr.f32.mxu0 0.0
    %3699 = vmatmul.mubr.f32.gmra.mrb[0].mxu0 %v3623
    %v3700 = vpop.f32.mrb[0].mxu0
    %v3701 = vadd.f32 0.0, %v3700
    %v3702 = vpop.f32.mrb[0].mxu0
    %3703 = vmatprep.mubr.f32.mxu0 0.0
    %3704 = vmatmul.mubr.f32.gmra.mrb[0].mxu0 %v3625
    %v3705 = vpop.f32.mrb[0].mxu0
    %v3706 = vadd.f32 0.0, %v3705
    %v3707 = vpop.f32.mrb[0].mxu0
    %3708 = vmatprep.mubr.f32.mxu0 0.0
    %3709 = vmatmul.mubr.f32.gmra.mrb[0].mxu0 %v3627
    %v3710 = vpop.f32.mrb[0].mxu0
    %v3711 = vadd.f32 0.0, %v3710
    %v3712 = vpop.f32.mrb[0].mxu0
    %3713 = vdwg.mxu0
    %3718 = vrot.lane.b32.xlu0 %v1120, 96
    %v3719 = vpop.permute.xlu0 %3718
    %3720 = vrot.lane.b32.xlu0 %v1125, 96
    %v3721 = vpop.permute.xlu0 %3720
    %3722 = vrot.lane.b32.xlu0 %v1130, 96
    %v3723 = vpop.permute.xlu0 %3722
    %3724 = vrot.lane.b32.xlu0 %v1135, 96
    %v3725 = vpop.permute.xlu0 %3724
    %v3726 = vsel %vm1310, %v3719, 0
    %v3728 = vsel %vm1310, %v3721, 0
    %v3730 = vsel %vm1310, %v3723, 0
    %v3732 = vsel %vm1310, %v3725, 0
    %3734 = vmatprep.subr.mxu0 0.0
    %3735 = vmatpush1.msra.mxu0 %v1120
    %3736 = vmatprep.subr.mxu0 0.0
    %3737 = vmatpush1.msra.mxu0 %v1125
    %3738 = vmatprep.subr.mxu0 0.0
    %3739 = vmatpush1.msra.mxu0 %v1130
    %3740 = vmatprep.subr.mxu0 0.0
    %3741 = vmatpush1.msra.mxu0 %v1135
    %3742 = vmatprep.subr.mxu0 0.0
    %3743 = vmatpush1.msra.mxu0 0.0
    %3744 = vmatprep.subr.mxu0 0.0
    %3745 = vmatpush1.msra.mxu0 0.0
    %3746 = vmatprep.subr.mxu0 0.0
    %3747 = vmatpush1.msra.mxu0 0.0
    %3748 = vmatprep.subr.mxu0 0.0
    %3749 = vmatpush1.msra.mxu0 0.0
    %3750 = vmatprep.subr.mxu0 0.0
    %3751 = vmatpush1.msra.mxu0 0.0
    %3752 = vmatprep.subr.mxu0 0.0
    %3753 = vmatpush1.msra.mxu0 0.0
    %3754 = vmatprep.subr.mxu0 0.0
    %3755 = vmatpush1.msra.mxu0 0.0
    %3756 = vmatprep.subr.mxu0 0.0
    %3757 = vmatpush1.msra.mxu0 0.0
    %3758 = vmatprep.subr.mxu0 0.0
    %3759 = vmatpush1.msra.mxu0 0.0
    %3760 = vmatprep.subr.mxu0 0.0
    %3761 = vmatpush1.msra.mxu0 0.0
    %3762 = vmatprep.subr.mxu0 0.0
    %3763 = vmatpush1.msra.mxu0 0.0
    %3764 = vmatprep.subr.mxu0 0.0
    %3765 = vmatpush1.msra.mxu0 0.0
    %3766 = vmatprep.subr.mxu0 0.0
    %3767 = vmatpush1.msra.mxu0 0.0
    %3768 = vmatprep.subr.mxu0 0.0
    %3769 = vmatpush1.msra.mxu0 0.0
    %3770 = vmatprep.subr.mxu0 0.0
    %3771 = vmatpush1.msra.mxu0 0.0
    %3772 = vmatprep.subr.mxu0 0.0
    %3773 = vmatpush1.msra.mxu0 0.0
    %3774 = vmatprep.subr.mxu0 0.0
    %3775 = vmatpush1.msra.mxu0 0.0
    %3776 = vmatprep.subr.mxu0 0.0
    %3777 = vmatpush1.msra.mxu0 0.0
    %3778 = vmatprep.subr.mxu0 0.0
    %3779 = vmatpush1.msra.mxu0 0.0
    %3780 = vmatprep.subr.mxu0 0.0
    %3781 = vmatpush1.msra.mxu0 0.0
    %3782 = vmatprep.subr.mxu0 0.0
    %3783 = vmatpush1.msra.mxu0 0.0
    %3784 = vmatprep.subr.mxu0 0.0
    %3785 = vmatpush1.msra.mxu0 0.0
    %3786 = vmatprep.subr.mxu0 0.0
    %3787 = vmatpush1.msra.mxu0 0.0
    %3788 = vmatprep.subr.mxu0 0.0
    %3789 = vmatpush1.msra.mxu0 0.0
    %3790 = vmatprep.subr.mxu0 0.0
    %3791 = vmatpush1.msra.mxu0 0.0
    %3792 = vmatprep.subr.mxu0 0.0
    %3793 = vmatpush1.msra.mxu0 0.0
    %3794 = vmatprep.subr.mxu0 0.0
    %3795 = vmatpush1.msra.mxu0 0.0
    %3796 = vmatprep.subr.mxu0 0.0
    %3797 = vmatpush1.msra.mxu0 0.0
    %3798 = vmatprep.mubr.f32.mxu0 0.0
    %3799 = vmatmul.mubr.f32.gmra.mrb[0].mxu0 %v3726
    %v3800 = vpop.f32.mrb[0].mxu0
    %v3801 = vadd.f32 0.0, %v3800
    %v3802 = vpop.f32.mrb[0].mxu0
    %3803 = vmatprep.mubr.f32.mxu0 0.0
    %3804 = vmatmul.mubr.f32.gmra.mrb[0].mxu0 %v3728
    %v3805 = vpop.f32.mrb[0].mxu0
    %v3806 = vadd.f32 0.0, %v3805
    %v3807 = vpop.f32.mrb[0].mxu0
    %3808 = vmatprep.mubr.f32.mxu0 0.0
    %3809 = vmatmul.mubr.f32.gmra.mrb[0].mxu0 %v3730
    %v3810 = vpop.f32.mrb[0].mxu0
    %v3811 = vadd.f32 0.0, %v3810
    %v3812 = vpop.f32.mrb[0].mxu0
    %3813 = vmatprep.mubr.f32.mxu0 0.0
    %3814 = vmatmul.mubr.f32.gmra.mrb[0].mxu0 %v3732
    %v3815 = vpop.f32.mrb[0].mxu0
    %v3816 = vadd.f32 0.0, %v3815
    %v3817 = vpop.f32.mrb[0].mxu0
    %3818 = vdwg.mxu0
    %3823 = vrot.lane.b32.xlu0 %v1140, 96
    %v3824 = vpop.permute.xlu0 %3823
    %3825 = vrot.lane.b32.xlu0 %v1145, 96
    %v3826 = vpop.permute.xlu0 %3825
    %3827 = vrot.lane.b32.xlu0 %v1150, 96
    %v3828 = vpop.permute.xlu0 %3827
    %3829 = vrot.lane.b32.xlu0 %v1155, 96
    %v3830 = vpop.permute.xlu0 %3829
    %v3831 = vsel %vm1310, %v3824, 0
    %v3833 = vsel %vm1310, %v3826, 0
    %v3835 = vsel %vm1310, %v3828, 0
    %v3837 = vsel %vm1310, %v3830, 0
    %3839 = vmatprep.subr.mxu0 0.0
    %3840 = vmatpush1.msra.mxu0 %v1140
    %3841 = vmatprep.subr.mxu0 0.0
    %3842 = vmatpush1.msra.mxu0 %v1145
    %3843 = vmatprep.subr.mxu0 0.0
    %3844 = vmatpush1.msra.mxu0 %v1150
    %3845 = vmatprep.subr.mxu0 0.0
    %3846 = vmatpush1.msra.mxu0 %v1155
    %3847 = vmatprep.subr.mxu0 0.0
    %3848 = vmatpush1.msra.mxu0 0.0
    %3849 = vmatprep.subr.mxu0 0.0
    %3850 = vmatpush1.msra.mxu0 0.0
    %3851 = vmatprep.subr.mxu0 0.0
    %3852 = vmatpush1.msra.mxu0 0.0
    %3853 = vmatprep.subr.mxu0 0.0
    %3854 = vmatpush1.msra.mxu0 0.0
    %3855 = vmatprep.subr.mxu0 0.0
    %3856 = vmatpush1.msra.mxu0 0.0
    %3857 = vmatprep.subr.mxu0 0.0
    %3858 = vmatpush1.msra.mxu0 0.0
    %3859 = vmatprep.subr.mxu0 0.0
    %3860 = vmatpush1.msra.mxu0 0.0
    %3861 = vmatprep.subr.mxu0 0.0
    %3862 = vmatpush1.msra.mxu0 0.0
    %3863 = vmatprep.subr.mxu0 0.0
    %3864 = vmatpush1.msra.mxu0 0.0
    %3865 = vmatprep.subr.mxu0 0.0
    %3866 = vmatpush1.msra.mxu0 0.0
    %3867 = vmatprep.subr.mxu0 0.0
    %3868 = vmatpush1.msra.mxu0 0.0
    %3869 = vmatprep.subr.mxu0 0.0
    %3870 = vmatpush1.msra.mxu0 0.0
    %3871 = vmatprep.subr.mxu0 0.0
    %3872 = vmatpush1.msra.mxu0 0.0
    %3873 = vmatprep.subr.mxu0 0.0
    %3874 = vmatpush1.msra.mxu0 0.0
    %3875 = vmatprep.subr.mxu0 0.0
    %3876 = vmatpush1.msra.mxu0 0.0
    %3877 = vmatprep.subr.mxu0 0.0
    %3878 = vmatpush1.msra.mxu0 0.0
    %3879 = vmatprep.subr.mxu0 0.0
    %3880 = vmatpush1.msra.mxu0 0.0
    %3881 = vmatprep.subr.mxu0 0.0
    %3882 = vmatpush1.msra.mxu0 0.0
    %3883 = vmatprep.subr.mxu0 0.0
    %3884 = vmatpush1.msra.mxu0 0.0
    %3885 = vmatprep.subr.mxu0 0.0
    %3886 = vmatpush1.msra.mxu0 0.0
    %3887 = vmatprep.subr.mxu0 0.0
    %3888 = vmatpush1.msra.mxu0 0.0
    %3889 = vmatprep.subr.mxu0 0.0
    %3890 = vmatpush1.msra.mxu0 0.0
    %3891 = vmatprep.subr.mxu0 0.0
    %3892 = vmatpush1.msra.mxu0 0.0
    %3893 = vmatprep.subr.mxu0 0.0
    %3894 = vmatpush1.msra.mxu0 0.0
    %3895 = vmatprep.subr.mxu0 0.0
    %3896 = vmatpush1.msra.mxu0 0.0
    %3897 = vmatprep.subr.mxu0 0.0
    %3898 = vmatpush1.msra.mxu0 0.0
    %3899 = vmatprep.subr.mxu0 0.0
    %3900 = vmatpush1.msra.mxu0 0.0
    %3901 = vmatprep.subr.mxu0 0.0
    %3902 = vmatpush1.msra.mxu0 0.0
    %3903 = vmatprep.mubr.f32.mxu0 0.0
    %3904 = vmatmul.mubr.f32.gmra.mrb[0].mxu0 %v3831
    %v3905 = vpop.f32.mrb[0].mxu0
    %v3906 = vadd.f32 0.0, %v3905
    %v3907 = vpop.f32.mrb[0].mxu0
    %3908 = vmatprep.mubr.f32.mxu0 0.0
    %3909 = vmatmul.mubr.f32.gmra.mrb[0].mxu0 %v3833
    %v3910 = vpop.f32.mrb[0].mxu0
    %v3911 = vadd.f32 0.0, %v3910
    %v3912 = vpop.f32.mrb[0].mxu0
    %3913 = vmatprep.mubr.f32.mxu0 0.0
    %3914 = vmatmul.mubr.f32.gmra.mrb[0].mxu0 %v3835
    %v3915 = vpop.f32.mrb[0].mxu0
    %v3916 = vadd.f32 0.0, %v3915
    %v3917 = vpop.f32.mrb[0].mxu0
    %3918 = vmatprep.mubr.f32.mxu0 0.0
    %3919 = vmatmul.mubr.f32.gmra.mrb[0].mxu0 %v3837
    %v3920 = vpop.f32.mrb[0].mxu0
    %v3921 = vadd.f32 0.0, %v3920
    %v3922 = vpop.f32.mrb[0].mxu0
    %3923 = vdwg.mxu0
    %3928 = vrot.lane.b32.xlu0 %v1160, 96
    %v3929 = vpop.permute.xlu0 %3928
    %3930 = vrot.lane.b32.xlu0 %v1165, 96
    %v3931 = vpop.permute.xlu0 %3930
    %3932 = vrot.lane.b32.xlu0 %v1170, 96
    %v3933 = vpop.permute.xlu0 %3932
    %3934 = vrot.lane.b32.xlu0 %v1175, 96
    %v3935 = vpop.permute.xlu0 %3934
    %v3936 = vsel %vm1310, %v3929, 0
    %v3938 = vsel %vm1310, %v3931, 0
    %v3940 = vsel %vm1310, %v3933, 0
    %v3942 = vsel %vm1310, %v3935, 0
    %3944 = vmatprep.subr.mxu0 0.0
    %3945 = vmatpush1.msra.mxu0 %v1160
    %3946 = vmatprep.subr.mxu0 0.0
    %3947 = vmatpush1.msra.mxu0 %v1165
    %3948 = vmatprep.subr.mxu0 0.0
    %3949 = vmatpush1.msra.mxu0 %v1170
    %3950 = vmatprep.subr.mxu0 0.0
    %3951 = vmatpush1.msra.mxu0 %v1175
    %3952 = vmatprep.subr.mxu0 0.0
    %3953 = vmatpush1.msra.mxu0 0.0
    %3954 = vmatprep.subr.mxu0 0.0
    %3955 = vmatpush1.msra.mxu0 0.0
    %3956 = vmatprep.subr.mxu0 0.0
    %3957 = vmatpush1.msra.mxu0 0.0
    %3958 = vmatprep.subr.mxu0 0.0
    %3959 = vmatpush1.msra.mxu0 0.0
    %3960 = vmatprep.subr.mxu0 0.0
    %3961 = vmatpush1.msra.mxu0 0.0
    %3962 = vmatprep.subr.mxu0 0.0
    %3963 = vmatpush1.msra.mxu0 0.0
    %3964 = vmatprep.subr.mxu0 0.0
    %3965 = vmatpush1.msra.mxu0 0.0
    %3966 = vmatprep.subr.mxu0 0.0
    %3967 = vmatpush1.msra.mxu0 0.0
    %3968 = vmatprep.subr.mxu0 0.0
    %3969 = vmatpush1.msra.mxu0 0.0
    %3970 = vmatprep.subr.mxu0 0.0
    %3971 = vmatpush1.msra.mxu0 0.0
    %3972 = vmatprep.subr.mxu0 0.0
    %3973 = vmatpush1.msra.mxu0 0.0
    %3974 = vmatprep.subr.mxu0 0.0
    %3975 = vmatpush1.msra.mxu0 0.0
    %3976 = vmatprep.subr.mxu0 0.0
    %3977 = vmatpush1.msra.mxu0 0.0
    %3978 = vmatprep.subr.mxu0 0.0
    %3979 = vmatpush1.msra.mxu0 0.0
    %3980 = vmatprep.subr.mxu0 0.0
    %3981 = vmatpush1.msra.mxu0 0.0
    %3982 = vmatprep.subr.mxu0 0.0
    %3983 = vmatpush1.msra.mxu0 0.0
    %3984 = vmatprep.subr.mxu0 0.0
    %3985 = vmatpush1.msra.mxu0 0.0
    %3986 = vmatprep.subr.mxu0 0.0
    %3987 = vmatpush1.msra.mxu0 0.0
    %3988 = vmatprep.subr.mxu0 0.0
    %3989 = vmatpush1.msra.mxu0 0.0
    %3990 = vmatprep.subr.mxu0 0.0
    %3991 = vmatpush1.msra.mxu0 0.0
    %3992 = vmatprep.subr.mxu0 0.0
    %3993 = vmatpush1.msra.mxu0 0.0
    %3994 = vmatprep.subr.mxu0 0.0
    %3995 = vmatpush1.msra.mxu0 0.0
    %3996 = vmatprep.subr.mxu0 0.0
    %3997 = vmatpush1.msra.mxu0 0.0
    %3998 = vmatprep.subr.mxu0 0.0
    %3999 = vmatpush1.msra.mxu0 0.0
    %4000 = vmatprep.subr.mxu0 0.0
    %4001 = vmatpush1.msra.mxu0 0.0
    %4002 = vmatprep.subr.mxu0 0.0
    %4003 = vmatpush1.msra.mxu0 0.0
    %4004 = vmatprep.subr.mxu0 0.0
    %4005 = vmatpush1.msra.mxu0 0.0
    %4006 = vmatprep.subr.mxu0 0.0
    %4007 = vmatpush1.msra.mxu0 0.0
    %4008 = vmatprep.mubr.f32.mxu0 0.0
    %4009 = vmatmul.mubr.f32.gmra.mrb[0].mxu0 %v3936
    %v4010 = vpop.f32.mrb[0].mxu0
    %v4011 = vadd.f32 0.0, %v4010
    %v4012 = vpop.f32.mrb[0].mxu0
    %4013 = vmatprep.mubr.f32.mxu0 0.0
    %4014 = vmatmul.mubr.f32.gmra.mrb[0].mxu0 %v3938
    %v4015 = vpop.f32.mrb[0].mxu0
    %v4016 = vadd.f32 0.0, %v4015
    %v4017 = vpop.f32.mrb[0].mxu0
    %4018 = vmatprep.mubr.f32.mxu0 0.0
    %4019 = vmatmul.mubr.f32.gmra.mrb[0].mxu0 %v3940
    %v4020 = vpop.f32.mrb[0].mxu0
    %v4021 = vadd.f32 0.0, %v4020
    %v4022 = vpop.f32.mrb[0].mxu0
    %4023 = vmatprep.mubr.f32.mxu0 0.0
    %4024 = vmatmul.mubr.f32.gmra.mrb[0].mxu0 %v3942
    %v4025 = vpop.f32.mrb[0].mxu0
    %v4026 = vadd.f32 0.0, %v4025
    %v4027 = vpop.f32.mrb[0].mxu0
    %4028 = vdwg.mxu0
    %4033 = vrot.lane.b32.xlu0 %v1180, 96
    %v4034 = vpop.permute.xlu0 %4033
    %4035 = vrot.lane.b32.xlu0 %v1185, 96
    %v4036 = vpop.permute.xlu0 %4035
    %4037 = vrot.lane.b32.xlu0 %v1190, 96
    %v4038 = vpop.permute.xlu0 %4037
    %4039 = vrot.lane.b32.xlu0 %v1195, 96
    %v4040 = vpop.permute.xlu0 %4039
    %v4041 = vsel %vm1310, %v4034, 0
    %v4043 = vsel %vm1310, %v4036, 0
    %v4045 = vsel %vm1310, %v4038, 0
    %v4047 = vsel %vm1310, %v4040, 0
    %4049 = vmatprep.subr.mxu0 0.0
    %4050 = vmatpush1.msra.mxu0 %v1180
    %4051 = vmatprep.subr.mxu0 0.0
    %4052 = vmatpush1.msra.mxu0 %v1185
    %4053 = vmatprep.subr.mxu0 0.0
    %4054 = vmatpush1.msra.mxu0 %v1190
    %4055 = vmatprep.subr.mxu0 0.0
    %4056 = vmatpush1.msra.mxu0 %v1195
    %4057 = vmatprep.subr.mxu0 0.0
    %4058 = vmatpush1.msra.mxu0 0.0
    %4059 = vmatprep.subr.mxu0 0.0
    %4060 = vmatpush1.msra.mxu0 0.0
    %4061 = vmatprep.subr.mxu0 0.0
    %4062 = vmatpush1.msra.mxu0 0.0
    %4063 = vmatprep.subr.mxu0 0.0
    %4064 = vmatpush1.msra.mxu0 0.0
    %4065 = vmatprep.subr.mxu0 0.0
    %4066 = vmatpush1.msra.mxu0 0.0
    %4067 = vmatprep.subr.mxu0 0.0
    %4068 = vmatpush1.msra.mxu0 0.0
    %4069 = vmatprep.subr.mxu0 0.0
    %4070 = vmatpush1.msra.mxu0 0.0
    %4071 = vmatprep.subr.mxu0 0.0
    %4072 = vmatpush1.msra.mxu0 0.0
    %4073 = vmatprep.subr.mxu0 0.0
    %4074 = vmatpush1.msra.mxu0 0.0
    %4075 = vmatprep.subr.mxu0 0.0
    %4076 = vmatpush1.msra.mxu0 0.0
    %4077 = vmatprep.subr.mxu0 0.0
    %4078 = vmatpush1.msra.mxu0 0.0
    %4079 = vmatprep.subr.mxu0 0.0
    %4080 = vmatpush1.msra.mxu0 0.0
    %4081 = vmatprep.subr.mxu0 0.0
    %4082 = vmatpush1.msra.mxu0 0.0
    %4083 = vmatprep.subr.mxu0 0.0
    %4084 = vmatpush1.msra.mxu0 0.0
    %4085 = vmatprep.subr.mxu0 0.0
    %4086 = vmatpush1.msra.mxu0 0.0
    %4087 = vmatprep.subr.mxu0 0.0
    %4088 = vmatpush1.msra.mxu0 0.0
    %4089 = vmatprep.subr.mxu0 0.0
    %4090 = vmatpush1.msra.mxu0 0.0
    %4091 = vmatprep.subr.mxu0 0.0
    %4092 = vmatpush1.msra.mxu0 0.0
    %4093 = vmatprep.subr.mxu0 0.0
    %4094 = vmatpush1.msra.mxu0 0.0
    %4095 = vmatprep.subr.mxu0 0.0
    %4096 = vmatpush1.msra.mxu0 0.0
    %4097 = vmatprep.subr.mxu0 0.0
    %4098 = vmatpush1.msra.mxu0 0.0
    %4099 = vmatprep.subr.mxu0 0.0
    %4100 = vmatpush1.msra.mxu0 0.0
    %4101 = vmatprep.subr.mxu0 0.0
    %4102 = vmatpush1.msra.mxu0 0.0
    %4103 = vmatprep.subr.mxu0 0.0
    %4104 = vmatpush1.msra.mxu0 0.0
    %4105 = vmatprep.subr.mxu0 0.0
    %4106 = vmatpush1.msra.mxu0 0.0
    %4107 = vmatprep.subr.mxu0 0.0
    %4108 = vmatpush1.msra.mxu0 0.0
    %4109 = vmatprep.subr.mxu0 0.0
    %4110 = vmatpush1.msra.mxu0 0.0
    %4111 = vmatprep.subr.mxu0 0.0
    %4112 = vmatpush1.msra.mxu0 0.0
    %4113 = vmatprep.mubr.f32.mxu0 0.0
    %4114 = vmatmul.mubr.f32.gmra.mrb[0].mxu0 %v4041
    %v4115 = vpop.f32.mrb[0].mxu0
    %v4116 = vadd.f32 0.0, %v4115
    %v4117 = vpop.f32.mrb[0].mxu0
    %4118 = vmatprep.mubr.f32.mxu0 0.0
    %4119 = vmatmul.mubr.f32.gmra.mrb[0].mxu0 %v4043
    %v4120 = vpop.f32.mrb[0].mxu0
    %v4121 = vadd.f32 0.0, %v4120
    %v4122 = vpop.f32.mrb[0].mxu0
    %4123 = vmatprep.mubr.f32.mxu0 0.0
    %4124 = vmatmul.mubr.f32.gmra.mrb[0].mxu0 %v4045
    %v4125 = vpop.f32.mrb[0].mxu0
    %v4126 = vadd.f32 0.0, %v4125
    %v4127 = vpop.f32.mrb[0].mxu0
    %4128 = vmatprep.mubr.f32.mxu0 0.0
    %4129 = vmatmul.mubr.f32.gmra.mrb[0].mxu0 %v4047
    %v4130 = vpop.f32.mrb[0].mxu0
    %v4131 = vadd.f32 0.0, %v4130
    %v4132 = vpop.f32.mrb[0].mxu0
    %4133 = vdwg.mxu0
    %4138 = vrot.lane.b32.xlu0 %v1200, 96
    %v4139 = vpop.permute.xlu0 %4138
    %4140 = vrot.lane.b32.xlu0 %v1205, 96
    %v4141 = vpop.permute.xlu0 %4140
    %4142 = vrot.lane.b32.xlu0 %v1210, 96
    %v4143 = vpop.permute.xlu0 %4142
    %4144 = vrot.lane.b32.xlu0 %v1215, 96
    %v4145 = vpop.permute.xlu0 %4144
    %v4146 = vsel %vm1310, %v4139, 0
    %v4148 = vsel %vm1310, %v4141, 0
    %v4150 = vsel %vm1310, %v4143, 0
    %v4152 = vsel %vm1310, %v4145, 0
    %4154 = vmatprep.subr.mxu0 0.0
    %4155 = vmatpush1.msra.mxu0 %v1200
    %4156 = vmatprep.subr.mxu0 0.0
    %4157 = vmatpush1.msra.mxu0 %v1205
    %4158 = vmatprep.subr.mxu0 0.0
    %4159 = vmatpush1.msra.mxu0 %v1210
    %4160 = vmatprep.subr.mxu0 0.0
    %4161 = vmatpush1.msra.mxu0 %v1215
    %4162 = vmatprep.subr.mxu0 0.0
    %4163 = vmatpush1.msra.mxu0 0.0
    %4164 = vmatprep.subr.mxu0 0.0
    %4165 = vmatpush1.msra.mxu0 0.0
    %4166 = vmatprep.subr.mxu0 0.0
    %4167 = vmatpush1.msra.mxu0 0.0
    %4168 = vmatprep.subr.mxu0 0.0
    %4169 = vmatpush1.msra.mxu0 0.0
    %4170 = vmatprep.subr.mxu0 0.0
    %4171 = vmatpush1.msra.mxu0 0.0
    %4172 = vmatprep.subr.mxu0 0.0
    %4173 = vmatpush1.msra.mxu0 0.0
    %4174 = vmatprep.subr.mxu0 0.0
    %4175 = vmatpush1.msra.mxu0 0.0
    %4176 = vmatprep.subr.mxu0 0.0
    %4177 = vmatpush1.msra.mxu0 0.0
    %4178 = vmatprep.subr.mxu0 0.0
    %4179 = vmatpush1.msra.mxu0 0.0
    %4180 = vmatprep.subr.mxu0 0.0
    %4181 = vmatpush1.msra.mxu0 0.0
    %4182 = vmatprep.subr.mxu0 0.0
    %4183 = vmatpush1.msra.mxu0 0.0
    %4184 = vmatprep.subr.mxu0 0.0
    %4185 = vmatpush1.msra.mxu0 0.0
    %4186 = vmatprep.subr.mxu0 0.0
    %4187 = vmatpush1.msra.mxu0 0.0
    %4188 = vmatprep.subr.mxu0 0.0
    %4189 = vmatpush1.msra.mxu0 0.0
    %4190 = vmatprep.subr.mxu0 0.0
    %4191 = vmatpush1.msra.mxu0 0.0
    %4192 = vmatprep.subr.mxu0 0.0
    %4193 = vmatpush1.msra.mxu0 0.0
    %4194 = vmatprep.subr.mxu0 0.0
    %4195 = vmatpush1.msra.mxu0 0.0
    %4196 = vmatprep.subr.mxu0 0.0
    %4197 = vmatpush1.msra.mxu0 0.0
    %4198 = vmatprep.subr.mxu0 0.0
    %4199 = vmatpush1.msra.mxu0 0.0
    %4200 = vmatprep.subr.mxu0 0.0
    %4201 = vmatpush1.msra.mxu0 0.0
    %4202 = vmatprep.subr.mxu0 0.0
    %4203 = vmatpush1.msra.mxu0 0.0
    %4204 = vmatprep.subr.mxu0 0.0
    %4205 = vmatpush1.msra.mxu0 0.0
    %4206 = vmatprep.subr.mxu0 0.0
    %4207 = vmatpush1.msra.mxu0 0.0
    %4208 = vmatprep.subr.mxu0 0.0
    %4209 = vmatpush1.msra.mxu0 0.0
    %4210 = vmatprep.subr.mxu0 0.0
    %4211 = vmatpush1.msra.mxu0 0.0
    %4212 = vmatprep.subr.mxu0 0.0
    %4213 = vmatpush1.msra.mxu0 0.0
    %4214 = vmatprep.subr.mxu0 0.0
    %4215 = vmatpush1.msra.mxu0 0.0
    %4216 = vmatprep.subr.mxu0 0.0
    %4217 = vmatpush1.msra.mxu0 0.0
    %4218 = vmatprep.mubr.f32.mxu0 0.0
    %4219 = vmatmul.mubr.f32.gmra.mrb[0].mxu0 %v4146
    %v4220 = vpop.f32.mrb[0].mxu0
    %v4221 = vadd.f32 0.0, %v4220
    %v4222 = vpop.f32.mrb[0].mxu0
    %4223 = vmatprep.mubr.f32.mxu0 0.0
    %4224 = vmatmul.mubr.f32.gmra.mrb[0].mxu0 %v4148
    %v4225 = vpop.f32.mrb[0].mxu0
    %v4226 = vadd.f32 0.0, %v4225
    %v4227 = vpop.f32.mrb[0].mxu0
    %4228 = vmatprep.mubr.f32.mxu0 0.0
    %4229 = vmatmul.mubr.f32.gmra.mrb[0].mxu0 %v4150
    %v4230 = vpop.f32.mrb[0].mxu0
    %v4231 = vadd.f32 0.0, %v4230
    %v4232 = vpop.f32.mrb[0].mxu0
    %4233 = vmatprep.mubr.f32.mxu0 0.0
    %4234 = vmatmul.mubr.f32.gmra.mrb[0].mxu0 %v4152
    %v4235 = vpop.f32.mrb[0].mxu0
    %v4236 = vadd.f32 0.0, %v4235
    %v4237 = vpop.f32.mrb[0].mxu0
    %4238 = vdwg.mxu0
    %4243 = vrot.lane.b32.xlu0 %v1220, 96
    %v4244 = vpop.permute.xlu0 %4243
    %4245 = vrot.lane.b32.xlu0 %v1225, 96
    %v4246 = vpop.permute.xlu0 %4245
    %4247 = vrot.lane.b32.xlu0 %v1230, 96
    %v4248 = vpop.permute.xlu0 %4247
    %4249 = vrot.lane.b32.xlu0 %v1235, 96
    %v4250 = vpop.permute.xlu0 %4249
    %v4251 = vsel %vm1310, %v4244, 0
    %v4253 = vsel %vm1310, %v4246, 0
    %v4255 = vsel %vm1310, %v4248, 0
    %v4257 = vsel %vm1310, %v4250, 0
    %4259 = vmatprep.subr.mxu0 0.0
    %4260 = vmatpush1.msra.mxu0 %v1220
    %4261 = vmatprep.subr.mxu0 0.0
    %4262 = vmatpush1.msra.mxu0 %v1225
    %4263 = vmatprep.subr.mxu0 0.0
    %4264 = vmatpush1.msra.mxu0 %v1230
    %4265 = vmatprep.subr.mxu0 0.0
    %4266 = vmatpush1.msra.mxu0 %v1235
    %4267 = vmatprep.subr.mxu0 0.0
    %4268 = vmatpush1.msra.mxu0 0.0
    %4269 = vmatprep.subr.mxu0 0.0
    %4270 = vmatpush1.msra.mxu0 0.0
    %4271 = vmatprep.subr.mxu0 0.0
    %4272 = vmatpush1.msra.mxu0 0.0
    %4273 = vmatprep.subr.mxu0 0.0
    %4274 = vmatpush1.msra.mxu0 0.0
    %4275 = vmatprep.subr.mxu0 0.0
    %4276 = vmatpush1.msra.mxu0 0.0
    %4277 = vmatprep.subr.mxu0 0.0
    %4278 = vmatpush1.msra.mxu0 0.0
    %4279 = vmatprep.subr.mxu0 0.0
    %4280 = vmatpush1.msra.mxu0 0.0
    %4281 = vmatprep.subr.mxu0 0.0
    %4282 = vmatpush1.msra.mxu0 0.0
    %4283 = vmatprep.subr.mxu0 0.0
    %4284 = vmatpush1.msra.mxu0 0.0
    %4285 = vmatprep.subr.mxu0 0.0
    %4286 = vmatpush1.msra.mxu0 0.0
    %4287 = vmatprep.subr.mxu0 0.0
    %4288 = vmatpush1.msra.mxu0 0.0
    %4289 = vmatprep.subr.mxu0 0.0
    %4290 = vmatpush1.msra.mxu0 0.0
    %4291 = vmatprep.subr.mxu0 0.0
    %4292 = vmatpush1.msra.mxu0 0.0
    %4293 = vmatprep.subr.mxu0 0.0
    %4294 = vmatpush1.msra.mxu0 0.0
    %4295 = vmatprep.subr.mxu0 0.0
    %4296 = vmatpush1.msra.mxu0 0.0
    %4297 = vmatprep.subr.mxu0 0.0
    %4298 = vmatpush1.msra.mxu0 0.0
    %4299 = vmatprep.subr.mxu0 0.0
    %4300 = vmatpush1.msra.mxu0 0.0
    %4301 = vmatprep.subr.mxu0 0.0
    %4302 = vmatpush1.msra.mxu0 0.0
    %4303 = vmatprep.subr.mxu0 0.0
    %4304 = vmatpush1.msra.mxu0 0.0
    %4305 = vmatprep.subr.mxu0 0.0
    %4306 = vmatpush1.msra.mxu0 0.0
    %4307 = vmatprep.subr.mxu0 0.0
    %4308 = vmatpush1.msra.mxu0 0.0
    %4309 = vmatprep.subr.mxu0 0.0
    %4310 = vmatpush1.msra.mxu0 0.0
    %4311 = vmatprep.subr.mxu0 0.0
    %4312 = vmatpush1.msra.mxu0 0.0
    %4313 = vmatprep.subr.mxu0 0.0
    %4314 = vmatpush1.msra.mxu0 0.0
    %4315 = vmatprep.subr.mxu0 0.0
    %4316 = vmatpush1.msra.mxu0 0.0
    %4317 = vmatprep.subr.mxu0 0.0
    %4318 = vmatpush1.msra.mxu0 0.0
    %4319 = vmatprep.subr.mxu0 0.0
    %4320 = vmatpush1.msra.mxu0 0.0
    %4321 = vmatprep.subr.mxu0 0.0
    %4322 = vmatpush1.msra.mxu0 0.0
    %4323 = vmatprep.mubr.f32.mxu0 0.0
    %4324 = vmatmul.mubr.f32.gmra.mrb[0].mxu0 %v4251
    %v4325 = vpop.f32.mrb[0].mxu0
    %v4326 = vadd.f32 0.0, %v4325
    %v4327 = vpop.f32.mrb[0].mxu0
    %4328 = vmatprep.mubr.f32.mxu0 0.0
    %4329 = vmatmul.mubr.f32.gmra.mrb[0].mxu0 %v4253
    %v4330 = vpop.f32.mrb[0].mxu0
    %v4331 = vadd.f32 0.0, %v4330
    %v4332 = vpop.f32.mrb[0].mxu0
    %4333 = vmatprep.mubr.f32.mxu0 0.0
    %4334 = vmatmul.mubr.f32.gmra.mrb[0].mxu0 %v4255
    %v4335 = vpop.f32.mrb[0].mxu0
    %v4336 = vadd.f32 0.0, %v4335
    %v4337 = vpop.f32.mrb[0].mxu0
    %4338 = vmatprep.mubr.f32.mxu0 0.0
    %4339 = vmatmul.mubr.f32.gmra.mrb[0].mxu0 %v4257
    %v4340 = vpop.f32.mrb[0].mxu0
    %v4341 = vadd.f32 0.0, %v4340
    %v4342 = vpop.f32.mrb[0].mxu0
    %4343 = vdwg.mxu0
    %4348 = vrot.lane.b32.xlu0 %v1240, 96
    %v4349 = vpop.permute.xlu0 %4348
    %4350 = vrot.lane.b32.xlu0 %v1245, 96
    %v4351 = vpop.permute.xlu0 %4350
    %4352 = vrot.lane.b32.xlu0 %v1250, 96
    %v4353 = vpop.permute.xlu0 %4352
    %4354 = vrot.lane.b32.xlu0 %v1255, 96
    %v4355 = vpop.permute.xlu0 %4354
    %v4356 = vsel %vm1310, %v4349, 0
    %v4358 = vsel %vm1310, %v4351, 0
    %v4360 = vsel %vm1310, %v4353, 0
    %v4362 = vsel %vm1310, %v4355, 0
    %4364 = vmatprep.subr.mxu0 0.0
    %4365 = vmatpush1.msra.mxu0 %v1240
    %4366 = vmatprep.subr.mxu0 0.0
    %4367 = vmatpush1.msra.mxu0 %v1245
    %4368 = vmatprep.subr.mxu0 0.0
    %4369 = vmatpush1.msra.mxu0 %v1250
    %4370 = vmatprep.subr.mxu0 0.0
    %4371 = vmatpush1.msra.mxu0 %v1255
    %4372 = vmatprep.subr.mxu0 0.0
    %4373 = vmatpush1.msra.mxu0 0.0
    %4374 = vmatprep.subr.mxu0 0.0
    %4375 = vmatpush1.msra.mxu0 0.0
    %4376 = vmatprep.subr.mxu0 0.0
    %4377 = vmatpush1.msra.mxu0 0.0
    %4378 = vmatprep.subr.mxu0 0.0
    %4379 = vmatpush1.msra.mxu0 0.0
    %4380 = vmatprep.subr.mxu0 0.0
    %4381 = vmatpush1.msra.mxu0 0.0
    %4382 = vmatprep.subr.mxu0 0.0
    %4383 = vmatpush1.msra.mxu0 0.0
    %4384 = vmatprep.subr.mxu0 0.0
    %4385 = vmatpush1.msra.mxu0 0.0
    %4386 = vmatprep.subr.mxu0 0.0
    %4387 = vmatpush1.msra.mxu0 0.0
    %4388 = vmatprep.subr.mxu0 0.0
    %4389 = vmatpush1.msra.mxu0 0.0
    %4390 = vmatprep.subr.mxu0 0.0
    %4391 = vmatpush1.msra.mxu0 0.0
    %4392 = vmatprep.subr.mxu0 0.0
    %4393 = vmatpush1.msra.mxu0 0.0
    %4394 = vmatprep.subr.mxu0 0.0
    %4395 = vmatpush1.msra.mxu0 0.0
    %4396 = vmatprep.subr.mxu0 0.0
    %4397 = vmatpush1.msra.mxu0 0.0
    %4398 = vmatprep.subr.mxu0 0.0
    %4399 = vmatpush1.msra.mxu0 0.0
    %4400 = vmatprep.subr.mxu0 0.0
    %4401 = vmatpush1.msra.mxu0 0.0
    %4402 = vmatprep.subr.mxu0 0.0
    %4403 = vmatpush1.msra.mxu0 0.0
    %4404 = vmatprep.subr.mxu0 0.0
    %4405 = vmatpush1.msra.mxu0 0.0
    %4406 = vmatprep.subr.mxu0 0.0
    %4407 = vmatpush1.msra.mxu0 0.0
    %4408 = vmatprep.subr.mxu0 0.0
    %4409 = vmatpush1.msra.mxu0 0.0
    %4410 = vmatprep.subr.mxu0 0.0
    %4411 = vmatpush1.msra.mxu0 0.0
    %4412 = vmatprep.subr.mxu0 0.0
    %4413 = vmatpush1.msra.mxu0 0.0
    %4414 = vmatprep.subr.mxu0 0.0
    %4415 = vmatpush1.msra.mxu0 0.0
    %4416 = vmatprep.subr.mxu0 0.0
    %4417 = vmatpush1.msra.mxu0 0.0
    %4418 = vmatprep.subr.mxu0 0.0
    %4419 = vmatpush1.msra.mxu0 0.0
    %4420 = vmatprep.subr.mxu0 0.0
    %4421 = vmatpush1.msra.mxu0 0.0
    %4422 = vmatprep.subr.mxu0 0.0
    %4423 = vmatpush1.msra.mxu0 0.0
    %4424 = vmatprep.subr.mxu0 0.0
    %4425 = vmatpush1.msra.mxu0 0.0
    %4426 = vmatprep.subr.mxu0 0.0
    %4427 = vmatpush1.msra.mxu0 0.0
    %4428 = vmatprep.mubr.f32.mxu0 0.0
    %4429 = vmatmul.mubr.f32.gmra.mrb[0].mxu0 %v4356
    %v4430 = vpop.f32.mrb[0].mxu0
    %v4431 = vadd.f32 0.0, %v4430
    %v4432 = vpop.f32.mrb[0].mxu0
    %4433 = vmatprep.mubr.f32.mxu0 0.0
    %4434 = vmatmul.mubr.f32.gmra.mrb[0].mxu0 %v4358
    %v4435 = vpop.f32.mrb[0].mxu0
    %v4436 = vadd.f32 0.0, %v4435
    %v4437 = vpop.f32.mrb[0].mxu0
    %4438 = vmatprep.mubr.f32.mxu0 0.0
    %4439 = vmatmul.mubr.f32.gmra.mrb[0].mxu0 %v4360
    %v4440 = vpop.f32.mrb[0].mxu0
    %v4441 = vadd.f32 0.0, %v4440
    %v4442 = vpop.f32.mrb[0].mxu0
    %4443 = vmatprep.mubr.f32.mxu0 0.0
    %4444 = vmatmul.mubr.f32.gmra.mrb[0].mxu0 %v4362
    %v4445 = vpop.f32.mrb[0].mxu0
    %v4446 = vadd.f32 0.0, %v4445
    %v4447 = vpop.f32.mrb[0].mxu0
    %4448 = vdwg.mxu0
    %4453 = vrot.lane.b32.xlu0 %v1260, 96
    %v4454 = vpop.permute.xlu0 %4453
    %4455 = vrot.lane.b32.xlu0 %v1265, 96
    %v4456 = vpop.permute.xlu0 %4455
    %4457 = vrot.lane.b32.xlu0 %v1270, 96
    %v4458 = vpop.permute.xlu0 %4457
    %4459 = vrot.lane.b32.xlu0 %v1275, 96
    %v4460 = vpop.permute.xlu0 %4459
    %v4461 = vsel %vm1310, %v4454, 0
    %v4463 = vsel %vm1310, %v4456, 0
    %v4465 = vsel %vm1310, %v4458, 0
    %v4467 = vsel %vm1310, %v4460, 0
    %4469 = vmatprep.subr.mxu0 0.0
    %4470 = vmatpush1.msra.mxu0 %v1260
    %4471 = vmatprep.subr.mxu0 0.0
    %4472 = vmatpush1.msra.mxu0 %v1265
    %4473 = vmatprep.subr.mxu0 0.0
    %4474 = vmatpush1.msra.mxu0 %v1270
    %4475 = vmatprep.subr.mxu0 0.0
    %4476 = vmatpush1.msra.mxu0 %v1275
    %4477 = vmatprep.subr.mxu0 0.0
    %4478 = vmatpush1.msra.mxu0 0.0
    %4479 = vmatprep.subr.mxu0 0.0
    %4480 = vmatpush1.msra.mxu0 0.0
    %4481 = vmatprep.subr.mxu0 0.0
    %4482 = vmatpush1.msra.mxu0 0.0
    %4483 = vmatprep.subr.mxu0 0.0
    %4484 = vmatpush1.msra.mxu0 0.0
    %4485 = vmatprep.subr.mxu0 0.0
    %4486 = vmatpush1.msra.mxu0 0.0
    %4487 = vmatprep.subr.mxu0 0.0
    %4488 = vmatpush1.msra.mxu0 0.0
    %4489 = vmatprep.subr.mxu0 0.0
    %4490 = vmatpush1.msra.mxu0 0.0
    %4491 = vmatprep.subr.mxu0 0.0
    %4492 = vmatpush1.msra.mxu0 0.0
    %4493 = vmatprep.subr.mxu0 0.0
    %4494 = vmatpush1.msra.mxu0 0.0
    %4495 = vmatprep.subr.mxu0 0.0
    %4496 = vmatpush1.msra.mxu0 0.0
    %4497 = vmatprep.subr.mxu0 0.0
    %4498 = vmatpush1.msra.mxu0 0.0
    %4499 = vmatprep.subr.mxu0 0.0
    %4500 = vmatpush1.msra.mxu0 0.0
    %4501 = vmatprep.subr.mxu0 0.0
    %4502 = vmatpush1.msra.mxu0 0.0
    %4503 = vmatprep.subr.mxu0 0.0
    %4504 = vmatpush1.msra.mxu0 0.0
    %4505 = vmatprep.subr.mxu0 0.0
    %4506 = vmatpush1.msra.mxu0 0.0
    %4507 = vmatprep.subr.mxu0 0.0
    %4508 = vmatpush1.msra.mxu0 0.0
    %4509 = vmatprep.subr.mxu0 0.0
    %4510 = vmatpush1.msra.mxu0 0.0
    %4511 = vmatprep.subr.mxu0 0.0
    %4512 = vmatpush1.msra.mxu0 0.0
    %4513 = vmatprep.subr.mxu0 0.0
    %4514 = vmatpush1.msra.mxu0 0.0
    %4515 = vmatprep.subr.mxu0 0.0
    %4516 = vmatpush1.msra.mxu0 0.0
    %4517 = vmatprep.subr.mxu0 0.0
    %4518 = vmatpush1.msra.mxu0 0.0
    %4519 = vmatprep.subr.mxu0 0.0
    %4520 = vmatpush1.msra.mxu0 0.0
    %4521 = vmatprep.subr.mxu0 0.0
    %4522 = vmatpush1.msra.mxu0 0.0
    %4523 = vmatprep.subr.mxu0 0.0
    %4524 = vmatpush1.msra.mxu0 0.0
    %4525 = vmatprep.subr.mxu0 0.0
    %4526 = vmatpush1.msra.mxu0 0.0
    %4527 = vmatprep.subr.mxu0 0.0
    %4528 = vmatpush1.msra.mxu0 0.0
    %4529 = vmatprep.subr.mxu0 0.0
    %4530 = vmatpush1.msra.mxu0 0.0
    %4531 = vmatprep.subr.mxu0 0.0
    %4532 = vmatpush1.msra.mxu0 0.0
    %4533 = vmatprep.mubr.f32.mxu0 0.0
    %4534 = vmatmul.mubr.f32.gmra.mrb[0].mxu0 %v4461
    %v4535 = vpop.f32.mrb[0].mxu0
    %v4536 = vadd.f32 0.0, %v4535
    %v4537 = vpop.f32.mrb[0].mxu0
    %4538 = vmatprep.mubr.f32.mxu0 0.0
    %4539 = vmatmul.mubr.f32.gmra.mrb[0].mxu0 %v4463
    %v4540 = vpop.f32.mrb[0].mxu0
    %v4541 = vadd.f32 0.0, %v4540
    %v4542 = vpop.f32.mrb[0].mxu0
    %4543 = vmatprep.mubr.f32.mxu0 0.0
    %4544 = vmatmul.mubr.f32.gmra.mrb[0].mxu0 %v4465
    %v4545 = vpop.f32.mrb[0].mxu0
    %v4546 = vadd.f32 0.0, %v4545
    %v4547 = vpop.f32.mrb[0].mxu0
    %4548 = vmatprep.mubr.f32.mxu0 0.0
    %4549 = vmatmul.mubr.f32.gmra.mrb[0].mxu0 %v4467
    %v4550 = vpop.f32.mrb[0].mxu0
    %v4551 = vadd.f32 0.0, %v4550
    %v4552 = vpop.f32.mrb[0].mxu0
    %4553 = vdwg.mxu0
    %4558 = vrot.lane.b32.xlu0 %v1280, 96
    %v4559 = vpop.permute.xlu0 %4558
    %4560 = vrot.lane.b32.xlu0 %v1285, 96
    %v4561 = vpop.permute.xlu0 %4560
    %4562 = vrot.lane.b32.xlu0 %v1290, 96
    %v4563 = vpop.permute.xlu0 %4562
    %4564 = vrot.lane.b32.xlu0 %v1295, 96
    %v4565 = vpop.permute.xlu0 %4564
    %v4566 = vsel %vm1310, %v4559, 0
    %v4568 = vsel %vm1310, %v4561, 0
    %v4570 = vsel %vm1310, %v4563, 0
    %v4572 = vsel %vm1310, %v4565, 0
    %4574 = vmatprep.subr.mxu0 0.0
    %4575 = vmatpush1.msra.mxu0 %v1280
    %4576 = vmatprep.subr.mxu0 0.0
    %4577 = vmatpush1.msra.mxu0 %v1285
    %4578 = vmatprep.subr.mxu0 0.0
    %4579 = vmatpush1.msra.mxu0 %v1290
    %4580 = vmatprep.subr.mxu0 0.0
    %4581 = vmatpush1.msra.mxu0 %v1295
    %4582 = vmatprep.subr.mxu0 0.0
    %4583 = vmatpush1.msra.mxu0 0.0
    %4584 = vmatprep.subr.mxu0 0.0
    %4585 = vmatpush1.msra.mxu0 0.0
    %4586 = vmatprep.subr.mxu0 0.0
    %4587 = vmatpush1.msra.mxu0 0.0
    %4588 = vmatprep.subr.mxu0 0.0
    %4589 = vmatpush1.msra.mxu0 0.0
    %4590 = vmatprep.subr.mxu0 0.0
    %4591 = vmatpush1.msra.mxu0 0.0
    %4592 = vmatprep.subr.mxu0 0.0
    %4593 = vmatpush1.msra.mxu0 0.0
    %4594 = vmatprep.subr.mxu0 0.0
    %4595 = vmatpush1.msra.mxu0 0.0
    %4596 = vmatprep.subr.mxu0 0.0
    %4597 = vmatpush1.msra.mxu0 0.0
    %4598 = vmatprep.subr.mxu0 0.0
    %4599 = vmatpush1.msra.mxu0 0.0
    %4600 = vmatprep.subr.mxu0 0.0
    %4601 = vmatpush1.msra.mxu0 0.0
    %4602 = vmatprep.subr.mxu0 0.0
    %4603 = vmatpush1.msra.mxu0 0.0
    %4604 = vmatprep.subr.mxu0 0.0
    %4605 = vmatpush1.msra.mxu0 0.0
    %4606 = vmatprep.subr.mxu0 0.0
    %4607 = vmatpush1.msra.mxu0 0.0
    %4608 = vmatprep.subr.mxu0 0.0
    %4609 = vmatpush1.msra.mxu0 0.0
    %4610 = vmatprep.subr.mxu0 0.0
    %4611 = vmatpush1.msra.mxu0 0.0
    %4612 = vmatprep.subr.mxu0 0.0
    %4613 = vmatpush1.msra.mxu0 0.0
    %4614 = vmatprep.subr.mxu0 0.0
    %4615 = vmatpush1.msra.mxu0 0.0
    %4616 = vmatprep.subr.mxu0 0.0
    %4617 = vmatpush1.msra.mxu0 0.0
    %4618 = vmatprep.subr.mxu0 0.0
    %4619 = vmatpush1.msra.mxu0 0.0
    %4620 = vmatprep.subr.mxu0 0.0
    %4621 = vmatpush1.msra.mxu0 0.0
    %4622 = vmatprep.subr.mxu0 0.0
    %4623 = vmatpush1.msra.mxu0 0.0
    %4624 = vmatprep.subr.mxu0 0.0
    %4625 = vmatpush1.msra.mxu0 0.0
    %4626 = vmatprep.subr.mxu0 0.0
    %4627 = vmatpush1.msra.mxu0 0.0
    %4628 = vmatprep.subr.mxu0 0.0
    %4629 = vmatpush1.msra.mxu0 0.0
    %4630 = vmatprep.subr.mxu0 0.0
    %4631 = vmatpush1.msra.mxu0 0.0
    %4632 = vmatprep.subr.mxu0 0.0
    %4633 = vmatpush1.msra.mxu0 0.0
    %4634 = vmatprep.subr.mxu0 0.0
    %4635 = vmatpush1.msra.mxu0 0.0
    %4636 = vmatprep.subr.mxu0 0.0
    %4637 = vmatpush1.msra.mxu0 0.0
    %4638 = vmatprep.mubr.f32.mxu0 0.0
    %4639 = vmatmul.mubr.f32.gmra.mrb[0].mxu0 %v4566
    %v4640 = vpop.f32.mrb[0].mxu0
    %v4641 = vadd.f32 0.0, %v4640
    %v4642 = vpop.f32.mrb[0].mxu0
    %4643 = vmatprep.mubr.f32.mxu0 0.0
    %4644 = vmatmul.mubr.f32.gmra.mrb[0].mxu0 %v4568
    %v4645 = vpop.f32.mrb[0].mxu0
    %v4646 = vadd.f32 0.0, %v4645
    %v4647 = vpop.f32.mrb[0].mxu0
    %4648 = vmatprep.mubr.f32.mxu0 0.0
    %4649 = vmatmul.mubr.f32.gmra.mrb[0].mxu0 %v4570
    %v4650 = vpop.f32.mrb[0].mxu0
    %v4651 = vadd.f32 0.0, %v4650
    %v4652 = vpop.f32.mrb[0].mxu0
    %4653 = vmatprep.mubr.f32.mxu0 0.0
    %4654 = vmatmul.mubr.f32.gmra.mrb[0].mxu0 %v4572
    %v4655 = vpop.f32.mrb[0].mxu0
    %v4656 = vadd.f32 0.0, %v4655
    %v4657 = vpop.f32.mrb[0].mxu0
    %4658 = vdwg.mxu0
    %v4659 = vsel %vm1310, %v1386, -inf
    %v4660 = vsel %vm1310, %v1391, -inf
    %v4661 = vmax.f32 %v4659, %v4660
    %v4662 = vsel %vm1310, %v1396, -inf
    %v4663 = vmax.f32 %v4661, %v4662
    %v4664 = vsel %vm1310, %v1401, -inf
    %v4665 = vmax.f32 %v4663, %v4664
    %v4666 = vrot.slane %v4665, 4
    %v4667 = vmax.f32 %v4665, %v4666
    %v4668 = vrot.slane %v4667, 2
    %v4669 = vmax.f32 %v4667, %v4668
    %v4670 = vrot.slane %v4669, 1
    %v4671 = vmax.f32 %v4669, %v4670
    %v4672 = vsel %vm1310, %v1491, -inf
    %v4673 = vsel %vm1310, %v1496, -inf
    %v4674 = vmax.f32 %v4672, %v4673
    %v4675 = vsel %vm1310, %v1501, -inf
    %v4676 = vmax.f32 %v4674, %v4675
    %v4677 = vsel %vm1310, %v1506, -inf
    %v4678 = vmax.f32 %v4676, %v4677
    %v4679 = vrot.slane %v4678, 4
    %v4680 = vmax.f32 %v4678, %v4679
    %v4681 = vrot.slane %v4680, 2
    %v4682 = vmax.f32 %v4680, %v4681
    %v4683 = vrot.slane %v4682, 1
    %v4684 = vmax.f32 %v4682, %v4683
    %v4685 = vsel %vm1310, %v1596, -inf
    %v4686 = vsel %vm1310, %v1601, -inf
    %v4687 = vmax.f32 %v4685, %v4686
    %v4688 = vsel %vm1310, %v1606, -inf
    %v4689 = vmax.f32 %v4687, %v4688
    %v4690 = vsel %vm1310, %v1611, -inf
    %v4691 = vmax.f32 %v4689, %v4690
    %v4692 = vrot.slane %v4691, 4
    %v4693 = vmax.f32 %v4691, %v4692
    %v4694 = vrot.slane %v4693, 2
    %v4695 = vmax.f32 %v4693, %v4694
    %v4696 = vrot.slane %v4695, 1
    %v4697 = vmax.f32 %v4695, %v4696
    %v4698 = vsel %vm1310, %v1701, -inf
    %v4699 = vsel %vm1310, %v1706, -inf
    %v4700 = vmax.f32 %v4698, %v4699
    %v4701 = vsel %vm1310, %v1711, -inf
    %v4702 = vmax.f32 %v4700, %v4701
    %v4703 = vsel %vm1310, %v1716, -inf
    %v4704 = vmax.f32 %v4702, %v4703
    %v4705 = vrot.slane %v4704, 4
    %v4706 = vmax.f32 %v4704, %v4705
    %v4707 = vrot.slane %v4706, 2
    %v4708 = vmax.f32 %v4706, %v4707
    %v4709 = vrot.slane %v4708, 1
    %v4710 = vmax.f32 %v4708, %v4709
    %v4711 = vsel %vm1310, %v1806, -inf
    %v4712 = vsel %vm1310, %v1811, -inf
    %v4713 = vmax.f32 %v4711, %v4712
    %v4714 = vsel %vm1310, %v1816, -inf
    %v4715 = vmax.f32 %v4713, %v4714
    %v4716 = vsel %vm1310, %v1821, -inf
    %v4717 = vmax.f32 %v4715, %v4716
    %v4718 = vrot.slane %v4717, 4
    %v4719 = vmax.f32 %v4717, %v4718
    %v4720 = vrot.slane %v4719, 2
    %v4721 = vmax.f32 %v4719, %v4720
    %v4722 = vrot.slane %v4721, 1
    %v4723 = vmax.f32 %v4721, %v4722
    %v4724 = vsel %vm1310, %v1911, -inf
    %v4725 = vsel %vm1310, %v1916, -inf
    %v4726 = vmax.f32 %v4724, %v4725
    %v4727 = vsel %vm1310, %v1921, -inf
    %v4728 = vmax.f32 %v4726, %v4727
    %v4729 = vsel %vm1310, %v1926, -inf
    %v4730 = vmax.f32 %v4728, %v4729
    %v4731 = vrot.slane %v4730, 4
    %v4732 = vmax.f32 %v4730, %v4731
    %v4733 = vrot.slane %v4732, 2
    %v4734 = vmax.f32 %v4732, %v4733
    %v4735 = vrot.slane %v4734, 1
    %v4736 = vmax.f32 %v4734, %v4735
    %v4737 = vsel %vm1310, %v2016, -inf
    %v4738 = vsel %vm1310, %v2021, -inf
    %v4739 = vmax.f32 %v4737, %v4738
    %v4740 = vsel %vm1310, %v2026, -inf
    %v4741 = vmax.f32 %v4739, %v4740
    %v4742 = vsel %vm1310, %v2031, -inf
    %v4743 = vmax.f32 %v4741, %v4742
    %v4744 = vrot.slane %v4743, 4
    %v4745 = vmax.f32 %v4743, %v4744
    %v4746 = vrot.slane %v4745, 2
    %v4747 = vmax.f32 %v4745, %v4746
    %v4748 = vrot.slane %v4747, 1
    %v4749 = vmax.f32 %v4747, %v4748
    %v4750 = vsel %vm1310, %v2121, -inf
    %v4751 = vsel %vm1310, %v2126, -inf
    %v4752 = vmax.f32 %v4750, %v4751
    %v4753 = vsel %vm1310, %v2131, -inf
    %v4754 = vmax.f32 %v4752, %v4753
    %v4755 = vsel %vm1310, %v2136, -inf
    %v4756 = vmax.f32 %v4754, %v4755
    %v4757 = vrot.slane %v4756, 4
    %v4758 = vmax.f32 %v4756, %v4757
    %v4759 = vrot.slane %v4758, 2
    %v4760 = vmax.f32 %v4758, %v4759
    %v4761 = vrot.slane %v4760, 1
    %v4762 = vmax.f32 %v4760, %v4761
    %v4763 = vsel %vm1310, %v2226, -inf
    %v4764 = vsel %vm1310, %v2231, -inf
    %v4765 = vmax.f32 %v4763, %v4764
    %v4766 = vsel %vm1310, %v2236, -inf
    %v4767 = vmax.f32 %v4765, %v4766
    %v4768 = vsel %vm1310, %v2241, -inf
    %v4769 = vmax.f32 %v4767, %v4768
    %v4770 = vrot.slane %v4769, 4
    %v4771 = vmax.f32 %v4769, %v4770
    %v4772 = vrot.slane %v4771, 2
    %v4773 = vmax.f32 %v4771, %v4772
    %v4774 = vrot.slane %v4773, 1
    %v4775 = vmax.f32 %v4773, %v4774
    %v4776 = vsel %vm1310, %v2331, -inf
    %v4777 = vsel %vm1310, %v2336, -inf
    %v4778 = vmax.f32 %v4776, %v4777
    %v4779 = vsel %vm1310, %v2341, -inf
    %v4780 = vmax.f32 %v4778, %v4779
    %v4781 = vsel %vm1310, %v2346, -inf
    %v4782 = vmax.f32 %v4780, %v4781
    %v4783 = vrot.slane %v4782, 4
    %v4784 = vmax.f32 %v4782, %v4783
    %v4785 = vrot.slane %v4784, 2
    %v4786 = vmax.f32 %v4784, %v4785
    %v4787 = vrot.slane %v4786, 1
    %v4788 = vmax.f32 %v4786, %v4787
    %v4789 = vsel %vm1310, %v2436, -inf
    %v4790 = vsel %vm1310, %v2441, -inf
    %v4791 = vmax.f32 %v4789, %v4790
    %v4792 = vsel %vm1310, %v2446, -inf
    %v4793 = vmax.f32 %v4791, %v4792
    %v4794 = vsel %vm1310, %v2451, -inf
    %v4795 = vmax.f32 %v4793, %v4794
    %v4796 = vrot.slane %v4795, 4
    %v4797 = vmax.f32 %v4795, %v4796
    %v4798 = vrot.slane %v4797, 2
    %v4799 = vmax.f32 %v4797, %v4798
    %v4800 = vrot.slane %v4799, 1
    %v4801 = vmax.f32 %v4799, %v4800
    %v4802 = vsel %vm1310, %v2541, -inf
    %v4803 = vsel %vm1310, %v2546, -inf
    %v4804 = vmax.f32 %v4802, %v4803
    %v4805 = vsel %vm1310, %v2551, -inf
    %v4806 = vmax.f32 %v4804, %v4805
    %v4807 = vsel %vm1310, %v2556, -inf
    %v4808 = vmax.f32 %v4806, %v4807
    %v4809 = vrot.slane %v4808, 4
    %v4810 = vmax.f32 %v4808, %v4809
    %v4811 = vrot.slane %v4810, 2
    %v4812 = vmax.f32 %v4810, %v4811
    %v4813 = vrot.slane %v4812, 1
    %v4814 = vmax.f32 %v4812, %v4813
    %v4815 = vsel %vm1310, %v2646, -inf
    %v4816 = vsel %vm1310, %v2651, -inf
    %v4817 = vmax.f32 %v4815, %v4816
    %v4818 = vsel %vm1310, %v2656, -inf
    %v4819 = vmax.f32 %v4817, %v4818
    %v4820 = vsel %vm1310, %v2661, -inf
    %v4821 = vmax.f32 %v4819, %v4820
    %v4822 = vrot.slane %v4821, 4
    %v4823 = vmax.f32 %v4821, %v4822
    %v4824 = vrot.slane %v4823, 2
    %v4825 = vmax.f32 %v4823, %v4824
    %v4826 = vrot.slane %v4825, 1
    %v4827 = vmax.f32 %v4825, %v4826
    %v4828 = vsel %vm1310, %v2751, -inf
    %v4829 = vsel %vm1310, %v2756, -inf
    %v4830 = vmax.f32 %v4828, %v4829
    %v4831 = vsel %vm1310, %v2761, -inf
    %v4832 = vmax.f32 %v4830, %v4831
    %v4833 = vsel %vm1310, %v2766, -inf
    %v4834 = vmax.f32 %v4832, %v4833
    %v4835 = vrot.slane %v4834, 4
    %v4836 = vmax.f32 %v4834, %v4835
    %v4837 = vrot.slane %v4836, 2
    %v4838 = vmax.f32 %v4836, %v4837
    %v4839 = vrot.slane %v4838, 1
    %v4840 = vmax.f32 %v4838, %v4839
    %v4841 = vsel %vm1310, %v2856, -inf
    %v4842 = vsel %vm1310, %v2861, -inf
    %v4843 = vmax.f32 %v4841, %v4842
    %v4844 = vsel %vm1310, %v2866, -inf
    %v4845 = vmax.f32 %v4843, %v4844
    %v4846 = vsel %vm1310, %v2871, -inf
    %v4847 = vmax.f32 %v4845, %v4846
    %v4848 = vrot.slane %v4847, 4
    %v4849 = vmax.f32 %v4847, %v4848
    %v4850 = vrot.slane %v4849, 2
    %v4851 = vmax.f32 %v4849, %v4850
    %v4852 = vrot.slane %v4851, 1
    %v4853 = vmax.f32 %v4851, %v4852
    %v4854 = vsel %vm1310, %v2961, -inf
    %v4855 = vsel %vm1310, %v2966, -inf
    %v4856 = vmax.f32 %v4854, %v4855
    %v4857 = vsel %vm1310, %v2971, -inf
    %v4858 = vmax.f32 %v4856, %v4857
    %v4859 = vsel %vm1310, %v2976, -inf
    %v4860 = vmax.f32 %v4858, %v4859
    %v4861 = vrot.slane %v4860, 4
    %v4862 = vmax.f32 %v4860, %v4861
    %v4863 = vrot.slane %v4862, 2
    %v4864 = vmax.f32 %v4862, %v4863
    %v4865 = vrot.slane %v4864, 1
    %v4866 = vmax.f32 %v4864, %v4865
    %v4867 = vsel %vm1310, %v3066, -inf
    %v4868 = vsel %vm1310, %v3071, -inf
    %v4869 = vmax.f32 %v4867, %v4868
    %v4870 = vsel %vm1310, %v3076, -inf
    %v4871 = vmax.f32 %v4869, %v4870
    %v4872 = vsel %vm1310, %v3081, -inf
    %v4873 = vmax.f32 %v4871, %v4872
    %v4874 = vrot.slane %v4873, 4
    %v4875 = vmax.f32 %v4873, %v4874
    %v4876 = vrot.slane %v4875, 2
    %v4877 = vmax.f32 %v4875, %v4876
    %v4878 = vrot.slane %v4877, 1
    %v4879 = vmax.f32 %v4877, %v4878
    %v4880 = vsel %vm1310, %v3171, -inf
    %v4881 = vsel %vm1310, %v3176, -inf
    %v4882 = vmax.f32 %v4880, %v4881
    %v4883 = vsel %vm1310, %v3181, -inf
    %v4884 = vmax.f32 %v4882, %v4883
    %v4885 = vsel %vm1310, %v3186, -inf
    %v4886 = vmax.f32 %v4884, %v4885
    %v4887 = vrot.slane %v4886, 4
    %v4888 = vmax.f32 %v4886, %v4887
    %v4889 = vrot.slane %v4888, 2
    %v4890 = vmax.f32 %v4888, %v4889
    %v4891 = vrot.slane %v4890, 1
    %v4892 = vmax.f32 %v4890, %v4891
    %v4893 = vsel %vm1310, %v3276, -inf
    %v4894 = vsel %vm1310, %v3281, -inf
    %v4895 = vmax.f32 %v4893, %v4894
    %v4896 = vsel %vm1310, %v3286, -inf
    %v4897 = vmax.f32 %v4895, %v4896
    %v4898 = vsel %vm1310, %v3291, -inf
    %v4899 = vmax.f32 %v4897, %v4898
    %v4900 = vrot.slane %v4899, 4
    %v4901 = vmax.f32 %v4899, %v4900
    %v4902 = vrot.slane %v4901, 2
    %v4903 = vmax.f32 %v4901, %v4902
    %v4904 = vrot.slane %v4903, 1
    %v4905 = vmax.f32 %v4903, %v4904
    %v4906 = vsel %vm1310, %v3381, -inf
    %v4907 = vsel %vm1310, %v3386, -inf
    %v4908 = vmax.f32 %v4906, %v4907
    %v4909 = vsel %vm1310, %v3391, -inf
    %v4910 = vmax.f32 %v4908, %v4909
    %v4911 = vsel %vm1310, %v3396, -inf
    %v4912 = vmax.f32 %v4910, %v4911
    %v4913 = vrot.slane %v4912, 4
    %v4914 = vmax.f32 %v4912, %v4913
    %v4915 = vrot.slane %v4914, 2
    %v4916 = vmax.f32 %v4914, %v4915
    %v4917 = vrot.slane %v4916, 1
    %v4918 = vmax.f32 %v4916, %v4917
    %v4919 = vsel %vm1310, %v3486, -inf
    %v4920 = vsel %vm1310, %v3491, -inf
    %v4921 = vmax.f32 %v4919, %v4920
    %v4922 = vsel %vm1310, %v3496, -inf
    %v4923 = vmax.f32 %v4921, %v4922
    %v4924 = vsel %vm1310, %v3501, -inf
    %v4925 = vmax.f32 %v4923, %v4924
    %v4926 = vrot.slane %v4925, 4
    %v4927 = vmax.f32 %v4925, %v4926
    %v4928 = vrot.slane %v4927, 2
    %v4929 = vmax.f32 %v4927, %v4928
    %v4930 = vrot.slane %v4929, 1
    %v4931 = vmax.f32 %v4929, %v4930
    %v4932 = vsel %vm1310, %v3591, -inf
    %v4933 = vsel %vm1310, %v3596, -inf
    %v4934 = vmax.f32 %v4932, %v4933
    %v4935 = vsel %vm1310, %v3601, -inf
    %v4936 = vmax.f32 %v4934, %v4935
    %v4937 = vsel %vm1310, %v3606, -inf
    %v4938 = vmax.f32 %v4936, %v4937
    %v4939 = vrot.slane %v4938, 4
    %v4940 = vmax.f32 %v4938, %v4939
    %v4941 = vrot.slane %v4940, 2
    %v4942 = vmax.f32 %v4940, %v4941
    %v4943 = vrot.slane %v4942, 1
    %v4944 = vmax.f32 %v4942, %v4943
    %v4945 = vsel %vm1310, %v3696, -inf
    %v4946 = vsel %vm1310, %v3701, -inf
    %v4947 = vmax.f32 %v4945, %v4946
    %v4948 = vsel %vm1310, %v3706, -inf
    %v4949 = vmax.f32 %v4947, %v4948
    %v4950 = vsel %vm1310, %v3711, -inf
    %v4951 = vmax.f32 %v4949, %v4950
    %v4952 = vrot.slane %v4951, 4
    %v4953 = vmax.f32 %v4951, %v4952
    %v4954 = vrot.slane %v4953, 2
    %v4955 = vmax.f32 %v4953, %v4954
    %v4956 = vrot.slane %v4955, 1
    %v4957 = vmax.f32 %v4955, %v4956
    %v4958 = vsel %vm1310, %v3801, -inf
    %v4959 = vsel %vm1310, %v3806, -inf
    %v4960 = vmax.f32 %v4958, %v4959
    %v4961 = vsel %vm1310, %v3811, -inf
    %v4962 = vmax.f32 %v4960, %v4961
    %v4963 = vsel %vm1310, %v3816, -inf
    %v4964 = vmax.f32 %v4962, %v4963
    %v4965 = vrot.slane %v4964, 4
    %v4966 = vmax.f32 %v4964, %v4965
    %v4967 = vrot.slane %v4966, 2
    %v4968 = vmax.f32 %v4966, %v4967
    %v4969 = vrot.slane %v4968, 1
    %v4970 = vmax.f32 %v4968, %v4969
    %v4971 = vsel %vm1310, %v3906, -inf
    %v4972 = vsel %vm1310, %v3911, -inf
    %v4973 = vmax.f32 %v4971, %v4972
    %v4974 = vsel %vm1310, %v3916, -inf
    %v4975 = vmax.f32 %v4973, %v4974
    %v4976 = vsel %vm1310, %v3921, -inf
    %v4977 = vmax.f32 %v4975, %v4976
    %v4978 = vrot.slane %v4977, 4
    %v4979 = vmax.f32 %v4977, %v4978
    %v4980 = vrot.slane %v4979, 2
    %v4981 = vmax.f32 %v4979, %v4980
    %v4982 = vrot.slane %v4981, 1
    %v4983 = vmax.f32 %v4981, %v4982
    %v4984 = vsel %vm1310, %v4011, -inf
    %v4985 = vsel %vm1310, %v4016, -inf
    %v4986 = vmax.f32 %v4984, %v4985
    %v4987 = vsel %vm1310, %v4021, -inf
    %v4988 = vmax.f32 %v4986, %v4987
    %v4989 = vsel %vm1310, %v4026, -inf
    %v4990 = vmax.f32 %v4988, %v4989
    %v4991 = vrot.slane %v4990, 4
    %v4992 = vmax.f32 %v4990, %v4991
    %v4993 = vrot.slane %v4992, 2
    %v4994 = vmax.f32 %v4992, %v4993
    %v4995 = vrot.slane %v4994, 1
    %v4996 = vmax.f32 %v4994, %v4995
    %v4997 = vsel %vm1310, %v4116, -inf
    %v4998 = vsel %vm1310, %v4121, -inf
    %v4999 = vmax.f32 %v4997, %v4998
    %v5000 = vsel %vm1310, %v4126, -inf
    %v5001 = vmax.f32 %v4999, %v5000
    %v5002 = vsel %vm1310, %v4131, -inf
    %v5003 = vmax.f32 %v5001, %v5002
    %v5004 = vrot.slane %v5003, 4
    %v5005 = vmax.f32 %v5003, %v5004
    %v5006 = vrot.slane %v5005, 2
    %v5007 = vmax.f32 %v5005, %v5006
    %v5008 = vrot.slane %v5007, 1
    %v5009 = vmax.f32 %v5007, %v5008
    %v5010 = vsel %vm1310, %v4221, -inf
    %v5011 = vsel %vm1310, %v4226, -inf
    %v5012 = vmax.f32 %v5010, %v5011
    %v5013 = vsel %vm1310, %v4231, -inf
    %v5014 = vmax.f32 %v5012, %v5013
    %v5015 = vsel %vm1310, %v4236, -inf
    %v5016 = vmax.f32 %v5014, %v5015
    %v5017 = vrot.slane %v5016, 4
    %v5018 = vmax.f32 %v5016, %v5017
    %v5019 = vrot.slane %v5018, 2
    %v5020 = vmax.f32 %v5018, %v5019
    %v5021 = vrot.slane %v5020, 1
    %v5022 = vmax.f32 %v5020, %v5021
    %v5023 = vsel %vm1310, %v4326, -inf
    %v5024 = vsel %vm1310, %v4331, -inf
    %v5025 = vmax.f32 %v5023, %v5024
    %v5026 = vsel %vm1310, %v4336, -inf
    %v5027 = vmax.f32 %v5025, %v5026
    %v5028 = vsel %vm1310, %v4341, -inf
    %v5029 = vmax.f32 %v5027, %v5028
    %v5030 = vrot.slane %v5029, 4
    %v5031 = vmax.f32 %v5029, %v5030
    %v5032 = vrot.slane %v5031, 2
    %v5033 = vmax.f32 %v5031, %v5032
    %v5034 = vrot.slane %v5033, 1
    %v5035 = vmax.f32 %v5033, %v5034
    %v5036 = vsel %vm1310, %v4431, -inf
    %v5037 = vsel %vm1310, %v4436, -inf
    %v5038 = vmax.f32 %v5036, %v5037
    %v5039 = vsel %vm1310, %v4441, -inf
    %v5040 = vmax.f32 %v5038, %v5039
    %v5041 = vsel %vm1310, %v4446, -inf
    %v5042 = vmax.f32 %v5040, %v5041
    %v5043 = vrot.slane %v5042, 4
    %v5044 = vmax.f32 %v5042, %v5043
    %v5045 = vrot.slane %v5044, 2
    %v5046 = vmax.f32 %v5044, %v5045
    %v5047 = vrot.slane %v5046, 1
    %v5048 = vmax.f32 %v5046, %v5047
    %v5049 = vsel %vm1310, %v4536, -inf
    %v5050 = vsel %vm1310, %v4541, -inf
    %v5051 = vmax.f32 %v5049, %v5050
    %v5052 = vsel %vm1310, %v4546, -inf
    %v5053 = vmax.f32 %v5051, %v5052
    %v5054 = vsel %vm1310, %v4551, -inf
    %v5055 = vmax.f32 %v5053, %v5054
    %v5056 = vrot.slane %v5055, 4
    %v5057 = vmax.f32 %v5055, %v5056
    %v5058 = vrot.slane %v5057, 2
    %v5059 = vmax.f32 %v5057, %v5058
    %v5060 = vrot.slane %v5059, 1
    %v5061 = vmax.f32 %v5059, %v5060
    %v5062 = vsel %vm1310, %v4641, -inf
    %v5063 = vsel %vm1310, %v4646, -inf
    %v5064 = vmax.f32 %v5062, %v5063
    %v5065 = vsel %vm1310, %v4651, -inf
    %v5066 = vmax.f32 %v5064, %v5065
    %v5067 = vsel %vm1310, %v4656, -inf
    %v5068 = vmax.f32 %v5066, %v5067
    %v5069 = vrot.slane %v5068, 4
    %v5070 = vmax.f32 %v5068, %v5069
    %v5071 = vrot.slane %v5070, 2
    %v5072 = vmax.f32 %v5070, %v5071
    %v5073 = vrot.slane %v5072, 1
    %v5074 = vmax.f32 %v5072, %v5073
    %v5075 = vsub.f32 %v1386, %v4671
    %v5076 = vsub.f32 %v1391, %v4671
    %v5077 = vsub.f32 %v1396, %v4671
    %v5078 = vsub.f32 %v1401, %v4671
    %v5079 = vsub.f32 %v1491, %v4684
    %v5080 = vsub.f32 %v1496, %v4684
    %v5081 = vsub.f32 %v1501, %v4684
    %v5082 = vsub.f32 %v1506, %v4684
    %v5083 = vsub.f32 %v1596, %v4697
    %v5084 = vsub.f32 %v1601, %v4697
    %v5085 = vsub.f32 %v1606, %v4697
    %v5086 = vsub.f32 %v1611, %v4697
    %v5087 = vsub.f32 %v1701, %v4710
    %v5088 = vsub.f32 %v1706, %v4710
    %v5089 = vsub.f32 %v1711, %v4710
    %v5090 = vsub.f32 %v1716, %v4710
    %v5091 = vsub.f32 %v1806, %v4723
    %v5092 = vsub.f32 %v1811, %v4723
    %v5093 = vsub.f32 %v1816, %v4723
    %v5094 = vsub.f32 %v1821, %v4723
    %v5095 = vsub.f32 %v1911, %v4736
    %v5096 = vsub.f32 %v1916, %v4736
    %v5097 = vsub.f32 %v1921, %v4736
    %v5098 = vsub.f32 %v1926, %v4736
    %v5099 = vsub.f32 %v2016, %v4749
    %v5100 = vsub.f32 %v2021, %v4749
    %v5101 = vsub.f32 %v2026, %v4749
    %v5102 = vsub.f32 %v2031, %v4749
    %v5103 = vsub.f32 %v2121, %v4762
    %v5104 = vsub.f32 %v2126, %v4762
    %v5105 = vsub.f32 %v2131, %v4762
    %v5106 = vsub.f32 %v2136, %v4762
    %v5107 = vsub.f32 %v2226, %v4775
    %v5108 = vsub.f32 %v2231, %v4775
    %v5109 = vsub.f32 %v2236, %v4775
    %v5110 = vsub.f32 %v2241, %v4775
    %v5111 = vsub.f32 %v2331, %v4788
    %v5112 = vsub.f32 %v2336, %v4788
    %v5113 = vsub.f32 %v2341, %v4788
    %v5114 = vsub.f32 %v2346, %v4788
    %v5115 = vsub.f32 %v2436, %v4801
    %v5116 = vsub.f32 %v2441, %v4801
    %v5117 = vsub.f32 %v2446, %v4801
    %v5118 = vsub.f32 %v2451, %v4801
    %v5119 = vsub.f32 %v2541, %v4814
    %v5120 = vsub.f32 %v2546, %v4814
    %v5121 = vsub.f32 %v2551, %v4814
    %v5122 = vsub.f32 %v2556, %v4814
    %v5123 = vsub.f32 %v2646, %v4827
    %v5124 = vsub.f32 %v2651, %v4827
    %v5125 = vsub.f32 %v2656, %v4827
    %v5126 = vsub.f32 %v2661, %v4827
    %v5127 = vsub.f32 %v2751, %v4840
    %v5128 = vsub.f32 %v2756, %v4840
    %v5129 = vsub.f32 %v2761, %v4840
    %v5130 = vsub.f32 %v2766, %v4840
    %v5131 = vsub.f32 %v2856, %v4853
    %v5132 = vsub.f32 %v2861, %v4853
    %v5133 = vsub.f32 %v2866, %v4853
    %v5134 = vsub.f32 %v2871, %v4853
    %v5135 = vsub.f32 %v2961, %v4866
    %v5136 = vsub.f32 %v2966, %v4866
    %v5137 = vsub.f32 %v2971, %v4866
    %v5138 = vsub.f32 %v2976, %v4866
    %v5139 = vsub.f32 %v3066, %v4879
    %v5140 = vsub.f32 %v3071, %v4879
    %v5141 = vsub.f32 %v3076, %v4879
    %v5142 = vsub.f32 %v3081, %v4879
    %v5143 = vsub.f32 %v3171, %v4892
    %v5144 = vsub.f32 %v3176, %v4892
    %v5145 = vsub.f32 %v3181, %v4892
    %v5146 = vsub.f32 %v3186, %v4892
    %v5147 = vsub.f32 %v3276, %v4905
    %v5148 = vsub.f32 %v3281, %v4905
    %v5149 = vsub.f32 %v3286, %v4905
    %v5150 = vsub.f32 %v3291, %v4905
    %v5151 = vsub.f32 %v3381, %v4918
    %v5152 = vsub.f32 %v3386, %v4918
    %v5153 = vsub.f32 %v3391, %v4918
    %v5154 = vsub.f32 %v3396, %v4918
    %v5155 = vsub.f32 %v3486, %v4931
    %v5156 = vsub.f32 %v3491, %v4931
    %v5157 = vsub.f32 %v3496, %v4931
    %v5158 = vsub.f32 %v3501, %v4931
    %v5159 = vsub.f32 %v3591, %v4944
    %v5160 = vsub.f32 %v3596, %v4944
    %v5161 = vsub.f32 %v3601, %v4944
    %v5162 = vsub.f32 %v3606, %v4944
    %v5163 = vsub.f32 %v3696, %v4957
    %v5164 = vsub.f32 %v3701, %v4957
    %v5165 = vsub.f32 %v3706, %v4957
    %v5166 = vsub.f32 %v3711, %v4957
    %v5167 = vsub.f32 %v3801, %v4970
    %v5168 = vsub.f32 %v3806, %v4970
    %v5169 = vsub.f32 %v3811, %v4970
    %v5170 = vsub.f32 %v3816, %v4970
    %v5171 = vsub.f32 %v3906, %v4983
    %v5172 = vsub.f32 %v3911, %v4983
    %v5173 = vsub.f32 %v3916, %v4983
    %v5174 = vsub.f32 %v3921, %v4983
    %v5175 = vsub.f32 %v4011, %v4996
    %v5176 = vsub.f32 %v4016, %v4996
    %v5177 = vsub.f32 %v4021, %v4996
    %v5178 = vsub.f32 %v4026, %v4996
    %v5179 = vsub.f32 %v4116, %v5009
    %v5180 = vsub.f32 %v4121, %v5009
    %v5181 = vsub.f32 %v4126, %v5009
    %v5182 = vsub.f32 %v4131, %v5009
    %v5183 = vsub.f32 %v4221, %v5022
    %v5184 = vsub.f32 %v4226, %v5022
    %v5185 = vsub.f32 %v4231, %v5022
    %v5186 = vsub.f32 %v4236, %v5022
    %v5187 = vsub.f32 %v4326, %v5035
    %v5188 = vsub.f32 %v4331, %v5035
    %v5189 = vsub.f32 %v4336, %v5035
    %v5190 = vsub.f32 %v4341, %v5035
    %v5191 = vsub.f32 %v4431, %v5048
    %v5192 = vsub.f32 %v4436, %v5048
    %v5193 = vsub.f32 %v4441, %v5048
    %v5194 = vsub.f32 %v4446, %v5048
    %v5195 = vsub.f32 %v4536, %v5061
    %v5196 = vsub.f32 %v4541, %v5061
    %v5197 = vsub.f32 %v4546, %v5061
    %v5198 = vsub.f32 %v4551, %v5061
    %v5199 = vsub.f32 %v4641, %v5074
    %v5200 = vsub.f32 %v4646, %v5074
    %v5201 = vsub.f32 %v4651, %v5074
    %v5202 = vsub.f32 %v4656, %v5074
    %v5203 = vmul.f32 %v5075, 0.5
    %v5204 = vmul.f32 %v5076, 0.5
    %v5205 = vmul.f32 %v5077, 0.5
    %v5206 = vmul.f32 %v5078, 0.5
    %v5207 = vmul.f32 %v5079, 0.5
    %v5208 = vmul.f32 %v5080, 0.5
    %v5209 = vmul.f32 %v5081, 0.5
    %v5210 = vmul.f32 %v5082, 0.5
    %v5211 = vmul.f32 %v5083, 0.5
    %v5212 = vmul.f32 %v5084, 0.5
    %v5213 = vmul.f32 %v5085, 0.5
    %v5214 = vmul.f32 %v5086, 0.5
    %v5215 = vmul.f32 %v5087, 0.5
    %v5216 = vmul.f32 %v5088, 0.5
    %v5217 = vmul.f32 %v5089, 0.5
    %v5218 = vmul.f32 %v5090, 0.5
    %v5219 = vmul.f32 %v5091, 0.5
    %v5220 = vmul.f32 %v5092, 0.5
    %v5221 = vmul.f32 %v5093, 0.5
    %v5222 = vmul.f32 %v5094, 0.5
    %v5223 = vmul.f32 %v5095, 0.5
    %v5224 = vmul.f32 %v5096, 0.5
    %v5225 = vmul.f32 %v5097, 0.5
    %v5226 = vmul.f32 %v5098, 0.5
    %v5227 = vmul.f32 %v5099, 0.5
    %v5228 = vmul.f32 %v5100, 0.5
    %v5229 = vmul.f32 %v5101, 0.5
    %v5230 = vmul.f32 %v5102, 0.5
    %v5231 = vmul.f32 %v5103, 0.5
    %v5232 = vmul.f32 %v5104, 0.5
    %v5233 = vmul.f32 %v5105, 0.5
    %v5234 = vmul.f32 %v5106, 0.5
    %v5235 = vmul.f32 %v5107, 0.5
    %v5236 = vmul.f32 %v5108, 0.5
    %v5237 = vmul.f32 %v5109, 0.5
    %v5238 = vmul.f32 %v5110, 0.5
    %v5239 = vmul.f32 %v5111, 0.5
    %v5240 = vmul.f32 %v5112, 0.5
    %v5241 = vmul.f32 %v5113, 0.5
    %v5242 = vmul.f32 %v5114, 0.5
    %v5243 = vmul.f32 %v5115, 0.5
    %v5244 = vmul.f32 %v5116, 0.5
    %v5245 = vmul.f32 %v5117, 0.5
    %v5246 = vmul.f32 %v5118, 0.5
    %v5247 = vmul.f32 %v5119, 0.5
    %v5248 = vmul.f32 %v5120, 0.5
    %v5249 = vmul.f32 %v5121, 0.5
    %v5250 = vmul.f32 %v5122, 0.5
    %v5251 = vmul.f32 %v5123, 0.5
    %v5252 = vmul.f32 %v5124, 0.5
    %v5253 = vmul.f32 %v5125, 0.5
    %v5254 = vmul.f32 %v5126, 0.5
    %v5255 = vmul.f32 %v5127, 0.5
    %v5256 = vmul.f32 %v5128, 0.5
    %v5257 = vmul.f32 %v5129, 0.5
    %v5258 = vmul.f32 %v5130, 0.5
    %v5259 = vmul.f32 %v5131, 0.5
    %v5260 = vmul.f32 %v5132, 0.5
    %v5261 = vmul.f32 %v5133, 0.5
    %v5262 = vmul.f32 %v5134, 0.5
    %v5263 = vmul.f32 %v5135, 0.5
    %v5264 = vmul.f32 %v5136, 0.5
    %v5265 = vmul.f32 %v5137, 0.5
    %v5266 = vmul.f32 %v5138, 0.5
    %v5267 = vmul.f32 %v5139, 0.5
    %v5268 = vmul.f32 %v5140, 0.5
    %v5269 = vmul.f32 %v5141, 0.5
    %v5270 = vmul.f32 %v5142, 0.5
    %v5271 = vmul.f32 %v5143, 0.5
    %v5272 = vmul.f32 %v5144, 0.5
    %v5273 = vmul.f32 %v5145, 0.5
    %v5274 = vmul.f32 %v5146, 0.5
    %v5275 = vmul.f32 %v5147, 0.5
    %v5276 = vmul.f32 %v5148, 0.5
    %v5277 = vmul.f32 %v5149, 0.5
    %v5278 = vmul.f32 %v5150, 0.5
    %v5279 = vmul.f32 %v5151, 0.5
    %v5280 = vmul.f32 %v5152, 0.5
    %v5281 = vmul.f32 %v5153, 0.5
    %v5282 = vmul.f32 %v5154, 0.5
    %v5283 = vmul.f32 %v5155, 0.5
    %v5284 = vmul.f32 %v5156, 0.5
    %v5285 = vmul.f32 %v5157, 0.5
    %v5286 = vmul.f32 %v5158, 0.5
    %v5287 = vmul.f32 %v5159, 0.5
    %v5288 = vmul.f32 %v5160, 0.5
    %v5289 = vmul.f32 %v5161, 0.5
    %v5290 = vmul.f32 %v5162, 0.5
    %v5291 = vmul.f32 %v5163, 0.5
    %v5292 = vmul.f32 %v5164, 0.5
    %v5293 = vmul.f32 %v5165, 0.5
    %v5294 = vmul.f32 %v5166, 0.5
    %v5295 = vmul.f32 %v5167, 0.5
    %v5296 = vmul.f32 %v5168, 0.5
    %v5297 = vmul.f32 %v5169, 0.5
    %v5298 = vmul.f32 %v5170, 0.5
    %v5299 = vmul.f32 %v5171, 0.5
    %v5300 = vmul.f32 %v5172, 0.5
    %v5301 = vmul.f32 %v5173, 0.5
    %v5302 = vmul.f32 %v5174, 0.5
    %v5303 = vmul.f32 %v5175, 0.5
    %v5304 = vmul.f32 %v5176, 0.5
    %v5305 = vmul.f32 %v5177, 0.5
    %v5306 = vmul.f32 %v5178, 0.5
    %v5307 = vmul.f32 %v5179, 0.5
    %v5308 = vmul.f32 %v5180, 0.5
    %v5309 = vmul.f32 %v5181, 0.5
    %v5310 = vmul.f32 %v5182, 0.5
    %v5311 = vmul.f32 %v5183, 0.5
    %v5312 = vmul.f32 %v5184, 0.5
    %v5313 = vmul.f32 %v5185, 0.5
    %v5314 = vmul.f32 %v5186, 0.5
    %v5315 = vmul.f32 %v5187, 0.5
    %v5316 = vmul.f32 %v5188, 0.5
    %v5317 = vmul.f32 %v5189, 0.5
    %v5318 = vmul.f32 %v5190, 0.5
    %v5319 = vmul.f32 %v5191, 0.5
    %v5320 = vmul.f32 %v5192, 0.5
    %v5321 = vmul.f32 %v5193, 0.5
    %v5322 = vmul.f32 %v5194, 0.5
    %v5323 = vmul.f32 %v5195, 0.5
    %v5324 = vmul.f32 %v5196, 0.5
    %v5325 = vmul.f32 %v5197, 0.5
    %v5326 = vmul.f32 %v5198, 0.5
    %v5327 = vmul.f32 %v5199, 0.5
    %v5328 = vmul.f32 %v5200, 0.5
    %v5329 = vmul.f32 %v5201, 0.5
    %v5330 = vmul.f32 %v5202, 0.5
    %v5331 = vmul.f32 %v5203, 1.442695
    %v5332 = vpow.pop %v5331
    %v5333 = vmul.f32 %v5204, 1.442695
    %v5334 = vpow.pop %v5333
    %v5335 = vmul.f32 %v5205, 1.442695
    %v5336 = vpow.pop %v5335
    %v5337 = vmul.f32 %v5206, 1.442695
    %v5338 = vpow.pop %v5337
    %v5339 = vmul.f32 %v5207, 1.442695
    %v5340 = vpow.pop %v5339
    %v5341 = vmul.f32 %v5208, 1.442695
    %v5342 = vpow.pop %v5341
    %v5343 = vmul.f32 %v5209, 1.442695
    %v5344 = vpow.pop %v5343
    %v5345 = vmul.f32 %v5210, 1.442695
    %v5346 = vpow.pop %v5345
    %v5347 = vmul.f32 %v5211, 1.442695
    %v5348 = vpow.pop %v5347
    %v5349 = vmul.f32 %v5212, 1.442695
    %v5350 = vpow.pop %v5349
    %v5351 = vmul.f32 %v5213, 1.442695
    %v5352 = vpow.pop %v5351
    %v5353 = vmul.f32 %v5214, 1.442695
    %v5354 = vpow.pop %v5353
    %v5355 = vmul.f32 %v5215, 1.442695
    %v5356 = vpow.pop %v5355
    %v5357 = vmul.f32 %v5216, 1.442695
    %v5358 = vpow.pop %v5357
    %v5359 = vmul.f32 %v5217, 1.442695
    %v5360 = vpow.pop %v5359
    %v5361 = vmul.f32 %v5218, 1.442695
    %v5362 = vpow.pop %v5361
    %v5363 = vmul.f32 %v5219, 1.442695
    %v5364 = vpow.pop %v5363
    %v5365 = vmul.f32 %v5220, 1.442695
    %v5366 = vpow.pop %v5365
    %v5367 = vmul.f32 %v5221, 1.442695
    %v5368 = vpow.pop %v5367
    %v5369 = vmul.f32 %v5222, 1.442695
    %v5370 = vpow.pop %v5369
    %v5371 = vmul.f32 %v5223, 1.442695
    %v5372 = vpow.pop %v5371
    %v5373 = vmul.f32 %v5224, 1.442695
    %v5374 = vpow.pop %v5373
    %v5375 = vmul.f32 %v5225, 1.442695
    %v5376 = vpow.pop %v5375
    %v5377 = vmul.f32 %v5226, 1.442695
    %v5378 = vpow.pop %v5377
    %v5379 = vmul.f32 %v5227, 1.442695
    %v5380 = vpow.pop %v5379
    %v5381 = vmul.f32 %v5228, 1.442695
    %v5382 = vpow.pop %v5381
    %v5383 = vmul.f32 %v5229, 1.442695
    %v5384 = vpow.pop %v5383
    %v5385 = vmul.f32 %v5230, 1.442695
    %v5386 = vpow.pop %v5385
    %v5387 = vmul.f32 %v5231, 1.442695
    %v5388 = vpow.pop %v5387
    %v5389 = vmul.f32 %v5232, 1.442695
    %v5390 = vpow.pop %v5389
    %v5391 = vmul.f32 %v5233, 1.442695
    %v5392 = vpow.pop %v5391
    %v5393 = vmul.f32 %v5234, 1.442695
    %v5394 = vpow.pop %v5393
    %v5395 = vmul.f32 %v5235, 1.442695
    %v5396 = vpow.pop %v5395
    %v5397 = vmul.f32 %v5236, 1.442695
    %v5398 = vpow.pop %v5397
    %v5399 = vmul.f32 %v5237, 1.442695
    %v5400 = vpow.pop %v5399
    %v5401 = vmul.f32 %v5238, 1.442695
    %v5402 = vpow.pop %v5401
    %v5403 = vmul.f32 %v5239, 1.442695
    %v5404 = vpow.pop %v5403
    %v5405 = vmul.f32 %v5240, 1.442695
    %v5406 = vpow.pop %v5405
    %v5407 = vmul.f32 %v5241, 1.442695
    %v5408 = vpow.pop %v5407
    %v5409 = vmul.f32 %v5242, 1.442695
    %v5410 = vpow.pop %v5409
    %v5411 = vmul.f32 %v5243, 1.442695
    %v5412 = vpow.pop %v5411
    %v5413 = vmul.f32 %v5244, 1.442695
    %v5414 = vpow.pop %v5413
    %v5415 = vmul.f32 %v5245, 1.442695
    %v5416 = vpow.pop %v5415
    %v5417 = vmul.f32 %v5246, 1.442695
    %v5418 = vpow.pop %v5417
    %v5419 = vmul.f32 %v5247, 1.442695
    %v5420 = vpow.pop %v5419
    %v5421 = vmul.f32 %v5248, 1.442695
    %v5422 = vpow.pop %v5421
    %v5423 = vmul.f32 %v5249, 1.442695
    %v5424 = vpow.pop %v5423
    %v5425 = vmul.f32 %v5250, 1.442695
    %v5426 = vpow.pop %v5425
    %v5427 = vmul.f32 %v5251, 1.442695
    %v5428 = vpow.pop %v5427
    %v5429 = vmul.f32 %v5252, 1.442695
    %v5430 = vpow.pop %v5429
    %v5431 = vmul.f32 %v5253, 1.442695
    %v5432 = vpow.pop %v5431
    %v5433 = vmul.f32 %v5254, 1.442695
    %v5434 = vpow.pop %v5433
    %v5435 = vmul.f32 %v5255, 1.442695
    %v5436 = vpow.pop %v5435
    %v5437 = vmul.f32 %v5256, 1.442695
    %v5438 = vpow.pop %v5437
    %v5439 = vmul.f32 %v5257, 1.442695
    %v5440 = vpow.pop %v5439
    %v5441 = vmul.f32 %v5258, 1.442695
    %v5442 = vpow.pop %v5441
    %v5443 = vmul.f32 %v5259, 1.442695
    %v5444 = vpow.pop %v5443
    %v5445 = vmul.f32 %v5260, 1.442695
    %v5446 = vpow.pop %v5445
    %v5447 = vmul.f32 %v5261, 1.442695
    %v5448 = vpow.pop %v5447
    %v5449 = vmul.f32 %v5262, 1.442695
    %v5450 = vpow.pop %v5449
    %v5451 = vmul.f32 %v5263, 1.442695
    %v5452 = vpow.pop %v5451
    %v5453 = vmul.f32 %v5264, 1.442695
    %v5454 = vpow.pop %v5453
    %v5455 = vmul.f32 %v5265, 1.442695
    %v5456 = vpow.pop %v5455
    %v5457 = vmul.f32 %v5266, 1.442695
    %v5458 = vpow.pop %v5457
    %v5459 = vmul.f32 %v5267, 1.442695
    %v5460 = vpow.pop %v5459
    %v5461 = vmul.f32 %v5268, 1.442695
    %v5462 = vpow.pop %v5461
    %v5463 = vmul.f32 %v5269, 1.442695
    %v5464 = vpow.pop %v5463
    %v5465 = vmul.f32 %v5270, 1.442695
    %v5466 = vpow.pop %v5465
    %v5467 = vmul.f32 %v5271, 1.442695
    %v5468 = vpow.pop %v5467
    %v5469 = vmul.f32 %v5272, 1.442695
    %v5470 = vpow.pop %v5469
    %v5471 = vmul.f32 %v5273, 1.442695
    %v5472 = vpow.pop %v5471
    %v5473 = vmul.f32 %v5274, 1.442695
    %v5474 = vpow.pop %v5473
    %v5475 = vmul.f32 %v5275, 1.442695
    %v5476 = vpow.pop %v5475
    %v5477 = vmul.f32 %v5276, 1.442695
    %v5478 = vpow.pop %v5477
    %v5479 = vmul.f32 %v5277, 1.442695
    %v5480 = vpow.pop %v5479
    %v5481 = vmul.f32 %v5278, 1.442695
    %v5482 = vpow.pop %v5481
    %v5483 = vmul.f32 %v5279, 1.442695
    %v5484 = vpow.pop %v5483
    %v5485 = vmul.f32 %v5280, 1.442695
    %v5486 = vpow.pop %v5485
    %v5487 = vmul.f32 %v5281, 1.442695
    %v5488 = vpow.pop %v5487
    %v5489 = vmul.f32 %v5282, 1.442695
    %v5490 = vpow.pop %v5489
    %v5491 = vmul.f32 %v5283, 1.442695
    %v5492 = vpow.pop %v5491
    %v5493 = vmul.f32 %v5284, 1.442695
    %v5494 = vpow.pop %v5493
    %v5495 = vmul.f32 %v5285, 1.442695
    %v5496 = vpow.pop %v5495
    %v5497 = vmul.f32 %v5286, 1.442695
    %v5498 = vpow.pop %v5497
    %v5499 = vmul.f32 %v5287, 1.442695
    %v5500 = vpow.pop %v5499
    %v5501 = vmul.f32 %v5288, 1.442695
    %v5502 = vpow.pop %v5501
    %v5503 = vmul.f32 %v5289, 1.442695
    %v5504 = vpow.pop %v5503
    %v5505 = vmul.f32 %v5290, 1.442695
    %v5506 = vpow.pop %v5505
    %v5507 = vmul.f32 %v5291, 1.442695
    %v5508 = vpow.pop %v5507
    %v5509 = vmul.f32 %v5292, 1.442695
    %v5510 = vpow.pop %v5509
    %v5511 = vmul.f32 %v5293, 1.442695
    %v5512 = vpow.pop %v5511
    %v5513 = vmul.f32 %v5294, 1.442695
    %v5514 = vpow.pop %v5513
    %v5515 = vmul.f32 %v5295, 1.442695
    %v5516 = vpow.pop %v5515
    %v5517 = vmul.f32 %v5296, 1.442695
    %v5518 = vpow.pop %v5517
    %v5519 = vmul.f32 %v5297, 1.442695
    %v5520 = vpow.pop %v5519
    %v5521 = vmul.f32 %v5298, 1.442695
    %v5522 = vpow.pop %v5521
    %v5523 = vmul.f32 %v5299, 1.442695
    %v5524 = vpow.pop %v5523
    %v5525 = vmul.f32 %v5300, 1.442695
    %v5526 = vpow.pop %v5525
    %v5527 = vmul.f32 %v5301, 1.442695
    %v5528 = vpow.pop %v5527
    %v5529 = vmul.f32 %v5302, 1.442695
    %v5530 = vpow.pop %v5529
    %v5531 = vmul.f32 %v5303, 1.442695
    %v5532 = vpow.pop %v5531
    %v5533 = vmul.f32 %v5304, 1.442695
    %v5534 = vpow.pop %v5533
    %v5535 = vmul.f32 %v5305, 1.442695
    %v5536 = vpow.pop %v5535
    %v5537 = vmul.f32 %v5306, 1.442695
    %v5538 = vpow.pop %v5537
    %v5539 = vmul.f32 %v5307, 1.442695
    %v5540 = vpow.pop %v5539
    %v5541 = vmul.f32 %v5308, 1.442695
    %v5542 = vpow.pop %v5541
    %v5543 = vmul.f32 %v5309, 1.442695
    %v5544 = vpow.pop %v5543
    %v5545 = vmul.f32 %v5310, 1.442695
    %v5546 = vpow.pop %v5545
    %v5547 = vmul.f32 %v5311, 1.442695
    %v5548 = vpow.pop %v5547
    %v5549 = vmul.f32 %v5312, 1.442695
    %v5550 = vpow.pop %v5549
    %v5551 = vmul.f32 %v5313, 1.442695
    %v5552 = vpow.pop %v5551
    %v5553 = vmul.f32 %v5314, 1.442695
    %v5554 = vpow.pop %v5553
    %v5555 = vmul.f32 %v5315, 1.442695
    %v5556 = vpow.pop %v5555
    %v5557 = vmul.f32 %v5316, 1.442695
    %v5558 = vpow.pop %v5557
    %v5559 = vmul.f32 %v5317, 1.442695
    %v5560 = vpow.pop %v5559
    %v5561 = vmul.f32 %v5318, 1.442695
    %v5562 = vpow.pop %v5561
    %v5563 = vmul.f32 %v5319, 1.442695
    %v5564 = vpow.pop %v5563
    %v5565 = vmul.f32 %v5320, 1.442695
    %v5566 = vpow.pop %v5565
    %v5567 = vmul.f32 %v5321, 1.442695
    %v5568 = vpow.pop %v5567
    %v5569 = vmul.f32 %v5322, 1.442695
    %v5570 = vpow.pop %v5569
    %v5571 = vmul.f32 %v5323, 1.442695
    %v5572 = vpow.pop %v5571
    %v5573 = vmul.f32 %v5324, 1.442695
    %v5574 = vpow.pop %v5573
    %v5575 = vmul.f32 %v5325, 1.442695
    %v5576 = vpow.pop %v5575
    %v5577 = vmul.f32 %v5326, 1.442695
    %v5578 = vpow.pop %v5577
    %v5579 = vmul.f32 %v5327, 1.442695
    %v5580 = vpow.pop %v5579
    %v5581 = vmul.f32 %v5328, 1.442695
    %v5582 = vpow.pop %v5581
    %v5583 = vmul.f32 %v5329, 1.442695
    %v5584 = vpow.pop %v5583
    %v5585 = vmul.f32 %v5330, 1.442695
    %v5586 = vpow.pop %v5585
    %v5587 = vsel %vm1310, %v5332, 0.0
    %v5588 = vsel %vm1310, %v5334, 0.0
    %v5589 = vadd.f32 %v5587, %v5588
    %v5590 = vsel %vm1310, %v5336, 0.0
    %v5591 = vadd.f32 %v5589, %v5590
    %v5592 = vsel %vm1310, %v5338, 0.0
    %v5593 = vadd.f32 %v5591, %v5592
    %v5594 = vrot.slane %v5593, 4
    %v5595 = vadd.f32 %v5593, %v5594
    %v5596 = vrot.slane %v5595, 2
    %v5597 = vadd.f32 %v5595, %v5596
    %v5598 = vrot.slane %v5597, 1
    %v5599 = vadd.f32 %v5597, %v5598
    %v5600 = vsel %vm1310, %v5340, 0.0
    %v5601 = vsel %vm1310, %v5342, 0.0
    %v5602 = vadd.f32 %v5600, %v5601
    %v5603 = vsel %vm1310, %v5344, 0.0
    %v5604 = vadd.f32 %v5602, %v5603
    %v5605 = vsel %vm1310, %v5346, 0.0
    %v5606 = vadd.f32 %v5604, %v5605
    %v5607 = vrot.slane %v5606, 4
    %v5608 = vadd.f32 %v5606, %v5607
    %v5609 = vrot.slane %v5608, 2
    %v5610 = vadd.f32 %v5608, %v5609
    %v5611 = vrot.slane %v5610, 1
    %v5612 = vadd.f32 %v5610, %v5611
    %v5613 = vsel %vm1310, %v5348, 0.0
    %v5614 = vsel %vm1310, %v5350, 0.0
    %v5615 = vadd.f32 %v5613, %v5614
    %v5616 = vsel %vm1310, %v5352, 0.0
    %v5617 = vadd.f32 %v5615, %v5616
    %v5618 = vsel %vm1310, %v5354, 0.0
    %v5619 = vadd.f32 %v5617, %v5618
    %v5620 = vrot.slane %v5619, 4
    %v5621 = vadd.f32 %v5619, %v5620
    %v5622 = vrot.slane %v5621, 2
    %v5623 = vadd.f32 %v5621, %v5622
    %v5624 = vrot.slane %v5623, 1
    %v5625 = vadd.f32 %v5623, %v5624
    %v5626 = vsel %vm1310, %v5356, 0.0
    %v5627 = vsel %vm1310, %v5358, 0.0
    %v5628 = vadd.f32 %v5626, %v5627
    %v5629 = vsel %vm1310, %v5360, 0.0
    %v5630 = vadd.f32 %v5628, %v5629
    %v5631 = vsel %vm1310, %v5362, 0.0
    %v5632 = vadd.f32 %v5630, %v5631
    %v5633 = vrot.slane %v5632, 4
    %v5634 = vadd.f32 %v5632, %v5633
    %v5635 = vrot.slane %v5634, 2
    %v5636 = vadd.f32 %v5634, %v5635
    %v5637 = vrot.slane %v5636, 1
    %v5638 = vadd.f32 %v5636, %v5637
    %v5639 = vsel %vm1310, %v5364, 0.0
    %v5640 = vsel %vm1310, %v5366, 0.0
    %v5641 = vadd.f32 %v5639, %v5640
    %v5642 = vsel %vm1310, %v5368, 0.0
    %v5643 = vadd.f32 %v5641, %v5642
    %v5644 = vsel %vm1310, %v5370, 0.0
    %v5645 = vadd.f32 %v5643, %v5644
    %v5646 = vrot.slane %v5645, 4
    %v5647 = vadd.f32 %v5645, %v5646
    %v5648 = vrot.slane %v5647, 2
    %v5649 = vadd.f32 %v5647, %v5648
    %v5650 = vrot.slane %v5649, 1
    %v5651 = vadd.f32 %v5649, %v5650
    %v5652 = vsel %vm1310, %v5372, 0.0
    %v5653 = vsel %vm1310, %v5374, 0.0
    %v5654 = vadd.f32 %v5652, %v5653
    %v5655 = vsel %vm1310, %v5376, 0.0
    %v5656 = vadd.f32 %v5654, %v5655
    %v5657 = vsel %vm1310, %v5378, 0.0
    %v5658 = vadd.f32 %v5656, %v5657
    %v5659 = vrot.slane %v5658, 4
    %v5660 = vadd.f32 %v5658, %v5659
    %v5661 = vrot.slane %v5660, 2
    %v5662 = vadd.f32 %v5660, %v5661
    %v5663 = vrot.slane %v5662, 1
    %v5664 = vadd.f32 %v5662, %v5663
    %v5665 = vsel %vm1310, %v5380, 0.0
    %v5666 = vsel %vm1310, %v5382, 0.0
    %v5667 = vadd.f32 %v5665, %v5666
    %v5668 = vsel %vm1310, %v5384, 0.0
    %v5669 = vadd.f32 %v5667, %v5668
    %v5670 = vsel %vm1310, %v5386, 0.0
    %v5671 = vadd.f32 %v5669, %v5670
    %v5672 = vrot.slane %v5671, 4
    %v5673 = vadd.f32 %v5671, %v5672
    %v5674 = vrot.slane %v5673, 2
    %v5675 = vadd.f32 %v5673, %v5674
    %v5676 = vrot.slane %v5675, 1
    %v5677 = vadd.f32 %v5675, %v5676
    %v5678 = vsel %vm1310, %v5388, 0.0
    %v5679 = vsel %vm1310, %v5390, 0.0
    %v5680 = vadd.f32 %v5678, %v5679
    %v5681 = vsel %vm1310, %v5392, 0.0
    %v5682 = vadd.f32 %v5680, %v5681
    %v5683 = vsel %vm1310, %v5394, 0.0
    %v5684 = vadd.f32 %v5682, %v5683
    %v5685 = vrot.slane %v5684, 4
    %v5686 = vadd.f32 %v5684, %v5685
    %v5687 = vrot.slane %v5686, 2
    %v5688 = vadd.f32 %v5686, %v5687
    %v5689 = vrot.slane %v5688, 1
    %v5690 = vadd.f32 %v5688, %v5689
    %v5691 = vsel %vm1310, %v5396, 0.0
    %v5692 = vsel %vm1310, %v5398, 0.0
    %v5693 = vadd.f32 %v5691, %v5692
    %v5694 = vsel %vm1310, %v5400, 0.0
    %v5695 = vadd.f32 %v5693, %v5694
    %v5696 = vsel %vm1310, %v5402, 0.0
    %v5697 = vadd.f32 %v5695, %v5696
    %v5698 = vrot.slane %v5697, 4
    %v5699 = vadd.f32 %v5697, %v5698
    %v5700 = vrot.slane %v5699, 2
    %v5701 = vadd.f32 %v5699, %v5700
    %v5702 = vrot.slane %v5701, 1
    %v5703 = vadd.f32 %v5701, %v5702
    %v5704 = vsel %vm1310, %v5404, 0.0
    %v5705 = vsel %vm1310, %v5406, 0.0
    %v5706 = vadd.f32 %v5704, %v5705
    %v5707 = vsel %vm1310, %v5408, 0.0
    %v5708 = vadd.f32 %v5706, %v5707
    %v5709 = vsel %vm1310, %v5410, 0.0
    %v5710 = vadd.f32 %v5708, %v5709
    %v5711 = vrot.slane %v5710, 4
    %v5712 = vadd.f32 %v5710, %v5711
    %v5713 = vrot.slane %v5712, 2
    %v5714 = vadd.f32 %v5712, %v5713
    %v5715 = vrot.slane %v5714, 1
    %v5716 = vadd.f32 %v5714, %v5715
    %v5717 = vsel %vm1310, %v5412, 0.0
    %v5718 = vsel %vm1310, %v5414, 0.0
    %v5719 = vadd.f32 %v5717, %v5718
    %v5720 = vsel %vm1310, %v5416, 0.0
    %v5721 = vadd.f32 %v5719, %v5720
    %v5722 = vsel %vm1310, %v5418, 0.0
    %v5723 = vadd.f32 %v5721, %v5722
    %v5724 = vrot.slane %v5723, 4
    %v5725 = vadd.f32 %v5723, %v5724
    %v5726 = vrot.slane %v5725, 2
    %v5727 = vadd.f32 %v5725, %v5726
    %v5728 = vrot.slane %v5727, 1
    %v5729 = vadd.f32 %v5727, %v5728
    %v5730 = vsel %vm1310, %v5420, 0.0
    %v5731 = vsel %vm1310, %v5422, 0.0
    %v5732 = vadd.f32 %v5730, %v5731
    %v5733 = vsel %vm1310, %v5424, 0.0
    %v5734 = vadd.f32 %v5732, %v5733
    %v5735 = vsel %vm1310, %v5426, 0.0
    %v5736 = vadd.f32 %v5734, %v5735
    %v5737 = vrot.slane %v5736, 4
    %v5738 = vadd.f32 %v5736, %v5737
    %v5739 = vrot.slane %v5738, 2
    %v5740 = vadd.f32 %v5738, %v5739
    %v5741 = vrot.slane %v5740, 1
    %v5742 = vadd.f32 %v5740, %v5741
    %v5743 = vsel %vm1310, %v5428, 0.0
    %v5744 = vsel %vm1310, %v5430, 0.0
    %v5745 = vadd.f32 %v5743, %v5744
    %v5746 = vsel %vm1310, %v5432, 0.0
    %v5747 = vadd.f32 %v5745, %v5746
    %v5748 = vsel %vm1310, %v5434, 0.0
    %v5749 = vadd.f32 %v5747, %v5748
    %v5750 = vrot.slane %v5749, 4
    %v5751 = vadd.f32 %v5749, %v5750
    %v5752 = vrot.slane %v5751, 2
    %v5753 = vadd.f32 %v5751, %v5752
    %v5754 = vrot.slane %v5753, 1
    %v5755 = vadd.f32 %v5753, %v5754
    %v5756 = vsel %vm1310, %v5436, 0.0
    %v5757 = vsel %vm1310, %v5438, 0.0
    %v5758 = vadd.f32 %v5756, %v5757
    %v5759 = vsel %vm1310, %v5440, 0.0
    %v5760 = vadd.f32 %v5758, %v5759
    %v5761 = vsel %vm1310, %v5442, 0.0
    %v5762 = vadd.f32 %v5760, %v5761
    %v5763 = vrot.slane %v5762, 4
    %v5764 = vadd.f32 %v5762, %v5763
    %v5765 = vrot.slane %v5764, 2
    %v5766 = vadd.f32 %v5764, %v5765
    %v5767 = vrot.slane %v5766, 1
    %v5768 = vadd.f32 %v5766, %v5767
    %v5769 = vsel %vm1310, %v5444, 0.0
    %v5770 = vsel %vm1310, %v5446, 0.0
    %v5771 = vadd.f32 %v5769, %v5770
    %v5772 = vsel %vm1310, %v5448, 0.0
    %v5773 = vadd.f32 %v5771, %v5772
    %v5774 = vsel %vm1310, %v5450, 0.0
    %v5775 = vadd.f32 %v5773, %v5774
    %v5776 = vrot.slane %v5775, 4
    %v5777 = vadd.f32 %v5775, %v5776
    %v5778 = vrot.slane %v5777, 2
    %v5779 = vadd.f32 %v5777, %v5778
    %v5780 = vrot.slane %v5779, 1
    %v5781 = vadd.f32 %v5779, %v5780
    %v5782 = vsel %vm1310, %v5452, 0.0
    %v5783 = vsel %vm1310, %v5454, 0.0
    %v5784 = vadd.f32 %v5782, %v5783
    %v5785 = vsel %vm1310, %v5456, 0.0
    %v5786 = vadd.f32 %v5784, %v5785
    %v5787 = vsel %vm1310, %v5458, 0.0
    %v5788 = vadd.f32 %v5786, %v5787
    %v5789 = vrot.slane %v5788, 4
    %v5790 = vadd.f32 %v5788, %v5789
    %v5791 = vrot.slane %v5790, 2
    %v5792 = vadd.f32 %v5790, %v5791
    %v5793 = vrot.slane %v5792, 1
    %v5794 = vadd.f32 %v5792, %v5793
    %v5795 = vsel %vm1310, %v5460, 0.0
    %v5796 = vsel %vm1310, %v5462, 0.0
    %v5797 = vadd.f32 %v5795, %v5796
    %v5798 = vsel %vm1310, %v5464, 0.0
    %v5799 = vadd.f32 %v5797, %v5798
    %v5800 = vsel %vm1310, %v5466, 0.0
    %v5801 = vadd.f32 %v5799, %v5800
    %v5802 = vrot.slane %v5801, 4
    %v5803 = vadd.f32 %v5801, %v5802
    %v5804 = vrot.slane %v5803, 2
    %v5805 = vadd.f32 %v5803, %v5804
    %v5806 = vrot.slane %v5805, 1
    %v5807 = vadd.f32 %v5805, %v5806
    %v5808 = vsel %vm1310, %v5468, 0.0
    %v5809 = vsel %vm1310, %v5470, 0.0
    %v5810 = vadd.f32 %v5808, %v5809
    %v5811 = vsel %vm1310, %v5472, 0.0
    %v5812 = vadd.f32 %v5810, %v5811
    %v5813 = vsel %vm1310, %v5474, 0.0
    %v5814 = vadd.f32 %v5812, %v5813
    %v5815 = vrot.slane %v5814, 4
    %v5816 = vadd.f32 %v5814, %v5815
    %v5817 = vrot.slane %v5816, 2
    %v5818 = vadd.f32 %v5816, %v5817
    %v5819 = vrot.slane %v5818, 1
    %v5820 = vadd.f32 %v5818, %v5819
    %v5821 = vsel %vm1310, %v5476, 0.0
    %v5822 = vsel %vm1310, %v5478, 0.0
    %v5823 = vadd.f32 %v5821, %v5822
    %v5824 = vsel %vm1310, %v5480, 0.0
    %v5825 = vadd.f32 %v5823, %v5824
    %v5826 = vsel %vm1310, %v5482, 0.0
    %v5827 = vadd.f32 %v5825, %v5826
    %v5828 = vrot.slane %v5827, 4
    %v5829 = vadd.f32 %v5827, %v5828
    %v5830 = vrot.slane %v5829, 2
    %v5831 = vadd.f32 %v5829, %v5830
    %v5832 = vrot.slane %v5831, 1
    %v5833 = vadd.f32 %v5831, %v5832
    %v5834 = vsel %vm1310, %v5484, 0.0
    %v5835 = vsel %vm1310, %v5486, 0.0
    %v5836 = vadd.f32 %v5834, %v5835
    %v5837 = vsel %vm1310, %v5488, 0.0
    %v5838 = vadd.f32 %v5836, %v5837
    %v5839 = vsel %vm1310, %v5490, 0.0
    %v5840 = vadd.f32 %v5838, %v5839
    %v5841 = vrot.slane %v5840, 4
    %v5842 = vadd.f32 %v5840, %v5841
    %v5843 = vrot.slane %v5842, 2
    %v5844 = vadd.f32 %v5842, %v5843
    %v5845 = vrot.slane %v5844, 1
    %v5846 = vadd.f32 %v5844, %v5845
    %v5847 = vsel %vm1310, %v5492, 0.0
    %v5848 = vsel %vm1310, %v5494, 0.0
    %v5849 = vadd.f32 %v5847, %v5848
    %v5850 = vsel %vm1310, %v5496, 0.0
    %v5851 = vadd.f32 %v5849, %v5850
    %v5852 = vsel %vm1310, %v5498, 0.0
    %v5853 = vadd.f32 %v5851, %v5852
    %v5854 = vrot.slane %v5853, 4
    %v5855 = vadd.f32 %v5853, %v5854
    %v5856 = vrot.slane %v5855, 2
    %v5857 = vadd.f32 %v5855, %v5856
    %v5858 = vrot.slane %v5857, 1
    %v5859 = vadd.f32 %v5857, %v5858
    %v5860 = vsel %vm1310, %v5500, 0.0
    %v5861 = vsel %vm1310, %v5502, 0.0
    %v5862 = vadd.f32 %v5860, %v5861
    %v5863 = vsel %vm1310, %v5504, 0.0
    %v5864 = vadd.f32 %v5862, %v5863
    %v5865 = vsel %vm1310, %v5506, 0.0
    %v5866 = vadd.f32 %v5864, %v5865
    %v5867 = vrot.slane %v5866, 4
    %v5868 = vadd.f32 %v5866, %v5867
    %v5869 = vrot.slane %v5868, 2
    %v5870 = vadd.f32 %v5868, %v5869
    %v5871 = vrot.slane %v5870, 1
    %v5872 = vadd.f32 %v5870, %v5871
    %v5873 = vsel %vm1310, %v5508, 0.0
    %v5874 = vsel %vm1310, %v5510, 0.0
    %v5875 = vadd.f32 %v5873, %v5874
    %v5876 = vsel %vm1310, %v5512, 0.0
    %v5877 = vadd.f32 %v5875, %v5876
    %v5878 = vsel %vm1310, %v5514, 0.0
    %v5879 = vadd.f32 %v5877, %v5878
    %v5880 = vrot.slane %v5879, 4
    %v5881 = vadd.f32 %v5879, %v5880
    %v5882 = vrot.slane %v5881, 2
    %v5883 = vadd.f32 %v5881, %v5882
    %v5884 = vrot.slane %v5883, 1
    %v5885 = vadd.f32 %v5883, %v5884
    %v5886 = vsel %vm1310, %v5516, 0.0
    %v5887 = vsel %vm1310, %v5518, 0.0
    %v5888 = vadd.f32 %v5886, %v5887
    %v5889 = vsel %vm1310, %v5520, 0.0
    %v5890 = vadd.f32 %v5888, %v5889
    %v5891 = vsel %vm1310, %v5522, 0.0
    %v5892 = vadd.f32 %v5890, %v5891
    %v5893 = vrot.slane %v5892, 4
    %v5894 = vadd.f32 %v5892, %v5893
    %v5895 = vrot.slane %v5894, 2
    %v5896 = vadd.f32 %v5894, %v5895
    %v5897 = vrot.slane %v5896, 1
    %v5898 = vadd.f32 %v5896, %v5897
    %v5899 = vsel %vm1310, %v5524, 0.0
    %v5900 = vsel %vm1310, %v5526, 0.0
    %v5901 = vadd.f32 %v5899, %v5900
    %v5902 = vsel %vm1310, %v5528, 0.0
    %v5903 = vadd.f32 %v5901, %v5902
    %v5904 = vsel %vm1310, %v5530, 0.0
    %v5905 = vadd.f32 %v5903, %v5904
    %v5906 = vrot.slane %v5905, 4
    %v5907 = vadd.f32 %v5905, %v5906
    %v5908 = vrot.slane %v5907, 2
    %v5909 = vadd.f32 %v5907, %v5908
    %v5910 = vrot.slane %v5909, 1
    %v5911 = vadd.f32 %v5909, %v5910
    %v5912 = vsel %vm1310, %v5532, 0.0
    %v5913 = vsel %vm1310, %v5534, 0.0
    %v5914 = vadd.f32 %v5912, %v5913
    %v5915 = vsel %vm1310, %v5536, 0.0
    %v5916 = vadd.f32 %v5914, %v5915
    %v5917 = vsel %vm1310, %v5538, 0.0
    %v5918 = vadd.f32 %v5916, %v5917
    %v5919 = vrot.slane %v5918, 4
    %v5920 = vadd.f32 %v5918, %v5919
    %v5921 = vrot.slane %v5920, 2
    %v5922 = vadd.f32 %v5920, %v5921
    %v5923 = vrot.slane %v5922, 1
    %v5924 = vadd.f32 %v5922, %v5923
    %v5925 = vsel %vm1310, %v5540, 0.0
    %v5926 = vsel %vm1310, %v5542, 0.0
    %v5927 = vadd.f32 %v5925, %v5926
    %v5928 = vsel %vm1310, %v5544, 0.0
    %v5929 = vadd.f32 %v5927, %v5928
    %v5930 = vsel %vm1310, %v5546, 0.0
    %v5931 = vadd.f32 %v5929, %v5930
    %v5932 = vrot.slane %v5931, 4
    %v5933 = vadd.f32 %v5931, %v5932
    %v5934 = vrot.slane %v5933, 2
    %v5935 = vadd.f32 %v5933, %v5934
    %v5936 = vrot.slane %v5935, 1
    %v5937 = vadd.f32 %v5935, %v5936
    %v5938 = vsel %vm1310, %v5548, 0.0
    %v5939 = vsel %vm1310, %v5550, 0.0
    %v5940 = vadd.f32 %v5938, %v5939
    %v5941 = vsel %vm1310, %v5552, 0.0
    %v5942 = vadd.f32 %v5940, %v5941
    %v5943 = vsel %vm1310, %v5554, 0.0
    %v5944 = vadd.f32 %v5942, %v5943
    %v5945 = vrot.slane %v5944, 4
    %v5946 = vadd.f32 %v5944, %v5945
    %v5947 = vrot.slane %v5946, 2
    %v5948 = vadd.f32 %v5946, %v5947
    %v5949 = vrot.slane %v5948, 1
    %v5950 = vadd.f32 %v5948, %v5949
    %v5951 = vsel %vm1310, %v5556, 0.0
    %v5952 = vsel %vm1310, %v5558, 0.0
    %v5953 = vadd.f32 %v5951, %v5952
    %v5954 = vsel %vm1310, %v5560, 0.0
    %v5955 = vadd.f32 %v5953, %v5954
    %v5956 = vsel %vm1310, %v5562, 0.0
    %v5957 = vadd.f32 %v5955, %v5956
    %v5958 = vrot.slane %v5957, 4
    %v5959 = vadd.f32 %v5957, %v5958
    %v5960 = vrot.slane %v5959, 2
    %v5961 = vadd.f32 %v5959, %v5960
    %v5962 = vrot.slane %v5961, 1
    %v5963 = vadd.f32 %v5961, %v5962
    %v5964 = vsel %vm1310, %v5564, 0.0
    %v5965 = vsel %vm1310, %v5566, 0.0
    %v5966 = vadd.f32 %v5964, %v5965
    %v5967 = vsel %vm1310, %v5568, 0.0
    %v5968 = vadd.f32 %v5966, %v5967
    %v5969 = vsel %vm1310, %v5570, 0.0
    %v5970 = vadd.f32 %v5968, %v5969
    %v5971 = vrot.slane %v5970, 4
    %v5972 = vadd.f32 %v5970, %v5971
    %v5973 = vrot.slane %v5972, 2
    %v5974 = vadd.f32 %v5972, %v5973
    %v5975 = vrot.slane %v5974, 1
    %v5976 = vadd.f32 %v5974, %v5975
    %v5977 = vsel %vm1310, %v5572, 0.0
    %v5978 = vsel %vm1310, %v5574, 0.0
    %v5979 = vadd.f32 %v5977, %v5978
    %v5980 = vsel %vm1310, %v5576, 0.0
    %v5981 = vadd.f32 %v5979, %v5980
    %v5982 = vsel %vm1310, %v5578, 0.0
    %v5983 = vadd.f32 %v5981, %v5982
    %v5984 = vrot.slane %v5983, 4
    %v5985 = vadd.f32 %v5983, %v5984
    %v5986 = vrot.slane %v5985, 2
    %v5987 = vadd.f32 %v5985, %v5986
    %v5988 = vrot.slane %v5987, 1
    %v5989 = vadd.f32 %v5987, %v5988
    %v5990 = vsel %vm1310, %v5580, 0.0
    %v5991 = vsel %vm1310, %v5582, 0.0
    %v5992 = vadd.f32 %v5990, %v5991
    %v5993 = vsel %vm1310, %v5584, 0.0
    %v5994 = vadd.f32 %v5992, %v5993
    %v5995 = vsel %vm1310, %v5586, 0.0
    %v5996 = vadd.f32 %v5994, %v5995
    %v5997 = vrot.slane %v5996, 4
    %v5998 = vadd.f32 %v5996, %v5997
    %v5999 = vrot.slane %v5998, 2
    %v6000 = vadd.f32 %v5998, %v5999
    %v6001 = vrot.slane %v6000, 1
    %v6002 = vadd.f32 %v6000, %v6001
    %v6003 = vrcp.pop %v5599
    %v6004 = vrcp.pop %v5612
    %v6005 = vrcp.pop %v5625
    %v6006 = vrcp.pop %v5638
    %v6007 = vrcp.pop %v5651
    %v6008 = vrcp.pop %v5664
    %v6009 = vrcp.pop %v5677
    %v6010 = vrcp.pop %v5690
    %v6011 = vrcp.pop %v5703
    %v6012 = vrcp.pop %v5716
    %v6013 = vrcp.pop %v5729
    %v6014 = vrcp.pop %v5742
    %v6015 = vrcp.pop %v5755
    %v6016 = vrcp.pop %v5768
    %v6017 = vrcp.pop %v5781
    %v6018 = vrcp.pop %v5794
    %v6019 = vrcp.pop %v5807
    %v6020 = vrcp.pop %v5820
    %v6021 = vrcp.pop %v5833
    %v6022 = vrcp.pop %v5846
    %v6023 = vrcp.pop %v5859
    %v6024 = vrcp.pop %v5872
    %v6025 = vrcp.pop %v5885
    %v6026 = vrcp.pop %v5898
    %v6027 = vrcp.pop %v5911
    %v6028 = vrcp.pop %v5924
    %v6029 = vrcp.pop %v5937
    %v6030 = vrcp.pop %v5950
    %v6031 = vrcp.pop %v5963
    %v6032 = vrcp.pop %v5976
    %v6033 = vrcp.pop %v5989
    %v6034 = vrcp.pop %v6002
    %v6035 = vmul.f32 %v5332, %v6003
    %v6036 = vmul.f32 %v5334, %v6003
    %v6037 = vmul.f32 %v5336, %v6003
    %v6038 = vmul.f32 %v5338, %v6003
    %v6039 = vmul.f32 %v5340, %v6004
    %v6040 = vmul.f32 %v5342, %v6004
    %v6041 = vmul.f32 %v5344, %v6004
    %v6042 = vmul.f32 %v5346, %v6004
    %v6043 = vmul.f32 %v5348, %v6005
    %v6044 = vmul.f32 %v5350, %v6005
    %v6045 = vmul.f32 %v5352, %v6005
    %v6046 = vmul.f32 %v5354, %v6005
    %v6047 = vmul.f32 %v5356, %v6006
    %v6048 = vmul.f32 %v5358, %v6006
    %v6049 = vmul.f32 %v5360, %v6006
    %v6050 = vmul.f32 %v5362, %v6006
    %v6051 = vmul.f32 %v5364, %v6007
    %v6052 = vmul.f32 %v5366, %v6007
    %v6053 = vmul.f32 %v5368, %v6007
    %v6054 = vmul.f32 %v5370, %v6007
    %v6055 = vmul.f32 %v5372, %v6008
    %v6056 = vmul.f32 %v5374, %v6008
    %v6057 = vmul.f32 %v5376, %v6008
    %v6058 = vmul.f32 %v5378, %v6008
    %v6059 = vmul.f32 %v5380, %v6009
    %v6060 = vmul.f32 %v5382, %v6009
    %v6061 = vmul.f32 %v5384, %v6009
    %v6062 = vmul.f32 %v5386, %v6009
    %v6063 = vmul.f32 %v5388, %v6010
    %v6064 = vmul.f32 %v5390, %v6010
    %v6065 = vmul.f32 %v5392, %v6010
    %v6066 = vmul.f32 %v5394, %v6010
    %v6067 = vmul.f32 %v5396, %v6011
    %v6068 = vmul.f32 %v5398, %v6011
    %v6069 = vmul.f32 %v5400, %v6011
    %v6070 = vmul.f32 %v5402, %v6011
    %v6071 = vmul.f32 %v5404, %v6012
    %v6072 = vmul.f32 %v5406, %v6012
    %v6073 = vmul.f32 %v5408, %v6012
    %v6074 = vmul.f32 %v5410, %v6012
    %v6075 = vmul.f32 %v5412, %v6013
    %v6076 = vmul.f32 %v5414, %v6013
    %v6077 = vmul.f32 %v5416, %v6013
    %v6078 = vmul.f32 %v5418, %v6013
    %v6079 = vmul.f32 %v5420, %v6014
    %v6080 = vmul.f32 %v5422, %v6014
    %v6081 = vmul.f32 %v5424, %v6014
    %v6082 = vmul.f32 %v5426, %v6014
    %v6083 = vmul.f32 %v5428, %v6015
    %v6084 = vmul.f32 %v5430, %v6015
    %v6085 = vmul.f32 %v5432, %v6015
    %v6086 = vmul.f32 %v5434, %v6015
    %v6087 = vmul.f32 %v5436, %v6016
    %v6088 = vmul.f32 %v5438, %v6016
    %v6089 = vmul.f32 %v5440, %v6016
    %v6090 = vmul.f32 %v5442, %v6016
    %v6091 = vmul.f32 %v5444, %v6017
    %v6092 = vmul.f32 %v5446, %v6017
    %v6093 = vmul.f32 %v5448, %v6017
    %v6094 = vmul.f32 %v5450, %v6017
    %v6095 = vmul.f32 %v5452, %v6018
    %v6096 = vmul.f32 %v5454, %v6018
    %v6097 = vmul.f32 %v5456, %v6018
    %v6098 = vmul.f32 %v5458, %v6018
    %v6099 = vmul.f32 %v5460, %v6019
    %v6100 = vmul.f32 %v5462, %v6019
    %v6101 = vmul.f32 %v5464, %v6019
    %v6102 = vmul.f32 %v5466, %v6019
    %v6103 = vmul.f32 %v5468, %v6020
    %v6104 = vmul.f32 %v5470, %v6020
    %v6105 = vmul.f32 %v5472, %v6020
    %v6106 = vmul.f32 %v5474, %v6020
    %v6107 = vmul.f32 %v5476, %v6021
    %v6108 = vmul.f32 %v5478, %v6021
    %v6109 = vmul.f32 %v5480, %v6021
    %v6110 = vmul.f32 %v5482, %v6021
    %v6111 = vmul.f32 %v5484, %v6022
    %v6112 = vmul.f32 %v5486, %v6022
    %v6113 = vmul.f32 %v5488, %v6022
    %v6114 = vmul.f32 %v5490, %v6022
    %v6115 = vmul.f32 %v5492, %v6023
    %v6116 = vmul.f32 %v5494, %v6023
    %v6117 = vmul.f32 %v5496, %v6023
    %v6118 = vmul.f32 %v5498, %v6023
    %v6119 = vmul.f32 %v5500, %v6024
    %v6120 = vmul.f32 %v5502, %v6024
    %v6121 = vmul.f32 %v5504, %v6024
    %v6122 = vmul.f32 %v5506, %v6024
    %v6123 = vmul.f32 %v5508, %v6025
    %v6124 = vmul.f32 %v5510, %v6025
    %v6125 = vmul.f32 %v5512, %v6025
    %v6126 = vmul.f32 %v5514, %v6025
    %v6127 = vmul.f32 %v5516, %v6026
    %v6128 = vmul.f32 %v5518, %v6026
    %v6129 = vmul.f32 %v5520, %v6026
    %v6130 = vmul.f32 %v5522, %v6026
    %v6131 = vmul.f32 %v5524, %v6027
    %v6132 = vmul.f32 %v5526, %v6027
    %v6133 = vmul.f32 %v5528, %v6027
    %v6134 = vmul.f32 %v5530, %v6027
    %v6135 = vmul.f32 %v5532, %v6028
    %v6136 = vmul.f32 %v5534, %v6028
    %v6137 = vmul.f32 %v5536, %v6028
    %v6138 = vmul.f32 %v5538, %v6028
    %v6139 = vmul.f32 %v5540, %v6029
    %v6140 = vmul.f32 %v5542, %v6029
    %v6141 = vmul.f32 %v5544, %v6029
    %v6142 = vmul.f32 %v5546, %v6029
    %v6143 = vmul.f32 %v5548, %v6030
    %v6144 = vmul.f32 %v5550, %v6030
    %v6145 = vmul.f32 %v5552, %v6030
    %v6146 = vmul.f32 %v5554, %v6030
    %v6147 = vmul.f32 %v5556, %v6031
    %v6148 = vmul.f32 %v5558, %v6031
    %v6149 = vmul.f32 %v5560, %v6031
    %v6150 = vmul.f32 %v5562, %v6031
    %v6151 = vmul.f32 %v5564, %v6032
    %v6152 = vmul.f32 %v5566, %v6032
    %v6153 = vmul.f32 %v5568, %v6032
    %v6154 = vmul.f32 %v5570, %v6032
    %v6155 = vmul.f32 %v5572, %v6033
    %v6156 = vmul.f32 %v5574, %v6033
    %v6157 = vmul.f32 %v5576, %v6033
    %v6158 = vmul.f32 %v5578, %v6033
    %v6159 = vmul.f32 %v5580, %v6034
    %v6160 = vmul.f32 %v5582, %v6034
    %v6161 = vmul.f32 %v5584, %v6034
    %v6162 = vmul.f32 %v5586, %v6034
    %6163 = vrot.lane.b32.xlu0 %v660, 64
    %v6164 = vpop.permute.xlu0 %6163
    %6165 = vrot.lane.b32.xlu0 %v665, 64
    %v6166 = vpop.permute.xlu0 %6165
    %6167 = vrot.lane.b32.xlu0 %v670, 64
    %v6168 = vpop.permute.xlu0 %6167
    %6169 = vrot.lane.b32.xlu0 %v675, 64
    %v6170 = vpop.permute.xlu0 %6169
    %v6176 = vsel %vm1310, %v6035, 0
    %v6179 = vsel %vm1310, %v6036, 0
    %v6182 = vsel %vm1310, %v6037, 0
    %v6185 = vsel %vm1310, %v6038, 0
    %6187 = vmatprep.subr.mxu0 0.0
    %6188 = vmatpush1.msra.mxu0 %v6164
    %6189 = vmatprep.subr.mxu0 0.0
    %6190 = vmatpush1.msra.mxu0 %v6166
    %6191 = vmatprep.subr.mxu0 0.0
    %6192 = vmatpush1.msra.mxu0 %v6168
    %6193 = vmatprep.subr.mxu0 0.0
    %6194 = vmatpush1.msra.mxu0 %v6170
    %6195 = vmatprep.subr.mxu0 0.0
    %6196 = vmatpush1.msra.mxu0 0.0
    %6197 = vmatprep.subr.mxu0 0.0
    %6198 = vmatpush1.msra.mxu0 0.0
    %6199 = vmatprep.subr.mxu0 0.0
    %6200 = vmatpush1.msra.mxu0 0.0
    %6201 = vmatprep.subr.mxu0 0.0
    %6202 = vmatpush1.msra.mxu0 0.0
    %6203 = vmatprep.subr.mxu0 0.0
    %6204 = vmatpush1.msra.mxu0 0.0
    %6205 = vmatprep.subr.mxu0 0.0
    %6206 = vmatpush1.msra.mxu0 0.0
    %6207 = vmatprep.subr.mxu0 0.0
    %6208 = vmatpush1.msra.mxu0 0.0
    %6209 = vmatprep.subr.mxu0 0.0
    %6210 = vmatpush1.msra.mxu0 0.0
    %6211 = vmatprep.subr.mxu0 0.0
    %6212 = vmatpush1.msra.mxu0 0.0
    %6213 = vmatprep.subr.mxu0 0.0
    %6214 = vmatpush1.msra.mxu0 0.0
    %6215 = vmatprep.subr.mxu0 0.0
    %6216 = vmatpush1.msra.mxu0 0.0
    %6217 = vmatprep.subr.mxu0 0.0
    %6218 = vmatpush1.msra.mxu0 0.0
    %6219 = vmatprep.subr.mxu0 0.0
    %6220 = vmatpush1.msra.mxu0 0.0
    %6221 = vmatprep.subr.mxu0 0.0
    %6222 = vmatpush1.msra.mxu0 0.0
    %6223 = vmatprep.subr.mxu0 0.0
    %6224 = vmatpush1.msra.mxu0 0.0
    %6225 = vmatprep.subr.mxu0 0.0
    %6226 = vmatpush1.msra.mxu0 0.0
    %6227 = vmatprep.subr.mxu0 0.0
    %6228 = vmatpush1.msra.mxu0 0.0
    %6229 = vmatprep.subr.mxu0 0.0
    %6230 = vmatpush1.msra.mxu0 0.0
    %6231 = vmatprep.subr.mxu0 0.0
    %6232 = vmatpush1.msra.mxu0 0.0
    %6233 = vmatprep.subr.mxu0 0.0
    %6234 = vmatpush1.msra.mxu0 0.0
    %6235 = vmatprep.subr.mxu0 0.0
    %6236 = vmatpush1.msra.mxu0 0.0
    %6237 = vmatprep.subr.mxu0 0.0
    %6238 = vmatpush1.msra.mxu0 0.0
    %6239 = vmatprep.subr.mxu0 0.0
    %6240 = vmatpush1.msra.mxu0 0.0
    %6241 = vmatprep.subr.mxu0 0.0
    %6242 = vmatpush1.msra.mxu0 0.0
    %6243 = vmatprep.subr.mxu0 0.0
    %6244 = vmatpush1.msra.mxu0 0.0
    %6245 = vmatprep.subr.mxu0 0.0
    %6246 = vmatpush1.msra.mxu0 0.0
    %6247 = vmatprep.subr.mxu0 0.0
    %6248 = vmatpush1.msra.mxu0 0.0
    %6249 = vmatprep.subr.mxu0 0.0
    %6250 = vmatpush1.msra.mxu0 0.0
    %6251 = vmatprep.mubr.f32.mxu0 0.0
    %6252 = vmatmul.mubr.f32.gmra.mrb[0].mxu0 %v6176
    %v6253 = vpop.f32.mrb[0].mxu0
    %v6254 = vadd.f32 0.0, %v6253
    %v6255 = vpop.f32.mrb[0].mxu0
    %6256 = vmatprep.mubr.f32.mxu0 0.0
    %6257 = vmatmul.mubr.f32.gmra.mrb[0].mxu0 %v6179
    %v6258 = vpop.f32.mrb[0].mxu0
    %v6259 = vadd.f32 0.0, %v6258
    %v6260 = vpop.f32.mrb[0].mxu0
    %6261 = vmatprep.mubr.f32.mxu0 0.0
    %6262 = vmatmul.mubr.f32.gmra.mrb[0].mxu0 %v6182
    %v6263 = vpop.f32.mrb[0].mxu0
    %v6264 = vadd.f32 0.0, %v6263
    %v6265 = vpop.f32.mrb[0].mxu0
    %6266 = vmatprep.mubr.f32.mxu0 0.0
    %6267 = vmatmul.mubr.f32.gmra.mrb[0].mxu0 %v6185
    %v6268 = vpop.f32.mrb[0].mxu0
    %v6269 = vadd.f32 0.0, %v6268
    %v6270 = vpop.f32.mrb[0].mxu0
    %6271 = vdwg.mxu0
    %6272 = vrot.lane.b32.xlu0 %v680, 64
    %v6273 = vpop.permute.xlu0 %6272
    %6274 = vrot.lane.b32.xlu0 %v685, 64
    %v6275 = vpop.permute.xlu0 %6274
    %6276 = vrot.lane.b32.xlu0 %v690, 64
    %v6277 = vpop.permute.xlu0 %6276
    %6278 = vrot.lane.b32.xlu0 %v695, 64
    %v6279 = vpop.permute.xlu0 %6278
    %v6285 = vsel %vm1310, %v6039, 0
    %v6288 = vsel %vm1310, %v6040, 0
    %v6291 = vsel %vm1310, %v6041, 0
    %v6294 = vsel %vm1310, %v6042, 0
    %6296 = vmatprep.subr.mxu0 0.0
    %6297 = vmatpush1.msra.mxu0 %v6273
    %6298 = vmatprep.subr.mxu0 0.0
    %6299 = vmatpush1.msra.mxu0 %v6275
    %6300 = vmatprep.subr.mxu0 0.0
    %6301 = vmatpush1.msra.mxu0 %v6277
    %6302 = vmatprep.subr.mxu0 0.0
    %6303 = vmatpush1.msra.mxu0 %v6279
    %6304 = vmatprep.subr.mxu0 0.0
    %6305 = vmatpush1.msra.mxu0 0.0
    %6306 = vmatprep.subr.mxu0 0.0
    %6307 = vmatpush1.msra.mxu0 0.0
    %6308 = vmatprep.subr.mxu0 0.0
    %6309 = vmatpush1.msra.mxu0 0.0
    %6310 = vmatprep.subr.mxu0 0.0
    %6311 = vmatpush1.msra.mxu0 0.0
    %6312 = vmatprep.subr.mxu0 0.0
    %6313 = vmatpush1.msra.mxu0 0.0
    %6314 = vmatprep.subr.mxu0 0.0
    %6315 = vmatpush1.msra.mxu0 0.0
    %6316 = vmatprep.subr.mxu0 0.0
    %6317 = vmatpush1.msra.mxu0 0.0
    %6318 = vmatprep.subr.mxu0 0.0
    %6319 = vmatpush1.msra.mxu0 0.0
    %6320 = vmatprep.subr.mxu0 0.0
    %6321 = vmatpush1.msra.mxu0 0.0
    %6322 = vmatprep.subr.mxu0 0.0
    %6323 = vmatpush1.msra.mxu0 0.0
    %6324 = vmatprep.subr.mxu0 0.0
    %6325 = vmatpush1.msra.mxu0 0.0
    %6326 = vmatprep.subr.mxu0 0.0
    %6327 = vmatpush1.msra.mxu0 0.0
    %6328 = vmatprep.subr.mxu0 0.0
    %6329 = vmatpush1.msra.mxu0 0.0
    %6330 = vmatprep.subr.mxu0 0.0
    %6331 = vmatpush1.msra.mxu0 0.0
    %6332 = vmatprep.subr.mxu0 0.0
    %6333 = vmatpush1.msra.mxu0 0.0
    %6334 = vmatprep.subr.mxu0 0.0
    %6335 = vmatpush1.msra.mxu0 0.0
    %6336 = vmatprep.subr.mxu0 0.0
    %6337 = vmatpush1.msra.mxu0 0.0
    %6338 = vmatprep.subr.mxu0 0.0
    %6339 = vmatpush1.msra.mxu0 0.0
    %6340 = vmatprep.subr.mxu0 0.0
    %6341 = vmatpush1.msra.mxu0 0.0
    %6342 = vmatprep.subr.mxu0 0.0
    %6343 = vmatpush1.msra.mxu0 0.0
    %6344 = vmatprep.subr.mxu0 0.0
    %6345 = vmatpush1.msra.mxu0 0.0
    %6346 = vmatprep.subr.mxu0 0.0
    %6347 = vmatpush1.msra.mxu0 0.0
    %6348 = vmatprep.subr.mxu0 0.0
    %6349 = vmatpush1.msra.mxu0 0.0
    %6350 = vmatprep.subr.mxu0 0.0
    %6351 = vmatpush1.msra.mxu0 0.0
    %6352 = vmatprep.subr.mxu0 0.0
    %6353 = vmatpush1.msra.mxu0 0.0
    %6354 = vmatprep.subr.mxu0 0.0
    %6355 = vmatpush1.msra.mxu0 0.0
    %6356 = vmatprep.subr.mxu0 0.0
    %6357 = vmatpush1.msra.mxu0 0.0
    %6358 = vmatprep.subr.mxu0 0.0
    %6359 = vmatpush1.msra.mxu0 0.0
    %6360 = vmatprep.mubr.f32.mxu0 0.0
    %6361 = vmatmul.mubr.f32.gmra.mrb[0].mxu0 %v6285
    %v6362 = vpop.f32.mrb[0].mxu0
    %v6363 = vadd.f32 0.0, %v6362
    %v6364 = vpop.f32.mrb[0].mxu0
    %6365 = vmatprep.mubr.f32.mxu0 0.0
    %6366 = vmatmul.mubr.f32.gmra.mrb[0].mxu0 %v6288
    %v6367 = vpop.f32.mrb[0].mxu0
    %v6368 = vadd.f32 0.0, %v6367
    %v6369 = vpop.f32.mrb[0].mxu0
    %6370 = vmatprep.mubr.f32.mxu0 0.0
    %6371 = vmatmul.mubr.f32.gmra.mrb[0].mxu0 %v6291
    %v6372 = vpop.f32.mrb[0].mxu0
    %v6373 = vadd.f32 0.0, %v6372
    %v6374 = vpop.f32.mrb[0].mxu0
    %6375 = vmatprep.mubr.f32.mxu0 0.0
    %6376 = vmatmul.mubr.f32.gmra.mrb[0].mxu0 %v6294
    %v6377 = vpop.f32.mrb[0].mxu0
    %v6378 = vadd.f32 0.0, %v6377
    %v6379 = vpop.f32.mrb[0].mxu0
    %6380 = vdwg.mxu0
    %6381 = vrot.lane.b32.xlu0 %v700, 64
    %v6382 = vpop.permute.xlu0 %6381
    %6383 = vrot.lane.b32.xlu0 %v705, 64
    %v6384 = vpop.permute.xlu0 %6383
    %6385 = vrot.lane.b32.xlu0 %v710, 64
    %v6386 = vpop.permute.xlu0 %6385
    %6387 = vrot.lane.b32.xlu0 %v715, 64
    %v6388 = vpop.permute.xlu0 %6387
    %v6394 = vsel %vm1310, %v6043, 0
    %v6397 = vsel %vm1310, %v6044, 0
    %v6400 = vsel %vm1310, %v6045, 0
    %v6403 = vsel %vm1310, %v6046, 0
    %6405 = vmatprep.subr.mxu0 0.0
    %6406 = vmatpush1.msra.mxu0 %v6382
    %6407 = vmatprep.subr.mxu0 0.0
    %6408 = vmatpush1.msra.mxu0 %v6384
    %6409 = vmatprep.subr.mxu0 0.0
    %6410 = vmatpush1.msra.mxu0 %v6386
    %6411 = vmatprep.subr.mxu0 0.0
    %6412 = vmatpush1.msra.mxu0 %v6388
    %6413 = vmatprep.subr.mxu0 0.0
    %6414 = vmatpush1.msra.mxu0 0.0
    %6415 = vmatprep.subr.mxu0 0.0
    %6416 = vmatpush1.msra.mxu0 0.0
    %6417 = vmatprep.subr.mxu0 0.0
    %6418 = vmatpush1.msra.mxu0 0.0
    %6419 = vmatprep.subr.mxu0 0.0
    %6420 = vmatpush1.msra.mxu0 0.0
    %6421 = vmatprep.subr.mxu0 0.0
    %6422 = vmatpush1.msra.mxu0 0.0
    %6423 = vmatprep.subr.mxu0 0.0
    %6424 = vmatpush1.msra.mxu0 0.0
    %6425 = vmatprep.subr.mxu0 0.0
    %6426 = vmatpush1.msra.mxu0 0.0
    %6427 = vmatprep.subr.mxu0 0.0
    %6428 = vmatpush1.msra.mxu0 0.0
    %6429 = vmatprep.subr.mxu0 0.0
    %6430 = vmatpush1.msra.mxu0 0.0
    %6431 = vmatprep.subr.mxu0 0.0
    %6432 = vmatpush1.msra.mxu0 0.0
    %6433 = vmatprep.subr.mxu0 0.0
    %6434 = vmatpush1.msra.mxu0 0.0
    %6435 = vmatprep.subr.mxu0 0.0
    %6436 = vmatpush1.msra.mxu0 0.0
    %6437 = vmatprep.subr.mxu0 0.0
    %6438 = vmatpush1.msra.mxu0 0.0
    %6439 = vmatprep.subr.mxu0 0.0
    %6440 = vmatpush1.msra.mxu0 0.0
    %6441 = vmatprep.subr.mxu0 0.0
    %6442 = vmatpush1.msra.mxu0 0.0
    %6443 = vmatprep.subr.mxu0 0.0
    %6444 = vmatpush1.msra.mxu0 0.0
    %6445 = vmatprep.subr.mxu0 0.0
    %6446 = vmatpush1.msra.mxu0 0.0
    %6447 = vmatprep.subr.mxu0 0.0
    %6448 = vmatpush1.msra.mxu0 0.0
    %6449 = vmatprep.subr.mxu0 0.0
    %6450 = vmatpush1.msra.mxu0 0.0
    %6451 = vmatprep.subr.mxu0 0.0
    %6452 = vmatpush1.msra.mxu0 0.0
    %6453 = vmatprep.subr.mxu0 0.0
    %6454 = vmatpush1.msra.mxu0 0.0
    %6455 = vmatprep.subr.mxu0 0.0
    %6456 = vmatpush1.msra.mxu0 0.0
    %6457 = vmatprep.subr.mxu0 0.0
    %6458 = vmatpush1.msra.mxu0 0.0
    %6459 = vmatprep.subr.mxu0 0.0
    %6460 = vmatpush1.msra.mxu0 0.0
    %6461 = vmatprep.subr.mxu0 0.0
    %6462 = vmatpush1.msra.mxu0 0.0
    %6463 = vmatprep.subr.mxu0 0.0
    %6464 = vmatpush1.msra.mxu0 0.0
    %6465 = vmatprep.subr.mxu0 0.0
    %6466 = vmatpush1.msra.mxu0 0.0
    %6467 = vmatprep.subr.mxu0 0.0
    %6468 = vmatpush1.msra.mxu0 0.0
    %6469 = vmatprep.mubr.f32.mxu0 0.0
    %6470 = vmatmul.mubr.f32.gmra.mrb[0].mxu0 %v6394
    %v6471 = vpop.f32.mrb[0].mxu0
    %v6472 = vadd.f32 0.0, %v6471
    %v6473 = vpop.f32.mrb[0].mxu0
    %6474 = vmatprep.mubr.f32.mxu0 0.0
    %6475 = vmatmul.mubr.f32.gmra.mrb[0].mxu0 %v6397
    %v6476 = vpop.f32.mrb[0].mxu0
    %v6477 = vadd.f32 0.0, %v6476
    %v6478 = vpop.f32.mrb[0].mxu0
    %6479 = vmatprep.mubr.f32.mxu0 0.0
    %6480 = vmatmul.mubr.f32.gmra.mrb[0].mxu0 %v6400
    %v6481 = vpop.f32.mrb[0].mxu0
    %v6482 = vadd.f32 0.0, %v6481
    %v6483 = vpop.f32.mrb[0].mxu0
    %6484 = vmatprep.mubr.f32.mxu0 0.0
    %6485 = vmatmul.mubr.f32.gmra.mrb[0].mxu0 %v6403
    %v6486 = vpop.f32.mrb[0].mxu0
    %v6487 = vadd.f32 0.0, %v6486
    %v6488 = vpop.f32.mrb[0].mxu0
    %6489 = vdwg.mxu0
    %6490 = vrot.lane.b32.xlu0 %v720, 64
    %v6491 = vpop.permute.xlu0 %6490
    %6492 = vrot.lane.b32.xlu0 %v725, 64
    %v6493 = vpop.permute.xlu0 %6492
    %6494 = vrot.lane.b32.xlu0 %v730, 64
    %v6495 = vpop.permute.xlu0 %6494
    %6496 = vrot.lane.b32.xlu0 %v735, 64
    %v6497 = vpop.permute.xlu0 %6496
    %v6503 = vsel %vm1310, %v6047, 0
    %v6506 = vsel %vm1310, %v6048, 0
    %v6509 = vsel %vm1310, %v6049, 0
    %v6512 = vsel %vm1310, %v6050, 0
    %6514 = vmatprep.subr.mxu0 0.0
    %6515 = vmatpush1.msra.mxu0 %v6491
    %6516 = vmatprep.subr.mxu0 0.0
    %6517 = vmatpush1.msra.mxu0 %v6493
    %6518 = vmatprep.subr.mxu0 0.0
    %6519 = vmatpush1.msra.mxu0 %v6495
    %6520 = vmatprep.subr.mxu0 0.0
    %6521 = vmatpush1.msra.mxu0 %v6497
    %6522 = vmatprep.subr.mxu0 0.0
    %6523 = vmatpush1.msra.mxu0 0.0
    %6524 = vmatprep.subr.mxu0 0.0
    %6525 = vmatpush1.msra.mxu0 0.0
    %6526 = vmatprep.subr.mxu0 0.0
    %6527 = vmatpush1.msra.mxu0 0.0
    %6528 = vmatprep.subr.mxu0 0.0
    %6529 = vmatpush1.msra.mxu0 0.0
    %6530 = vmatprep.subr.mxu0 0.0
    %6531 = vmatpush1.msra.mxu0 0.0
    %6532 = vmatprep.subr.mxu0 0.0
    %6533 = vmatpush1.msra.mxu0 0.0
    %6534 = vmatprep.subr.mxu0 0.0
    %6535 = vmatpush1.msra.mxu0 0.0
    %6536 = vmatprep.subr.mxu0 0.0
    %6537 = vmatpush1.msra.mxu0 0.0
    %6538 = vmatprep.subr.mxu0 0.0
    %6539 = vmatpush1.msra.mxu0 0.0
    %6540 = vmatprep.subr.mxu0 0.0
    %6541 = vmatpush1.msra.mxu0 0.0
    %6542 = vmatprep.subr.mxu0 0.0
    %6543 = vmatpush1.msra.mxu0 0.0
    %6544 = vmatprep.subr.mxu0 0.0
    %6545 = vmatpush1.msra.mxu0 0.0
    %6546 = vmatprep.subr.mxu0 0.0
    %6547 = vmatpush1.msra.mxu0 0.0
    %6548 = vmatprep.subr.mxu0 0.0
    %6549 = vmatpush1.msra.mxu0 0.0
    %6550 = vmatprep.subr.mxu0 0.0
    %6551 = vmatpush1.msra.mxu0 0.0
    %6552 = vmatprep.subr.mxu0 0.0
    %6553 = vmatpush1.msra.mxu0 0.0
    %6554 = vmatprep.subr.mxu0 0.0
    %6555 = vmatpush1.msra.mxu0 0.0
    %6556 = vmatprep.subr.mxu0 0.0
    %6557 = vmatpush1.msra.mxu0 0.0
    %6558 = vmatprep.subr.mxu0 0.0
    %6559 = vmatpush1.msra.mxu0 0.0
    %6560 = vmatprep.subr.mxu0 0.0
    %6561 = vmatpush1.msra.mxu0 0.0
    %6562 = vmatprep.subr.mxu0 0.0
    %6563 = vmatpush1.msra.mxu0 0.0
    %6564 = vmatprep.subr.mxu0 0.0
    %6565 = vmatpush1.msra.mxu0 0.0
    %6566 = vmatprep.subr.mxu0 0.0
    %6567 = vmatpush1.msra.mxu0 0.0
    %6568 = vmatprep.subr.mxu0 0.0
    %6569 = vmatpush1.msra.mxu0 0.0
    %6570 = vmatprep.subr.mxu0 0.0
    %6571 = vmatpush1.msra.mxu0 0.0
    %6572 = vmatprep.subr.mxu0 0.0
    %6573 = vmatpush1.msra.mxu0 0.0
    %6574 = vmatprep.subr.mxu0 0.0
    %6575 = vmatpush1.msra.mxu0 0.0
    %6576 = vmatprep.subr.mxu0 0.0
    %6577 = vmatpush1.msra.mxu0 0.0
    %6578 = vmatprep.mubr.f32.mxu0 0.0
    %6579 = vmatmul.mubr.f32.gmra.mrb[0].mxu0 %v6503
    %v6580 = vpop.f32.mrb[0].mxu0
    %v6581 = vadd.f32 0.0, %v6580
    %v6582 = vpop.f32.mrb[0].mxu0
    %6583 = vmatprep.mubr.f32.mxu0 0.0
    %6584 = vmatmul.mubr.f32.gmra.mrb[0].mxu0 %v6506
    %v6585 = vpop.f32.mrb[0].mxu0
    %v6586 = vadd.f32 0.0, %v6585
    %v6587 = vpop.f32.mrb[0].mxu0
    %6588 = vmatprep.mubr.f32.mxu0 0.0
    %6589 = vmatmul.mubr.f32.gmra.mrb[0].mxu0 %v6509
    %v6590 = vpop.f32.mrb[0].mxu0
    %v6591 = vadd.f32 0.0, %v6590
    %v6592 = vpop.f32.mrb[0].mxu0
    %6593 = vmatprep.mubr.f32.mxu0 0.0
    %6594 = vmatmul.mubr.f32.gmra.mrb[0].mxu0 %v6512
    %v6595 = vpop.f32.mrb[0].mxu0
    %v6596 = vadd.f32 0.0, %v6595
    %v6597 = vpop.f32.mrb[0].mxu0
    %6598 = vdwg.mxu0
    %6599 = vrot.lane.b32.xlu0 %v740, 64
    %v6600 = vpop.permute.xlu0 %6599
    %6601 = vrot.lane.b32.xlu0 %v745, 64
    %v6602 = vpop.permute.xlu0 %6601
    %6603 = vrot.lane.b32.xlu0 %v750, 64
    %v6604 = vpop.permute.xlu0 %6603
    %6605 = vrot.lane.b32.xlu0 %v755, 64
    %v6606 = vpop.permute.xlu0 %6605
    %v6612 = vsel %vm1310, %v6051, 0
    %v6615 = vsel %vm1310, %v6052, 0
    %v6618 = vsel %vm1310, %v6053, 0
    %v6621 = vsel %vm1310, %v6054, 0
    %6623 = vmatprep.subr.mxu0 0.0
    %6624 = vmatpush1.msra.mxu0 %v6600
    %6625 = vmatprep.subr.mxu0 0.0
    %6626 = vmatpush1.msra.mxu0 %v6602
    %6627 = vmatprep.subr.mxu0 0.0
    %6628 = vmatpush1.msra.mxu0 %v6604
    %6629 = vmatprep.subr.mxu0 0.0
    %6630 = vmatpush1.msra.mxu0 %v6606
    %6631 = vmatprep.subr.mxu0 0.0
    %6632 = vmatpush1.msra.mxu0 0.0
    %6633 = vmatprep.subr.mxu0 0.0
    %6634 = vmatpush1.msra.mxu0 0.0
    %6635 = vmatprep.subr.mxu0 0.0
    %6636 = vmatpush1.msra.mxu0 0.0
    %6637 = vmatprep.subr.mxu0 0.0
    %6638 = vmatpush1.msra.mxu0 0.0
    %6639 = vmatprep.subr.mxu0 0.0
    %6640 = vmatpush1.msra.mxu0 0.0
    %6641 = vmatprep.subr.mxu0 0.0
    %6642 = vmatpush1.msra.mxu0 0.0
    %6643 = vmatprep.subr.mxu0 0.0
    %6644 = vmatpush1.msra.mxu0 0.0
    %6645 = vmatprep.subr.mxu0 0.0
    %6646 = vmatpush1.msra.mxu0 0.0
    %6647 = vmatprep.subr.mxu0 0.0
    %6648 = vmatpush1.msra.mxu0 0.0
    %6649 = vmatprep.subr.mxu0 0.0
    %6650 = vmatpush1.msra.mxu0 0.0
    %6651 = vmatprep.subr.mxu0 0.0
    %6652 = vmatpush1.msra.mxu0 0.0
    %6653 = vmatprep.subr.mxu0 0.0
    %6654 = vmatpush1.msra.mxu0 0.0
    %6655 = vmatprep.subr.mxu0 0.0
    %6656 = vmatpush1.msra.mxu0 0.0
    %6657 = vmatprep.subr.mxu0 0.0
    %6658 = vmatpush1.msra.mxu0 0.0
    %6659 = vmatprep.subr.mxu0 0.0
    %6660 = vmatpush1.msra.mxu0 0.0
    %6661 = vmatprep.subr.mxu0 0.0
    %6662 = vmatpush1.msra.mxu0 0.0
    %6663 = vmatprep.subr.mxu0 0.0
    %6664 = vmatpush1.msra.mxu0 0.0
    %6665 = vmatprep.subr.mxu0 0.0
    %6666 = vmatpush1.msra.mxu0 0.0
    %6667 = vmatprep.subr.mxu0 0.0
    %6668 = vmatpush1.msra.mxu0 0.0
    %6669 = vmatprep.subr.mxu0 0.0
    %6670 = vmatpush1.msra.mxu0 0.0
    %6671 = vmatprep.subr.mxu0 0.0
    %6672 = vmatpush1.msra.mxu0 0.0
    %6673 = vmatprep.subr.mxu0 0.0
    %6674 = vmatpush1.msra.mxu0 0.0
    %6675 = vmatprep.subr.mxu0 0.0
    %6676 = vmatpush1.msra.mxu0 0.0
    %6677 = vmatprep.subr.mxu0 0.0
    %6678 = vmatpush1.msra.mxu0 0.0
    %6679 = vmatprep.subr.mxu0 0.0
    %6680 = vmatpush1.msra.mxu0 0.0
    %6681 = vmatprep.subr.mxu0 0.0
    %6682 = vmatpush1.msra.mxu0 0.0
    %6683 = vmatprep.subr.mxu0 0.0
    %6684 = vmatpush1.msra.mxu0 0.0
    %6685 = vmatprep.subr.mxu0 0.0
    %6686 = vmatpush1.msra.mxu0 0.0
    %6687 = vmatprep.mubr.f32.mxu0 0.0
    %6688 = vmatmul.mubr.f32.gmra.mrb[0].mxu0 %v6612
    %v6689 = vpop.f32.mrb[0].mxu0
    %v6690 = vadd.f32 0.0, %v6689
    %v6691 = vpop.f32.mrb[0].mxu0
    %6692 = vmatprep.mubr.f32.mxu0 0.0
    %6693 = vmatmul.mubr.f32.gmra.mrb[0].mxu0 %v6615
    %v6694 = vpop.f32.mrb[0].mxu0
    %v6695 = vadd.f32 0.0, %v6694
    %v6696 = vpop.f32.mrb[0].mxu0
    %6697 = vmatprep.mubr.f32.mxu0 0.0
    %6698 = vmatmul.mubr.f32.gmra.mrb[0].mxu0 %v6618
    %v6699 = vpop.f32.mrb[0].mxu0
    %v6700 = vadd.f32 0.0, %v6699
    %v6701 = vpop.f32.mrb[0].mxu0
    %6702 = vmatprep.mubr.f32.mxu0 0.0
    %6703 = vmatmul.mubr.f32.gmra.mrb[0].mxu0 %v6621
    %v6704 = vpop.f32.mrb[0].mxu0
    %v6705 = vadd.f32 0.0, %v6704
    %v6706 = vpop.f32.mrb[0].mxu0
    %6707 = vdwg.mxu0
    %6708 = vrot.lane.b32.xlu0 %v760, 64
    %v6709 = vpop.permute.xlu0 %6708
    %6710 = vrot.lane.b32.xlu0 %v765, 64
    %v6711 = vpop.permute.xlu0 %6710
    %6712 = vrot.lane.b32.xlu0 %v770, 64
    %v6713 = vpop.permute.xlu0 %6712
    %6714 = vrot.lane.b32.xlu0 %v775, 64
    %v6715 = vpop.permute.xlu0 %6714
    %v6721 = vsel %vm1310, %v6055, 0
    %v6724 = vsel %vm1310, %v6056, 0
    %v6727 = vsel %vm1310, %v6057, 0
    %v6730 = vsel %vm1310, %v6058, 0
    %6732 = vmatprep.subr.mxu0 0.0
    %6733 = vmatpush1.msra.mxu0 %v6709
    %6734 = vmatprep.subr.mxu0 0.0
    %6735 = vmatpush1.msra.mxu0 %v6711
    %6736 = vmatprep.subr.mxu0 0.0
    %6737 = vmatpush1.msra.mxu0 %v6713
    %6738 = vmatprep.subr.mxu0 0.0
    %6739 = vmatpush1.msra.mxu0 %v6715
    %6740 = vmatprep.subr.mxu0 0.0
    %6741 = vmatpush1.msra.mxu0 0.0
    %6742 = vmatprep.subr.mxu0 0.0
    %6743 = vmatpush1.msra.mxu0 0.0
    %6744 = vmatprep.subr.mxu0 0.0
    %6745 = vmatpush1.msra.mxu0 0.0
    %6746 = vmatprep.subr.mxu0 0.0
    %6747 = vmatpush1.msra.mxu0 0.0
    %6748 = vmatprep.subr.mxu0 0.0
    %6749 = vmatpush1.msra.mxu0 0.0
    %6750 = vmatprep.subr.mxu0 0.0
    %6751 = vmatpush1.msra.mxu0 0.0
    %6752 = vmatprep.subr.mxu0 0.0
    %6753 = vmatpush1.msra.mxu0 0.0
    %6754 = vmatprep.subr.mxu0 0.0
    %6755 = vmatpush1.msra.mxu0 0.0
    %6756 = vmatprep.subr.mxu0 0.0
    %6757 = vmatpush1.msra.mxu0 0.0
    %6758 = vmatprep.subr.mxu0 0.0
    %6759 = vmatpush1.msra.mxu0 0.0
    %6760 = vmatprep.subr.mxu0 0.0
    %6761 = vmatpush1.msra.mxu0 0.0
    %6762 = vmatprep.subr.mxu0 0.0
    %6763 = vmatpush1.msra.mxu0 0.0
    %6764 = vmatprep.subr.mxu0 0.0
    %6765 = vmatpush1.msra.mxu0 0.0
    %6766 = vmatprep.subr.mxu0 0.0
    %6767 = vmatpush1.msra.mxu0 0.0
    %6768 = vmatprep.subr.mxu0 0.0
    %6769 = vmatpush1.msra.mxu0 0.0
    %6770 = vmatprep.subr.mxu0 0.0
    %6771 = vmatpush1.msra.mxu0 0.0
    %6772 = vmatprep.subr.mxu0 0.0
    %6773 = vmatpush1.msra.mxu0 0.0
    %6774 = vmatprep.subr.mxu0 0.0
    %6775 = vmatpush1.msra.mxu0 0.0
    %6776 = vmatprep.subr.mxu0 0.0
    %6777 = vmatpush1.msra.mxu0 0.0
    %6778 = vmatprep.subr.mxu0 0.0
    %6779 = vmatpush1.msra.mxu0 0.0
    %6780 = vmatprep.subr.mxu0 0.0
    %6781 = vmatpush1.msra.mxu0 0.0
    %6782 = vmatprep.subr.mxu0 0.0
    %6783 = vmatpush1.msra.mxu0 0.0
    %6784 = vmatprep.subr.mxu0 0.0
    %6785 = vmatpush1.msra.mxu0 0.0
    %6786 = vmatprep.subr.mxu0 0.0
    %6787 = vmatpush1.msra.mxu0 0.0
    %6788 = vmatprep.subr.mxu0 0.0
    %6789 = vmatpush1.msra.mxu0 0.0
    %6790 = vmatprep.subr.mxu0 0.0
    %6791 = vmatpush1.msra.mxu0 0.0
    %6792 = vmatprep.subr.mxu0 0.0
    %6793 = vmatpush1.msra.mxu0 0.0
    %6794 = vmatprep.subr.mxu0 0.0
    %6795 = vmatpush1.msra.mxu0 0.0
    %6796 = vmatprep.mubr.f32.mxu0 0.0
    %6797 = vmatmul.mubr.f32.gmra.mrb[0].mxu0 %v6721
    %v6798 = vpop.f32.mrb[0].mxu0
    %v6799 = vadd.f32 0.0, %v6798
    %v6800 = vpop.f32.mrb[0].mxu0
    %6801 = vmatprep.mubr.f32.mxu0 0.0
    %6802 = vmatmul.mubr.f32.gmra.mrb[0].mxu0 %v6724
    %v6803 = vpop.f32.mrb[0].mxu0
    %v6804 = vadd.f32 0.0, %v6803
    %v6805 = vpop.f32.mrb[0].mxu0
    %6806 = vmatprep.mubr.f32.mxu0 0.0
    %6807 = vmatmul.mubr.f32.gmra.mrb[0].mxu0 %v6727
    %v6808 = vpop.f32.mrb[0].mxu0
    %v6809 = vadd.f32 0.0, %v6808
    %v6810 = vpop.f32.mrb[0].mxu0
    %6811 = vmatprep.mubr.f32.mxu0 0.0
    %6812 = vmatmul.mubr.f32.gmra.mrb[0].mxu0 %v6730
    %v6813 = vpop.f32.mrb[0].mxu0
    %v6814 = vadd.f32 0.0, %v6813
    %v6815 = vpop.f32.mrb[0].mxu0
    %6816 = vdwg.mxu0
    %6817 = vrot.lane.b32.xlu0 %v780, 64
    %v6818 = vpop.permute.xlu0 %6817
    %6819 = vrot.lane.b32.xlu0 %v785, 64
    %v6820 = vpop.permute.xlu0 %6819
    %6821 = vrot.lane.b32.xlu0 %v790, 64
    %v6822 = vpop.permute.xlu0 %6821
    %6823 = vrot.lane.b32.xlu0 %v795, 64
    %v6824 = vpop.permute.xlu0 %6823
    %v6830 = vsel %vm1310, %v6059, 0
    %v6833 = vsel %vm1310, %v6060, 0
    %v6836 = vsel %vm1310, %v6061, 0
    %v6839 = vsel %vm1310, %v6062, 0
    %6841 = vmatprep.subr.mxu0 0.0
    %6842 = vmatpush1.msra.mxu0 %v6818
    %6843 = vmatprep.subr.mxu0 0.0
    %6844 = vmatpush1.msra.mxu0 %v6820
    %6845 = vmatprep.subr.mxu0 0.0
    %6846 = vmatpush1.msra.mxu0 %v6822
    %6847 = vmatprep.subr.mxu0 0.0
    %6848 = vmatpush1.msra.mxu0 %v6824
    %6849 = vmatprep.subr.mxu0 0.0
    %6850 = vmatpush1.msra.mxu0 0.0
    %6851 = vmatprep.subr.mxu0 0.0
    %6852 = vmatpush1.msra.mxu0 0.0
    %6853 = vmatprep.subr.mxu0 0.0
    %6854 = vmatpush1.msra.mxu0 0.0
    %6855 = vmatprep.subr.mxu0 0.0
    %6856 = vmatpush1.msra.mxu0 0.0
    %6857 = vmatprep.subr.mxu0 0.0
    %6858 = vmatpush1.msra.mxu0 0.0
    %6859 = vmatprep.subr.mxu0 0.0
    %6860 = vmatpush1.msra.mxu0 0.0
    %6861 = vmatprep.subr.mxu0 0.0
    %6862 = vmatpush1.msra.mxu0 0.0
    %6863 = vmatprep.subr.mxu0 0.0
    %6864 = vmatpush1.msra.mxu0 0.0
    %6865 = vmatprep.subr.mxu0 0.0
    %6866 = vmatpush1.msra.mxu0 0.0
    %6867 = vmatprep.subr.mxu0 0.0
    %6868 = vmatpush1.msra.mxu0 0.0
    %6869 = vmatprep.subr.mxu0 0.0
    %6870 = vmatpush1.msra.mxu0 0.0
    %6871 = vmatprep.subr.mxu0 0.0
    %6872 = vmatpush1.msra.mxu0 0.0
    %6873 = vmatprep.subr.mxu0 0.0
    %6874 = vmatpush1.msra.mxu0 0.0
    %6875 = vmatprep.subr.mxu0 0.0
    %6876 = vmatpush1.msra.mxu0 0.0
    %6877 = vmatprep.subr.mxu0 0.0
    %6878 = vmatpush1.msra.mxu0 0.0
    %6879 = vmatprep.subr.mxu0 0.0
    %6880 = vmatpush1.msra.mxu0 0.0
    %6881 = vmatprep.subr.mxu0 0.0
    %6882 = vmatpush1.msra.mxu0 0.0
    %6883 = vmatprep.subr.mxu0 0.0
    %6884 = vmatpush1.msra.mxu0 0.0
    %6885 = vmatprep.subr.mxu0 0.0
    %6886 = vmatpush1.msra.mxu0 0.0
    %6887 = vmatprep.subr.mxu0 0.0
    %6888 = vmatpush1.msra.mxu0 0.0
    %6889 = vmatprep.subr.mxu0 0.0
    %6890 = vmatpush1.msra.mxu0 0.0
    %6891 = vmatprep.subr.mxu0 0.0
    %6892 = vmatpush1.msra.mxu0 0.0
    %6893 = vmatprep.subr.mxu0 0.0
    %6894 = vmatpush1.msra.mxu0 0.0
    %6895 = vmatprep.subr.mxu0 0.0
    %6896 = vmatpush1.msra.mxu0 0.0
    %6897 = vmatprep.subr.mxu0 0.0
    %6898 = vmatpush1.msra.mxu0 0.0
    %6899 = vmatprep.subr.mxu0 0.0
    %6900 = vmatpush1.msra.mxu0 0.0
    %6901 = vmatprep.subr.mxu0 0.0
    %6902 = vmatpush1.msra.mxu0 0.0
    %6903 = vmatprep.subr.mxu0 0.0
    %6904 = vmatpush1.msra.mxu0 0.0
    %6905 = vmatprep.mubr.f32.mxu0 0.0
    %6906 = vmatmul.mubr.f32.gmra.mrb[0].mxu0 %v6830
    %v6907 = vpop.f32.mrb[0].mxu0
    %v6908 = vadd.f32 0.0, %v6907
    %v6909 = vpop.f32.mrb[0].mxu0
    %6910 = vmatprep.mubr.f32.mxu0 0.0
    %6911 = vmatmul.mubr.f32.gmra.mrb[0].mxu0 %v6833
    %v6912 = vpop.f32.mrb[0].mxu0
    %v6913 = vadd.f32 0.0, %v6912
    %v6914 = vpop.f32.mrb[0].mxu0
    %6915 = vmatprep.mubr.f32.mxu0 0.0
    %6916 = vmatmul.mubr.f32.gmra.mrb[0].mxu0 %v6836
    %v6917 = vpop.f32.mrb[0].mxu0
    %v6918 = vadd.f32 0.0, %v6917
    %v6919 = vpop.f32.mrb[0].mxu0
    %6920 = vmatprep.mubr.f32.mxu0 0.0
    %6921 = vmatmul.mubr.f32.gmra.mrb[0].mxu0 %v6839
    %v6922 = vpop.f32.mrb[0].mxu0
    %v6923 = vadd.f32 0.0, %v6922
    %v6924 = vpop.f32.mrb[0].mxu0
    %6925 = vdwg.mxu0
    %6926 = vrot.lane.b32.xlu0 %v800, 64
    %v6927 = vpop.permute.xlu0 %6926
    %6928 = vrot.lane.b32.xlu0 %v805, 64
    %v6929 = vpop.permute.xlu0 %6928
    %6930 = vrot.lane.b32.xlu0 %v810, 64
    %v6931 = vpop.permute.xlu0 %6930
    %6932 = vrot.lane.b32.xlu0 %v815, 64
    %v6933 = vpop.permute.xlu0 %6932
    %v6939 = vsel %vm1310, %v6063, 0
    %v6942 = vsel %vm1310, %v6064, 0
    %v6945 = vsel %vm1310, %v6065, 0
    %v6948 = vsel %vm1310, %v6066, 0
    %6950 = vmatprep.subr.mxu0 0.0
    %6951 = vmatpush1.msra.mxu0 %v6927
    %6952 = vmatprep.subr.mxu0 0.0
    %6953 = vmatpush1.msra.mxu0 %v6929
    %6954 = vmatprep.subr.mxu0 0.0
    %6955 = vmatpush1.msra.mxu0 %v6931
    %6956 = vmatprep.subr.mxu0 0.0
    %6957 = vmatpush1.msra.mxu0 %v6933
    %6958 = vmatprep.subr.mxu0 0.0
    %6959 = vmatpush1.msra.mxu0 0.0
    %6960 = vmatprep.subr.mxu0 0.0
    %6961 = vmatpush1.msra.mxu0 0.0
    %6962 = vmatprep.subr.mxu0 0.0
    %6963 = vmatpush1.msra.mxu0 0.0
    %6964 = vmatprep.subr.mxu0 0.0
    %6965 = vmatpush1.msra.mxu0 0.0
    %6966 = vmatprep.subr.mxu0 0.0
    %6967 = vmatpush1.msra.mxu0 0.0
    %6968 = vmatprep.subr.mxu0 0.0
    %6969 = vmatpush1.msra.mxu0 0.0
    %6970 = vmatprep.subr.mxu0 0.0
    %6971 = vmatpush1.msra.mxu0 0.0
    %6972 = vmatprep.subr.mxu0 0.0
    %6973 = vmatpush1.msra.mxu0 0.0
    %6974 = vmatprep.subr.mxu0 0.0
    %6975 = vmatpush1.msra.mxu0 0.0
    %6976 = vmatprep.subr.mxu0 0.0
    %6977 = vmatpush1.msra.mxu0 0.0
    %6978 = vmatprep.subr.mxu0 0.0
    %6979 = vmatpush1.msra.mxu0 0.0
    %6980 = vmatprep.subr.mxu0 0.0
    %6981 = vmatpush1.msra.mxu0 0.0
    %6982 = vmatprep.subr.mxu0 0.0
    %6983 = vmatpush1.msra.mxu0 0.0
    %6984 = vmatprep.subr.mxu0 0.0
    %6985 = vmatpush1.msra.mxu0 0.0
    %6986 = vmatprep.subr.mxu0 0.0
    %6987 = vmatpush1.msra.mxu0 0.0
    %6988 = vmatprep.subr.mxu0 0.0
    %6989 = vmatpush1.msra.mxu0 0.0
    %6990 = vmatprep.subr.mxu0 0.0
    %6991 = vmatpush1.msra.mxu0 0.0
    %6992 = vmatprep.subr.mxu0 0.0
    %6993 = vmatpush1.msra.mxu0 0.0
    %6994 = vmatprep.subr.mxu0 0.0
    %6995 = vmatpush1.msra.mxu0 0.0
    %6996 = vmatprep.subr.mxu0 0.0
    %6997 = vmatpush1.msra.mxu0 0.0
    %6998 = vmatprep.subr.mxu0 0.0
    %6999 = vmatpush1.msra.mxu0 0.0
    %7000 = vmatprep.subr.mxu0 0.0
    %7001 = vmatpush1.msra.mxu0 0.0
    %7002 = vmatprep.subr.mxu0 0.0
    %7003 = vmatpush1.msra.mxu0 0.0
    %7004 = vmatprep.subr.mxu0 0.0
    %7005 = vmatpush1.msra.mxu0 0.0
    %7006 = vmatprep.subr.mxu0 0.0
    %7007 = vmatpush1.msra.mxu0 0.0
    %7008 = vmatprep.subr.mxu0 0.0
    %7009 = vmatpush1.msra.mxu0 0.0
    %7010 = vmatprep.subr.mxu0 0.0
    %7011 = vmatpush1.msra.mxu0 0.0
    %7012 = vmatprep.subr.mxu0 0.0
    %7013 = vmatpush1.msra.mxu0 0.0
    %7014 = vmatprep.mubr.f32.mxu0 0.0
    %7015 = vmatmul.mubr.f32.gmra.mrb[0].mxu0 %v6939
    %v7016 = vpop.f32.mrb[0].mxu0
    %v7017 = vadd.f32 0.0, %v7016
    %v7018 = vpop.f32.mrb[0].mxu0
    %7019 = vmatprep.mubr.f32.mxu0 0.0
    %7020 = vmatmul.mubr.f32.gmra.mrb[0].mxu0 %v6942
    %v7021 = vpop.f32.mrb[0].mxu0
    %v7022 = vadd.f32 0.0, %v7021
    %v7023 = vpop.f32.mrb[0].mxu0
    %7024 = vmatprep.mubr.f32.mxu0 0.0
    %7025 = vmatmul.mubr.f32.gmra.mrb[0].mxu0 %v6945
    %v7026 = vpop.f32.mrb[0].mxu0
    %v7027 = vadd.f32 0.0, %v7026
    %v7028 = vpop.f32.mrb[0].mxu0
    %7029 = vmatprep.mubr.f32.mxu0 0.0
    %7030 = vmatmul.mubr.f32.gmra.mrb[0].mxu0 %v6948
    %v7031 = vpop.f32.mrb[0].mxu0
    %v7032 = vadd.f32 0.0, %v7031
    %v7033 = vpop.f32.mrb[0].mxu0
    %7034 = vdwg.mxu0
    %7035 = vrot.lane.b32.xlu0 %v820, 64
    %v7036 = vpop.permute.xlu0 %7035
    %7037 = vrot.lane.b32.xlu0 %v825, 64
    %v7038 = vpop.permute.xlu0 %7037
    %7039 = vrot.lane.b32.xlu0 %v830, 64
    %v7040 = vpop.permute.xlu0 %7039
    %7041 = vrot.lane.b32.xlu0 %v835, 64
    %v7042 = vpop.permute.xlu0 %7041
    %v7048 = vsel %vm1310, %v6067, 0
    %v7051 = vsel %vm1310, %v6068, 0
    %v7054 = vsel %vm1310, %v6069, 0
    %v7057 = vsel %vm1310, %v6070, 0
    %7059 = vmatprep.subr.mxu0 0.0
    %7060 = vmatpush1.msra.mxu0 %v7036
    %7061 = vmatprep.subr.mxu0 0.0
    %7062 = vmatpush1.msra.mxu0 %v7038
    %7063 = vmatprep.subr.mxu0 0.0
    %7064 = vmatpush1.msra.mxu0 %v7040
    %7065 = vmatprep.subr.mxu0 0.0
    %7066 = vmatpush1.msra.mxu0 %v7042
    %7067 = vmatprep.subr.mxu0 0.0
    %7068 = vmatpush1.msra.mxu0 0.0
    %7069 = vmatprep.subr.mxu0 0.0
    %7070 = vmatpush1.msra.mxu0 0.0
    %7071 = vmatprep.subr.mxu0 0.0
    %7072 = vmatpush1.msra.mxu0 0.0
    %7073 = vmatprep.subr.mxu0 0.0
    %7074 = vmatpush1.msra.mxu0 0.0
    %7075 = vmatprep.subr.mxu0 0.0
    %7076 = vmatpush1.msra.mxu0 0.0
    %7077 = vmatprep.subr.mxu0 0.0
    %7078 = vmatpush1.msra.mxu0 0.0
    %7079 = vmatprep.subr.mxu0 0.0
    %7080 = vmatpush1.msra.mxu0 0.0
    %7081 = vmatprep.subr.mxu0 0.0
    %7082 = vmatpush1.msra.mxu0 0.0
    %7083 = vmatprep.subr.mxu0 0.0
    %7084 = vmatpush1.msra.mxu0 0.0
    %7085 = vmatprep.subr.mxu0 0.0
    %7086 = vmatpush1.msra.mxu0 0.0
    %7087 = vmatprep.subr.mxu0 0.0
    %7088 = vmatpush1.msra.mxu0 0.0
    %7089 = vmatprep.subr.mxu0 0.0
    %7090 = vmatpush1.msra.mxu0 0.0
    %7091 = vmatprep.subr.mxu0 0.0
    %7092 = vmatpush1.msra.mxu0 0.0
    %7093 = vmatprep.subr.mxu0 0.0
    %7094 = vmatpush1.msra.mxu0 0.0
    %7095 = vmatprep.subr.mxu0 0.0
    %7096 = vmatpush1.msra.mxu0 0.0
    %7097 = vmatprep.subr.mxu0 0.0
    %7098 = vmatpush1.msra.mxu0 0.0
    %7099 = vmatprep.subr.mxu0 0.0
    %7100 = vmatpush1.msra.mxu0 0.0
    %7101 = vmatprep.subr.mxu0 0.0
    %7102 = vmatpush1.msra.mxu0 0.0
    %7103 = vmatprep.subr.mxu0 0.0
    %7104 = vmatpush1.msra.mxu0 0.0
    %7105 = vmatprep.subr.mxu0 0.0
    %7106 = vmatpush1.msra.mxu0 0.0
    %7107 = vmatprep.subr.mxu0 0.0
    %7108 = vmatpush1.msra.mxu0 0.0
    %7109 = vmatprep.subr.mxu0 0.0
    %7110 = vmatpush1.msra.mxu0 0.0
    %7111 = vmatprep.subr.mxu0 0.0
    %7112 = vmatpush1.msra.mxu0 0.0
    %7113 = vmatprep.subr.mxu0 0.0
    %7114 = vmatpush1.msra.mxu0 0.0
    %7115 = vmatprep.subr.mxu0 0.0
    %7116 = vmatpush1.msra.mxu0 0.0
    %7117 = vmatprep.subr.mxu0 0.0
    %7118 = vmatpush1.msra.mxu0 0.0
    %7119 = vmatprep.subr.mxu0 0.0
    %7120 = vmatpush1.msra.mxu0 0.0
    %7121 = vmatprep.subr.mxu0 0.0
    %7122 = vmatpush1.msra.mxu0 0.0
    %7123 = vmatprep.mubr.f32.mxu0 0.0
    %7124 = vmatmul.mubr.f32.gmra.mrb[0].mxu0 %v7048
    %v7125 = vpop.f32.mrb[0].mxu0
    %v7126 = vadd.f32 0.0, %v7125
    %v7127 = vpop.f32.mrb[0].mxu0
    %7128 = vmatprep.mubr.f32.mxu0 0.0
    %7129 = vmatmul.mubr.f32.gmra.mrb[0].mxu0 %v7051
    %v7130 = vpop.f32.mrb[0].mxu0
    %v7131 = vadd.f32 0.0, %v7130
    %v7132 = vpop.f32.mrb[0].mxu0
    %7133 = vmatprep.mubr.f32.mxu0 0.0
    %7134 = vmatmul.mubr.f32.gmra.mrb[0].mxu0 %v7054
    %v7135 = vpop.f32.mrb[0].mxu0
    %v7136 = vadd.f32 0.0, %v7135
    %v7137 = vpop.f32.mrb[0].mxu0
    %7138 = vmatprep.mubr.f32.mxu0 0.0
    %7139 = vmatmul.mubr.f32.gmra.mrb[0].mxu0 %v7057
    %v7140 = vpop.f32.mrb[0].mxu0
    %v7141 = vadd.f32 0.0, %v7140
    %v7142 = vpop.f32.mrb[0].mxu0
    %7143 = vdwg.mxu0
    %7144 = vrot.lane.b32.xlu0 %v840, 64
    %v7145 = vpop.permute.xlu0 %7144
    %7146 = vrot.lane.b32.xlu0 %v845, 64
    %v7147 = vpop.permute.xlu0 %7146
    %7148 = vrot.lane.b32.xlu0 %v850, 64
    %v7149 = vpop.permute.xlu0 %7148
    %7150 = vrot.lane.b32.xlu0 %v855, 64
    %v7151 = vpop.permute.xlu0 %7150
    %v7157 = vsel %vm1310, %v6071, 0
    %v7160 = vsel %vm1310, %v6072, 0
    %v7163 = vsel %vm1310, %v6073, 0
    %v7166 = vsel %vm1310, %v6074, 0
    %7168 = vmatprep.subr.mxu0 0.0
    %7169 = vmatpush1.msra.mxu0 %v7145
    %7170 = vmatprep.subr.mxu0 0.0
    %7171 = vmatpush1.msra.mxu0 %v7147
    %7172 = vmatprep.subr.mxu0 0.0
    %7173 = vmatpush1.msra.mxu0 %v7149
    %7174 = vmatprep.subr.mxu0 0.0
    %7175 = vmatpush1.msra.mxu0 %v7151
    %7176 = vmatprep.subr.mxu0 0.0
    %7177 = vmatpush1.msra.mxu0 0.0
    %7178 = vmatprep.subr.mxu0 0.0
    %7179 = vmatpush1.msra.mxu0 0.0
    %7180 = vmatprep.subr.mxu0 0.0
    %7181 = vmatpush1.msra.mxu0 0.0
    %7182 = vmatprep.subr.mxu0 0.0
    %7183 = vmatpush1.msra.mxu0 0.0
    %7184 = vmatprep.subr.mxu0 0.0
    %7185 = vmatpush1.msra.mxu0 0.0
    %7186 = vmatprep.subr.mxu0 0.0
    %7187 = vmatpush1.msra.mxu0 0.0
    %7188 = vmatprep.subr.mxu0 0.0
    %7189 = vmatpush1.msra.mxu0 0.0
    %7190 = vmatprep.subr.mxu0 0.0
    %7191 = vmatpush1.msra.mxu0 0.0
    %7192 = vmatprep.subr.mxu0 0.0
    %7193 = vmatpush1.msra.mxu0 0.0
    %7194 = vmatprep.subr.mxu0 0.0
    %7195 = vmatpush1.msra.mxu0 0.0
    %7196 = vmatprep.subr.mxu0 0.0
    %7197 = vmatpush1.msra.mxu0 0.0
    %7198 = vmatprep.subr.mxu0 0.0
    %7199 = vmatpush1.msra.mxu0 0.0
    %7200 = vmatprep.subr.mxu0 0.0
    %7201 = vmatpush1.msra.mxu0 0.0
    %7202 = vmatprep.subr.mxu0 0.0
    %7203 = vmatpush1.msra.mxu0 0.0
    %7204 = vmatprep.subr.mxu0 0.0
    %7205 = vmatpush1.msra.mxu0 0.0
    %7206 = vmatprep.subr.mxu0 0.0
    %7207 = vmatpush1.msra.mxu0 0.0
    %7208 = vmatprep.subr.mxu0 0.0
    %7209 = vmatpush1.msra.mxu0 0.0
    %7210 = vmatprep.subr.mxu0 0.0
    %7211 = vmatpush1.msra.mxu0 0.0
    %7212 = vmatprep.subr.mxu0 0.0
    %7213 = vmatpush1.msra.mxu0 0.0
    %7214 = vmatprep.subr.mxu0 0.0
    %7215 = vmatpush1.msra.mxu0 0.0
    %7216 = vmatprep.subr.mxu0 0.0
    %7217 = vmatpush1.msra.mxu0 0.0
    %7218 = vmatprep.subr.mxu0 0.0
    %7219 = vmatpush1.msra.mxu0 0.0
    %7220 = vmatprep.subr.mxu0 0.0
    %7221 = vmatpush1.msra.mxu0 0.0
    %7222 = vmatprep.subr.mxu0 0.0
    %7223 = vmatpush1.msra.mxu0 0.0
    %7224 = vmatprep.subr.mxu0 0.0
    %7225 = vmatpush1.msra.mxu0 0.0
    %7226 = vmatprep.subr.mxu0 0.0
    %7227 = vmatpush1.msra.mxu0 0.0
    %7228 = vmatprep.subr.mxu0 0.0
    %7229 = vmatpush1.msra.mxu0 0.0
    %7230 = vmatprep.subr.mxu0 0.0
    %7231 = vmatpush1.msra.mxu0 0.0
    %7232 = vmatprep.mubr.f32.mxu0 0.0
    %7233 = vmatmul.mubr.f32.gmra.mrb[0].mxu0 %v7157
    %v7234 = vpop.f32.mrb[0].mxu0
    %v7235 = vadd.f32 0.0, %v7234
    %v7236 = vpop.f32.mrb[0].mxu0
    %7237 = vmatprep.mubr.f32.mxu0 0.0
    %7238 = vmatmul.mubr.f32.gmra.mrb[0].mxu0 %v7160
    %v7239 = vpop.f32.mrb[0].mxu0
    %v7240 = vadd.f32 0.0, %v7239
    %v7241 = vpop.f32.mrb[0].mxu0
    %7242 = vmatprep.mubr.f32.mxu0 0.0
    %7243 = vmatmul.mubr.f32.gmra.mrb[0].mxu0 %v7163
    %v7244 = vpop.f32.mrb[0].mxu0
    %v7245 = vadd.f32 0.0, %v7244
    %v7246 = vpop.f32.mrb[0].mxu0
    %7247 = vmatprep.mubr.f32.mxu0 0.0
    %7248 = vmatmul.mubr.f32.gmra.mrb[0].mxu0 %v7166
    %v7249 = vpop.f32.mrb[0].mxu0
    %v7250 = vadd.f32 0.0, %v7249
    %v7251 = vpop.f32.mrb[0].mxu0
    %7252 = vdwg.mxu0
    %7253 = vrot.lane.b32.xlu0 %v860, 64
    %v7254 = vpop.permute.xlu0 %7253
    %7255 = vrot.lane.b32.xlu0 %v865, 64
    %v7256 = vpop.permute.xlu0 %7255
    %7257 = vrot.lane.b32.xlu0 %v870, 64
    %v7258 = vpop.permute.xlu0 %7257
    %7259 = vrot.lane.b32.xlu0 %v875, 64
    %v7260 = vpop.permute.xlu0 %7259
    %v7266 = vsel %vm1310, %v6075, 0
    %v7269 = vsel %vm1310, %v6076, 0
    %v7272 = vsel %vm1310, %v6077, 0
    %v7275 = vsel %vm1310, %v6078, 0
    %7277 = vmatprep.subr.mxu0 0.0
    %7278 = vmatpush1.msra.mxu0 %v7254
    %7279 = vmatprep.subr.mxu0 0.0
    %7280 = vmatpush1.msra.mxu0 %v7256
    %7281 = vmatprep.subr.mxu0 0.0
    %7282 = vmatpush1.msra.mxu0 %v7258
    %7283 = vmatprep.subr.mxu0 0.0
    %7284 = vmatpush1.msra.mxu0 %v7260
    %7285 = vmatprep.subr.mxu0 0.0
    %7286 = vmatpush1.msra.mxu0 0.0
    %7287 = vmatprep.subr.mxu0 0.0
    %7288 = vmatpush1.msra.mxu0 0.0
    %7289 = vmatprep.subr.mxu0 0.0
    %7290 = vmatpush1.msra.mxu0 0.0
    %7291 = vmatprep.subr.mxu0 0.0
    %7292 = vmatpush1.msra.mxu0 0.0
    %7293 = vmatprep.subr.mxu0 0.0
    %7294 = vmatpush1.msra.mxu0 0.0
    %7295 = vmatprep.subr.mxu0 0.0
    %7296 = vmatpush1.msra.mxu0 0.0
    %7297 = vmatprep.subr.mxu0 0.0
    %7298 = vmatpush1.msra.mxu0 0.0
    %7299 = vmatprep.subr.mxu0 0.0
    %7300 = vmatpush1.msra.mxu0 0.0
    %7301 = vmatprep.subr.mxu0 0.0
    %7302 = vmatpush1.msra.mxu0 0.0
    %7303 = vmatprep.subr.mxu0 0.0
    %7304 = vmatpush1.msra.mxu0 0.0
    %7305 = vmatprep.subr.mxu0 0.0
    %7306 = vmatpush1.msra.mxu0 0.0
    %7307 = vmatprep.subr.mxu0 0.0
    %7308 = vmatpush1.msra.mxu0 0.0
    %7309 = vmatprep.subr.mxu0 0.0
    %7310 = vmatpush1.msra.mxu0 0.0
    %7311 = vmatprep.subr.mxu0 0.0
    %7312 = vmatpush1.msra.mxu0 0.0
    %7313 = vmatprep.subr.mxu0 0.0
    %7314 = vmatpush1.msra.mxu0 0.0
    %7315 = vmatprep.subr.mxu0 0.0
    %7316 = vmatpush1.msra.mxu0 0.0
    %7317 = vmatprep.subr.mxu0 0.0
    %7318 = vmatpush1.msra.mxu0 0.0
    %7319 = vmatprep.subr.mxu0 0.0
    %7320 = vmatpush1.msra.mxu0 0.0
    %7321 = vmatprep.subr.mxu0 0.0
    %7322 = vmatpush1.msra.mxu0 0.0
    %7323 = vmatprep.subr.mxu0 0.0
    %7324 = vmatpush1.msra.mxu0 0.0
    %7325 = vmatprep.subr.mxu0 0.0
    %7326 = vmatpush1.msra.mxu0 0.0
    %7327 = vmatprep.subr.mxu0 0.0
    %7328 = vmatpush1.msra.mxu0 0.0
    %7329 = vmatprep.subr.mxu0 0.0
    %7330 = vmatpush1.msra.mxu0 0.0
    %7331 = vmatprep.subr.mxu0 0.0
    %7332 = vmatpush1.msra.mxu0 0.0
    %7333 = vmatprep.subr.mxu0 0.0
    %7334 = vmatpush1.msra.mxu0 0.0
    %7335 = vmatprep.subr.mxu0 0.0
    %7336 = vmatpush1.msra.mxu0 0.0
    %7337 = vmatprep.subr.mxu0 0.0
    %7338 = vmatpush1.msra.mxu0 0.0
    %7339 = vmatprep.subr.mxu0 0.0
    %7340 = vmatpush1.msra.mxu0 0.0
    %7341 = vmatprep.mubr.f32.mxu0 0.0
    %7342 = vmatmul.mubr.f32.gmra.mrb[0].mxu0 %v7266
    %v7343 = vpop.f32.mrb[0].mxu0
    %v7344 = vadd.f32 0.0, %v7343
    %v7345 = vpop.f32.mrb[0].mxu0
    %7346 = vmatprep.mubr.f32.mxu0 0.0
    %7347 = vmatmul.mubr.f32.gmra.mrb[0].mxu0 %v7269
    %v7348 = vpop.f32.mrb[0].mxu0
    %v7349 = vadd.f32 0.0, %v7348
    %v7350 = vpop.f32.mrb[0].mxu0
    %7351 = vmatprep.mubr.f32.mxu0 0.0
    %7352 = vmatmul.mubr.f32.gmra.mrb[0].mxu0 %v7272
    %v7353 = vpop.f32.mrb[0].mxu0
    %v7354 = vadd.f32 0.0, %v7353
    %v7355 = vpop.f32.mrb[0].mxu0
    %7356 = vmatprep.mubr.f32.mxu0 0.0
    %7357 = vmatmul.mubr.f32.gmra.mrb[0].mxu0 %v7275
    %v7358 = vpop.f32.mrb[0].mxu0
    %v7359 = vadd.f32 0.0, %v7358
    %v7360 = vpop.f32.mrb[0].mxu0
    %7361 = vdwg.mxu0
    %7362 = vrot.lane.b32.xlu0 %v880, 64
    %v7363 = vpop.permute.xlu0 %7362
    %7364 = vrot.lane.b32.xlu0 %v885, 64
    %v7365 = vpop.permute.xlu0 %7364
    %7366 = vrot.lane.b32.xlu0 %v890, 64
    %v7367 = vpop.permute.xlu0 %7366
    %7368 = vrot.lane.b32.xlu0 %v895, 64
    %v7369 = vpop.permute.xlu0 %7368
    %v7375 = vsel %vm1310, %v6079, 0
    %v7378 = vsel %vm1310, %v6080, 0
    %v7381 = vsel %vm1310, %v6081, 0
    %v7384 = vsel %vm1310, %v6082, 0
    %7386 = vmatprep.subr.mxu0 0.0
    %7387 = vmatpush1.msra.mxu0 %v7363
    %7388 = vmatprep.subr.mxu0 0.0
    %7389 = vmatpush1.msra.mxu0 %v7365
    %7390 = vmatprep.subr.mxu0 0.0
    %7391 = vmatpush1.msra.mxu0 %v7367
    %7392 = vmatprep.subr.mxu0 0.0
    %7393 = vmatpush1.msra.mxu0 %v7369
    %7394 = vmatprep.subr.mxu0 0.0
    %7395 = vmatpush1.msra.mxu0 0.0
    %7396 = vmatprep.subr.mxu0 0.0
    %7397 = vmatpush1.msra.mxu0 0.0
    %7398 = vmatprep.subr.mxu0 0.0
    %7399 = vmatpush1.msra.mxu0 0.0
    %7400 = vmatprep.subr.mxu0 0.0
    %7401 = vmatpush1.msra.mxu0 0.0
    %7402 = vmatprep.subr.mxu0 0.0
    %7403 = vmatpush1.msra.mxu0 0.0
    %7404 = vmatprep.subr.mxu0 0.0
    %7405 = vmatpush1.msra.mxu0 0.0
    %7406 = vmatprep.subr.mxu0 0.0
    %7407 = vmatpush1.msra.mxu0 0.0
    %7408 = vmatprep.subr.mxu0 0.0
    %7409 = vmatpush1.msra.mxu0 0.0
    %7410 = vmatprep.subr.mxu0 0.0
    %7411 = vmatpush1.msra.mxu0 0.0
    %7412 = vmatprep.subr.mxu0 0.0
    %7413 = vmatpush1.msra.mxu0 0.0
    %7414 = vmatprep.subr.mxu0 0.0
    %7415 = vmatpush1.msra.mxu0 0.0
    %7416 = vmatprep.subr.mxu0 0.0
    %7417 = vmatpush1.msra.mxu0 0.0
    %7418 = vmatprep.subr.mxu0 0.0
    %7419 = vmatpush1.msra.mxu0 0.0
    %7420 = vmatprep.subr.mxu0 0.0
    %7421 = vmatpush1.msra.mxu0 0.0
    %7422 = vmatprep.subr.mxu0 0.0
    %7423 = vmatpush1.msra.mxu0 0.0
    %7424 = vmatprep.subr.mxu0 0.0
    %7425 = vmatpush1.msra.mxu0 0.0
    %7426 = vmatprep.subr.mxu0 0.0
    %7427 = vmatpush1.msra.mxu0 0.0
    %7428 = vmatprep.subr.mxu0 0.0
    %7429 = vmatpush1.msra.mxu0 0.0
    %7430 = vmatprep.subr.mxu0 0.0
    %7431 = vmatpush1.msra.mxu0 0.0
    %7432 = vmatprep.subr.mxu0 0.0
    %7433 = vmatpush1.msra.mxu0 0.0
    %7434 = vmatprep.subr.mxu0 0.0
    %7435 = vmatpush1.msra.mxu0 0.0
    %7436 = vmatprep.subr.mxu0 0.0
    %7437 = vmatpush1.msra.mxu0 0.0
    %7438 = vmatprep.subr.mxu0 0.0
    %7439 = vmatpush1.msra.mxu0 0.0
    %7440 = vmatprep.subr.mxu0 0.0
    %7441 = vmatpush1.msra.mxu0 0.0
    %7442 = vmatprep.subr.mxu0 0.0
    %7443 = vmatpush1.msra.mxu0 0.0
    %7444 = vmatprep.subr.mxu0 0.0
    %7445 = vmatpush1.msra.mxu0 0.0
    %7446 = vmatprep.subr.mxu0 0.0
    %7447 = vmatpush1.msra.mxu0 0.0
    %7448 = vmatprep.subr.mxu0 0.0
    %7449 = vmatpush1.msra.mxu0 0.0
    %7450 = vmatprep.mubr.f32.mxu0 0.0
    %7451 = vmatmul.mubr.f32.gmra.mrb[0].mxu0 %v7375
    %v7452 = vpop.f32.mrb[0].mxu0
    %v7453 = vadd.f32 0.0, %v7452
    %v7454 = vpop.f32.mrb[0].mxu0
    %7455 = vmatprep.mubr.f32.mxu0 0.0
    %7456 = vmatmul.mubr.f32.gmra.mrb[0].mxu0 %v7378
    %v7457 = vpop.f32.mrb[0].mxu0
    %v7458 = vadd.f32 0.0, %v7457
    %v7459 = vpop.f32.mrb[0].mxu0
    %7460 = vmatprep.mubr.f32.mxu0 0.0
    %7461 = vmatmul.mubr.f32.gmra.mrb[0].mxu0 %v7381
    %v7462 = vpop.f32.mrb[0].mxu0
    %v7463 = vadd.f32 0.0, %v7462
    %v7464 = vpop.f32.mrb[0].mxu0
    %7465 = vmatprep.mubr.f32.mxu0 0.0
    %7466 = vmatmul.mubr.f32.gmra.mrb[0].mxu0 %v7384
    %v7467 = vpop.f32.mrb[0].mxu0
    %v7468 = vadd.f32 0.0, %v7467
    %v7469 = vpop.f32.mrb[0].mxu0
    %7470 = vdwg.mxu0
    %7471 = vrot.lane.b32.xlu0 %v900, 64
    %v7472 = vpop.permute.xlu0 %7471
    %7473 = vrot.lane.b32.xlu0 %v905, 64
    %v7474 = vpop.permute.xlu0 %7473
    %7475 = vrot.lane.b32.xlu0 %v910, 64
    %v7476 = vpop.permute.xlu0 %7475
    %7477 = vrot.lane.b32.xlu0 %v915, 64
    %v7478 = vpop.permute.xlu0 %7477
    %v7484 = vsel %vm1310, %v6083, 0
    %v7487 = vsel %vm1310, %v6084, 0
    %v7490 = vsel %vm1310, %v6085, 0
    %v7493 = vsel %vm1310, %v6086, 0
    %7495 = vmatprep.subr.mxu0 0.0
    %7496 = vmatpush1.msra.mxu0 %v7472
    %7497 = vmatprep.subr.mxu0 0.0
    %7498 = vmatpush1.msra.mxu0 %v7474
    %7499 = vmatprep.subr.mxu0 0.0
    %7500 = vmatpush1.msra.mxu0 %v7476
    %7501 = vmatprep.subr.mxu0 0.0
    %7502 = vmatpush1.msra.mxu0 %v7478
    %7503 = vmatprep.subr.mxu0 0.0
    %7504 = vmatpush1.msra.mxu0 0.0
    %7505 = vmatprep.subr.mxu0 0.0
    %7506 = vmatpush1.msra.mxu0 0.0
    %7507 = vmatprep.subr.mxu0 0.0
    %7508 = vmatpush1.msra.mxu0 0.0
    %7509 = vmatprep.subr.mxu0 0.0
    %7510 = vmatpush1.msra.mxu0 0.0
    %7511 = vmatprep.subr.mxu0 0.0
    %7512 = vmatpush1.msra.mxu0 0.0
    %7513 = vmatprep.subr.mxu0 0.0
    %7514 = vmatpush1.msra.mxu0 0.0
    %7515 = vmatprep.subr.mxu0 0.0
    %7516 = vmatpush1.msra.mxu0 0.0
    %7517 = vmatprep.subr.mxu0 0.0
    %7518 = vmatpush1.msra.mxu0 0.0
    %7519 = vmatprep.subr.mxu0 0.0
    %7520 = vmatpush1.msra.mxu0 0.0
    %7521 = vmatprep.subr.mxu0 0.0
    %7522 = vmatpush1.msra.mxu0 0.0
    %7523 = vmatprep.subr.mxu0 0.0
    %7524 = vmatpush1.msra.mxu0 0.0
    %7525 = vmatprep.subr.mxu0 0.0
    %7526 = vmatpush1.msra.mxu0 0.0
    %7527 = vmatprep.subr.mxu0 0.0
    %7528 = vmatpush1.msra.mxu0 0.0
    %7529 = vmatprep.subr.mxu0 0.0
    %7530 = vmatpush1.msra.mxu0 0.0
    %7531 = vmatprep.subr.mxu0 0.0
    %7532 = vmatpush1.msra.mxu0 0.0
    %7533 = vmatprep.subr.mxu0 0.0
    %7534 = vmatpush1.msra.mxu0 0.0
    %7535 = vmatprep.subr.mxu0 0.0
    %7536 = vmatpush1.msra.mxu0 0.0
    %7537 = vmatprep.subr.mxu0 0.0
    %7538 = vmatpush1.msra.mxu0 0.0
    %7539 = vmatprep.subr.mxu0 0.0
    %7540 = vmatpush1.msra.mxu0 0.0
    %7541 = vmatprep.subr.mxu0 0.0
    %7542 = vmatpush1.msra.mxu0 0.0
    %7543 = vmatprep.subr.mxu0 0.0
    %7544 = vmatpush1.msra.mxu0 0.0
    %7545 = vmatprep.subr.mxu0 0.0
    %7546 = vmatpush1.msra.mxu0 0.0
    %7547 = vmatprep.subr.mxu0 0.0
    %7548 = vmatpush1.msra.mxu0 0.0
    %7549 = vmatprep.subr.mxu0 0.0
    %7550 = vmatpush1.msra.mxu0 0.0
    %7551 = vmatprep.subr.mxu0 0.0
    %7552 = vmatpush1.msra.mxu0 0.0
    %7553 = vmatprep.subr.mxu0 0.0
    %7554 = vmatpush1.msra.mxu0 0.0
    %7555 = vmatprep.subr.mxu0 0.0
    %7556 = vmatpush1.msra.mxu0 0.0
    %7557 = vmatprep.subr.mxu0 0.0
    %7558 = vmatpush1.msra.mxu0 0.0
    %7559 = vmatprep.mubr.f32.mxu0 0.0
    %7560 = vmatmul.mubr.f32.gmra.mrb[0].mxu0 %v7484
    %v7561 = vpop.f32.mrb[0].mxu0
    %v7562 = vadd.f32 0.0, %v7561
    %v7563 = vpop.f32.mrb[0].mxu0
    %7564 = vmatprep.mubr.f32.mxu0 0.0
    %7565 = vmatmul.mubr.f32.gmra.mrb[0].mxu0 %v7487
    %v7566 = vpop.f32.mrb[0].mxu0
    %v7567 = vadd.f32 0.0, %v7566
    %v7568 = vpop.f32.mrb[0].mxu0
    %7569 = vmatprep.mubr.f32.mxu0 0.0
    %7570 = vmatmul.mubr.f32.gmra.mrb[0].mxu0 %v7490
    %v7571 = vpop.f32.mrb[0].mxu0
    %v7572 = vadd.f32 0.0, %v7571
    %v7573 = vpop.f32.mrb[0].mxu0
    %7574 = vmatprep.mubr.f32.mxu0 0.0
    %7575 = vmatmul.mubr.f32.gmra.mrb[0].mxu0 %v7493
    %v7576 = vpop.f32.mrb[0].mxu0
    %v7577 = vadd.f32 0.0, %v7576
    %v7578 = vpop.f32.mrb[0].mxu0
    %7579 = vdwg.mxu0
    %7580 = vrot.lane.b32.xlu0 %v920, 64
    %v7581 = vpop.permute.xlu0 %7580
    %7582 = vrot.lane.b32.xlu0 %v925, 64
    %v7583 = vpop.permute.xlu0 %7582
    %7584 = vrot.lane.b32.xlu0 %v930, 64
    %v7585 = vpop.permute.xlu0 %7584
    %7586 = vrot.lane.b32.xlu0 %v935, 64
    %v7587 = vpop.permute.xlu0 %7586
    %v7593 = vsel %vm1310, %v6087, 0
    %v7596 = vsel %vm1310, %v6088, 0
    %v7599 = vsel %vm1310, %v6089, 0
    %v7602 = vsel %vm1310, %v6090, 0
    %7604 = vmatprep.subr.mxu0 0.0
    %7605 = vmatpush1.msra.mxu0 %v7581
    %7606 = vmatprep.subr.mxu0 0.0
    %7607 = vmatpush1.msra.mxu0 %v7583
    %7608 = vmatprep.subr.mxu0 0.0
    %7609 = vmatpush1.msra.mxu0 %v7585
    %7610 = vmatprep.subr.mxu0 0.0
    %7611 = vmatpush1.msra.mxu0 %v7587
    %7612 = vmatprep.subr.mxu0 0.0
    %7613 = vmatpush1.msra.mxu0 0.0
    %7614 = vmatprep.subr.mxu0 0.0
    %7615 = vmatpush1.msra.mxu0 0.0
    %7616 = vmatprep.subr.mxu0 0.0
    %7617 = vmatpush1.msra.mxu0 0.0
    %7618 = vmatprep.subr.mxu0 0.0
    %7619 = vmatpush1.msra.mxu0 0.0
    %7620 = vmatprep.subr.mxu0 0.0
    %7621 = vmatpush1.msra.mxu0 0.0
    %7622 = vmatprep.subr.mxu0 0.0
    %7623 = vmatpush1.msra.mxu0 0.0
    %7624 = vmatprep.subr.mxu0 0.0
    %7625 = vmatpush1.msra.mxu0 0.0
    %7626 = vmatprep.subr.mxu0 0.0
    %7627 = vmatpush1.msra.mxu0 0.0
    %7628 = vmatprep.subr.mxu0 0.0
    %7629 = vmatpush1.msra.mxu0 0.0
    %7630 = vmatprep.subr.mxu0 0.0
    %7631 = vmatpush1.msra.mxu0 0.0
    %7632 = vmatprep.subr.mxu0 0.0
    %7633 = vmatpush1.msra.mxu0 0.0
    %7634 = vmatprep.subr.mxu0 0.0
    %7635 = vmatpush1.msra.mxu0 0.0
    %7636 = vmatprep.subr.mxu0 0.0
    %7637 = vmatpush1.msra.mxu0 0.0
    %7638 = vmatprep.subr.mxu0 0.0
    %7639 = vmatpush1.msra.mxu0 0.0
    %7640 = vmatprep.subr.mxu0 0.0
    %7641 = vmatpush1.msra.mxu0 0.0
    %7642 = vmatprep.subr.mxu0 0.0
    %7643 = vmatpush1.msra.mxu0 0.0
    %7644 = vmatprep.subr.mxu0 0.0
    %7645 = vmatpush1.msra.mxu0 0.0
    %7646 = vmatprep.subr.mxu0 0.0
    %7647 = vmatpush1.msra.mxu0 0.0
    %7648 = vmatprep.subr.mxu0 0.0
    %7649 = vmatpush1.msra.mxu0 0.0
    %7650 = vmatprep.subr.mxu0 0.0
    %7651 = vmatpush1.msra.mxu0 0.0
    %7652 = vmatprep.subr.mxu0 0.0
    %7653 = vmatpush1.msra.mxu0 0.0
    %7654 = vmatprep.subr.mxu0 0.0
    %7655 = vmatpush1.msra.mxu0 0.0
    %7656 = vmatprep.subr.mxu0 0.0
    %7657 = vmatpush1.msra.mxu0 0.0
    %7658 = vmatprep.subr.mxu0 0.0
    %7659 = vmatpush1.msra.mxu0 0.0
    %7660 = vmatprep.subr.mxu0 0.0
    %7661 = vmatpush1.msra.mxu0 0.0
    %7662 = vmatprep.subr.mxu0 0.0
    %7663 = vmatpush1.msra.mxu0 0.0
    %7664 = vmatprep.subr.mxu0 0.0
    %7665 = vmatpush1.msra.mxu0 0.0
    %7666 = vmatprep.subr.mxu0 0.0
    %7667 = vmatpush1.msra.mxu0 0.0
    %7668 = vmatprep.mubr.f32.mxu0 0.0
    %7669 = vmatmul.mubr.f32.gmra.mrb[0].mxu0 %v7593
    %v7670 = vpop.f32.mrb[0].mxu0
    %v7671 = vadd.f32 0.0, %v7670
    %v7672 = vpop.f32.mrb[0].mxu0
    %7673 = vmatprep.mubr.f32.mxu0 0.0
    %7674 = vmatmul.mubr.f32.gmra.mrb[0].mxu0 %v7596
    %v7675 = vpop.f32.mrb[0].mxu0
    %v7676 = vadd.f32 0.0, %v7675
    %v7677 = vpop.f32.mrb[0].mxu0
    %7678 = vmatprep.mubr.f32.mxu0 0.0
    %7679 = vmatmul.mubr.f32.gmra.mrb[0].mxu0 %v7599
    %v7680 = vpop.f32.mrb[0].mxu0
    %v7681 = vadd.f32 0.0, %v7680
    %v7682 = vpop.f32.mrb[0].mxu0
    %7683 = vmatprep.mubr.f32.mxu0 0.0
    %7684 = vmatmul.mubr.f32.gmra.mrb[0].mxu0 %v7602
    %v7685 = vpop.f32.mrb[0].mxu0
    %v7686 = vadd.f32 0.0, %v7685
    %v7687 = vpop.f32.mrb[0].mxu0
    %7688 = vdwg.mxu0
    %7689 = vrot.lane.b32.xlu0 %v940, 64
    %v7690 = vpop.permute.xlu0 %7689
    %7691 = vrot.lane.b32.xlu0 %v945, 64
    %v7692 = vpop.permute.xlu0 %7691
    %7693 = vrot.lane.b32.xlu0 %v950, 64
    %v7694 = vpop.permute.xlu0 %7693
    %7695 = vrot.lane.b32.xlu0 %v955, 64
    %v7696 = vpop.permute.xlu0 %7695
    %v7702 = vsel %vm1310, %v6091, 0
    %v7705 = vsel %vm1310, %v6092, 0
    %v7708 = vsel %vm1310, %v6093, 0
    %v7711 = vsel %vm1310, %v6094, 0
    %7713 = vmatprep.subr.mxu0 0.0
    %7714 = vmatpush1.msra.mxu0 %v7690
    %7715 = vmatprep.subr.mxu0 0.0
    %7716 = vmatpush1.msra.mxu0 %v7692
    %7717 = vmatprep.subr.mxu0 0.0
    %7718 = vmatpush1.msra.mxu0 %v7694
    %7719 = vmatprep.subr.mxu0 0.0
    %7720 = vmatpush1.msra.mxu0 %v7696
    %7721 = vmatprep.subr.mxu0 0.0
    %7722 = vmatpush1.msra.mxu0 0.0
    %7723 = vmatprep.subr.mxu0 0.0
    %7724 = vmatpush1.msra.mxu0 0.0
    %7725 = vmatprep.subr.mxu0 0.0
    %7726 = vmatpush1.msra.mxu0 0.0
    %7727 = vmatprep.subr.mxu0 0.0
    %7728 = vmatpush1.msra.mxu0 0.0
    %7729 = vmatprep.subr.mxu0 0.0
    %7730 = vmatpush1.msra.mxu0 0.0
    %7731 = vmatprep.subr.mxu0 0.0
    %7732 = vmatpush1.msra.mxu0 0.0
    %7733 = vmatprep.subr.mxu0 0.0
    %7734 = vmatpush1.msra.mxu0 0.0
    %7735 = vmatprep.subr.mxu0 0.0
    %7736 = vmatpush1.msra.mxu0 0.0
    %7737 = vmatprep.subr.mxu0 0.0
    %7738 = vmatpush1.msra.mxu0 0.0
    %7739 = vmatprep.subr.mxu0 0.0
    %7740 = vmatpush1.msra.mxu0 0.0
    %7741 = vmatprep.subr.mxu0 0.0
    %7742 = vmatpush1.msra.mxu0 0.0
    %7743 = vmatprep.subr.mxu0 0.0
    %7744 = vmatpush1.msra.mxu0 0.0
    %7745 = vmatprep.subr.mxu0 0.0
    %7746 = vmatpush1.msra.mxu0 0.0
    %7747 = vmatprep.subr.mxu0 0.0
    %7748 = vmatpush1.msra.mxu0 0.0
    %7749 = vmatprep.subr.mxu0 0.0
    %7750 = vmatpush1.msra.mxu0 0.0
    %7751 = vmatprep.subr.mxu0 0.0
    %7752 = vmatpush1.msra.mxu0 0.0
    %7753 = vmatprep.subr.mxu0 0.0
    %7754 = vmatpush1.msra.mxu0 0.0
    %7755 = vmatprep.subr.mxu0 0.0
    %7756 = vmatpush1.msra.mxu0 0.0
    %7757 = vmatprep.subr.mxu0 0.0
    %7758 = vmatpush1.msra.mxu0 0.0
    %7759 = vmatprep.subr.mxu0 0.0
    %7760 = vmatpush1.msra.mxu0 0.0
    %7761 = vmatprep.subr.mxu0 0.0
    %7762 = vmatpush1.msra.mxu0 0.0
    %7763 = vmatprep.subr.mxu0 0.0
    %7764 = vmatpush1.msra.mxu0 0.0
    %7765 = vmatprep.subr.mxu0 0.0
    %7766 = vmatpush1.msra.mxu0 0.0
    %7767 = vmatprep.subr.mxu0 0.0
    %7768 = vmatpush1.msra.mxu0 0.0
    %7769 = vmatprep.subr.mxu0 0.0
    %7770 = vmatpush1.msra.mxu0 0.0
    %7771 = vmatprep.subr.mxu0 0.0
    %7772 = vmatpush1.msra.mxu0 0.0
    %7773 = vmatprep.subr.mxu0 0.0
    %7774 = vmatpush1.msra.mxu0 0.0
    %7775 = vmatprep.subr.mxu0 0.0
    %7776 = vmatpush1.msra.mxu0 0.0
    %7777 = vmatprep.mubr.f32.mxu0 0.0
    %7778 = vmatmul.mubr.f32.gmra.mrb[0].mxu0 %v7702
    %v7779 = vpop.f32.mrb[0].mxu0
    %v7780 = vadd.f32 0.0, %v7779
    %v7781 = vpop.f32.mrb[0].mxu0
    %7782 = vmatprep.mubr.f32.mxu0 0.0
    %7783 = vmatmul.mubr.f32.gmra.mrb[0].mxu0 %v7705
    %v7784 = vpop.f32.mrb[0].mxu0
    %v7785 = vadd.f32 0.0, %v7784
    %v7786 = vpop.f32.mrb[0].mxu0
    %7787 = vmatprep.mubr.f32.mxu0 0.0
    %7788 = vmatmul.mubr.f32.gmra.mrb[0].mxu0 %v7708
    %v7789 = vpop.f32.mrb[0].mxu0
    %v7790 = vadd.f32 0.0, %v7789
    %v7791 = vpop.f32.mrb[0].mxu0
    %7792 = vmatprep.mubr.f32.mxu0 0.0
    %7793 = vmatmul.mubr.f32.gmra.mrb[0].mxu0 %v7711
    %v7794 = vpop.f32.mrb[0].mxu0
    %v7795 = vadd.f32 0.0, %v7794
    %v7796 = vpop.f32.mrb[0].mxu0
    %7797 = vdwg.mxu0
    %7798 = vrot.lane.b32.xlu0 %v960, 64
    %v7799 = vpop.permute.xlu0 %7798
    %7800 = vrot.lane.b32.xlu0 %v965, 64
    %v7801 = vpop.permute.xlu0 %7800
    %7802 = vrot.lane.b32.xlu0 %v970, 64
    %v7803 = vpop.permute.xlu0 %7802
    %7804 = vrot.lane.b32.xlu0 %v975, 64
    %v7805 = vpop.permute.xlu0 %7804
    %v7811 = vsel %vm1310, %v6095, 0
    %v7814 = vsel %vm1310, %v6096, 0
    %v7817 = vsel %vm1310, %v6097, 0
    %v7820 = vsel %vm1310, %v6098, 0
    %7822 = vmatprep.subr.mxu0 0.0
    %7823 = vmatpush1.msra.mxu0 %v7799
    %7824 = vmatprep.subr.mxu0 0.0
    %7825 = vmatpush1.msra.mxu0 %v7801
    %7826 = vmatprep.subr.mxu0 0.0
    %7827 = vmatpush1.msra.mxu0 %v7803
    %7828 = vmatprep.subr.mxu0 0.0
    %7829 = vmatpush1.msra.mxu0 %v7805
    %7830 = vmatprep.subr.mxu0 0.0
    %7831 = vmatpush1.msra.mxu0 0.0
    %7832 = vmatprep.subr.mxu0 0.0
    %7833 = vmatpush1.msra.mxu0 0.0
    %7834 = vmatprep.subr.mxu0 0.0
    %7835 = vmatpush1.msra.mxu0 0.0
    %7836 = vmatprep.subr.mxu0 0.0
    %7837 = vmatpush1.msra.mxu0 0.0
    %7838 = vmatprep.subr.mxu0 0.0
    %7839 = vmatpush1.msra.mxu0 0.0
    %7840 = vmatprep.subr.mxu0 0.0
    %7841 = vmatpush1.msra.mxu0 0.0
    %7842 = vmatprep.subr.mxu0 0.0
    %7843 = vmatpush1.msra.mxu0 0.0
    %7844 = vmatprep.subr.mxu0 0.0
    %7845 = vmatpush1.msra.mxu0 0.0
    %7846 = vmatprep.subr.mxu0 0.0
    %7847 = vmatpush1.msra.mxu0 0.0
    %7848 = vmatprep.subr.mxu0 0.0
    %7849 = vmatpush1.msra.mxu0 0.0
    %7850 = vmatprep.subr.mxu0 0.0
    %7851 = vmatpush1.msra.mxu0 0.0
    %7852 = vmatprep.subr.mxu0 0.0
    %7853 = vmatpush1.msra.mxu0 0.0
    %7854 = vmatprep.subr.mxu0 0.0
    %7855 = vmatpush1.msra.mxu0 0.0
    %7856 = vmatprep.subr.mxu0 0.0
    %7857 = vmatpush1.msra.mxu0 0.0
    %7858 = vmatprep.subr.mxu0 0.0
    %7859 = vmatpush1.msra.mxu0 0.0
    %7860 = vmatprep.subr.mxu0 0.0
    %7861 = vmatpush1.msra.mxu0 0.0
    %7862 = vmatprep.subr.mxu0 0.0
    %7863 = vmatpush1.msra.mxu0 0.0
    %7864 = vmatprep.subr.mxu0 0.0
    %7865 = vmatpush1.msra.mxu0 0.0
    %7866 = vmatprep.subr.mxu0 0.0
    %7867 = vmatpush1.msra.mxu0 0.0
    %7868 = vmatprep.subr.mxu0 0.0
    %7869 = vmatpush1.msra.mxu0 0.0
    %7870 = vmatprep.subr.mxu0 0.0
    %7871 = vmatpush1.msra.mxu0 0.0
    %7872 = vmatprep.subr.mxu0 0.0
    %7873 = vmatpush1.msra.mxu0 0.0
    %7874 = vmatprep.subr.mxu0 0.0
    %7875 = vmatpush1.msra.mxu0 0.0
    %7876 = vmatprep.subr.mxu0 0.0
    %7877 = vmatpush1.msra.mxu0 0.0
    %7878 = vmatprep.subr.mxu0 0.0
    %7879 = vmatpush1.msra.mxu0 0.0
    %7880 = vmatprep.subr.mxu0 0.0
    %7881 = vmatpush1.msra.mxu0 0.0
    %7882 = vmatprep.subr.mxu0 0.0
    %7883 = vmatpush1.msra.mxu0 0.0
    %7884 = vmatprep.subr.mxu0 0.0
    %7885 = vmatpush1.msra.mxu0 0.0
    %7886 = vmatprep.mubr.f32.mxu0 0.0
    %7887 = vmatmul.mubr.f32.gmra.mrb[0].mxu0 %v7811
    %v7888 = vpop.f32.mrb[0].mxu0
    %v7889 = vadd.f32 0.0, %v7888
    %v7890 = vpop.f32.mrb[0].mxu0
    %7891 = vmatprep.mubr.f32.mxu0 0.0
    %7892 = vmatmul.mubr.f32.gmra.mrb[0].mxu0 %v7814
    %v7893 = vpop.f32.mrb[0].mxu0
    %v7894 = vadd.f32 0.0, %v7893
    %v7895 = vpop.f32.mrb[0].mxu0
    %7896 = vmatprep.mubr.f32.mxu0 0.0
    %7897 = vmatmul.mubr.f32.gmra.mrb[0].mxu0 %v7817
    %v7898 = vpop.f32.mrb[0].mxu0
    %v7899 = vadd.f32 0.0, %v7898
    %v7900 = vpop.f32.mrb[0].mxu0
    %7901 = vmatprep.mubr.f32.mxu0 0.0
    %7902 = vmatmul.mubr.f32.gmra.mrb[0].mxu0 %v7820
    %v7903 = vpop.f32.mrb[0].mxu0
    %v7904 = vadd.f32 0.0, %v7903
    %v7905 = vpop.f32.mrb[0].mxu0
    %7906 = vdwg.mxu0
    %7907 = vrot.lane.b32.xlu0 %v980, 64
    %v7908 = vpop.permute.xlu0 %7907
    %7909 = vrot.lane.b32.xlu0 %v985, 64
    %v7910 = vpop.permute.xlu0 %7909
    %7911 = vrot.lane.b32.xlu0 %v990, 64
    %v7912 = vpop.permute.xlu0 %7911
    %7913 = vrot.lane.b32.xlu0 %v995, 64
    %v7914 = vpop.permute.xlu0 %7913
    %v7920 = vsel %vm1310, %v6099, 0
    %v7923 = vsel %vm1310, %v6100, 0
    %v7926 = vsel %vm1310, %v6101, 0
    %v7929 = vsel %vm1310, %v6102, 0
    %7931 = vmatprep.subr.mxu0 0.0
    %7932 = vmatpush1.msra.mxu0 %v7908
    %7933 = vmatprep.subr.mxu0 0.0
    %7934 = vmatpush1.msra.mxu0 %v7910
    %7935 = vmatprep.subr.mxu0 0.0
    %7936 = vmatpush1.msra.mxu0 %v7912
    %7937 = vmatprep.subr.mxu0 0.0
    %7938 = vmatpush1.msra.mxu0 %v7914
    %7939 = vmatprep.subr.mxu0 0.0
    %7940 = vmatpush1.msra.mxu0 0.0
    %7941 = vmatprep.subr.mxu0 0.0
    %7942 = vmatpush1.msra.mxu0 0.0
    %7943 = vmatprep.subr.mxu0 0.0
    %7944 = vmatpush1.msra.mxu0 0.0
    %7945 = vmatprep.subr.mxu0 0.0
    %7946 = vmatpush1.msra.mxu0 0.0
    %7947 = vmatprep.subr.mxu0 0.0
    %7948 = vmatpush1.msra.mxu0 0.0
    %7949 = vmatprep.subr.mxu0 0.0
    %7950 = vmatpush1.msra.mxu0 0.0
    %7951 = vmatprep.subr.mxu0 0.0
    %7952 = vmatpush1.msra.mxu0 0.0
    %7953 = vmatprep.subr.mxu0 0.0
    %7954 = vmatpush1.msra.mxu0 0.0
    %7955 = vmatprep.subr.mxu0 0.0
    %7956 = vmatpush1.msra.mxu0 0.0
    %7957 = vmatprep.subr.mxu0 0.0
    %7958 = vmatpush1.msra.mxu0 0.0
    %7959 = vmatprep.subr.mxu0 0.0
    %7960 = vmatpush1.msra.mxu0 0.0
    %7961 = vmatprep.subr.mxu0 0.0
    %7962 = vmatpush1.msra.mxu0 0.0
    %7963 = vmatprep.subr.mxu0 0.0
    %7964 = vmatpush1.msra.mxu0 0.0
    %7965 = vmatprep.subr.mxu0 0.0
    %7966 = vmatpush1.msra.mxu0 0.0
    %7967 = vmatprep.subr.mxu0 0.0
    %7968 = vmatpush1.msra.mxu0 0.0
    %7969 = vmatprep.subr.mxu0 0.0
    %7970 = vmatpush1.msra.mxu0 0.0
    %7971 = vmatprep.subr.mxu0 0.0
    %7972 = vmatpush1.msra.mxu0 0.0
    %7973 = vmatprep.subr.mxu0 0.0
    %7974 = vmatpush1.msra.mxu0 0.0
    %7975 = vmatprep.subr.mxu0 0.0
    %7976 = vmatpush1.msra.mxu0 0.0
    %7977 = vmatprep.subr.mxu0 0.0
    %7978 = vmatpush1.msra.mxu0 0.0
    %7979 = vmatprep.subr.mxu0 0.0
    %7980 = vmatpush1.msra.mxu0 0.0
    %7981 = vmatprep.subr.mxu0 0.0
    %7982 = vmatpush1.msra.mxu0 0.0
    %7983 = vmatprep.subr.mxu0 0.0
    %7984 = vmatpush1.msra.mxu0 0.0
    %7985 = vmatprep.subr.mxu0 0.0
    %7986 = vmatpush1.msra.mxu0 0.0
    %7987 = vmatprep.subr.mxu0 0.0
    %7988 = vmatpush1.msra.mxu0 0.0
    %7989 = vmatprep.subr.mxu0 0.0
    %7990 = vmatpush1.msra.mxu0 0.0
    %7991 = vmatprep.subr.mxu0 0.0
    %7992 = vmatpush1.msra.mxu0 0.0
    %7993 = vmatprep.subr.mxu0 0.0
    %7994 = vmatpush1.msra.mxu0 0.0
    %7995 = vmatprep.mubr.f32.mxu0 0.0
    %7996 = vmatmul.mubr.f32.gmra.mrb[0].mxu0 %v7920
    %v7997 = vpop.f32.mrb[0].mxu0
    %v7998 = vadd.f32 0.0, %v7997
    %v7999 = vpop.f32.mrb[0].mxu0
    %8000 = vmatprep.mubr.f32.mxu0 0.0
    %8001 = vmatmul.mubr.f32.gmra.mrb[0].mxu0 %v7923
    %v8002 = vpop.f32.mrb[0].mxu0
    %v8003 = vadd.f32 0.0, %v8002
    %v8004 = vpop.f32.mrb[0].mxu0
    %8005 = vmatprep.mubr.f32.mxu0 0.0
    %8006 = vmatmul.mubr.f32.gmra.mrb[0].mxu0 %v7926
    %v8007 = vpop.f32.mrb[0].mxu0
    %v8008 = vadd.f32 0.0, %v8007
    %v8009 = vpop.f32.mrb[0].mxu0
    %8010 = vmatprep.mubr.f32.mxu0 0.0
    %8011 = vmatmul.mubr.f32.gmra.mrb[0].mxu0 %v7929
    %v8012 = vpop.f32.mrb[0].mxu0
    %v8013 = vadd.f32 0.0, %v8012
    %v8014 = vpop.f32.mrb[0].mxu0
    %8015 = vdwg.mxu0
    %8016 = vrot.lane.b32.xlu0 %v1000, 64
    %v8017 = vpop.permute.xlu0 %8016
    %8018 = vrot.lane.b32.xlu0 %v1005, 64
    %v8019 = vpop.permute.xlu0 %8018
    %8020 = vrot.lane.b32.xlu0 %v1010, 64
    %v8021 = vpop.permute.xlu0 %8020
    %8022 = vrot.lane.b32.xlu0 %v1015, 64
    %v8023 = vpop.permute.xlu0 %8022
    %v8029 = vsel %vm1310, %v6103, 0
    %v8032 = vsel %vm1310, %v6104, 0
    %v8035 = vsel %vm1310, %v6105, 0
    %v8038 = vsel %vm1310, %v6106, 0
    %8040 = vmatprep.subr.mxu0 0.0
    %8041 = vmatpush1.msra.mxu0 %v8017
    %8042 = vmatprep.subr.mxu0 0.0
    %8043 = vmatpush1.msra.mxu0 %v8019
    %8044 = vmatprep.subr.mxu0 0.0
    %8045 = vmatpush1.msra.mxu0 %v8021
    %8046 = vmatprep.subr.mxu0 0.0
    %8047 = vmatpush1.msra.mxu0 %v8023
    %8048 = vmatprep.subr.mxu0 0.0
    %8049 = vmatpush1.msra.mxu0 0.0
    %8050 = vmatprep.subr.mxu0 0.0
    %8051 = vmatpush1.msra.mxu0 0.0
    %8052 = vmatprep.subr.mxu0 0.0
    %8053 = vmatpush1.msra.mxu0 0.0
    %8054 = vmatprep.subr.mxu0 0.0
    %8055 = vmatpush1.msra.mxu0 0.0
    %8056 = vmatprep.subr.mxu0 0.0
    %8057 = vmatpush1.msra.mxu0 0.0
    %8058 = vmatprep.subr.mxu0 0.0
    %8059 = vmatpush1.msra.mxu0 0.0
    %8060 = vmatprep.subr.mxu0 0.0
    %8061 = vmatpush1.msra.mxu0 0.0
    %8062 = vmatprep.subr.mxu0 0.0
    %8063 = vmatpush1.msra.mxu0 0.0
    %8064 = vmatprep.subr.mxu0 0.0
    %8065 = vmatpush1.msra.mxu0 0.0
    %8066 = vmatprep.subr.mxu0 0.0
    %8067 = vmatpush1.msra.mxu0 0.0
    %8068 = vmatprep.subr.mxu0 0.0
    %8069 = vmatpush1.msra.mxu0 0.0
    %8070 = vmatprep.subr.mxu0 0.0
    %8071 = vmatpush1.msra.mxu0 0.0
    %8072 = vmatprep.subr.mxu0 0.0
    %8073 = vmatpush1.msra.mxu0 0.0
    %8074 = vmatprep.subr.mxu0 0.0
    %8075 = vmatpush1.msra.mxu0 0.0
    %8076 = vmatprep.subr.mxu0 0.0
    %8077 = vmatpush1.msra.mxu0 0.0
    %8078 = vmatprep.subr.mxu0 0.0
    %8079 = vmatpush1.msra.mxu0 0.0
    %8080 = vmatprep.subr.mxu0 0.0
    %8081 = vmatpush1.msra.mxu0 0.0
    %8082 = vmatprep.subr.mxu0 0.0
    %8083 = vmatpush1.msra.mxu0 0.0
    %8084 = vmatprep.subr.mxu0 0.0
    %8085 = vmatpush1.msra.mxu0 0.0
    %8086 = vmatprep.subr.mxu0 0.0
    %8087 = vmatpush1.msra.mxu0 0.0
    %8088 = vmatprep.subr.mxu0 0.0
    %8089 = vmatpush1.msra.mxu0 0.0
    %8090 = vmatprep.subr.mxu0 0.0
    %8091 = vmatpush1.msra.mxu0 0.0
    %8092 = vmatprep.subr.mxu0 0.0
    %8093 = vmatpush1.msra.mxu0 0.0
    %8094 = vmatprep.subr.mxu0 0.0
    %8095 = vmatpush1.msra.mxu0 0.0
    %8096 = vmatprep.subr.mxu0 0.0
    %8097 = vmatpush1.msra.mxu0 0.0
    %8098 = vmatprep.subr.mxu0 0.0
    %8099 = vmatpush1.msra.mxu0 0.0
    %8100 = vmatprep.subr.mxu0 0.0
    %8101 = vmatpush1.msra.mxu0 0.0
    %8102 = vmatprep.subr.mxu0 0.0
    %8103 = vmatpush1.msra.mxu0 0.0
    %8104 = vmatprep.mubr.f32.mxu0 0.0
    %8105 = vmatmul.mubr.f32.gmra.mrb[0].mxu0 %v8029
    %v8106 = vpop.f32.mrb[0].mxu0
    %v8107 = vadd.f32 0.0, %v8106
    %v8108 = vpop.f32.mrb[0].mxu0
    %8109 = vmatprep.mubr.f32.mxu0 0.0
    %8110 = vmatmul.mubr.f32.gmra.mrb[0].mxu0 %v8032
    %v8111 = vpop.f32.mrb[0].mxu0
    %v8112 = vadd.f32 0.0, %v8111
    %v8113 = vpop.f32.mrb[0].mxu0
    %8114 = vmatprep.mubr.f32.mxu0 0.0
    %8115 = vmatmul.mubr.f32.gmra.mrb[0].mxu0 %v8035
    %v8116 = vpop.f32.mrb[0].mxu0
    %v8117 = vadd.f32 0.0, %v8116
    %v8118 = vpop.f32.mrb[0].mxu0
    %8119 = vmatprep.mubr.f32.mxu0 0.0
    %8120 = vmatmul.mubr.f32.gmra.mrb[0].mxu0 %v8038
    %v8121 = vpop.f32.mrb[0].mxu0
    %v8122 = vadd.f32 0.0, %v8121
    %v8123 = vpop.f32.mrb[0].mxu0
    %8124 = vdwg.mxu0
    %8125 = vrot.lane.b32.xlu0 %v1020, 64
    %v8126 = vpop.permute.xlu0 %8125
    %8127 = vrot.lane.b32.xlu0 %v1025, 64
    %v8128 = vpop.permute.xlu0 %8127
    %8129 = vrot.lane.b32.xlu0 %v1030, 64
    %v8130 = vpop.permute.xlu0 %8129
    %8131 = vrot.lane.b32.xlu0 %v1035, 64
    %v8132 = vpop.permute.xlu0 %8131
    %v8138 = vsel %vm1310, %v6107, 0
    %v8141 = vsel %vm1310, %v6108, 0
    %v8144 = vsel %vm1310, %v6109, 0
    %v8147 = vsel %vm1310, %v6110, 0
    %8149 = vmatprep.subr.mxu0 0.0
    %8150 = vmatpush1.msra.mxu0 %v8126
    %8151 = vmatprep.subr.mxu0 0.0
    %8152 = vmatpush1.msra.mxu0 %v8128
    %8153 = vmatprep.subr.mxu0 0.0
    %8154 = vmatpush1.msra.mxu0 %v8130
    %8155 = vmatprep.subr.mxu0 0.0
    %8156 = vmatpush1.msra.mxu0 %v8132
    %8157 = vmatprep.subr.mxu0 0.0
    %8158 = vmatpush1.msra.mxu0 0.0
    %8159 = vmatprep.subr.mxu0 0.0
    %8160 = vmatpush1.msra.mxu0 0.0
    %8161 = vmatprep.subr.mxu0 0.0
    %8162 = vmatpush1.msra.mxu0 0.0
    %8163 = vmatprep.subr.mxu0 0.0
    %8164 = vmatpush1.msra.mxu0 0.0
    %8165 = vmatprep.subr.mxu0 0.0
    %8166 = vmatpush1.msra.mxu0 0.0
    %8167 = vmatprep.subr.mxu0 0.0
    %8168 = vmatpush1.msra.mxu0 0.0
    %8169 = vmatprep.subr.mxu0 0.0
    %8170 = vmatpush1.msra.mxu0 0.0
    %8171 = vmatprep.subr.mxu0 0.0
    %8172 = vmatpush1.msra.mxu0 0.0
    %8173 = vmatprep.subr.mxu0 0.0
    %8174 = vmatpush1.msra.mxu0 0.0
    %8175 = vmatprep.subr.mxu0 0.0
    %8176 = vmatpush1.msra.mxu0 0.0
    %8177 = vmatprep.subr.mxu0 0.0
    %8178 = vmatpush1.msra.mxu0 0.0
    %8179 = vmatprep.subr.mxu0 0.0
    %8180 = vmatpush1.msra.mxu0 0.0
    %8181 = vmatprep.subr.mxu0 0.0
    %8182 = vmatpush1.msra.mxu0 0.0
    %8183 = vmatprep.subr.mxu0 0.0
    %8184 = vmatpush1.msra.mxu0 0.0
    %8185 = vmatprep.subr.mxu0 0.0
    %8186 = vmatpush1.msra.mxu0 0.0
    %8187 = vmatprep.subr.mxu0 0.0
    %8188 = vmatpush1.msra.mxu0 0.0
    %8189 = vmatprep.subr.mxu0 0.0
    %8190 = vmatpush1.msra.mxu0 0.0
    %8191 = vmatprep.subr.mxu0 0.0
    %8192 = vmatpush1.msra.mxu0 0.0
    %8193 = vmatprep.subr.mxu0 0.0
    %8194 = vmatpush1.msra.mxu0 0.0
    %8195 = vmatprep.subr.mxu0 0.0
    %8196 = vmatpush1.msra.mxu0 0.0
    %8197 = vmatprep.subr.mxu0 0.0
    %8198 = vmatpush1.msra.mxu0 0.0
    %8199 = vmatprep.subr.mxu0 0.0
    %8200 = vmatpush1.msra.mxu0 0.0
    %8201 = vmatprep.subr.mxu0 0.0
    %8202 = vmatpush1.msra.mxu0 0.0
    %8203 = vmatprep.subr.mxu0 0.0
    %8204 = vmatpush1.msra.mxu0 0.0
    %8205 = vmatprep.subr.mxu0 0.0
    %8206 = vmatpush1.msra.mxu0 0.0
    %8207 = vmatprep.subr.mxu0 0.0
    %8208 = vmatpush1.msra.mxu0 0.0
    %8209 = vmatprep.subr.mxu0 0.0
    %8210 = vmatpush1.msra.mxu0 0.0
    %8211 = vmatprep.subr.mxu0 0.0
    %8212 = vmatpush1.msra.mxu0 0.0
    %8213 = vmatprep.mubr.f32.mxu0 0.0
    %8214 = vmatmul.mubr.f32.gmra.mrb[0].mxu0 %v8138
    %v8215 = vpop.f32.mrb[0].mxu0
    %v8216 = vadd.f32 0.0, %v8215
    %v8217 = vpop.f32.mrb[0].mxu0
    %8218 = vmatprep.mubr.f32.mxu0 0.0
    %8219 = vmatmul.mubr.f32.gmra.mrb[0].mxu0 %v8141
    %v8220 = vpop.f32.mrb[0].mxu0
    %v8221 = vadd.f32 0.0, %v8220
    %v8222 = vpop.f32.mrb[0].mxu0
    %8223 = vmatprep.mubr.f32.mxu0 0.0
    %8224 = vmatmul.mubr.f32.gmra.mrb[0].mxu0 %v8144
    %v8225 = vpop.f32.mrb[0].mxu0
    %v8226 = vadd.f32 0.0, %v8225
    %v8227 = vpop.f32.mrb[0].mxu0
    %8228 = vmatprep.mubr.f32.mxu0 0.0
    %8229 = vmatmul.mubr.f32.gmra.mrb[0].mxu0 %v8147
    %v8230 = vpop.f32.mrb[0].mxu0
    %v8231 = vadd.f32 0.0, %v8230
    %v8232 = vpop.f32.mrb[0].mxu0
    %8233 = vdwg.mxu0
    %8234 = vrot.lane.b32.xlu0 %v1040, 64
    %v8235 = vpop.permute.xlu0 %8234
    %8236 = vrot.lane.b32.xlu0 %v1045, 64
    %v8237 = vpop.permute.xlu0 %8236
    %8238 = vrot.lane.b32.xlu0 %v1050, 64
    %v8239 = vpop.permute.xlu0 %8238
    %8240 = vrot.lane.b32.xlu0 %v1055, 64
    %v8241 = vpop.permute.xlu0 %8240
    %v8247 = vsel %vm1310, %v6111, 0
    %v8250 = vsel %vm1310, %v6112, 0
    %v8253 = vsel %vm1310, %v6113, 0
    %v8256 = vsel %vm1310, %v6114, 0
    %8258 = vmatprep.subr.mxu0 0.0
    %8259 = vmatpush1.msra.mxu0 %v8235
    %8260 = vmatprep.subr.mxu0 0.0
    %8261 = vmatpush1.msra.mxu0 %v8237
    %8262 = vmatprep.subr.mxu0 0.0
    %8263 = vmatpush1.msra.mxu0 %v8239
    %8264 = vmatprep.subr.mxu0 0.0
    %8265 = vmatpush1.msra.mxu0 %v8241
    %8266 = vmatprep.subr.mxu0 0.0
    %8267 = vmatpush1.msra.mxu0 0.0
    %8268 = vmatprep.subr.mxu0 0.0
    %8269 = vmatpush1.msra.mxu0 0.0
    %8270 = vmatprep.subr.mxu0 0.0
    %8271 = vmatpush1.msra.mxu0 0.0
    %8272 = vmatprep.subr.mxu0 0.0
    %8273 = vmatpush1.msra.mxu0 0.0
    %8274 = vmatprep.subr.mxu0 0.0
    %8275 = vmatpush1.msra.mxu0 0.0
    %8276 = vmatprep.subr.mxu0 0.0
    %8277 = vmatpush1.msra.mxu0 0.0
    %8278 = vmatprep.subr.mxu0 0.0
    %8279 = vmatpush1.msra.mxu0 0.0
    %8280 = vmatprep.subr.mxu0 0.0
    %8281 = vmatpush1.msra.mxu0 0.0
    %8282 = vmatprep.subr.mxu0 0.0
    %8283 = vmatpush1.msra.mxu0 0.0
    %8284 = vmatprep.subr.mxu0 0.0
    %8285 = vmatpush1.msra.mxu0 0.0
    %8286 = vmatprep.subr.mxu0 0.0
    %8287 = vmatpush1.msra.mxu0 0.0
    %8288 = vmatprep.subr.mxu0 0.0
    %8289 = vmatpush1.msra.mxu0 0.0
    %8290 = vmatprep.subr.mxu0 0.0
    %8291 = vmatpush1.msra.mxu0 0.0
    %8292 = vmatprep.subr.mxu0 0.0
    %8293 = vmatpush1.msra.mxu0 0.0
    %8294 = vmatprep.subr.mxu0 0.0
    %8295 = vmatpush1.msra.mxu0 0.0
    %8296 = vmatprep.subr.mxu0 0.0
    %8297 = vmatpush1.msra.mxu0 0.0
    %8298 = vmatprep.subr.mxu0 0.0
    %8299 = vmatpush1.msra.mxu0 0.0
    %8300 = vmatprep.subr.mxu0 0.0
    %8301 = vmatpush1.msra.mxu0 0.0
    %8302 = vmatprep.subr.mxu0 0.0
    %8303 = vmatpush1.msra.mxu0 0.0
    %8304 = vmatprep.subr.mxu0 0.0
    %8305 = vmatpush1.msra.mxu0 0.0
    %8306 = vmatprep.subr.mxu0 0.0
    %8307 = vmatpush1.msra.mxu0 0.0
    %8308 = vmatprep.subr.mxu0 0.0
    %8309 = vmatpush1.msra.mxu0 0.0
    %8310 = vmatprep.subr.mxu0 0.0
    %8311 = vmatpush1.msra.mxu0 0.0
    %8312 = vmatprep.subr.mxu0 0.0
    %8313 = vmatpush1.msra.mxu0 0.0
    %8314 = vmatprep.subr.mxu0 0.0
    %8315 = vmatpush1.msra.mxu0 0.0
    %8316 = vmatprep.subr.mxu0 0.0
    %8317 = vmatpush1.msra.mxu0 0.0
    %8318 = vmatprep.subr.mxu0 0.0
    %8319 = vmatpush1.msra.mxu0 0.0
    %8320 = vmatprep.subr.mxu0 0.0
    %8321 = vmatpush1.msra.mxu0 0.0
    %8322 = vmatprep.mubr.f32.mxu0 0.0
    %8323 = vmatmul.mubr.f32.gmra.mrb[0].mxu0 %v8247
    %v8324 = vpop.f32.mrb[0].mxu0
    %v8325 = vadd.f32 0.0, %v8324
    %v8326 = vpop.f32.mrb[0].mxu0
    %8327 = vmatprep.mubr.f32.mxu0 0.0
    %8328 = vmatmul.mubr.f32.gmra.mrb[0].mxu0 %v8250
    %v8329 = vpop.f32.mrb[0].mxu0
    %v8330 = vadd.f32 0.0, %v8329
    %v8331 = vpop.f32.mrb[0].mxu0
    %8332 = vmatprep.mubr.f32.mxu0 0.0
    %8333 = vmatmul.mubr.f32.gmra.mrb[0].mxu0 %v8253
    %v8334 = vpop.f32.mrb[0].mxu0
    %v8335 = vadd.f32 0.0, %v8334
    %v8336 = vpop.f32.mrb[0].mxu0
    %8337 = vmatprep.mubr.f32.mxu0 0.0
    %8338 = vmatmul.mubr.f32.gmra.mrb[0].mxu0 %v8256
    %v8339 = vpop.f32.mrb[0].mxu0
    %v8340 = vadd.f32 0.0, %v8339
    %v8341 = vpop.f32.mrb[0].mxu0
    %8342 = vdwg.mxu0
    %8343 = vrot.lane.b32.xlu0 %v1060, 64
    %v8344 = vpop.permute.xlu0 %8343
    %8345 = vrot.lane.b32.xlu0 %v1065, 64
    %v8346 = vpop.permute.xlu0 %8345
    %8347 = vrot.lane.b32.xlu0 %v1070, 64
    %v8348 = vpop.permute.xlu0 %8347
    %8349 = vrot.lane.b32.xlu0 %v1075, 64
    %v8350 = vpop.permute.xlu0 %8349
    %v8356 = vsel %vm1310, %v6115, 0
    %v8359 = vsel %vm1310, %v6116, 0
    %v8362 = vsel %vm1310, %v6117, 0
    %v8365 = vsel %vm1310, %v6118, 0
    %8367 = vmatprep.subr.mxu0 0.0
    %8368 = vmatpush1.msra.mxu0 %v8344
    %8369 = vmatprep.subr.mxu0 0.0
    %8370 = vmatpush1.msra.mxu0 %v8346
    %8371 = vmatprep.subr.mxu0 0.0
    %8372 = vmatpush1.msra.mxu0 %v8348
    %8373 = vmatprep.subr.mxu0 0.0
    %8374 = vmatpush1.msra.mxu0 %v8350
    %8375 = vmatprep.subr.mxu0 0.0
    %8376 = vmatpush1.msra.mxu0 0.0
    %8377 = vmatprep.subr.mxu0 0.0
    %8378 = vmatpush1.msra.mxu0 0.0
    %8379 = vmatprep.subr.mxu0 0.0
    %8380 = vmatpush1.msra.mxu0 0.0
    %8381 = vmatprep.subr.mxu0 0.0
    %8382 = vmatpush1.msra.mxu0 0.0
    %8383 = vmatprep.subr.mxu0 0.0
    %8384 = vmatpush1.msra.mxu0 0.0
    %8385 = vmatprep.subr.mxu0 0.0
    %8386 = vmatpush1.msra.mxu0 0.0
    %8387 = vmatprep.subr.mxu0 0.0
    %8388 = vmatpush1.msra.mxu0 0.0
    %8389 = vmatprep.subr.mxu0 0.0
    %8390 = vmatpush1.msra.mxu0 0.0
    %8391 = vmatprep.subr.mxu0 0.0
    %8392 = vmatpush1.msra.mxu0 0.0
    %8393 = vmatprep.subr.mxu0 0.0
    %8394 = vmatpush1.msra.mxu0 0.0
    %8395 = vmatprep.subr.mxu0 0.0
    %8396 = vmatpush1.msra.mxu0 0.0
    %8397 = vmatprep.subr.mxu0 0.0
    %8398 = vmatpush1.msra.mxu0 0.0
    %8399 = vmatprep.subr.mxu0 0.0
    %8400 = vmatpush1.msra.mxu0 0.0
    %8401 = vmatprep.subr.mxu0 0.0
    %8402 = vmatpush1.msra.mxu0 0.0
    %8403 = vmatprep.subr.mxu0 0.0
    %8404 = vmatpush1.msra.mxu0 0.0
    %8405 = vmatprep.subr.mxu0 0.0
    %8406 = vmatpush1.msra.mxu0 0.0
    %8407 = vmatprep.subr.mxu0 0.0
    %8408 = vmatpush1.msra.mxu0 0.0
    %8409 = vmatprep.subr.mxu0 0.0
    %8410 = vmatpush1.msra.mxu0 0.0
    %8411 = vmatprep.subr.mxu0 0.0
    %8412 = vmatpush1.msra.mxu0 0.0
    %8413 = vmatprep.subr.mxu0 0.0
    %8414 = vmatpush1.msra.mxu0 0.0
    %8415 = vmatprep.subr.mxu0 0.0
    %8416 = vmatpush1.msra.mxu0 0.0
    %8417 = vmatprep.subr.mxu0 0.0
    %8418 = vmatpush1.msra.mxu0 0.0
    %8419 = vmatprep.subr.mxu0 0.0
    %8420 = vmatpush1.msra.mxu0 0.0
    %8421 = vmatprep.subr.mxu0 0.0
    %8422 = vmatpush1.msra.mxu0 0.0
    %8423 = vmatprep.subr.mxu0 0.0
    %8424 = vmatpush1.msra.mxu0 0.0
    %8425 = vmatprep.subr.mxu0 0.0
    %8426 = vmatpush1.msra.mxu0 0.0
    %8427 = vmatprep.subr.mxu0 0.0
    %8428 = vmatpush1.msra.mxu0 0.0
    %8429 = vmatprep.subr.mxu0 0.0
    %8430 = vmatpush1.msra.mxu0 0.0
    %8431 = vmatprep.mubr.f32.mxu0 0.0
    %8432 = vmatmul.mubr.f32.gmra.mrb[0].mxu0 %v8356
    %v8433 = vpop.f32.mrb[0].mxu0
    %v8434 = vadd.f32 0.0, %v8433
    %v8435 = vpop.f32.mrb[0].mxu0
    %8436 = vmatprep.mubr.f32.mxu0 0.0
    %8437 = vmatmul.mubr.f32.gmra.mrb[0].mxu0 %v8359
    %v8438 = vpop.f32.mrb[0].mxu0
    %v8439 = vadd.f32 0.0, %v8438
    %v8440 = vpop.f32.mrb[0].mxu0
    %8441 = vmatprep.mubr.f32.mxu0 0.0
    %8442 = vmatmul.mubr.f32.gmra.mrb[0].mxu0 %v8362
    %v8443 = vpop.f32.mrb[0].mxu0
    %v8444 = vadd.f32 0.0, %v8443
    %v8445 = vpop.f32.mrb[0].mxu0
    %8446 = vmatprep.mubr.f32.mxu0 0.0
    %8447 = vmatmul.mubr.f32.gmra.mrb[0].mxu0 %v8365
    %v8448 = vpop.f32.mrb[0].mxu0
    %v8449 = vadd.f32 0.0, %v8448
    %v8450 = vpop.f32.mrb[0].mxu0
    %8451 = vdwg.mxu0
    %8452 = vrot.lane.b32.xlu0 %v1080, 64
    %v8453 = vpop.permute.xlu0 %8452
    %8454 = vrot.lane.b32.xlu0 %v1085, 64
    %v8455 = vpop.permute.xlu0 %8454
    %8456 = vrot.lane.b32.xlu0 %v1090, 64
    %v8457 = vpop.permute.xlu0 %8456
    %8458 = vrot.lane.b32.xlu0 %v1095, 64
    %v8459 = vpop.permute.xlu0 %8458
    %v8465 = vsel %vm1310, %v6119, 0
    %v8468 = vsel %vm1310, %v6120, 0
    %v8471 = vsel %vm1310, %v6121, 0
    %v8474 = vsel %vm1310, %v6122, 0
    %8476 = vmatprep.subr.mxu0 0.0
    %8477 = vmatpush1.msra.mxu0 %v8453
    %8478 = vmatprep.subr.mxu0 0.0
    %8479 = vmatpush1.msra.mxu0 %v8455
    %8480 = vmatprep.subr.mxu0 0.0
    %8481 = vmatpush1.msra.mxu0 %v8457
    %8482 = vmatprep.subr.mxu0 0.0
    %8483 = vmatpush1.msra.mxu0 %v8459
    %8484 = vmatprep.subr.mxu0 0.0
    %8485 = vmatpush1.msra.mxu0 0.0
    %8486 = vmatprep.subr.mxu0 0.0
    %8487 = vmatpush1.msra.mxu0 0.0
    %8488 = vmatprep.subr.mxu0 0.0
    %8489 = vmatpush1.msra.mxu0 0.0
    %8490 = vmatprep.subr.mxu0 0.0
    %8491 = vmatpush1.msra.mxu0 0.0
    %8492 = vmatprep.subr.mxu0 0.0
    %8493 = vmatpush1.msra.mxu0 0.0
    %8494 = vmatprep.subr.mxu0 0.0
    %8495 = vmatpush1.msra.mxu0 0.0
    %8496 = vmatprep.subr.mxu0 0.0
    %8497 = vmatpush1.msra.mxu0 0.0
    %8498 = vmatprep.subr.mxu0 0.0
    %8499 = vmatpush1.msra.mxu0 0.0
    %8500 = vmatprep.subr.mxu0 0.0
    %8501 = vmatpush1.msra.mxu0 0.0
    %8502 = vmatprep.subr.mxu0 0.0
    %8503 = vmatpush1.msra.mxu0 0.0
    %8504 = vmatprep.subr.mxu0 0.0
    %8505 = vmatpush1.msra.mxu0 0.0
    %8506 = vmatprep.subr.mxu0 0.0
    %8507 = vmatpush1.msra.mxu0 0.0
    %8508 = vmatprep.subr.mxu0 0.0
    %8509 = vmatpush1.msra.mxu0 0.0
    %8510 = vmatprep.subr.mxu0 0.0
    %8511 = vmatpush1.msra.mxu0 0.0
    %8512 = vmatprep.subr.mxu0 0.0
    %8513 = vmatpush1.msra.mxu0 0.0
    %8514 = vmatprep.subr.mxu0 0.0
    %8515 = vmatpush1.msra.mxu0 0.0
    %8516 = vmatprep.subr.mxu0 0.0
    %8517 = vmatpush1.msra.mxu0 0.0
    %8518 = vmatprep.subr.mxu0 0.0
    %8519 = vmatpush1.msra.mxu0 0.0
    %8520 = vmatprep.subr.mxu0 0.0
    %8521 = vmatpush1.msra.mxu0 0.0
    %8522 = vmatprep.subr.mxu0 0.0
    %8523 = vmatpush1.msra.mxu0 0.0
    %8524 = vmatprep.subr.mxu0 0.0
    %8525 = vmatpush1.msra.mxu0 0.0
    %8526 = vmatprep.subr.mxu0 0.0
    %8527 = vmatpush1.msra.mxu0 0.0
    %8528 = vmatprep.subr.mxu0 0.0
    %8529 = vmatpush1.msra.mxu0 0.0
    %8530 = vmatprep.subr.mxu0 0.0
    %8531 = vmatpush1.msra.mxu0 0.0
    %8532 = vmatprep.subr.mxu0 0.0
    %8533 = vmatpush1.msra.mxu0 0.0
    %8534 = vmatprep.subr.mxu0 0.0
    %8535 = vmatpush1.msra.mxu0 0.0
    %8536 = vmatprep.subr.mxu0 0.0
    %8537 = vmatpush1.msra.mxu0 0.0
    %8538 = vmatprep.subr.mxu0 0.0
    %8539 = vmatpush1.msra.mxu0 0.0
    %8540 = vmatprep.mubr.f32.mxu0 0.0
    %8541 = vmatmul.mubr.f32.gmra.mrb[0].mxu0 %v8465
    %v8542 = vpop.f32.mrb[0].mxu0
    %v8543 = vadd.f32 0.0, %v8542
    %v8544 = vpop.f32.mrb[0].mxu0
    %8545 = vmatprep.mubr.f32.mxu0 0.0
    %8546 = vmatmul.mubr.f32.gmra.mrb[0].mxu0 %v8468
    %v8547 = vpop.f32.mrb[0].mxu0
    %v8548 = vadd.f32 0.0, %v8547
    %v8549 = vpop.f32.mrb[0].mxu0
    %8550 = vmatprep.mubr.f32.mxu0 0.0
    %8551 = vmatmul.mubr.f32.gmra.mrb[0].mxu0 %v8471
    %v8552 = vpop.f32.mrb[0].mxu0
    %v8553 = vadd.f32 0.0, %v8552
    %v8554 = vpop.f32.mrb[0].mxu0
    %8555 = vmatprep.mubr.f32.mxu0 0.0
    %8556 = vmatmul.mubr.f32.gmra.mrb[0].mxu0 %v8474
    %v8557 = vpop.f32.mrb[0].mxu0
    %v8558 = vadd.f32 0.0, %v8557
    %v8559 = vpop.f32.mrb[0].mxu0
    %8560 = vdwg.mxu0
    %8561 = vrot.lane.b32.xlu0 %v1100, 64
    %v8562 = vpop.permute.xlu0 %8561
    %8563 = vrot.lane.b32.xlu0 %v1105, 64
    %v8564 = vpop.permute.xlu0 %8563
    %8565 = vrot.lane.b32.xlu0 %v1110, 64
    %v8566 = vpop.permute.xlu0 %8565
    %8567 = vrot.lane.b32.xlu0 %v1115, 64
    %v8568 = vpop.permute.xlu0 %8567
    %v8574 = vsel %vm1310, %v6123, 0
    %v8577 = vsel %vm1310, %v6124, 0
    %v8580 = vsel %vm1310, %v6125, 0
    %v8583 = vsel %vm1310, %v6126, 0
    %8585 = vmatprep.subr.mxu0 0.0
    %8586 = vmatpush1.msra.mxu0 %v8562
    %8587 = vmatprep.subr.mxu0 0.0
    %8588 = vmatpush1.msra.mxu0 %v8564
    %8589 = vmatprep.subr.mxu0 0.0
    %8590 = vmatpush1.msra.mxu0 %v8566
    %8591 = vmatprep.subr.mxu0 0.0
    %8592 = vmatpush1.msra.mxu0 %v8568
    %8593 = vmatprep.subr.mxu0 0.0
    %8594 = vmatpush1.msra.mxu0 0.0
    %8595 = vmatprep.subr.mxu0 0.0
    %8596 = vmatpush1.msra.mxu0 0.0
    %8597 = vmatprep.subr.mxu0 0.0
    %8598 = vmatpush1.msra.mxu0 0.0
    %8599 = vmatprep.subr.mxu0 0.0
    %8600 = vmatpush1.msra.mxu0 0.0
    %8601 = vmatprep.subr.mxu0 0.0
    %8602 = vmatpush1.msra.mxu0 0.0
    %8603 = vmatprep.subr.mxu0 0.0
    %8604 = vmatpush1.msra.mxu0 0.0
    %8605 = vmatprep.subr.mxu0 0.0
    %8606 = vmatpush1.msra.mxu0 0.0
    %8607 = vmatprep.subr.mxu0 0.0
    %8608 = vmatpush1.msra.mxu0 0.0
    %8609 = vmatprep.subr.mxu0 0.0
    %8610 = vmatpush1.msra.mxu0 0.0
    %8611 = vmatprep.subr.mxu0 0.0
    %8612 = vmatpush1.msra.mxu0 0.0
    %8613 = vmatprep.subr.mxu0 0.0
    %8614 = vmatpush1.msra.mxu0 0.0
    %8615 = vmatprep.subr.mxu0 0.0
    %8616 = vmatpush1.msra.mxu0 0.0
    %8617 = vmatprep.subr.mxu0 0.0
    %8618 = vmatpush1.msra.mxu0 0.0
    %8619 = vmatprep.subr.mxu0 0.0
    %8620 = vmatpush1.msra.mxu0 0.0
    %8621 = vmatprep.subr.mxu0 0.0
    %8622 = vmatpush1.msra.mxu0 0.0
    %8623 = vmatprep.subr.mxu0 0.0
    %8624 = vmatpush1.msra.mxu0 0.0
    %8625 = vmatprep.subr.mxu0 0.0
    %8626 = vmatpush1.msra.mxu0 0.0
    %8627 = vmatprep.subr.mxu0 0.0
    %8628 = vmatpush1.msra.mxu0 0.0
    %8629 = vmatprep.subr.mxu0 0.0
    %8630 = vmatpush1.msra.mxu0 0.0
    %8631 = vmatprep.subr.mxu0 0.0
    %8632 = vmatpush1.msra.mxu0 0.0
    %8633 = vmatprep.subr.mxu0 0.0
    %8634 = vmatpush1.msra.mxu0 0.0
    %8635 = vmatprep.subr.mxu0 0.0
    %8636 = vmatpush1.msra.mxu0 0.0
    %8637 = vmatprep.subr.mxu0 0.0
    %8638 = vmatpush1.msra.mxu0 0.0
    %8639 = vmatprep.subr.mxu0 0.0
    %8640 = vmatpush1.msra.mxu0 0.0
    %8641 = vmatprep.subr.mxu0 0.0
    %8642 = vmatpush1.msra.mxu0 0.0
    %8643 = vmatprep.subr.mxu0 0.0
    %8644 = vmatpush1.msra.mxu0 0.0
    %8645 = vmatprep.subr.mxu0 0.0
    %8646 = vmatpush1.msra.mxu0 0.0
    %8647 = vmatprep.subr.mxu0 0.0
    %8648 = vmatpush1.msra.mxu0 0.0
    %8649 = vmatprep.mubr.f32.mxu0 0.0
    %8650 = vmatmul.mubr.f32.gmra.mrb[0].mxu0 %v8574
    %v8651 = vpop.f32.mrb[0].mxu0
    %v8652 = vadd.f32 0.0, %v8651
    %v8653 = vpop.f32.mrb[0].mxu0
    %8654 = vmatprep.mubr.f32.mxu0 0.0
    %8655 = vmatmul.mubr.f32.gmra.mrb[0].mxu0 %v8577
    %v8656 = vpop.f32.mrb[0].mxu0
    %v8657 = vadd.f32 0.0, %v8656
    %v8658 = vpop.f32.mrb[0].mxu0
    %8659 = vmatprep.mubr.f32.mxu0 0.0
    %8660 = vmatmul.mubr.f32.gmra.mrb[0].mxu0 %v8580
    %v8661 = vpop.f32.mrb[0].mxu0
    %v8662 = vadd.f32 0.0, %v8661
    %v8663 = vpop.f32.mrb[0].mxu0
    %8664 = vmatprep.mubr.f32.mxu0 0.0
    %8665 = vmatmul.mubr.f32.gmra.mrb[0].mxu0 %v8583
    %v8666 = vpop.f32.mrb[0].mxu0
    %v8667 = vadd.f32 0.0, %v8666
    %v8668 = vpop.f32.mrb[0].mxu0
    %8669 = vdwg.mxu0
    %8670 = vrot.lane.b32.xlu0 %v1120, 64
    %v8671 = vpop.permute.xlu0 %8670
    %8672 = vrot.lane.b32.xlu0 %v1125, 64
    %v8673 = vpop.permute.xlu0 %8672
    %8674 = vrot.lane.b32.xlu0 %v1130, 64
    %v8675 = vpop.permute.xlu0 %8674
    %8676 = vrot.lane.b32.xlu0 %v1135, 64
    %v8677 = vpop.permute.xlu0 %8676
    %v8683 = vsel %vm1310, %v6127, 0
    %v8686 = vsel %vm1310, %v6128, 0
    %v8689 = vsel %vm1310, %v6129, 0
    %v8692 = vsel %vm1310, %v6130, 0
    %8694 = vmatprep.subr.mxu0 0.0
    %8695 = vmatpush1.msra.mxu0 %v8671
    %8696 = vmatprep.subr.mxu0 0.0
    %8697 = vmatpush1.msra.mxu0 %v8673
    %8698 = vmatprep.subr.mxu0 0.0
    %8699 = vmatpush1.msra.mxu0 %v8675
    %8700 = vmatprep.subr.mxu0 0.0
    %8701 = vmatpush1.msra.mxu0 %v8677
    %8702 = vmatprep.subr.mxu0 0.0
    %8703 = vmatpush1.msra.mxu0 0.0
    %8704 = vmatprep.subr.mxu0 0.0
    %8705 = vmatpush1.msra.mxu0 0.0
    %8706 = vmatprep.subr.mxu0 0.0
    %8707 = vmatpush1.msra.mxu0 0.0
    %8708 = vmatprep.subr.mxu0 0.0
    %8709 = vmatpush1.msra.mxu0 0.0
    %8710 = vmatprep.subr.mxu0 0.0
    %8711 = vmatpush1.msra.mxu0 0.0
    %8712 = vmatprep.subr.mxu0 0.0
    %8713 = vmatpush1.msra.mxu0 0.0
    %8714 = vmatprep.subr.mxu0 0.0
    %8715 = vmatpush1.msra.mxu0 0.0
    %8716 = vmatprep.subr.mxu0 0.0
    %8717 = vmatpush1.msra.mxu0 0.0
    %8718 = vmatprep.subr.mxu0 0.0
    %8719 = vmatpush1.msra.mxu0 0.0
    %8720 = vmatprep.subr.mxu0 0.0
    %8721 = vmatpush1.msra.mxu0 0.0
    %8722 = vmatprep.subr.mxu0 0.0
    %8723 = vmatpush1.msra.mxu0 0.0
    %8724 = vmatprep.subr.mxu0 0.0
    %8725 = vmatpush1.msra.mxu0 0.0
    %8726 = vmatprep.subr.mxu0 0.0
    %8727 = vmatpush1.msra.mxu0 0.0
    %8728 = vmatprep.subr.mxu0 0.0
    %8729 = vmatpush1.msra.mxu0 0.0
    %8730 = vmatprep.subr.mxu0 0.0
    %8731 = vmatpush1.msra.mxu0 0.0
    %8732 = vmatprep.subr.mxu0 0.0
    %8733 = vmatpush1.msra.mxu0 0.0
    %8734 = vmatprep.subr.mxu0 0.0
    %8735 = vmatpush1.msra.mxu0 0.0
    %8736 = vmatprep.subr.mxu0 0.0
    %8737 = vmatpush1.msra.mxu0 0.0
    %8738 = vmatprep.subr.mxu0 0.0
    %8739 = vmatpush1.msra.mxu0 0.0
    %8740 = vmatprep.subr.mxu0 0.0
    %8741 = vmatpush1.msra.mxu0 0.0
    %8742 = vmatprep.subr.mxu0 0.0
    %8743 = vmatpush1.msra.mxu0 0.0
    %8744 = vmatprep.subr.mxu0 0.0
    %8745 = vmatpush1.msra.mxu0 0.0
    %8746 = vmatprep.subr.mxu0 0.0
    %8747 = vmatpush1.msra.mxu0 0.0
    %8748 = vmatprep.subr.mxu0 0.0
    %8749 = vmatpush1.msra.mxu0 0.0
    %8750 = vmatprep.subr.mxu0 0.0
    %8751 = vmatpush1.msra.mxu0 0.0
    %8752 = vmatprep.subr.mxu0 0.0
    %8753 = vmatpush1.msra.mxu0 0.0
    %8754 = vmatprep.subr.mxu0 0.0
    %8755 = vmatpush1.msra.mxu0 0.0
    %8756 = vmatprep.subr.mxu0 0.0
    %8757 = vmatpush1.msra.mxu0 0.0
    %8758 = vmatprep.mubr.f32.mxu0 0.0
    %8759 = vmatmul.mubr.f32.gmra.mrb[0].mxu0 %v8683
    %v8760 = vpop.f32.mrb[0].mxu0
    %v8761 = vadd.f32 0.0, %v8760
    %v8762 = vpop.f32.mrb[0].mxu0
    %8763 = vmatprep.mubr.f32.mxu0 0.0
    %8764 = vmatmul.mubr.f32.gmra.mrb[0].mxu0 %v8686
    %v8765 = vpop.f32.mrb[0].mxu0
    %v8766 = vadd.f32 0.0, %v8765
    %v8767 = vpop.f32.mrb[0].mxu0
    %8768 = vmatprep.mubr.f32.mxu0 0.0
    %8769 = vmatmul.mubr.f32.gmra.mrb[0].mxu0 %v8689
    %v8770 = vpop.f32.mrb[0].mxu0
    %v8771 = vadd.f32 0.0, %v8770
    %v8772 = vpop.f32.mrb[0].mxu0
    %8773 = vmatprep.mubr.f32.mxu0 0.0
    %8774 = vmatmul.mubr.f32.gmra.mrb[0].mxu0 %v8692
    %v8775 = vpop.f32.mrb[0].mxu0
    %v8776 = vadd.f32 0.0, %v8775
    %v8777 = vpop.f32.mrb[0].mxu0
    %8778 = vdwg.mxu0
    %8779 = vrot.lane.b32.xlu0 %v1140, 64
    %v8780 = vpop.permute.xlu0 %8779
    %8781 = vrot.lane.b32.xlu0 %v1145, 64
    %v8782 = vpop.permute.xlu0 %8781
    %8783 = vrot.lane.b32.xlu0 %v1150, 64
    %v8784 = vpop.permute.xlu0 %8783
    %8785 = vrot.lane.b32.xlu0 %v1155, 64
    %v8786 = vpop.permute.xlu0 %8785
    %v8792 = vsel %vm1310, %v6131, 0
    %v8795 = vsel %vm1310, %v6132, 0
    %v8798 = vsel %vm1310, %v6133, 0
    %v8801 = vsel %vm1310, %v6134, 0
    %8803 = vmatprep.subr.mxu0 0.0
    %8804 = vmatpush1.msra.mxu0 %v8780
    %8805 = vmatprep.subr.mxu0 0.0
    %8806 = vmatpush1.msra.mxu0 %v8782
    %8807 = vmatprep.subr.mxu0 0.0
    %8808 = vmatpush1.msra.mxu0 %v8784
    %8809 = vmatprep.subr.mxu0 0.0
    %8810 = vmatpush1.msra.mxu0 %v8786
    %8811 = vmatprep.subr.mxu0 0.0
    %8812 = vmatpush1.msra.mxu0 0.0
    %8813 = vmatprep.subr.mxu0 0.0
    %8814 = vmatpush1.msra.mxu0 0.0
    %8815 = vmatprep.subr.mxu0 0.0
    %8816 = vmatpush1.msra.mxu0 0.0
    %8817 = vmatprep.subr.mxu0 0.0
    %8818 = vmatpush1.msra.mxu0 0.0
    %8819 = vmatprep.subr.mxu0 0.0
    %8820 = vmatpush1.msra.mxu0 0.0
    %8821 = vmatprep.subr.mxu0 0.0
    %8822 = vmatpush1.msra.mxu0 0.0
    %8823 = vmatprep.subr.mxu0 0.0
    %8824 = vmatpush1.msra.mxu0 0.0
    %8825 = vmatprep.subr.mxu0 0.0
    %8826 = vmatpush1.msra.mxu0 0.0
    %8827 = vmatprep.subr.mxu0 0.0
    %8828 = vmatpush1.msra.mxu0 0.0
    %8829 = vmatprep.subr.mxu0 0.0
    %8830 = vmatpush1.msra.mxu0 0.0
    %8831 = vmatprep.subr.mxu0 0.0
    %8832 = vmatpush1.msra.mxu0 0.0
    %8833 = vmatprep.subr.mxu0 0.0
    %8834 = vmatpush1.msra.mxu0 0.0
    %8835 = vmatprep.subr.mxu0 0.0
    %8836 = vmatpush1.msra.mxu0 0.0
    %8837 = vmatprep.subr.mxu0 0.0
    %8838 = vmatpush1.msra.mxu0 0.0
    %8839 = vmatprep.subr.mxu0 0.0
    %8840 = vmatpush1.msra.mxu0 0.0
    %8841 = vmatprep.subr.mxu0 0.0
    %8842 = vmatpush1.msra.mxu0 0.0
    %8843 = vmatprep.subr.mxu0 0.0
    %8844 = vmatpush1.msra.mxu0 0.0
    %8845 = vmatprep.subr.mxu0 0.0
    %8846 = vmatpush1.msra.mxu0 0.0
    %8847 = vmatprep.subr.mxu0 0.0
    %8848 = vmatpush1.msra.mxu0 0.0
    %8849 = vmatprep.subr.mxu0 0.0
    %8850 = vmatpush1.msra.mxu0 0.0
    %8851 = vmatprep.subr.mxu0 0.0
    %8852 = vmatpush1.msra.mxu0 0.0
    %8853 = vmatprep.subr.mxu0 0.0
    %8854 = vmatpush1.msra.mxu0 0.0
    %8855 = vmatprep.subr.mxu0 0.0
    %8856 = vmatpush1.msra.mxu0 0.0
    %8857 = vmatprep.subr.mxu0 0.0
    %8858 = vmatpush1.msra.mxu0 0.0
    %8859 = vmatprep.subr.mxu0 0.0
    %8860 = vmatpush1.msra.mxu0 0.0
    %8861 = vmatprep.subr.mxu0 0.0
    %8862 = vmatpush1.msra.mxu0 0.0
    %8863 = vmatprep.subr.mxu0 0.0
    %8864 = vmatpush1.msra.mxu0 0.0
    %8865 = vmatprep.subr.mxu0 0.0
    %8866 = vmatpush1.msra.mxu0 0.0
    %8867 = vmatprep.mubr.f32.mxu0 0.0
    %8868 = vmatmul.mubr.f32.gmra.mrb[0].mxu0 %v8792
    %v8869 = vpop.f32.mrb[0].mxu0
    %v8870 = vadd.f32 0.0, %v8869
    %v8871 = vpop.f32.mrb[0].mxu0
    %8872 = vmatprep.mubr.f32.mxu0 0.0
    %8873 = vmatmul.mubr.f32.gmra.mrb[0].mxu0 %v8795
    %v8874 = vpop.f32.mrb[0].mxu0
    %v8875 = vadd.f32 0.0, %v8874
    %v8876 = vpop.f32.mrb[0].mxu0
    %8877 = vmatprep.mubr.f32.mxu0 0.0
    %8878 = vmatmul.mubr.f32.gmra.mrb[0].mxu0 %v8798
    %v8879 = vpop.f32.mrb[0].mxu0
    %v8880 = vadd.f32 0.0, %v8879
    %v8881 = vpop.f32.mrb[0].mxu0
    %8882 = vmatprep.mubr.f32.mxu0 0.0
    %8883 = vmatmul.mubr.f32.gmra.mrb[0].mxu0 %v8801
    %v8884 = vpop.f32.mrb[0].mxu0
    %v8885 = vadd.f32 0.0, %v8884
    %v8886 = vpop.f32.mrb[0].mxu0
    %8887 = vdwg.mxu0
    %8888 = vrot.lane.b32.xlu0 %v1160, 64
    %v8889 = vpop.permute.xlu0 %8888
    %8890 = vrot.lane.b32.xlu0 %v1165, 64
    %v8891 = vpop.permute.xlu0 %8890
    %8892 = vrot.lane.b32.xlu0 %v1170, 64
    %v8893 = vpop.permute.xlu0 %8892
    %8894 = vrot.lane.b32.xlu0 %v1175, 64
    %v8895 = vpop.permute.xlu0 %8894
    %v8901 = vsel %vm1310, %v6135, 0
    %v8904 = vsel %vm1310, %v6136, 0
    %v8907 = vsel %vm1310, %v6137, 0
    %v8910 = vsel %vm1310, %v6138, 0
    %8912 = vmatprep.subr.mxu0 0.0
    %8913 = vmatpush1.msra.mxu0 %v8889
    %8914 = vmatprep.subr.mxu0 0.0
    %8915 = vmatpush1.msra.mxu0 %v8891
    %8916 = vmatprep.subr.mxu0 0.0
    %8917 = vmatpush1.msra.mxu0 %v8893
    %8918 = vmatprep.subr.mxu0 0.0
    %8919 = vmatpush1.msra.mxu0 %v8895
    %8920 = vmatprep.subr.mxu0 0.0
    %8921 = vmatpush1.msra.mxu0 0.0
    %8922 = vmatprep.subr.mxu0 0.0
    %8923 = vmatpush1.msra.mxu0 0.0
    %8924 = vmatprep.subr.mxu0 0.0
    %8925 = vmatpush1.msra.mxu0 0.0
    %8926 = vmatprep.subr.mxu0 0.0
    %8927 = vmatpush1.msra.mxu0 0.0
    %8928 = vmatprep.subr.mxu0 0.0
    %8929 = vmatpush1.msra.mxu0 0.0
    %8930 = vmatprep.subr.mxu0 0.0
    %8931 = vmatpush1.msra.mxu0 0.0
    %8932 = vmatprep.subr.mxu0 0.0
    %8933 = vmatpush1.msra.mxu0 0.0
    %8934 = vmatprep.subr.mxu0 0.0
    %8935 = vmatpush1.msra.mxu0 0.0
    %8936 = vmatprep.subr.mxu0 0.0
    %8937 = vmatpush1.msra.mxu0 0.0
    %8938 = vmatprep.subr.mxu0 0.0
    %8939 = vmatpush1.msra.mxu0 0.0
    %8940 = vmatprep.subr.mxu0 0.0
    %8941 = vmatpush1.msra.mxu0 0.0
    %8942 = vmatprep.subr.mxu0 0.0
    %8943 = vmatpush1.msra.mxu0 0.0
    %8944 = vmatprep.subr.mxu0 0.0
    %8945 = vmatpush1.msra.mxu0 0.0
    %8946 = vmatprep.subr.mxu0 0.0
    %8947 = vmatpush1.msra.mxu0 0.0
    %8948 = vmatprep.subr.mxu0 0.0
    %8949 = vmatpush1.msra.mxu0 0.0
    %8950 = vmatprep.subr.mxu0 0.0
    %8951 = vmatpush1.msra.mxu0 0.0
    %8952 = vmatprep.subr.mxu0 0.0
    %8953 = vmatpush1.msra.mxu0 0.0
    %8954 = vmatprep.subr.mxu0 0.0
    %8955 = vmatpush1.msra.mxu0 0.0
    %8956 = vmatprep.subr.mxu0 0.0
    %8957 = vmatpush1.msra.mxu0 0.0
    %8958 = vmatprep.subr.mxu0 0.0
    %8959 = vmatpush1.msra.mxu0 0.0
    %8960 = vmatprep.subr.mxu0 0.0
    %8961 = vmatpush1.msra.mxu0 0.0
    %8962 = vmatprep.subr.mxu0 0.0
    %8963 = vmatpush1.msra.mxu0 0.0
    %8964 = vmatprep.subr.mxu0 0.0
    %8965 = vmatpush1.msra.mxu0 0.0
    %8966 = vmatprep.subr.mxu0 0.0
    %8967 = vmatpush1.msra.mxu0 0.0
    %8968 = vmatprep.subr.mxu0 0.0
    %8969 = vmatpush1.msra.mxu0 0.0
    %8970 = vmatprep.subr.mxu0 0.0
    %8971 = vmatpush1.msra.mxu0 0.0
    %8972 = vmatprep.subr.mxu0 0.0
    %8973 = vmatpush1.msra.mxu0 0.0
    %8974 = vmatprep.subr.mxu0 0.0
    %8975 = vmatpush1.msra.mxu0 0.0
    %8976 = vmatprep.mubr.f32.mxu0 0.0
    %8977 = vmatmul.mubr.f32.gmra.mrb[0].mxu0 %v8901
    %v8978 = vpop.f32.mrb[0].mxu0
    %v8979 = vadd.f32 0.0, %v8978
    %v8980 = vpop.f32.mrb[0].mxu0
    %8981 = vmatprep.mubr.f32.mxu0 0.0
    %8982 = vmatmul.mubr.f32.gmra.mrb[0].mxu0 %v8904
    %v8983 = vpop.f32.mrb[0].mxu0
    %v8984 = vadd.f32 0.0, %v8983
    %v8985 = vpop.f32.mrb[0].mxu0
    %8986 = vmatprep.mubr.f32.mxu0 0.0
    %8987 = vmatmul.mubr.f32.gmra.mrb[0].mxu0 %v8907
    %v8988 = vpop.f32.mrb[0].mxu0
    %v8989 = vadd.f32 0.0, %v8988
    %v8990 = vpop.f32.mrb[0].mxu0
    %8991 = vmatprep.mubr.f32.mxu0 0.0
    %8992 = vmatmul.mubr.f32.gmra.mrb[0].mxu0 %v8910
    %v8993 = vpop.f32.mrb[0].mxu0
    %v8994 = vadd.f32 0.0, %v8993
    %v8995 = vpop.f32.mrb[0].mxu0
    %8996 = vdwg.mxu0
    %8997 = vrot.lane.b32.xlu0 %v1180, 64
    %v8998 = vpop.permute.xlu0 %8997
    %8999 = vrot.lane.b32.xlu0 %v1185, 64
    %v9000 = vpop.permute.xlu0 %8999
    %9001 = vrot.lane.b32.xlu0 %v1190, 64
    %v9002 = vpop.permute.xlu0 %9001
    %9003 = vrot.lane.b32.xlu0 %v1195, 64
    %v9004 = vpop.permute.xlu0 %9003
    %v9010 = vsel %vm1310, %v6139, 0
    %v9013 = vsel %vm1310, %v6140, 0
    %v9016 = vsel %vm1310, %v6141, 0
    %v9019 = vsel %vm1310, %v6142, 0
    %9021 = vmatprep.subr.mxu0 0.0
    %9022 = vmatpush1.msra.mxu0 %v8998
    %9023 = vmatprep.subr.mxu0 0.0
    %9024 = vmatpush1.msra.mxu0 %v9000
    %9025 = vmatprep.subr.mxu0 0.0
    %9026 = vmatpush1.msra.mxu0 %v9002
    %9027 = vmatprep.subr.mxu0 0.0
    %9028 = vmatpush1.msra.mxu0 %v9004
    %9029 = vmatprep.subr.mxu0 0.0
    %9030 = vmatpush1.msra.mxu0 0.0
    %9031 = vmatprep.subr.mxu0 0.0
    %9032 = vmatpush1.msra.mxu0 0.0
    %9033 = vmatprep.subr.mxu0 0.0
    %9034 = vmatpush1.msra.mxu0 0.0
    %9035 = vmatprep.subr.mxu0 0.0
    %9036 = vmatpush1.msra.mxu0 0.0
    %9037 = vmatprep.subr.mxu0 0.0
    %9038 = vmatpush1.msra.mxu0 0.0
    %9039 = vmatprep.subr.mxu0 0.0
    %9040 = vmatpush1.msra.mxu0 0.0
    %9041 = vmatprep.subr.mxu0 0.0
    %9042 = vmatpush1.msra.mxu0 0.0
    %9043 = vmatprep.subr.mxu0 0.0
    %9044 = vmatpush1.msra.mxu0 0.0
    %9045 = vmatprep.subr.mxu0 0.0
    %9046 = vmatpush1.msra.mxu0 0.0
    %9047 = vmatprep.subr.mxu0 0.0
    %9048 = vmatpush1.msra.mxu0 0.0
    %9049 = vmatprep.subr.mxu0 0.0
    %9050 = vmatpush1.msra.mxu0 0.0
    %9051 = vmatprep.subr.mxu0 0.0
    %9052 = vmatpush1.msra.mxu0 0.0
    %9053 = vmatprep.subr.mxu0 0.0
    %9054 = vmatpush1.msra.mxu0 0.0
    %9055 = vmatprep.subr.mxu0 0.0
    %9056 = vmatpush1.msra.mxu0 0.0
    %9057 = vmatprep.subr.mxu0 0.0
    %9058 = vmatpush1.msra.mxu0 0.0
    %9059 = vmatprep.subr.mxu0 0.0
    %9060 = vmatpush1.msra.mxu0 0.0
    %9061 = vmatprep.subr.mxu0 0.0
    %9062 = vmatpush1.msra.mxu0 0.0
    %9063 = vmatprep.subr.mxu0 0.0
    %9064 = vmatpush1.msra.mxu0 0.0
    %9065 = vmatprep.subr.mxu0 0.0
    %9066 = vmatpush1.msra.mxu0 0.0
    %9067 = vmatprep.subr.mxu0 0.0
    %9068 = vmatpush1.msra.mxu0 0.0
    %9069 = vmatprep.subr.mxu0 0.0
    %9070 = vmatpush1.msra.mxu0 0.0
    %9071 = vmatprep.subr.mxu0 0.0
    %9072 = vmatpush1.msra.mxu0 0.0
    %9073 = vmatprep.subr.mxu0 0.0
    %9074 = vmatpush1.msra.mxu0 0.0
    %9075 = vmatprep.subr.mxu0 0.0
    %9076 = vmatpush1.msra.mxu0 0.0
    %9077 = vmatprep.subr.mxu0 0.0
    %9078 = vmatpush1.msra.mxu0 0.0
    %9079 = vmatprep.subr.mxu0 0.0
    %9080 = vmatpush1.msra.mxu0 0.0
    %9081 = vmatprep.subr.mxu0 0.0
    %9082 = vmatpush1.msra.mxu0 0.0
    %9083 = vmatprep.subr.mxu0 0.0
    %9084 = vmatpush1.msra.mxu0 0.0
    %9085 = vmatprep.mubr.f32.mxu0 0.0
    %9086 = vmatmul.mubr.f32.gmra.mrb[0].mxu0 %v9010
    %v9087 = vpop.f32.mrb[0].mxu0
    %v9088 = vadd.f32 0.0, %v9087
    %v9089 = vpop.f32.mrb[0].mxu0
    %9090 = vmatprep.mubr.f32.mxu0 0.0
    %9091 = vmatmul.mubr.f32.gmra.mrb[0].mxu0 %v9013
    %v9092 = vpop.f32.mrb[0].mxu0
    %v9093 = vadd.f32 0.0, %v9092
    %v9094 = vpop.f32.mrb[0].mxu0
    %9095 = vmatprep.mubr.f32.mxu0 0.0
    %9096 = vmatmul.mubr.f32.gmra.mrb[0].mxu0 %v9016
    %v9097 = vpop.f32.mrb[0].mxu0
    %v9098 = vadd.f32 0.0, %v9097
    %v9099 = vpop.f32.mrb[0].mxu0
    %9100 = vmatprep.mubr.f32.mxu0 0.0
    %9101 = vmatmul.mubr.f32.gmra.mrb[0].mxu0 %v9019
    %v9102 = vpop.f32.mrb[0].mxu0
    %v9103 = vadd.f32 0.0, %v9102
    %v9104 = vpop.f32.mrb[0].mxu0
    %9105 = vdwg.mxu0
    %9106 = vrot.lane.b32.xlu0 %v1200, 64
    %v9107 = vpop.permute.xlu0 %9106
    %9108 = vrot.lane.b32.xlu0 %v1205, 64
    %v9109 = vpop.permute.xlu0 %9108
    %9110 = vrot.lane.b32.xlu0 %v1210, 64
    %v9111 = vpop.permute.xlu0 %9110
    %9112 = vrot.lane.b32.xlu0 %v1215, 64
    %v9113 = vpop.permute.xlu0 %9112
    %v9119 = vsel %vm1310, %v6143, 0
    %v9122 = vsel %vm1310, %v6144, 0
    %v9125 = vsel %vm1310, %v6145, 0
    %v9128 = vsel %vm1310, %v6146, 0
    %9130 = vmatprep.subr.mxu0 0.0
    %9131 = vmatpush1.msra.mxu0 %v9107
    %9132 = vmatprep.subr.mxu0 0.0
    %9133 = vmatpush1.msra.mxu0 %v9109
    %9134 = vmatprep.subr.mxu0 0.0
    %9135 = vmatpush1.msra.mxu0 %v9111
    %9136 = vmatprep.subr.mxu0 0.0
    %9137 = vmatpush1.msra.mxu0 %v9113
    %9138 = vmatprep.subr.mxu0 0.0
    %9139 = vmatpush1.msra.mxu0 0.0
    %9140 = vmatprep.subr.mxu0 0.0
    %9141 = vmatpush1.msra.mxu0 0.0
    %9142 = vmatprep.subr.mxu0 0.0
    %9143 = vmatpush1.msra.mxu0 0.0
    %9144 = vmatprep.subr.mxu0 0.0
    %9145 = vmatpush1.msra.mxu0 0.0
    %9146 = vmatprep.subr.mxu0 0.0
    %9147 = vmatpush1.msra.mxu0 0.0
    %9148 = vmatprep.subr.mxu0 0.0
    %9149 = vmatpush1.msra.mxu0 0.0
    %9150 = vmatprep.subr.mxu0 0.0
    %9151 = vmatpush1.msra.mxu0 0.0
    %9152 = vmatprep.subr.mxu0 0.0
    %9153 = vmatpush1.msra.mxu0 0.0
    %9154 = vmatprep.subr.mxu0 0.0
    %9155 = vmatpush1.msra.mxu0 0.0
    %9156 = vmatprep.subr.mxu0 0.0
    %9157 = vmatpush1.msra.mxu0 0.0
    %9158 = vmatprep.subr.mxu0 0.0
    %9159 = vmatpush1.msra.mxu0 0.0
    %9160 = vmatprep.subr.mxu0 0.0
    %9161 = vmatpush1.msra.mxu0 0.0
    %9162 = vmatprep.subr.mxu0 0.0
    %9163 = vmatpush1.msra.mxu0 0.0
    %9164 = vmatprep.subr.mxu0 0.0
    %9165 = vmatpush1.msra.mxu0 0.0
    %9166 = vmatprep.subr.mxu0 0.0
    %9167 = vmatpush1.msra.mxu0 0.0
    %9168 = vmatprep.subr.mxu0 0.0
    %9169 = vmatpush1.msra.mxu0 0.0
    %9170 = vmatprep.subr.mxu0 0.0
    %9171 = vmatpush1.msra.mxu0 0.0
    %9172 = vmatprep.subr.mxu0 0.0
    %9173 = vmatpush1.msra.mxu0 0.0
    %9174 = vmatprep.subr.mxu0 0.0
    %9175 = vmatpush1.msra.mxu0 0.0
    %9176 = vmatprep.subr.mxu0 0.0
    %9177 = vmatpush1.msra.mxu0 0.0
    %9178 = vmatprep.subr.mxu0 0.0
    %9179 = vmatpush1.msra.mxu0 0.0
    %9180 = vmatprep.subr.mxu0 0.0
    %9181 = vmatpush1.msra.mxu0 0.0
    %9182 = vmatprep.subr.mxu0 0.0
    %9183 = vmatpush1.msra.mxu0 0.0
    %9184 = vmatprep.subr.mxu0 0.0
    %9185 = vmatpush1.msra.mxu0 0.0
    %9186 = vmatprep.subr.mxu0 0.0
    %9187 = vmatpush1.msra.mxu0 0.0
    %9188 = vmatprep.subr.mxu0 0.0
    %9189 = vmatpush1.msra.mxu0 0.0
    %9190 = vmatprep.subr.mxu0 0.0
    %9191 = vmatpush1.msra.mxu0 0.0
    %9192 = vmatprep.subr.mxu0 0.0
    %9193 = vmatpush1.msra.mxu0 0.0
    %9194 = vmatprep.mubr.f32.mxu0 0.0
    %9195 = vmatmul.mubr.f32.gmra.mrb[0].mxu0 %v9119
    %v9196 = vpop.f32.mrb[0].mxu0
    %v9197 = vadd.f32 0.0, %v9196
    %v9198 = vpop.f32.mrb[0].mxu0
    %9199 = vmatprep.mubr.f32.mxu0 0.0
    %9200 = vmatmul.mubr.f32.gmra.mrb[0].mxu0 %v9122
    %v9201 = vpop.f32.mrb[0].mxu0
    %v9202 = vadd.f32 0.0, %v9201
    %v9203 = vpop.f32.mrb[0].mxu0
    %9204 = vmatprep.mubr.f32.mxu0 0.0
    %9205 = vmatmul.mubr.f32.gmra.mrb[0].mxu0 %v9125
    %v9206 = vpop.f32.mrb[0].mxu0
    %v9207 = vadd.f32 0.0, %v9206
    %v9208 = vpop.f32.mrb[0].mxu0
    %9209 = vmatprep.mubr.f32.mxu0 0.0
    %9210 = vmatmul.mubr.f32.gmra.mrb[0].mxu0 %v9128
    %v9211 = vpop.f32.mrb[0].mxu0
    %v9212 = vadd.f32 0.0, %v9211
    %v9213 = vpop.f32.mrb[0].mxu0
    %9214 = vdwg.mxu0
    %9215 = vrot.lane.b32.xlu0 %v1220, 64
    %v9216 = vpop.permute.xlu0 %9215
    %9217 = vrot.lane.b32.xlu0 %v1225, 64
    %v9218 = vpop.permute.xlu0 %9217
    %9219 = vrot.lane.b32.xlu0 %v1230, 64
    %v9220 = vpop.permute.xlu0 %9219
    %9221 = vrot.lane.b32.xlu0 %v1235, 64
    %v9222 = vpop.permute.xlu0 %9221
    %v9228 = vsel %vm1310, %v6147, 0
    %v9231 = vsel %vm1310, %v6148, 0
    %v9234 = vsel %vm1310, %v6149, 0
    %v9237 = vsel %vm1310, %v6150, 0
    %9239 = vmatprep.subr.mxu0 0.0
    %9240 = vmatpush1.msra.mxu0 %v9216
    %9241 = vmatprep.subr.mxu0 0.0
    %9242 = vmatpush1.msra.mxu0 %v9218
    %9243 = vmatprep.subr.mxu0 0.0
    %9244 = vmatpush1.msra.mxu0 %v9220
    %9245 = vmatprep.subr.mxu0 0.0
    %9246 = vmatpush1.msra.mxu0 %v9222
    %9247 = vmatprep.subr.mxu0 0.0
    %9248 = vmatpush1.msra.mxu0 0.0
    %9249 = vmatprep.subr.mxu0 0.0
    %9250 = vmatpush1.msra.mxu0 0.0
    %9251 = vmatprep.subr.mxu0 0.0
    %9252 = vmatpush1.msra.mxu0 0.0
    %9253 = vmatprep.subr.mxu0 0.0
    %9254 = vmatpush1.msra.mxu0 0.0
    %9255 = vmatprep.subr.mxu0 0.0
    %9256 = vmatpush1.msra.mxu0 0.0
    %9257 = vmatprep.subr.mxu0 0.0
    %9258 = vmatpush1.msra.mxu0 0.0
    %9259 = vmatprep.subr.mxu0 0.0
    %9260 = vmatpush1.msra.mxu0 0.0
    %9261 = vmatprep.subr.mxu0 0.0
    %9262 = vmatpush1.msra.mxu0 0.0
    %9263 = vmatprep.subr.mxu0 0.0
    %9264 = vmatpush1.msra.mxu0 0.0
    %9265 = vmatprep.subr.mxu0 0.0
    %9266 = vmatpush1.msra.mxu0 0.0
    %9267 = vmatprep.subr.mxu0 0.0
    %9268 = vmatpush1.msra.mxu0 0.0
    %9269 = vmatprep.subr.mxu0 0.0
    %9270 = vmatpush1.msra.mxu0 0.0
    %9271 = vmatprep.subr.mxu0 0.0
    %9272 = vmatpush1.msra.mxu0 0.0
    %9273 = vmatprep.subr.mxu0 0.0
    %9274 = vmatpush1.msra.mxu0 0.0
    %9275 = vmatprep.subr.mxu0 0.0
    %9276 = vmatpush1.msra.mxu0 0.0
    %9277 = vmatprep.subr.mxu0 0.0
    %9278 = vmatpush1.msra.mxu0 0.0
    %9279 = vmatprep.subr.mxu0 0.0
    %9280 = vmatpush1.msra.mxu0 0.0
    %9281 = vmatprep.subr.mxu0 0.0
    %9282 = vmatpush1.msra.mxu0 0.0
    %9283 = vmatprep.subr.mxu0 0.0
    %9284 = vmatpush1.msra.mxu0 0.0
    %9285 = vmatprep.subr.mxu0 0.0
    %9286 = vmatpush1.msra.mxu0 0.0
    %9287 = vmatprep.subr.mxu0 0.0
    %9288 = vmatpush1.msra.mxu0 0.0
    %9289 = vmatprep.subr.mxu0 0.0
    %9290 = vmatpush1.msra.mxu0 0.0
    %9291 = vmatprep.subr.mxu0 0.0
    %9292 = vmatpush1.msra.mxu0 0.0
    %9293 = vmatprep.subr.mxu0 0.0
    %9294 = vmatpush1.msra.mxu0 0.0
    %9295 = vmatprep.subr.mxu0 0.0
    %9296 = vmatpush1.msra.mxu0 0.0
    %9297 = vmatprep.subr.mxu0 0.0
    %9298 = vmatpush1.msra.mxu0 0.0
    %9299 = vmatprep.subr.mxu0 0.0
    %9300 = vmatpush1.msra.mxu0 0.0
    %9301 = vmatprep.subr.mxu0 0.0
    %9302 = vmatpush1.msra.mxu0 0.0
    %9303 = vmatprep.mubr.f32.mxu0 0.0
    %9304 = vmatmul.mubr.f32.gmra.mrb[0].mxu0 %v9228
    %v9305 = vpop.f32.mrb[0].mxu0
    %v9306 = vadd.f32 0.0, %v9305
    %v9307 = vpop.f32.mrb[0].mxu0
    %9308 = vmatprep.mubr.f32.mxu0 0.0
    %9309 = vmatmul.mubr.f32.gmra.mrb[0].mxu0 %v9231
    %v9310 = vpop.f32.mrb[0].mxu0
    %v9311 = vadd.f32 0.0, %v9310
    %v9312 = vpop.f32.mrb[0].mxu0
    %9313 = vmatprep.mubr.f32.mxu0 0.0
    %9314 = vmatmul.mubr.f32.gmra.mrb[0].mxu0 %v9234
    %v9315 = vpop.f32.mrb[0].mxu0
    %v9316 = vadd.f32 0.0, %v9315
    %v9317 = vpop.f32.mrb[0].mxu0
    %9318 = vmatprep.mubr.f32.mxu0 0.0
    %9319 = vmatmul.mubr.f32.gmra.mrb[0].mxu0 %v9237
    %v9320 = vpop.f32.mrb[0].mxu0
    %v9321 = vadd.f32 0.0, %v9320
    %v9322 = vpop.f32.mrb[0].mxu0
    %9323 = vdwg.mxu0
    %9324 = vrot.lane.b32.xlu0 %v1240, 64
    %v9325 = vpop.permute.xlu0 %9324
    %9326 = vrot.lane.b32.xlu0 %v1245, 64
    %v9327 = vpop.permute.xlu0 %9326
    %9328 = vrot.lane.b32.xlu0 %v1250, 64
    %v9329 = vpop.permute.xlu0 %9328
    %9330 = vrot.lane.b32.xlu0 %v1255, 64
    %v9331 = vpop.permute.xlu0 %9330
    %v9337 = vsel %vm1310, %v6151, 0
    %v9340 = vsel %vm1310, %v6152, 0
    %v9343 = vsel %vm1310, %v6153, 0
    %v9346 = vsel %vm1310, %v6154, 0
    %9348 = vmatprep.subr.mxu0 0.0
    %9349 = vmatpush1.msra.mxu0 %v9325
    %9350 = vmatprep.subr.mxu0 0.0
    %9351 = vmatpush1.msra.mxu0 %v9327
    %9352 = vmatprep.subr.mxu0 0.0
    %9353 = vmatpush1.msra.mxu0 %v9329
    %9354 = vmatprep.subr.mxu0 0.0
    %9355 = vmatpush1.msra.mxu0 %v9331
    %9356 = vmatprep.subr.mxu0 0.0
    %9357 = vmatpush1.msra.mxu0 0.0
    %9358 = vmatprep.subr.mxu0 0.0
    %9359 = vmatpush1.msra.mxu0 0.0
    %9360 = vmatprep.subr.mxu0 0.0
    %9361 = vmatpush1.msra.mxu0 0.0
    %9362 = vmatprep.subr.mxu0 0.0
    %9363 = vmatpush1.msra.mxu0 0.0
    %9364 = vmatprep.subr.mxu0 0.0
    %9365 = vmatpush1.msra.mxu0 0.0
    %9366 = vmatprep.subr.mxu0 0.0
    %9367 = vmatpush1.msra.mxu0 0.0
    %9368 = vmatprep.subr.mxu0 0.0
    %9369 = vmatpush1.msra.mxu0 0.0
    %9370 = vmatprep.subr.mxu0 0.0
    %9371 = vmatpush1.msra.mxu0 0.0
    %9372 = vmatprep.subr.mxu0 0.0
    %9373 = vmatpush1.msra.mxu0 0.0
    %9374 = vmatprep.subr.mxu0 0.0
    %9375 = vmatpush1.msra.mxu0 0.0
    %9376 = vmatprep.subr.mxu0 0.0
    %9377 = vmatpush1.msra.mxu0 0.0
    %9378 = vmatprep.subr.mxu0 0.0
    %9379 = vmatpush1.msra.mxu0 0.0
    %9380 = vmatprep.subr.mxu0 0.0
    %9381 = vmatpush1.msra.mxu0 0.0
    %9382 = vmatprep.subr.mxu0 0.0
    %9383 = vmatpush1.msra.mxu0 0.0
    %9384 = vmatprep.subr.mxu0 0.0
    %9385 = vmatpush1.msra.mxu0 0.0
    %9386 = vmatprep.subr.mxu0 0.0
    %9387 = vmatpush1.msra.mxu0 0.0
    %9388 = vmatprep.subr.mxu0 0.0
    %9389 = vmatpush1.msra.mxu0 0.0
    %9390 = vmatprep.subr.mxu0 0.0
    %9391 = vmatpush1.msra.mxu0 0.0
    %9392 = vmatprep.subr.mxu0 0.0
    %9393 = vmatpush1.msra.mxu0 0.0
    %9394 = vmatprep.subr.mxu0 0.0
    %9395 = vmatpush1.msra.mxu0 0.0
    %9396 = vmatprep.subr.mxu0 0.0
    %9397 = vmatpush1.msra.mxu0 0.0
    %9398 = vmatprep.subr.mxu0 0.0
    %9399 = vmatpush1.msra.mxu0 0.0
    %9400 = vmatprep.subr.mxu0 0.0
    %9401 = vmatpush1.msra.mxu0 0.0
    %9402 = vmatprep.subr.mxu0 0.0
    %9403 = vmatpush1.msra.mxu0 0.0
    %9404 = vmatprep.subr.mxu0 0.0
    %9405 = vmatpush1.msra.mxu0 0.0
    %9406 = vmatprep.subr.mxu0 0.0
    %9407 = vmatpush1.msra.mxu0 0.0
    %9408 = vmatprep.subr.mxu0 0.0
    %9409 = vmatpush1.msra.mxu0 0.0
    %9410 = vmatprep.subr.mxu0 0.0
    %9411 = vmatpush1.msra.mxu0 0.0
    %9412 = vmatprep.mubr.f32.mxu0 0.0
    %9413 = vmatmul.mubr.f32.gmra.mrb[0].mxu0 %v9337
    %v9414 = vpop.f32.mrb[0].mxu0
    %v9415 = vadd.f32 0.0, %v9414
    %v9416 = vpop.f32.mrb[0].mxu0
    %9417 = vmatprep.mubr.f32.mxu0 0.0
    %9418 = vmatmul.mubr.f32.gmra.mrb[0].mxu0 %v9340
    %v9419 = vpop.f32.mrb[0].mxu0
    %v9420 = vadd.f32 0.0, %v9419
    %v9421 = vpop.f32.mrb[0].mxu0
    %9422 = vmatprep.mubr.f32.mxu0 0.0
    %9423 = vmatmul.mubr.f32.gmra.mrb[0].mxu0 %v9343
    %v9424 = vpop.f32.mrb[0].mxu0
    %v9425 = vadd.f32 0.0, %v9424
    %v9426 = vpop.f32.mrb[0].mxu0
    %9427 = vmatprep.mubr.f32.mxu0 0.0
    %9428 = vmatmul.mubr.f32.gmra.mrb[0].mxu0 %v9346
    %v9429 = vpop.f32.mrb[0].mxu0
    %v9430 = vadd.f32 0.0, %v9429
    %v9431 = vpop.f32.mrb[0].mxu0
    %9432 = vdwg.mxu0
    %9433 = vrot.lane.b32.xlu0 %v1260, 64
    %v9434 = vpop.permute.xlu0 %9433
    %9435 = vrot.lane.b32.xlu0 %v1265, 64
    %v9436 = vpop.permute.xlu0 %9435
    %9437 = vrot.lane.b32.xlu0 %v1270, 64
    %v9438 = vpop.permute.xlu0 %9437
    %9439 = vrot.lane.b32.xlu0 %v1275, 64
    %v9440 = vpop.permute.xlu0 %9439
    %v9446 = vsel %vm1310, %v6155, 0
    %v9449 = vsel %vm1310, %v6156, 0
    %v9452 = vsel %vm1310, %v6157, 0
    %v9455 = vsel %vm1310, %v6158, 0
    %9457 = vmatprep.subr.mxu0 0.0
    %9458 = vmatpush1.msra.mxu0 %v9434
    %9459 = vmatprep.subr.mxu0 0.0
    %9460 = vmatpush1.msra.mxu0 %v9436
    %9461 = vmatprep.subr.mxu0 0.0
    %9462 = vmatpush1.msra.mxu0 %v9438
    %9463 = vmatprep.subr.mxu0 0.0
    %9464 = vmatpush1.msra.mxu0 %v9440
    %9465 = vmatprep.subr.mxu0 0.0
    %9466 = vmatpush1.msra.mxu0 0.0
    %9467 = vmatprep.subr.mxu0 0.0
    %9468 = vmatpush1.msra.mxu0 0.0
    %9469 = vmatprep.subr.mxu0 0.0
    %9470 = vmatpush1.msra.mxu0 0.0
    %9471 = vmatprep.subr.mxu0 0.0
    %9472 = vmatpush1.msra.mxu0 0.0
    %9473 = vmatprep.subr.mxu0 0.0
    %9474 = vmatpush1.msra.mxu0 0.0
    %9475 = vmatprep.subr.mxu0 0.0
    %9476 = vmatpush1.msra.mxu0 0.0
    %9477 = vmatprep.subr.mxu0 0.0
    %9478 = vmatpush1.msra.mxu0 0.0
    %9479 = vmatprep.subr.mxu0 0.0
    %9480 = vmatpush1.msra.mxu0 0.0
    %9481 = vmatprep.subr.mxu0 0.0
    %9482 = vmatpush1.msra.mxu0 0.0
    %9483 = vmatprep.subr.mxu0 0.0
    %9484 = vmatpush1.msra.mxu0 0.0
    %9485 = vmatprep.subr.mxu0 0.0
    %9486 = vmatpush1.msra.mxu0 0.0
    %9487 = vmatprep.subr.mxu0 0.0
    %9488 = vmatpush1.msra.mxu0 0.0
    %9489 = vmatprep.subr.mxu0 0.0
    %9490 = vmatpush1.msra.mxu0 0.0
    %9491 = vmatprep.subr.mxu0 0.0
    %9492 = vmatpush1.msra.mxu0 0.0
    %9493 = vmatprep.subr.mxu0 0.0
    %9494 = vmatpush1.msra.mxu0 0.0
    %9495 = vmatprep.subr.mxu0 0.0
    %9496 = vmatpush1.msra.mxu0 0.0
    %9497 = vmatprep.subr.mxu0 0.0
    %9498 = vmatpush1.msra.mxu0 0.0
    %9499 = vmatprep.subr.mxu0 0.0
    %9500 = vmatpush1.msra.mxu0 0.0
    %9501 = vmatprep.subr.mxu0 0.0
    %9502 = vmatpush1.msra.mxu0 0.0
    %9503 = vmatprep.subr.mxu0 0.0
    %9504 = vmatpush1.msra.mxu0 0.0
    %9505 = vmatprep.subr.mxu0 0.0
    %9506 = vmatpush1.msra.mxu0 0.0
    %9507 = vmatprep.subr.mxu0 0.0
    %9508 = vmatpush1.msra.mxu0 0.0
    %9509 = vmatprep.subr.mxu0 0.0
    %9510 = vmatpush1.msra.mxu0 0.0
    %9511 = vmatprep.subr.mxu0 0.0
    %9512 = vmatpush1.msra.mxu0 0.0
    %9513 = vmatprep.subr.mxu0 0.0
    %9514 = vmatpush1.msra.mxu0 0.0
    %9515 = vmatprep.subr.mxu0 0.0
    %9516 = vmatpush1.msra.mxu0 0.0
    %9517 = vmatprep.subr.mxu0 0.0
    %9518 = vmatpush1.msra.mxu0 0.0
    %9519 = vmatprep.subr.mxu0 0.0
    %9520 = vmatpush1.msra.mxu0 0.0
    %9521 = vmatprep.mubr.f32.mxu0 0.0
    %9522 = vmatmul.mubr.f32.gmra.mrb[0].mxu0 %v9446
    %v9523 = vpop.f32.mrb[0].mxu0
    %v9524 = vadd.f32 0.0, %v9523
    %v9525 = vpop.f32.mrb[0].mxu0
    %9526 = vmatprep.mubr.f32.mxu0 0.0
    %9527 = vmatmul.mubr.f32.gmra.mrb[0].mxu0 %v9449
    %v9528 = vpop.f32.mrb[0].mxu0
    %v9529 = vadd.f32 0.0, %v9528
    %v9530 = vpop.f32.mrb[0].mxu0
    %9531 = vmatprep.mubr.f32.mxu0 0.0
    %9532 = vmatmul.mubr.f32.gmra.mrb[0].mxu0 %v9452
    %v9533 = vpop.f32.mrb[0].mxu0
    %v9534 = vadd.f32 0.0, %v9533
    %v9535 = vpop.f32.mrb[0].mxu0
    %9536 = vmatprep.mubr.f32.mxu0 0.0
    %9537 = vmatmul.mubr.f32.gmra.mrb[0].mxu0 %v9455
    %v9538 = vpop.f32.mrb[0].mxu0
    %v9539 = vadd.f32 0.0, %v9538
    %v9540 = vpop.f32.mrb[0].mxu0
    %9541 = vdwg.mxu0
    %9542 = vrot.lane.b32.xlu0 %v1280, 64
    %v9543 = vpop.permute.xlu0 %9542
    %9544 = vrot.lane.b32.xlu0 %v1285, 64
    %v9545 = vpop.permute.xlu0 %9544
    %9546 = vrot.lane.b32.xlu0 %v1290, 64
    %v9547 = vpop.permute.xlu0 %9546
    %9548 = vrot.lane.b32.xlu0 %v1295, 64
    %v9549 = vpop.permute.xlu0 %9548
    %v9555 = vsel %vm1310, %v6159, 0
    %v9558 = vsel %vm1310, %v6160, 0
    %v9561 = vsel %vm1310, %v6161, 0
    %v9564 = vsel %vm1310, %v6162, 0
    %9566 = vmatprep.subr.mxu0 0.0
    %9567 = vmatpush1.msra.mxu0 %v9543
    %9568 = vmatprep.subr.mxu0 0.0
    %9569 = vmatpush1.msra.mxu0 %v9545
    %9570 = vmatprep.subr.mxu0 0.0
    %9571 = vmatpush1.msra.mxu0 %v9547
    %9572 = vmatprep.subr.mxu0 0.0
    %9573 = vmatpush1.msra.mxu0 %v9549
    %9574 = vmatprep.subr.mxu0 0.0
    %9575 = vmatpush1.msra.mxu0 0.0
    %9576 = vmatprep.subr.mxu0 0.0
    %9577 = vmatpush1.msra.mxu0 0.0
    %9578 = vmatprep.subr.mxu0 0.0
    %9579 = vmatpush1.msra.mxu0 0.0
    %9580 = vmatprep.subr.mxu0 0.0
    %9581 = vmatpush1.msra.mxu0 0.0
    %9582 = vmatprep.subr.mxu0 0.0
    %9583 = vmatpush1.msra.mxu0 0.0
    %9584 = vmatprep.subr.mxu0 0.0
    %9585 = vmatpush1.msra.mxu0 0.0
    %9586 = vmatprep.subr.mxu0 0.0
    %9587 = vmatpush1.msra.mxu0 0.0
    %9588 = vmatprep.subr.mxu0 0.0
    %9589 = vmatpush1.msra.mxu0 0.0
    %9590 = vmatprep.subr.mxu0 0.0
    %9591 = vmatpush1.msra.mxu0 0.0
    %9592 = vmatprep.subr.mxu0 0.0
    %9593 = vmatpush1.msra.mxu0 0.0
    %9594 = vmatprep.subr.mxu0 0.0
    %9595 = vmatpush1.msra.mxu0 0.0
    %9596 = vmatprep.subr.mxu0 0.0
    %9597 = vmatpush1.msra.mxu0 0.0
    %9598 = vmatprep.subr.mxu0 0.0
    %9599 = vmatpush1.msra.mxu0 0.0
    %9600 = vmatprep.subr.mxu0 0.0
    %9601 = vmatpush1.msra.mxu0 0.0
    %9602 = vmatprep.subr.mxu0 0.0
    %9603 = vmatpush1.msra.mxu0 0.0
    %9604 = vmatprep.subr.mxu0 0.0
    %9605 = vmatpush1.msra.mxu0 0.0
    %9606 = vmatprep.subr.mxu0 0.0
    %9607 = vmatpush1.msra.mxu0 0.0
    %9608 = vmatprep.subr.mxu0 0.0
    %9609 = vmatpush1.msra.mxu0 0.0
    %9610 = vmatprep.subr.mxu0 0.0
    %9611 = vmatpush1.msra.mxu0 0.0
    %9612 = vmatprep.subr.mxu0 0.0
    %9613 = vmatpush1.msra.mxu0 0.0
    %9614 = vmatprep.subr.mxu0 0.0
    %9615 = vmatpush1.msra.mxu0 0.0
    %9616 = vmatprep.subr.mxu0 0.0
    %9617 = vmatpush1.msra.mxu0 0.0
    %9618 = vmatprep.subr.mxu0 0.0
    %9619 = vmatpush1.msra.mxu0 0.0
    %9620 = vmatprep.subr.mxu0 0.0
    %9621 = vmatpush1.msra.mxu0 0.0
    %9622 = vmatprep.subr.mxu0 0.0
    %9623 = vmatpush1.msra.mxu0 0.0
    %9624 = vmatprep.subr.mxu0 0.0
    %9625 = vmatpush1.msra.mxu0 0.0
    %9626 = vmatprep.subr.mxu0 0.0
    %9627 = vmatpush1.msra.mxu0 0.0
    %9628 = vmatprep.subr.mxu0 0.0
    %9629 = vmatpush1.msra.mxu0 0.0
    %9630 = vmatprep.mubr.f32.mxu0 0.0
    %9631 = vmatmul.mubr.f32.gmra.mrb[0].mxu0 %v9555
    %v9632 = vpop.f32.mrb[0].mxu0
    %v9633 = vadd.f32 0.0, %v9632
    %v9634 = vpop.f32.mrb[0].mxu0
    %9635 = vmatprep.mubr.f32.mxu0 0.0
    %9636 = vmatmul.mubr.f32.gmra.mrb[0].mxu0 %v9558
    %v9637 = vpop.f32.mrb[0].mxu0
    %v9638 = vadd.f32 0.0, %v9637
    %v9639 = vpop.f32.mrb[0].mxu0
    %9640 = vmatprep.mubr.f32.mxu0 0.0
    %9641 = vmatmul.mubr.f32.gmra.mrb[0].mxu0 %v9561
    %v9642 = vpop.f32.mrb[0].mxu0
    %v9643 = vadd.f32 0.0, %v9642
    %v9644 = vpop.f32.mrb[0].mxu0
    %9645 = vmatprep.mubr.f32.mxu0 0.0
    %9646 = vmatmul.mubr.f32.gmra.mrb[0].mxu0 %v9564
    %v9647 = vpop.f32.mrb[0].mxu0
    %v9648 = vadd.f32 0.0, %v9647
    %v9649 = vpop.f32.mrb[0].mxu0
    %9650 = vdwg.mxu0
    %v9651 = vld [vmem:[#allocation6] sm:$0xff]
    %v9652 = vld [vmem:[#allocation6 + $0x8] sm:$0xff]
    %v9653 = vld [vmem:[#allocation6 + $0x10] sm:$0xff]
    %v9654 = vld [vmem:[#allocation6 + $0x18] sm:$0xff]
    %v9655 = vld [vmem:[%s4] sm:$0x1]
    %v9657 = vlaneseq
    %v9658 = vshrl.u32 %v9657, 7
    %v9659 = vsub.s32 0, %v9658
    %v9660 = vrot.slane %v9655, %v9659
    %v9663 = vsel %vm1310, %v6254, 0
    %v9666 = vsel %vm1310, %v6259, 0
    %v9669 = vsel %vm1310, %v6264, 0
    %v9672 = vsel %vm1310, %v6269, 0
    %v9675 = vsel %vm1310, %v6363, 0
    %v9678 = vsel %vm1310, %v6368, 0
    %v9681 = vsel %vm1310, %v6373, 0
    %v9684 = vsel %vm1310, %v6378, 0
    %v9687 = vsel %vm1310, %v6472, 0
    %v9690 = vsel %vm1310, %v6477, 0
    %v9693 = vsel %vm1310, %v6482, 0
    %v9696 = vsel %vm1310, %v6487, 0
    %v9699 = vsel %vm1310, %v6581, 0
    %v9702 = vsel %vm1310, %v6586, 0
    %v9705 = vsel %vm1310, %v6591, 0
    %v9708 = vsel %vm1310, %v6596, 0
    %v9711 = vsel %vm1310, %v6690, 0
    %v9714 = vsel %vm1310, %v6695, 0
    %v9717 = vsel %vm1310, %v6700, 0
    %v9720 = vsel %vm1310, %v6705, 0
    %v9723 = vsel %vm1310, %v6799, 0
    %v9726 = vsel %vm1310, %v6804, 0
    %v9729 = vsel %vm1310, %v6809, 0
    %v9732 = vsel %vm1310, %v6814, 0
    %v9735 = vsel %vm1310, %v6908, 0
    %v9738 = vsel %vm1310, %v6913, 0
    %v9741 = vsel %vm1310, %v6918, 0
    %v9744 = vsel %vm1310, %v6923, 0
    %v9747 = vsel %vm1310, %v7017, 0
    %v9750 = vsel %vm1310, %v7022, 0
    %v9753 = vsel %vm1310, %v7027, 0
    %v9756 = vsel %vm1310, %v7032, 0
    %v9759 = vsel %vm1310, %v7126, 0
    %v9762 = vsel %vm1310, %v7131, 0
    %v9765 = vsel %vm1310, %v7136, 0
    %v9768 = vsel %vm1310, %v7141, 0
    %v9771 = vsel %vm1310, %v7235, 0
    %v9774 = vsel %vm1310, %v7240, 0
    %v9777 = vsel %vm1310, %v7245, 0
    %v9780 = vsel %vm1310, %v7250, 0
    %v9783 = vsel %vm1310, %v7344, 0
    %v9786 = vsel %vm1310, %v7349, 0
    %v9789 = vsel %vm1310, %v7354, 0
    %v9792 = vsel %vm1310, %v7359, 0
    %v9795 = vsel %vm1310, %v7453, 0
    %v9798 = vsel %vm1310, %v7458, 0
    %v9801 = vsel %vm1310, %v7463, 0
    %v9804 = vsel %vm1310, %v7468, 0
    %v9807 = vsel %vm1310, %v7562, 0
    %v9810 = vsel %vm1310, %v7567, 0
    %v9813 = vsel %vm1310, %v7572, 0
    %v9816 = vsel %vm1310, %v7577, 0
    %v9819 = vsel %vm1310, %v7671, 0
    %v9822 = vsel %vm1310, %v7676, 0
    %v9825 = vsel %vm1310, %v7681, 0
    %v9828 = vsel %vm1310, %v7686, 0
    %v9831 = vsel %vm1310, %v7780, 0
    %v9834 = vsel %vm1310, %v7785, 0
    %v9837 = vsel %vm1310, %v7790, 0
    %v9840 = vsel %vm1310, %v7795, 0
    %v9843 = vsel %vm1310, %v7889, 0
    %v9846 = vsel %vm1310, %v7894, 0
    %v9849 = vsel %vm1310, %v7899, 0
    %v9852 = vsel %vm1310, %v7904, 0
    %v9855 = vsel %vm1310, %v7998, 0
    %v9858 = vsel %vm1310, %v8003, 0
    %v9861 = vsel %vm1310, %v8008, 0
    %v9864 = vsel %vm1310, %v8013, 0
    %v9867 = vsel %vm1310, %v8107, 0
    %v9870 = vsel %vm1310, %v8112, 0
    %v9873 = vsel %vm1310, %v8117, 0
    %v9876 = vsel %vm1310, %v8122, 0
    %v9879 = vsel %vm1310, %v8216, 0
    %v9882 = vsel %vm1310, %v8221, 0
    %v9885 = vsel %vm1310, %v8226, 0
    %v9888 = vsel %vm1310, %v8231, 0
    %v9891 = vsel %vm1310, %v8325, 0
    %v9894 = vsel %vm1310, %v8330, 0
    %v9897 = vsel %vm1310, %v8335, 0
    %v9900 = vsel %vm1310, %v8340, 0
    %v9903 = vsel %vm1310, %v8434, 0
    %v9906 = vsel %vm1310, %v8439, 0
    %v9909 = vsel %vm1310, %v8444, 0
    %v9912 = vsel %vm1310, %v8449, 0
    %v9915 = vsel %vm1310, %v8543, 0
    %v9918 = vsel %vm1310, %v8548, 0
    %v9921 = vsel %vm1310, %v8553, 0
    %v9924 = vsel %vm1310, %v8558, 0
    %v9927 = vsel %vm1310, %v8652, 0
    %v9930 = vsel %vm1310, %v8657, 0
    %v9933 = vsel %vm1310, %v8662, 0
    %v9936 = vsel %vm1310, %v8667, 0
    %v9939 = vsel %vm1310, %v8761, 0
    %v9942 = vsel %vm1310, %v8766, 0
    %v9945 = vsel %vm1310, %v8771, 0
    %v9948 = vsel %vm1310, %v8776, 0
    %v9951 = vsel %vm1310, %v8870, 0
    %v9954 = vsel %vm1310, %v8875, 0
    %v9957 = vsel %vm1310, %v8880, 0
    %v9960 = vsel %vm1310, %v8885, 0
    %v9963 = vsel %vm1310, %v8979, 0
    %v9966 = vsel %vm1310, %v8984, 0
    %v9969 = vsel %vm1310, %v8989, 0
    %v9972 = vsel %vm1310, %v8994, 0
    %v9975 = vsel %vm1310, %v9088, 0
    %v9978 = vsel %vm1310, %v9093, 0
    %v9981 = vsel %vm1310, %v9098, 0
    %v9984 = vsel %vm1310, %v9103, 0
    %v9987 = vsel %vm1310, %v9197, 0
    %v9990 = vsel %vm1310, %v9202, 0
    %v9993 = vsel %vm1310, %v9207, 0
    %v9996 = vsel %vm1310, %v9212, 0
    %v9999 = vsel %vm1310, %v9306, 0
    %v10002 = vsel %vm1310, %v9311, 0
    %v10005 = vsel %vm1310, %v9316, 0
    %v10008 = vsel %vm1310, %v9321, 0
    %v10011 = vsel %vm1310, %v9415, 0
    %v10014 = vsel %vm1310, %v9420, 0
    %v10017 = vsel %vm1310, %v9425, 0
    %v10020 = vsel %vm1310, %v9430, 0
    %v10023 = vsel %vm1310, %v9524, 0
    %v10026 = vsel %vm1310, %v9529, 0
    %v10029 = vsel %vm1310, %v9534, 0
    %v10032 = vsel %vm1310, %v9539, 0
    %v10035 = vsel %vm1310, %v9633, 0
    %v10038 = vsel %vm1310, %v9638, 0
    %v10041 = vsel %vm1310, %v9643, 0
    %v10044 = vsel %vm1310, %v9648, 0
    %10046 = vmatprep.subr.mxu0 0.0
    %10047 = vmatpush1.msra.mxu0 %v9651
    %10048 = vmatprep.subr.mxu0 0.0
    %10049 = vmatpush1.msra.mxu0 %v9652
    %10050 = vmatprep.subr.mxu0 0.0
    %10051 = vmatpush1.msra.mxu0 %v9653
    %10052 = vmatprep.subr.mxu0 0.0
    %10053 = vmatpush1.msra.mxu0 %v9654
    %10054 = vmatprep.subr.mxu0 0.0
    %10055 = vmatpush1.msra.mxu0 0.0
    %10056 = vmatprep.subr.mxu0 0.0
    %10057 = vmatpush1.msra.mxu0 0.0
    %10058 = vmatprep.subr.mxu0 0.0
    %10059 = vmatpush1.msra.mxu0 0.0
    %10060 = vmatprep.subr.mxu0 0.0
    %10061 = vmatpush1.msra.mxu0 0.0
    %10062 = vmatprep.subr.mxu0 0.0
    %10063 = vmatpush1.msra.mxu0 0.0
    %10064 = vmatprep.subr.mxu0 0.0
    %10065 = vmatpush1.msra.mxu0 0.0
    %10066 = vmatprep.subr.mxu0 0.0
    %10067 = vmatpush1.msra.mxu0 0.0
    %10068 = vmatprep.subr.mxu0 0.0
    %10069 = vmatpush1.msra.mxu0 0.0
    %10070 = vmatprep.subr.mxu0 0.0
    %10071 = vmatpush1.msra.mxu0 0.0
    %10072 = vmatprep.subr.mxu0 0.0
    %10073 = vmatpush1.msra.mxu0 0.0
    %10074 = vmatprep.subr.mxu0 0.0
    %10075 = vmatpush1.msra.mxu0 0.0
    %10076 = vmatprep.subr.mxu0 0.0
    %10077 = vmatpush1.msra.mxu0 0.0
    %10078 = vmatprep.subr.mxu0 0.0
    %10079 = vmatpush1.msra.mxu0 0.0
    %10080 = vmatprep.subr.mxu0 0.0
    %10081 = vmatpush1.msra.mxu0 0.0
    %10082 = vmatprep.subr.mxu0 0.0
    %10083 = vmatpush1.msra.mxu0 0.0
    %10084 = vmatprep.subr.mxu0 0.0
    %10085 = vmatpush1.msra.mxu0 0.0
    %10086 = vmatprep.subr.mxu0 0.0
    %10087 = vmatpush1.msra.mxu0 0.0
    %10088 = vmatprep.subr.mxu0 0.0
    %10089 = vmatpush1.msra.mxu0 0.0
    %10090 = vmatprep.subr.mxu0 0.0
    %10091 = vmatpush1.msra.mxu0 0.0
    %10092 = vmatprep.subr.mxu0 0.0
    %10093 = vmatpush1.msra.mxu0 0.0
    %10094 = vmatprep.subr.mxu0 0.0
    %10095 = vmatpush1.msra.mxu0 0.0
    %10096 = vmatprep.subr.mxu0 0.0
    %10097 = vmatpush1.msra.mxu0 0.0
    %10098 = vmatprep.subr.mxu0 0.0
    %10099 = vmatpush1.msra.mxu0 0.0
    %10100 = vmatprep.subr.mxu0 0.0
    %10101 = vmatpush1.msra.mxu0 0.0
    %10102 = vmatprep.subr.mxu0 0.0
    %10103 = vmatpush1.msra.mxu0 0.0
    %10104 = vmatprep.subr.mxu0 0.0
    %10105 = vmatpush1.msra.mxu0 0.0
    %10106 = vmatprep.subr.mxu0 0.0
    %10107 = vmatpush1.msra.mxu0 0.0
    %10108 = vmatprep.subr.mxu0 0.0
    %10109 = vmatpush1.msra.mxu0 0.0
    %10110 = vmatprep.mubr.f32.mxu0 0.0
    %10111 = vmatmul.mubr.f32.gmra.mrb[0].mxu0 %v9663
    %v10112 = vpop.f32.mrb[0].mxu0
    %v10113 = vadd.f32 %v9660, %v10112
    %v10114 = vpop.f32.mrb[0].mxu0
    %10115 = vmatprep.mubr.f32.mxu0 0.0
    %10116 = vmatmul.mubr.f32.gmra.mrb[0].mxu0 %v9666
    %v10117 = vpop.f32.mrb[0].mxu0
    %v10118 = vadd.f32 %v9660, %v10117
    %v10119 = vpop.f32.mrb[0].mxu0
    %10120 = vmatprep.mubr.f32.mxu0 0.0
    %10121 = vmatmul.mubr.f32.gmra.mrb[0].mxu0 %v9669
    %v10122 = vpop.f32.mrb[0].mxu0
    %v10123 = vadd.f32 %v9660, %v10122
    %v10124 = vpop.f32.mrb[0].mxu0
    %10125 = vmatprep.mubr.f32.mxu0 0.0
    %10126 = vmatmul.mubr.f32.gmra.mrb[0].mxu0 %v9672
    %v10127 = vpop.f32.mrb[0].mxu0
    %v10128 = vadd.f32 %v9660, %v10127
    %v10129 = vpop.f32.mrb[0].mxu0
    %10130 = vmatprep.mubr.f32.mxu0 0.0
    %10131 = vmatmul.mubr.f32.gmra.mrb[0].mxu0 %v9675
    %v10132 = vpop.f32.mrb[0].mxu0
    %v10133 = vadd.f32 %v9660, %v10132
    %v10134 = vpop.f32.mrb[0].mxu0
    %10135 = vmatprep.mubr.f32.mxu0 0.0
    %10136 = vmatmul.mubr.f32.gmra.mrb[0].mxu0 %v9678
    %v10137 = vpop.f32.mrb[0].mxu0
    %v10138 = vadd.f32 %v9660, %v10137
    %v10139 = vpop.f32.mrb[0].mxu0
    %10140 = vmatprep.mubr.f32.mxu0 0.0
    %10141 = vmatmul.mubr.f32.gmra.mrb[0].mxu0 %v9681
    %v10142 = vpop.f32.mrb[0].mxu0
    %v10143 = vadd.f32 %v9660, %v10142
    %v10144 = vpop.f32.mrb[0].mxu0
    %10145 = vmatprep.mubr.f32.mxu0 0.0
    %10146 = vmatmul.mubr.f32.gmra.mrb[0].mxu0 %v9684
    %v10147 = vpop.f32.mrb[0].mxu0
    %v10148 = vadd.f32 %v9660, %v10147
    %v10149 = vpop.f32.mrb[0].mxu0
    %10150 = vmatprep.mubr.f32.mxu0 0.0
    %10151 = vmatmul.mubr.f32.gmra.mrb[0].mxu0 %v9687
    %v10152 = vpop.f32.mrb[0].mxu0
    %v10153 = vadd.f32 %v9660, %v10152
    %v10154 = vpop.f32.mrb[0].mxu0
    %10155 = vmatprep.mubr.f32.mxu0 0.0
    %10156 = vmatmul.mubr.f32.gmra.mrb[0].mxu0 %v9690
    %v10157 = vpop.f32.mrb[0].mxu0
    %v10158 = vadd.f32 %v9660, %v10157
    %v10159 = vpop.f32.mrb[0].mxu0
    %10160 = vmatprep.mubr.f32.mxu0 0.0
    %10161 = vmatmul.mubr.f32.gmra.mrb[0].mxu0 %v9693
    %v10162 = vpop.f32.mrb[0].mxu0
    %v10163 = vadd.f32 %v9660, %v10162
    %v10164 = vpop.f32.mrb[0].mxu0
    %10165 = vmatprep.mubr.f32.mxu0 0.0
    %10166 = vmatmul.mubr.f32.gmra.mrb[0].mxu0 %v9696
    %v10167 = vpop.f32.mrb[0].mxu0
    %v10168 = vadd.f32 %v9660, %v10167
    %v10169 = vpop.f32.mrb[0].mxu0
    %10170 = vmatprep.mubr.f32.mxu0 0.0
    %10171 = vmatmul.mubr.f32.gmra.mrb[0].mxu0 %v9699
    %v10172 = vpop.f32.mrb[0].mxu0
    %v10173 = vadd.f32 %v9660, %v10172
    %v10174 = vpop.f32.mrb[0].mxu0
    %10175 = vmatprep.mubr.f32.mxu0 0.0
    %10176 = vmatmul.mubr.f32.gmra.mrb[0].mxu0 %v9702
    %v10177 = vpop.f32.mrb[0].mxu0
    %v10178 = vadd.f32 %v9660, %v10177
    %v10179 = vpop.f32.mrb[0].mxu0
    %10180 = vmatprep.mubr.f32.mxu0 0.0
    %10181 = vmatmul.mubr.f32.gmra.mrb[0].mxu0 %v9705
    %v10182 = vpop.f32.mrb[0].mxu0
    %v10183 = vadd.f32 %v9660, %v10182
    %v10184 = vpop.f32.mrb[0].mxu0
    %10185 = vmatprep.mubr.f32.mxu0 0.0
    %10186 = vmatmul.mubr.f32.gmra.mrb[0].mxu0 %v9708
    %v10187 = vpop.f32.mrb[0].mxu0
    %v10188 = vadd.f32 %v9660, %v10187
    %v10189 = vpop.f32.mrb[0].mxu0
    %10190 = vmatprep.mubr.f32.mxu0 0.0
    %10191 = vmatmul.mubr.f32.gmra.mrb[0].mxu0 %v9711
    %v10192 = vpop.f32.mrb[0].mxu0
    %v10193 = vadd.f32 %v9660, %v10192
    %v10194 = vpop.f32.mrb[0].mxu0
    %10195 = vmatprep.mubr.f32.mxu0 0.0
    %10196 = vmatmul.mubr.f32.gmra.mrb[0].mxu0 %v9714
    %v10197 = vpop.f32.mrb[0].mxu0
    %v10198 = vadd.f32 %v9660, %v10197
    %v10199 = vpop.f32.mrb[0].mxu0
    %10200 = vmatprep.mubr.f32.mxu0 0.0
    %10201 = vmatmul.mubr.f32.gmra.mrb[0].mxu0 %v9717
    %v10202 = vpop.f32.mrb[0].mxu0
    %v10203 = vadd.f32 %v9660, %v10202
    %v10204 = vpop.f32.mrb[0].mxu0
    %10205 = vmatprep.mubr.f32.mxu0 0.0
    %10206 = vmatmul.mubr.f32.gmra.mrb[0].mxu0 %v9720
    %v10207 = vpop.f32.mrb[0].mxu0
    %v10208 = vadd.f32 %v9660, %v10207
    %v10209 = vpop.f32.mrb[0].mxu0
    %10210 = vmatprep.mubr.f32.mxu0 0.0
    %10211 = vmatmul.mubr.f32.gmra.mrb[0].mxu0 %v9723
    %v10212 = vpop.f32.mrb[0].mxu0
    %v10213 = vadd.f32 %v9660, %v10212
    %v10214 = vpop.f32.mrb[0].mxu0
    %10215 = vmatprep.mubr.f32.mxu0 0.0
    %10216 = vmatmul.mubr.f32.gmra.mrb[0].mxu0 %v9726
    %v10217 = vpop.f32.mrb[0].mxu0
    %v10218 = vadd.f32 %v9660, %v10217
    %v10219 = vpop.f32.mrb[0].mxu0
    %10220 = vmatprep.mubr.f32.mxu0 0.0
    %10221 = vmatmul.mubr.f32.gmra.mrb[0].mxu0 %v9729
    %v10222 = vpop.f32.mrb[0].mxu0
    %v10223 = vadd.f32 %v9660, %v10222
    %v10224 = vpop.f32.mrb[0].mxu0
    %10225 = vmatprep.mubr.f32.mxu0 0.0
    %10226 = vmatmul.mubr.f32.gmra.mrb[0].mxu0 %v9732
    %v10227 = vpop.f32.mrb[0].mxu0
    %v10228 = vadd.f32 %v9660, %v10227
    %v10229 = vpop.f32.mrb[0].mxu0
    %10230 = vmatprep.mubr.f32.mxu0 0.0
    %10231 = vmatmul.mubr.f32.gmra.mrb[0].mxu0 %v9735
    %v10232 = vpop.f32.mrb[0].mxu0
    %v10233 = vadd.f32 %v9660, %v10232
    %v10234 = vpop.f32.mrb[0].mxu0
    %10235 = vmatprep.mubr.f32.mxu0 0.0
    %10236 = vmatmul.mubr.f32.gmra.mrb[0].mxu0 %v9738
    %v10237 = vpop.f32.mrb[0].mxu0
    %v10238 = vadd.f32 %v9660, %v10237
    %v10239 = vpop.f32.mrb[0].mxu0
    %10240 = vmatprep.mubr.f32.mxu0 0.0
    %10241 = vmatmul.mubr.f32.gmra.mrb[0].mxu0 %v9741
    %v10242 = vpop.f32.mrb[0].mxu0
    %v10243 = vadd.f32 %v9660, %v10242
    %v10244 = vpop.f32.mrb[0].mxu0
    %10245 = vmatprep.mubr.f32.mxu0 0.0
    %10246 = vmatmul.mubr.f32.gmra.mrb[0].mxu0 %v9744
    %v10247 = vpop.f32.mrb[0].mxu0
    %v10248 = vadd.f32 %v9660, %v10247
    %v10249 = vpop.f32.mrb[0].mxu0
    %10250 = vmatprep.mubr.f32.mxu0 0.0
    %10251 = vmatmul.mubr.f32.gmra.mrb[0].mxu0 %v9747
    %v10252 = vpop.f32.mrb[0].mxu0
    %v10253 = vadd.f32 %v9660, %v10252
    %v10254 = vpop.f32.mrb[0].mxu0
    %10255 = vmatprep.mubr.f32.mxu0 0.0
    %10256 = vmatmul.mubr.f32.gmra.mrb[0].mxu0 %v9750
    %v10257 = vpop.f32.mrb[0].mxu0
    %v10258 = vadd.f32 %v9660, %v10257
    %v10259 = vpop.f32.mrb[0].mxu0
    %10260 = vmatprep.mubr.f32.mxu0 0.0
    %10261 = vmatmul.mubr.f32.gmra.mrb[0].mxu0 %v9753
    %v10262 = vpop.f32.mrb[0].mxu0
    %v10263 = vadd.f32 %v9660, %v10262
    %v10264 = vpop.f32.mrb[0].mxu0
    %10265 = vmatprep.mubr.f32.mxu0 0.0
    %10266 = vmatmul.mubr.f32.gmra.mrb[0].mxu0 %v9756
    %v10267 = vpop.f32.mrb[0].mxu0
    %v10268 = vadd.f32 %v9660, %v10267
    %v10269 = vpop.f32.mrb[0].mxu0
    %10270 = vmatprep.mubr.f32.mxu0 0.0
    %10271 = vmatmul.mubr.f32.gmra.mrb[0].mxu0 %v9759
    %v10272 = vpop.f32.mrb[0].mxu0
    %v10273 = vadd.f32 %v9660, %v10272
    %v10274 = vpop.f32.mrb[0].mxu0
    %10275 = vmatprep.mubr.f32.mxu0 0.0
    %10276 = vmatmul.mubr.f32.gmra.mrb[0].mxu0 %v9762
    %v10277 = vpop.f32.mrb[0].mxu0
    %v10278 = vadd.f32 %v9660, %v10277
    %v10279 = vpop.f32.mrb[0].mxu0
    %10280 = vmatprep.mubr.f32.mxu0 0.0
    %10281 = vmatmul.mubr.f32.gmra.mrb[0].mxu0 %v9765
    %v10282 = vpop.f32.mrb[0].mxu0
    %v10283 = vadd.f32 %v9660, %v10282
    %v10284 = vpop.f32.mrb[0].mxu0
    %10285 = vmatprep.mubr.f32.mxu0 0.0
    %10286 = vmatmul.mubr.f32.gmra.mrb[0].mxu0 %v9768
    %v10287 = vpop.f32.mrb[0].mxu0
    %v10288 = vadd.f32 %v9660, %v10287
    %v10289 = vpop.f32.mrb[0].mxu0
    %10290 = vmatprep.mubr.f32.mxu0 0.0
    %10291 = vmatmul.mubr.f32.gmra.mrb[0].mxu0 %v9771
    %v10292 = vpop.f32.mrb[0].mxu0
    %v10293 = vadd.f32 %v9660, %v10292
    %v10294 = vpop.f32.mrb[0].mxu0
    %10295 = vmatprep.mubr.f32.mxu0 0.0
    %10296 = vmatmul.mubr.f32.gmra.mrb[0].mxu0 %v9774
    %v10297 = vpop.f32.mrb[0].mxu0
    %v10298 = vadd.f32 %v9660, %v10297
    %v10299 = vpop.f32.mrb[0].mxu0
    %10300 = vmatprep.mubr.f32.mxu0 0.0
    %10301 = vmatmul.mubr.f32.gmra.mrb[0].mxu0 %v9777
    %v10302 = vpop.f32.mrb[0].mxu0
    %v10303 = vadd.f32 %v9660, %v10302
    %v10304 = vpop.f32.mrb[0].mxu0
    %10305 = vmatprep.mubr.f32.mxu0 0.0
    %10306 = vmatmul.mubr.f32.gmra.mrb[0].mxu0 %v9780
    %v10307 = vpop.f32.mrb[0].mxu0
    %v10308 = vadd.f32 %v9660, %v10307
    %v10309 = vpop.f32.mrb[0].mxu0
    %10310 = vmatprep.mubr.f32.mxu0 0.0
    %10311 = vmatmul.mubr.f32.gmra.mrb[0].mxu0 %v9783
    %v10312 = vpop.f32.mrb[0].mxu0
    %v10313 = vadd.f32 %v9660, %v10312
    %v10314 = vpop.f32.mrb[0].mxu0
    %10315 = vmatprep.mubr.f32.mxu0 0.0
    %10316 = vmatmul.mubr.f32.gmra.mrb[0].mxu0 %v9786
    %v10317 = vpop.f32.mrb[0].mxu0
    %v10318 = vadd.f32 %v9660, %v10317
    %v10319 = vpop.f32.mrb[0].mxu0
    %10320 = vmatprep.mubr.f32.mxu0 0.0
    %10321 = vmatmul.mubr.f32.gmra.mrb[0].mxu0 %v9789
    %v10322 = vpop.f32.mrb[0].mxu0
    %v10323 = vadd.f32 %v9660, %v10322
    %v10324 = vpop.f32.mrb[0].mxu0
    %10325 = vmatprep.mubr.f32.mxu0 0.0
    %10326 = vmatmul.mubr.f32.gmra.mrb[0].mxu0 %v9792
    %v10327 = vpop.f32.mrb[0].mxu0
    %v10328 = vadd.f32 %v9660, %v10327
    %v10329 = vpop.f32.mrb[0].mxu0
    %10330 = vmatprep.mubr.f32.mxu0 0.0
    %10331 = vmatmul.mubr.f32.gmra.mrb[0].mxu0 %v9795
    %v10332 = vpop.f32.mrb[0].mxu0
    %v10333 = vadd.f32 %v9660, %v10332
    %v10334 = vpop.f32.mrb[0].mxu0
    %10335 = vmatprep.mubr.f32.mxu0 0.0
    %10336 = vmatmul.mubr.f32.gmra.mrb[0].mxu0 %v9798
    %v10337 = vpop.f32.mrb[0].mxu0
    %v10338 = vadd.f32 %v9660, %v10337
    %v10339 = vpop.f32.mrb[0].mxu0
    %10340 = vmatprep.mubr.f32.mxu0 0.0
    %10341 = vmatmul.mubr.f32.gmra.mrb[0].mxu0 %v9801
    %v10342 = vpop.f32.mrb[0].mxu0
    %v10343 = vadd.f32 %v9660, %v10342
    %v10344 = vpop.f32.mrb[0].mxu0
    %10345 = vmatprep.mubr.f32.mxu0 0.0
    %10346 = vmatmul.mubr.f32.gmra.mrb[0].mxu0 %v9804
    %v10347 = vpop.f32.mrb[0].mxu0
    %v10348 = vadd.f32 %v9660, %v10347
    %v10349 = vpop.f32.mrb[0].mxu0
    %10350 = vmatprep.mubr.f32.mxu0 0.0
    %10351 = vmatmul.mubr.f32.gmra.mrb[0].mxu0 %v9807
    %v10352 = vpop.f32.mrb[0].mxu0
    %v10353 = vadd.f32 %v9660, %v10352
    %v10354 = vpop.f32.mrb[0].mxu0
    %10355 = vmatprep.mubr.f32.mxu0 0.0
    %10356 = vmatmul.mubr.f32.gmra.mrb[0].mxu0 %v9810
    %v10357 = vpop.f32.mrb[0].mxu0
    %v10358 = vadd.f32 %v9660, %v10357
    %v10359 = vpop.f32.mrb[0].mxu0
    %10360 = vmatprep.mubr.f32.mxu0 0.0
    %10361 = vmatmul.mubr.f32.gmra.mrb[0].mxu0 %v9813
    %v10362 = vpop.f32.mrb[0].mxu0
    %v10363 = vadd.f32 %v9660, %v10362
    %v10364 = vpop.f32.mrb[0].mxu0
    %10365 = vmatprep.mubr.f32.mxu0 0.0
    %10366 = vmatmul.mubr.f32.gmra.mrb[0].mxu0 %v9816
    %v10367 = vpop.f32.mrb[0].mxu0
    %v10368 = vadd.f32 %v9660, %v10367
    %v10369 = vpop.f32.mrb[0].mxu0
    %10370 = vmatprep.mubr.f32.mxu0 0.0
    %10371 = vmatmul.mubr.f32.gmra.mrb[0].mxu0 %v9819
    %v10372 = vpop.f32.mrb[0].mxu0
    %v10373 = vadd.f32 %v9660, %v10372
    %v10374 = vpop.f32.mrb[0].mxu0
    %10375 = vmatprep.mubr.f32.mxu0 0.0
    %10376 = vmatmul.mubr.f32.gmra.mrb[0].mxu0 %v9822
    %v10377 = vpop.f32.mrb[0].mxu0
    %v10378 = vadd.f32 %v9660, %v10377
    %v10379 = vpop.f32.mrb[0].mxu0
    %10380 = vmatprep.mubr.f32.mxu0 0.0
    %10381 = vmatmul.mubr.f32.gmra.mrb[0].mxu0 %v9825
    %v10382 = vpop.f32.mrb[0].mxu0
    %v10383 = vadd.f32 %v9660, %v10382
    %v10384 = vpop.f32.mrb[0].mxu0
    %10385 = vmatprep.mubr.f32.mxu0 0.0
    %10386 = vmatmul.mubr.f32.gmra.mrb[0].mxu0 %v9828
    %v10387 = vpop.f32.mrb[0].mxu0
    %v10388 = vadd.f32 %v9660, %v10387
    %v10389 = vpop.f32.mrb[0].mxu0
    %10390 = vmatprep.mubr.f32.mxu0 0.0
    %10391 = vmatmul.mubr.f32.gmra.mrb[0].mxu0 %v9831
    %v10392 = vpop.f32.mrb[0].mxu0
    %v10393 = vadd.f32 %v9660, %v10392
    %v10394 = vpop.f32.mrb[0].mxu0
    %10395 = vmatprep.mubr.f32.mxu0 0.0
    %10396 = vmatmul.mubr.f32.gmra.mrb[0].mxu0 %v9834
    %v10397 = vpop.f32.mrb[0].mxu0
    %v10398 = vadd.f32 %v9660, %v10397
    %v10399 = vpop.f32.mrb[0].mxu0
    %10400 = vmatprep.mubr.f32.mxu0 0.0
    %10401 = vmatmul.mubr.f32.gmra.mrb[0].mxu0 %v9837
    %v10402 = vpop.f32.mrb[0].mxu0
    %v10403 = vadd.f32 %v9660, %v10402
    %v10404 = vpop.f32.mrb[0].mxu0
    %10405 = vmatprep.mubr.f32.mxu0 0.0
    %10406 = vmatmul.mubr.f32.gmra.mrb[0].mxu0 %v9840
    %v10407 = vpop.f32.mrb[0].mxu0
    %v10408 = vadd.f32 %v9660, %v10407
    %v10409 = vpop.f32.mrb[0].mxu0
    %10410 = vmatprep.mubr.f32.mxu0 0.0
    %10411 = vmatmul.mubr.f32.gmra.mrb[0].mxu0 %v9843
    %v10412 = vpop.f32.mrb[0].mxu0
    %v10413 = vadd.f32 %v9660, %v10412
    %v10414 = vpop.f32.mrb[0].mxu0
    %10415 = vmatprep.mubr.f32.mxu0 0.0
    %10416 = vmatmul.mubr.f32.gmra.mrb[0].mxu0 %v9846
    %v10417 = vpop.f32.mrb[0].mxu0
    %v10418 = vadd.f32 %v9660, %v10417
    %v10419 = vpop.f32.mrb[0].mxu0
    %10420 = vmatprep.mubr.f32.mxu0 0.0
    %10421 = vmatmul.mubr.f32.gmra.mrb[0].mxu0 %v9849
    %v10422 = vpop.f32.mrb[0].mxu0
    %v10423 = vadd.f32 %v9660, %v10422
    %v10424 = vpop.f32.mrb[0].mxu0
    %10425 = vmatprep.mubr.f32.mxu0 0.0
    %10426 = vmatmul.mubr.f32.gmra.mrb[0].mxu0 %v9852
    %v10427 = vpop.f32.mrb[0].mxu0
    %v10428 = vadd.f32 %v9660, %v10427
    %v10429 = vpop.f32.mrb[0].mxu0
    %10430 = vmatprep.mubr.f32.mxu0 0.0
    %10431 = vmatmul.mubr.f32.gmra.mrb[0].mxu0 %v9855
    %v10432 = vpop.f32.mrb[0].mxu0
    %v10433 = vadd.f32 %v9660, %v10432
    %v10434 = vpop.f32.mrb[0].mxu0
    %10435 = vmatprep.mubr.f32.mxu0 0.0
    %10436 = vmatmul.mubr.f32.gmra.mrb[0].mxu0 %v9858
    %v10437 = vpop.f32.mrb[0].mxu0
    %v10438 = vadd.f32 %v9660, %v10437
    %v10439 = vpop.f32.mrb[0].mxu0
    %10440 = vmatprep.mubr.f32.mxu0 0.0
    %10441 = vmatmul.mubr.f32.gmra.mrb[0].mxu0 %v9861
    %v10442 = vpop.f32.mrb[0].mxu0
    %v10443 = vadd.f32 %v9660, %v10442
    %v10444 = vpop.f32.mrb[0].mxu0
    %10445 = vmatprep.mubr.f32.mxu0 0.0
    %10446 = vmatmul.mubr.f32.gmra.mrb[0].mxu0 %v9864
    %v10447 = vpop.f32.mrb[0].mxu0
    %v10448 = vadd.f32 %v9660, %v10447
    %v10449 = vpop.f32.mrb[0].mxu0
    %10450 = vmatprep.mubr.f32.mxu0 0.0
    %10451 = vmatmul.mubr.f32.gmra.mrb[0].mxu0 %v9867
    %v10452 = vpop.f32.mrb[0].mxu0
    %v10453 = vadd.f32 %v9660, %v10452
    %v10454 = vpop.f32.mrb[0].mxu0
    %10455 = vmatprep.mubr.f32.mxu0 0.0
    %10456 = vmatmul.mubr.f32.gmra.mrb[0].mxu0 %v9870
    %v10457 = vpop.f32.mrb[0].mxu0
    %v10458 = vadd.f32 %v9660, %v10457
    %v10459 = vpop.f32.mrb[0].mxu0
    %10460 = vmatprep.mubr.f32.mxu0 0.0
    %10461 = vmatmul.mubr.f32.gmra.mrb[0].mxu0 %v9873
    %v10462 = vpop.f32.mrb[0].mxu0
    %v10463 = vadd.f32 %v9660, %v10462
    %v10464 = vpop.f32.mrb[0].mxu0
    %10465 = vmatprep.mubr.f32.mxu0 0.0
    %10466 = vmatmul.mubr.f32.gmra.mrb[0].mxu0 %v9876
    %v10467 = vpop.f32.mrb[0].mxu0
    %v10468 = vadd.f32 %v9660, %v10467
    %v10469 = vpop.f32.mrb[0].mxu0
    %10470 = vmatprep.mubr.f32.mxu0 0.0
    %10471 = vmatmul.mubr.f32.gmra.mrb[0].mxu0 %v9879
    %v10472 = vpop.f32.mrb[0].mxu0
    %v10473 = vadd.f32 %v9660, %v10472
    %v10474 = vpop.f32.mrb[0].mxu0
    %10475 = vmatprep.mubr.f32.mxu0 0.0
    %10476 = vmatmul.mubr.f32.gmra.mrb[0].mxu0 %v9882
    %v10477 = vpop.f32.mrb[0].mxu0
    %v10478 = vadd.f32 %v9660, %v10477
    %v10479 = vpop.f32.mrb[0].mxu0
    %10480 = vmatprep.mubr.f32.mxu0 0.0
    %10481 = vmatmul.mubr.f32.gmra.mrb[0].mxu0 %v9885
    %v10482 = vpop.f32.mrb[0].mxu0
    %v10483 = vadd.f32 %v9660, %v10482
    %v10484 = vpop.f32.mrb[0].mxu0
    %10485 = vmatprep.mubr.f32.mxu0 0.0
    %10486 = vmatmul.mubr.f32.gmra.mrb[0].mxu0 %v9888
    %v10487 = vpop.f32.mrb[0].mxu0
    %v10488 = vadd.f32 %v9660, %v10487
    %v10489 = vpop.f32.mrb[0].mxu0
    %10490 = vmatprep.mubr.f32.mxu0 0.0
    %10491 = vmatmul.mubr.f32.gmra.mrb[0].mxu0 %v9891
    %v10492 = vpop.f32.mrb[0].mxu0
    %v10493 = vadd.f32 %v9660, %v10492
    %v10494 = vpop.f32.mrb[0].mxu0
    %10495 = vmatprep.mubr.f32.mxu0 0.0
    %10496 = vmatmul.mubr.f32.gmra.mrb[0].mxu0 %v9894
    %v10497 = vpop.f32.mrb[0].mxu0
    %v10498 = vadd.f32 %v9660, %v10497
    %v10499 = vpop.f32.mrb[0].mxu0
    %10500 = vmatprep.mubr.f32.mxu0 0.0
    %10501 = vmatmul.mubr.f32.gmra.mrb[0].mxu0 %v9897
    %v10502 = vpop.f32.mrb[0].mxu0
    %v10503 = vadd.f32 %v9660, %v10502
    %v10504 = vpop.f32.mrb[0].mxu0
    %10505 = vmatprep.mubr.f32.mxu0 0.0
    %10506 = vmatmul.mubr.f32.gmra.mrb[0].mxu0 %v9900
    %v10507 = vpop.f32.mrb[0].mxu0
    %v10508 = vadd.f32 %v9660, %v10507
    %v10509 = vpop.f32.mrb[0].mxu0
    %10510 = vmatprep.mubr.f32.mxu0 0.0
    %10511 = vmatmul.mubr.f32.gmra.mrb[0].mxu0 %v9903
    %v10512 = vpop.f32.mrb[0].mxu0
    %v10513 = vadd.f32 %v9660, %v10512
    %v10514 = vpop.f32.mrb[0].mxu0
    %10515 = vmatprep.mubr.f32.mxu0 0.0
    %10516 = vmatmul.mubr.f32.gmra.mrb[0].mxu0 %v9906
    %v10517 = vpop.f32.mrb[0].mxu0
    %v10518 = vadd.f32 %v9660, %v10517
    %v10519 = vpop.f32.mrb[0].mxu0
    %10520 = vmatprep.mubr.f32.mxu0 0.0
    %10521 = vmatmul.mubr.f32.gmra.mrb[0].mxu0 %v9909
    %v10522 = vpop.f32.mrb[0].mxu0
    %v10523 = vadd.f32 %v9660, %v10522
    %v10524 = vpop.f32.mrb[0].mxu0
    %10525 = vmatprep.mubr.f32.mxu0 0.0
    %10526 = vmatmul.mubr.f32.gmra.mrb[0].mxu0 %v9912
    %v10527 = vpop.f32.mrb[0].mxu0
    %v10528 = vadd.f32 %v9660, %v10527
    %v10529 = vpop.f32.mrb[0].mxu0
    %10530 = vmatprep.mubr.f32.mxu0 0.0
    %10531 = vmatmul.mubr.f32.gmra.mrb[0].mxu0 %v9915
    %v10532 = vpop.f32.mrb[0].mxu0
    %v10533 = vadd.f32 %v9660, %v10532
    %v10534 = vpop.f32.mrb[0].mxu0
    %10535 = vmatprep.mubr.f32.mxu0 0.0
    %10536 = vmatmul.mubr.f32.gmra.mrb[0].mxu0 %v9918
    %v10537 = vpop.f32.mrb[0].mxu0
    %v10538 = vadd.f32 %v9660, %v10537
    %v10539 = vpop.f32.mrb[0].mxu0
    %10540 = vmatprep.mubr.f32.mxu0 0.0
    %10541 = vmatmul.mubr.f32.gmra.mrb[0].mxu0 %v9921
    %v10542 = vpop.f32.mrb[0].mxu0
    %v10543 = vadd.f32 %v9660, %v10542
    %v10544 = vpop.f32.mrb[0].mxu0
    %10545 = vmatprep.mubr.f32.mxu0 0.0
    %10546 = vmatmul.mubr.f32.gmra.mrb[0].mxu0 %v9924
    %v10547 = vpop.f32.mrb[0].mxu0
    %v10548 = vadd.f32 %v9660, %v10547
    %v10549 = vpop.f32.mrb[0].mxu0
    %10550 = vmatprep.mubr.f32.mxu0 0.0
    %10551 = vmatmul.mubr.f32.gmra.mrb[0].mxu0 %v9927
    %v10552 = vpop.f32.mrb[0].mxu0
    %v10553 = vadd.f32 %v9660, %v10552
    %v10554 = vpop.f32.mrb[0].mxu0
    %10555 = vmatprep.mubr.f32.mxu0 0.0
    %10556 = vmatmul.mubr.f32.gmra.mrb[0].mxu0 %v9930
    %v10557 = vpop.f32.mrb[0].mxu0
    %v10558 = vadd.f32 %v9660, %v10557
    %v10559 = vpop.f32.mrb[0].mxu0
    %10560 = vmatprep.mubr.f32.mxu0 0.0
    %10561 = vmatmul.mubr.f32.gmra.mrb[0].mxu0 %v9933
    %v10562 = vpop.f32.mrb[0].mxu0
    %v10563 = vadd.f32 %v9660, %v10562
    %v10564 = vpop.f32.mrb[0].mxu0
    %10565 = vmatprep.mubr.f32.mxu0 0.0
    %10566 = vmatmul.mubr.f32.gmra.mrb[0].mxu0 %v9936
    %v10567 = vpop.f32.mrb[0].mxu0
    %v10568 = vadd.f32 %v9660, %v10567
    %v10569 = vpop.f32.mrb[0].mxu0
    %10570 = vmatprep.mubr.f32.mxu0 0.0
    %10571 = vmatmul.mubr.f32.gmra.mrb[0].mxu0 %v9939
    %v10572 = vpop.f32.mrb[0].mxu0
    %v10573 = vadd.f32 %v9660, %v10572
    %v10574 = vpop.f32.mrb[0].mxu0
    %10575 = vmatprep.mubr.f32.mxu0 0.0
    %10576 = vmatmul.mubr.f32.gmra.mrb[0].mxu0 %v9942
    %v10577 = vpop.f32.mrb[0].mxu0
    %v10578 = vadd.f32 %v9660, %v10577
    %v10579 = vpop.f32.mrb[0].mxu0
    %10580 = vmatprep.mubr.f32.mxu0 0.0
    %10581 = vmatmul.mubr.f32.gmra.mrb[0].mxu0 %v9945
    %v10582 = vpop.f32.mrb[0].mxu0
    %v10583 = vadd.f32 %v9660, %v10582
    %v10584 = vpop.f32.mrb[0].mxu0
    %10585 = vmatprep.mubr.f32.mxu0 0.0
    %10586 = vmatmul.mubr.f32.gmra.mrb[0].mxu0 %v9948
    %v10587 = vpop.f32.mrb[0].mxu0
    %v10588 = vadd.f32 %v9660, %v10587
    %v10589 = vpop.f32.mrb[0].mxu0
    %10590 = vmatprep.mubr.f32.mxu0 0.0
    %10591 = vmatmul.mubr.f32.gmra.mrb[0].mxu0 %v9951
    %v10592 = vpop.f32.mrb[0].mxu0
    %v10593 = vadd.f32 %v9660, %v10592
    %v10594 = vpop.f32.mrb[0].mxu0
    %10595 = vmatprep.mubr.f32.mxu0 0.0
    %10596 = vmatmul.mubr.f32.gmra.mrb[0].mxu0 %v9954
    %v10597 = vpop.f32.mrb[0].mxu0
    %v10598 = vadd.f32 %v9660, %v10597
    %v10599 = vpop.f32.mrb[0].mxu0
    %10600 = vmatprep.mubr.f32.mxu0 0.0
    %10601 = vmatmul.mubr.f32.gmra.mrb[0].mxu0 %v9957
    %v10602 = vpop.f32.mrb[0].mxu0
    %v10603 = vadd.f32 %v9660, %v10602
    %v10604 = vpop.f32.mrb[0].mxu0
    %10605 = vmatprep.mubr.f32.mxu0 0.0
    %10606 = vmatmul.mubr.f32.gmra.mrb[0].mxu0 %v9960
    %v10607 = vpop.f32.mrb[0].mxu0
    %v10608 = vadd.f32 %v9660, %v10607
    %v10609 = vpop.f32.mrb[0].mxu0
    %10610 = vmatprep.mubr.f32.mxu0 0.0
    %10611 = vmatmul.mubr.f32.gmra.mrb[0].mxu0 %v9963
    %v10612 = vpop.f32.mrb[0].mxu0
    %v10613 = vadd.f32 %v9660, %v10612
    %v10614 = vpop.f32.mrb[0].mxu0
    %10615 = vmatprep.mubr.f32.mxu0 0.0
    %10616 = vmatmul.mubr.f32.gmra.mrb[0].mxu0 %v9966
    %v10617 = vpop.f32.mrb[0].mxu0
    %v10618 = vadd.f32 %v9660, %v10617
    %v10619 = vpop.f32.mrb[0].mxu0
    %10620 = vmatprep.mubr.f32.mxu0 0.0
    %10621 = vmatmul.mubr.f32.gmra.mrb[0].mxu0 %v9969
    %v10622 = vpop.f32.mrb[0].mxu0
    %v10623 = vadd.f32 %v9660, %v10622
    %v10624 = vpop.f32.mrb[0].mxu0
    %10625 = vmatprep.mubr.f32.mxu0 0.0
    %10626 = vmatmul.mubr.f32.gmra.mrb[0].mxu0 %v9972
    %v10627 = vpop.f32.mrb[0].mxu0
    %v10628 = vadd.f32 %v9660, %v10627
    %v10629 = vpop.f32.mrb[0].mxu0
    %10630 = vmatprep.mubr.f32.mxu0 0.0
    %10631 = vmatmul.mubr.f32.gmra.mrb[0].mxu0 %v9975
    %v10632 = vpop.f32.mrb[0].mxu0
    %v10633 = vadd.f32 %v9660, %v10632
    %v10634 = vpop.f32.mrb[0].mxu0
    %10635 = vmatprep.mubr.f32.mxu0 0.0
    %10636 = vmatmul.mubr.f32.gmra.mrb[0].mxu0 %v9978
    %v10637 = vpop.f32.mrb[0].mxu0
    %v10638 = vadd.f32 %v9660, %v10637
    %v10639 = vpop.f32.mrb[0].mxu0
    %10640 = vmatprep.mubr.f32.mxu0 0.0
    %10641 = vmatmul.mubr.f32.gmra.mrb[0].mxu0 %v9981
    %v10642 = vpop.f32.mrb[0].mxu0
    %v10643 = vadd.f32 %v9660, %v10642
    %v10644 = vpop.f32.mrb[0].mxu0
    %10645 = vmatprep.mubr.f32.mxu0 0.0
    %10646 = vmatmul.mubr.f32.gmra.mrb[0].mxu0 %v9984
    %v10647 = vpop.f32.mrb[0].mxu0
    %v10648 = vadd.f32 %v9660, %v10647
    %v10649 = vpop.f32.mrb[0].mxu0
    %10650 = vmatprep.mubr.f32.mxu0 0.0
    %10651 = vmatmul.mubr.f32.gmra.mrb[0].mxu0 %v9987
    %v10652 = vpop.f32.mrb[0].mxu0
    %v10653 = vadd.f32 %v9660, %v10652
    %v10654 = vpop.f32.mrb[0].mxu0
    %10655 = vmatprep.mubr.f32.mxu0 0.0
    %10656 = vmatmul.mubr.f32.gmra.mrb[0].mxu0 %v9990
    %v10657 = vpop.f32.mrb[0].mxu0
    %v10658 = vadd.f32 %v9660, %v10657
    %v10659 = vpop.f32.mrb[0].mxu0
    %10660 = vmatprep.mubr.f32.mxu0 0.0
    %10661 = vmatmul.mubr.f32.gmra.mrb[0].mxu0 %v9993
    %v10662 = vpop.f32.mrb[0].mxu0
    %v10663 = vadd.f32 %v9660, %v10662
    %v10664 = vpop.f32.mrb[0].mxu0
    %10665 = vmatprep.mubr.f32.mxu0 0.0
    %10666 = vmatmul.mubr.f32.gmra.mrb[0].mxu0 %v9996
    %v10667 = vpop.f32.mrb[0].mxu0
    %v10668 = vadd.f32 %v9660, %v10667
    %v10669 = vpop.f32.mrb[0].mxu0
    %10670 = vmatprep.mubr.f32.mxu0 0.0
    %10671 = vmatmul.mubr.f32.gmra.mrb[0].mxu0 %v9999
    %v10672 = vpop.f32.mrb[0].mxu0
    %v10673 = vadd.f32 %v9660, %v10672
    %v10674 = vpop.f32.mrb[0].mxu0
    %10675 = vmatprep.mubr.f32.mxu0 0.0
    %10676 = vmatmul.mubr.f32.gmra.mrb[0].mxu0 %v10002
    %v10677 = vpop.f32.mrb[0].mxu0
    %v10678 = vadd.f32 %v9660, %v10677
    %v10679 = vpop.f32.mrb[0].mxu0
    %10680 = vmatprep.mubr.f32.mxu0 0.0
    %10681 = vmatmul.mubr.f32.gmra.mrb[0].mxu0 %v10005
    %v10682 = vpop.f32.mrb[0].mxu0
    %v10683 = vadd.f32 %v9660, %v10682
    %v10684 = vpop.f32.mrb[0].mxu0
    %10685 = vmatprep.mubr.f32.mxu0 0.0
    %10686 = vmatmul.mubr.f32.gmra.mrb[0].mxu0 %v10008
    %v10687 = vpop.f32.mrb[0].mxu0
    %v10688 = vadd.f32 %v9660, %v10687
    %v10689 = vpop.f32.mrb[0].mxu0
    %10690 = vmatprep.mubr.f32.mxu0 0.0
    %10691 = vmatmul.mubr.f32.gmra.mrb[0].mxu0 %v10011
    %v10692 = vpop.f32.mrb[0].mxu0
    %v10693 = vadd.f32 %v9660, %v10692
    %v10694 = vpop.f32.mrb[0].mxu0
    %10695 = vmatprep.mubr.f32.mxu0 0.0
    %10696 = vmatmul.mubr.f32.gmra.mrb[0].mxu0 %v10014
    %v10697 = vpop.f32.mrb[0].mxu0
    %v10698 = vadd.f32 %v9660, %v10697
    %v10699 = vpop.f32.mrb[0].mxu0
    %10700 = vmatprep.mubr.f32.mxu0 0.0
    %10701 = vmatmul.mubr.f32.gmra.mrb[0].mxu0 %v10017
    %v10702 = vpop.f32.mrb[0].mxu0
    %v10703 = vadd.f32 %v9660, %v10702
    %v10704 = vpop.f32.mrb[0].mxu0
    %10705 = vmatprep.mubr.f32.mxu0 0.0
    %10706 = vmatmul.mubr.f32.gmra.mrb[0].mxu0 %v10020
    %v10707 = vpop.f32.mrb[0].mxu0
    %v10708 = vadd.f32 %v9660, %v10707
    %v10709 = vpop.f32.mrb[0].mxu0
    %10710 = vmatprep.mubr.f32.mxu0 0.0
    %10711 = vmatmul.mubr.f32.gmra.mrb[0].mxu0 %v10023
    %v10712 = vpop.f32.mrb[0].mxu0
    %v10713 = vadd.f32 %v9660, %v10712
    %v10714 = vpop.f32.mrb[0].mxu0
    %10715 = vmatprep.mubr.f32.mxu0 0.0
    %10716 = vmatmul.mubr.f32.gmra.mrb[0].mxu0 %v10026
    %v10717 = vpop.f32.mrb[0].mxu0
    %v10718 = vadd.f32 %v9660, %v10717
    %v10719 = vpop.f32.mrb[0].mxu0
    %10720 = vmatprep.mubr.f32.mxu0 0.0
    %10721 = vmatmul.mubr.f32.gmra.mrb[0].mxu0 %v10029
    %v10722 = vpop.f32.mrb[0].mxu0
    %v10723 = vadd.f32 %v9660, %v10722
    %v10724 = vpop.f32.mrb[0].mxu0
    %10725 = vmatprep.mubr.f32.mxu0 0.0
    %10726 = vmatmul.mubr.f32.gmra.mrb[0].mxu0 %v10032
    %v10727 = vpop.f32.mrb[0].mxu0
    %v10728 = vadd.f32 %v9660, %v10727
    %v10729 = vpop.f32.mrb[0].mxu0
    %10730 = vmatprep.mubr.f32.mxu0 0.0
    %10731 = vmatmul.mubr.f32.gmra.mrb[0].mxu0 %v10035
    %v10732 = vpop.f32.mrb[0].mxu0
    %v10733 = vadd.f32 %v9660, %v10732
    %v10734 = vpop.f32.mrb[0].mxu0
    %10735 = vmatprep.mubr.f32.mxu0 0.0
    %10736 = vmatmul.mubr.f32.gmra.mrb[0].mxu0 %v10038
    %v10737 = vpop.f32.mrb[0].mxu0
    %v10738 = vadd.f32 %v9660, %v10737
    %v10739 = vpop.f32.mrb[0].mxu0
    %10740 = vmatprep.mubr.f32.mxu0 0.0
    %10741 = vmatmul.mubr.f32.gmra.mrb[0].mxu0 %v10041
    %v10742 = vpop.f32.mrb[0].mxu0
    %v10743 = vadd.f32 %v9660, %v10742
    %v10744 = vpop.f32.mrb[0].mxu0
    %10745 = vmatprep.mubr.f32.mxu0 0.0
    %10746 = vmatmul.mubr.f32.gmra.mrb[0].mxu0 %v10044
    %v10747 = vpop.f32.mrb[0].mxu0
    %v10748 = vadd.f32 %v9660, %v10747
    %v10749 = vpop.f32.mrb[0].mxu0
    %10750 = vdwg.mxu0
    %10751 = vst.msk [vmem:[%s5] sm:$0xff] %vm1310, %v10113
    %10752 = vst.msk [vmem:[%s5 + $0x8] sm:$0xff] %vm1310, %v10118
    %10753 = vst.msk [vmem:[%s5 + $0x10] sm:$0xff] %vm1310, %v10123
    %10754 = vst.msk [vmem:[%s5 + $0x18] sm:$0xff] %vm1310, %v10128
    %10755 = vst.msk [vmem:[%s5 + $0x20] sm:$0xff] %vm1310, %v10133
    %10756 = vst.msk [vmem:[%s5 + $0x28] sm:$0xff] %vm1310, %v10138
    %10757 = vst.msk [vmem:[%s5 + $0x30] sm:$0xff] %vm1310, %v10143
    %10758 = vst.msk [vmem:[%s5 + $0x38] sm:$0xff] %vm1310, %v10148
    %10759 = vst.msk [vmem:[%s5 + $0x40] sm:$0xff] %vm1310, %v10153
    %10760 = vst.msk [vmem:[%s5 + $0x48] sm:$0xff] %vm1310, %v10158
    %10761 = vst.msk [vmem:[%s5 + $0x50] sm:$0xff] %vm1310, %v10163
    %10762 = vst.msk [vmem:[%s5 + $0x58] sm:$0xff] %vm1310, %v10168
    %10763 = vst.msk [vmem:[%s5 + $0x60] sm:$0xff] %vm1310, %v10173
    %10764 = vst.msk [vmem:[%s5 + $0x68] sm:$0xff] %vm1310, %v10178
    %10765 = vst.msk [vmem:[%s5 + $0x70] sm:$0xff] %vm1310, %v10183
    %10766 = vst.msk [vmem:[%s5 + $0x78] sm:$0xff] %vm1310, %v10188
    %10767 = vst.msk [vmem:[%s5 + $0x80] sm:$0xff] %vm1310, %v10193
    %10768 = vst.msk [vmem:[%s5 + $0x88] sm:$0xff] %vm1310, %v10198
    %10769 = vst.msk [vmem:[%s5 + $0x90] sm:$0xff] %vm1310, %v10203
    %10770 = vst.msk [vmem:[%s5 + $0x98] sm:$0xff] %vm1310, %v10208
    %10771 = vst.msk [vmem:[%s5 + $0xa0] sm:$0xff] %vm1310, %v10213
    %10772 = vst.msk [vmem:[%s5 + $0xa8] sm:$0xff] %vm1310, %v10218
    %10773 = vst.msk [vmem:[%s5 + $0xb0] sm:$0xff] %vm1310, %v10223
    %10774 = vst.msk [vmem:[%s5 + $0xb8] sm:$0xff] %vm1310, %v10228
    %10775 = vst.msk [vmem:[%s5 + $0xc0] sm:$0xff] %vm1310, %v10233
    %10776 = vst.msk [vmem:[%s5 + $0xc8] sm:$0xff] %vm1310, %v10238
    %10777 = vst.msk [vmem:[%s5 + $0xd0] sm:$0xff] %vm1310, %v10243
    %10778 = vst.msk [vmem:[%s5 + $0xd8] sm:$0xff] %vm1310, %v10248
    %10779 = vst.msk [vmem:[%s5 + $0xe0] sm:$0xff] %vm1310, %v10253
    %10780 = vst.msk [vmem:[%s5 + $0xe8] sm:$0xff] %vm1310, %v10258
    %10781 = vst.msk [vmem:[%s5 + $0xf0] sm:$0xff] %vm1310, %v10263
    %10782 = vst.msk [vmem:[%s5 + $0xf8] sm:$0xff] %vm1310, %v10268
    %10783 = vst.msk [vmem:[%s5 + $0x100] sm:$0xff] %vm1310, %v10273
    %10784 = vst.msk [vmem:[%s5 + $0x108] sm:$0xff] %vm1310, %v10278
    %10785 = vst.msk [vmem:[%s5 + $0x110] sm:$0xff] %vm1310, %v10283
    %10786 = vst.msk [vmem:[%s5 + $0x118] sm:$0xff] %vm1310, %v10288
    %10787 = vst.msk [vmem:[%s5 + $0x120] sm:$0xff] %vm1310, %v10293
    %10788 = vst.msk [vmem:[%s5 + $0x128] sm:$0xff] %vm1310, %v10298
    %10789 = vst.msk [vmem:[%s5 + $0x130] sm:$0xff] %vm1310, %v10303
    %10790 = vst.msk [vmem:[%s5 + $0x138] sm:$0xff] %vm1310, %v10308
    %10791 = vst.msk [vmem:[%s5 + $0x140] sm:$0xff] %vm1310, %v10313
    %10792 = vst.msk [vmem:[%s5 + $0x148] sm:$0xff] %vm1310, %v10318
    %10793 = vst.msk [vmem:[%s5 + $0x150] sm:$0xff] %vm1310, %v10323
    %10794 = vst.msk [vmem:[%s5 + $0x158] sm:$0xff] %vm1310, %v10328
    %10795 = vst.msk [vmem:[%s5 + $0x160] sm:$0xff] %vm1310, %v10333
    %10796 = vst.msk [vmem:[%s5 + $0x168] sm:$0xff] %vm1310, %v10338
    %10797 = vst.msk [vmem:[%s5 + $0x170] sm:$0xff] %vm1310, %v10343
    %10798 = vst.msk [vmem:[%s5 + $0x178] sm:$0xff] %vm1310, %v10348
    %10799 = vst.msk [vmem:[%s5 + $0x180] sm:$0xff] %vm1310, %v10353
    %10800 = vst.msk [vmem:[%s5 + $0x188] sm:$0xff] %vm1310, %v10358
    %10801 = vst.msk [vmem:[%s5 + $0x190] sm:$0xff] %vm1310, %v10363
    %10802 = vst.msk [vmem:[%s5 + $0x198] sm:$0xff] %vm1310, %v10368
    %10803 = vst.msk [vmem:[%s5 + $0x1a0] sm:$0xff] %vm1310, %v10373
    %10804 = vst.msk [vmem:[%s5 + $0x1a8] sm:$0xff] %vm1310, %v10378
    %10805 = vst.msk [vmem:[%s5 + $0x1b0] sm:$0xff] %vm1310, %v10383
    %10806 = vst.msk [vmem:[%s5 + $0x1b8] sm:$0xff] %vm1310, %v10388
    %10807 = vst.msk [vmem:[%s5 + $0x1c0] sm:$0xff] %vm1310, %v10393
    %10808 = vst.msk [vmem:[%s5 + $0x1c8] sm:$0xff] %vm1310, %v10398
    %10809 = vst.msk [vmem:[%s5 + $0x1d0] sm:$0xff] %vm1310, %v10403
    %10810 = vst.msk [vmem:[%s5 + $0x1d8] sm:$0xff] %vm1310, %v10408
    %10811 = vst.msk [vmem:[%s5 + $0x1e0] sm:$0xff] %vm1310, %v10413
    %10812 = vst.msk [vmem:[%s5 + $0x1e8] sm:$0xff] %vm1310, %v10418
    %10813 = vst.msk [vmem:[%s5 + $0x1f0] sm:$0xff] %vm1310, %v10423
    %10814 = vst.msk [vmem:[%s5 + $0x1f8] sm:$0xff] %vm1310, %v10428
    %10815 = vst.msk [vmem:[%s5 + $0x200] sm:$0xff] %vm1310, %v10433
    %10816 = vst.msk [vmem:[%s5 + $0x208] sm:$0xff] %vm1310, %v10438
    %10817 = vst.msk [vmem:[%s5 + $0x210] sm:$0xff] %vm1310, %v10443
    %10818 = vst.msk [vmem:[%s5 + $0x218] sm:$0xff] %vm1310, %v10448
    %10819 = vst.msk [vmem:[%s5 + $0x220] sm:$0xff] %vm1310, %v10453
    %10820 = vst.msk [vmem:[%s5 + $0x228] sm:$0xff] %vm1310, %v10458
    %10821 = vst.msk [vmem:[%s5 + $0x230] sm:$0xff] %vm1310, %v10463
    %10822 = vst.msk [vmem:[%s5 + $0x238] sm:$0xff] %vm1310, %v10468
    %10823 = vst.msk [vmem:[%s5 + $0x240] sm:$0xff] %vm1310, %v10473
    %10824 = vst.msk [vmem:[%s5 + $0x248] sm:$0xff] %vm1310, %v10478
    %10825 = vst.msk [vmem:[%s5 + $0x250] sm:$0xff] %vm1310, %v10483
    %10826 = vst.msk [vmem:[%s5 + $0x258] sm:$0xff] %vm1310, %v10488
    %10827 = vst.msk [vmem:[%s5 + $0x260] sm:$0xff] %vm1310, %v10493
    %10828 = vst.msk [vmem:[%s5 + $0x268] sm:$0xff] %vm1310, %v10498
    %10829 = vst.msk [vmem:[%s5 + $0x270] sm:$0xff] %vm1310, %v10503
    %10830 = vst.msk [vmem:[%s5 + $0x278] sm:$0xff] %vm1310, %v10508
    %10831 = vst.msk [vmem:[%s5 + $0x280] sm:$0xff] %vm1310, %v10513
    %10832 = vst.msk [vmem:[%s5 + $0x288] sm:$0xff] %vm1310, %v10518
    %10833 = vst.msk [vmem:[%s5 + $0x290] sm:$0xff] %vm1310, %v10523
    %10834 = vst.msk [vmem:[%s5 + $0x298] sm:$0xff] %vm1310, %v10528
    %10835 = vst.msk [vmem:[%s5 + $0x2a0] sm:$0xff] %vm1310, %v10533
    %10836 = vst.msk [vmem:[%s5 + $0x2a8] sm:$0xff] %vm1310, %v10538
    %10837 = vst.msk [vmem:[%s5 + $0x2b0] sm:$0xff] %vm1310, %v10543
    %10838 = vst.msk [vmem:[%s5 + $0x2b8] sm:$0xff] %vm1310, %v10548
    %10839 = vst.msk [vmem:[%s5 + $0x2c0] sm:$0xff] %vm1310, %v10553
    %10840 = vst.msk [vmem:[%s5 + $0x2c8] sm:$0xff] %vm1310, %v10558
    %10841 = vst.msk [vmem:[%s5 + $0x2d0] sm:$0xff] %vm1310, %v10563
    %10842 = vst.msk [vmem:[%s5 + $0x2d8] sm:$0xff] %vm1310, %v10568
    %10843 = vst.msk [vmem:[%s5 + $0x2e0] sm:$0xff] %vm1310, %v10573
    %10844 = vst.msk [vmem:[%s5 + $0x2e8] sm:$0xff] %vm1310, %v10578
    %10845 = vst.msk [vmem:[%s5 + $0x2f0] sm:$0xff] %vm1310, %v10583
    %10846 = vst.msk [vmem:[%s5 + $0x2f8] sm:$0xff] %vm1310, %v10588
    %10847 = vst.msk [vmem:[%s5 + $0x300] sm:$0xff] %vm1310, %v10593
    %10848 = vst.msk [vmem:[%s5 + $0x308] sm:$0xff] %vm1310, %v10598
    %10849 = vst.msk [vmem:[%s5 + $0x310] sm:$0xff] %vm1310, %v10603
    %10850 = vst.msk [vmem:[%s5 + $0x318] sm:$0xff] %vm1310, %v10608
    %10851 = vst.msk [vmem:[%s5 + $0x320] sm:$0xff] %vm1310, %v10613
    %10852 = vst.msk [vmem:[%s5 + $0x328] sm:$0xff] %vm1310, %v10618
    %10853 = vst.msk [vmem:[%s5 + $0x330] sm:$0xff] %vm1310, %v10623
    %10854 = vst.msk [vmem:[%s5 + $0x338] sm:$0xff] %vm1310, %v10628
    %10855 = vst.msk [vmem:[%s5 + $0x340] sm:$0xff] %vm1310, %v10633
    %10856 = vst.msk [vmem:[%s5 + $0x348] sm:$0xff] %vm1310, %v10638
    %10857 = vst.msk [vmem:[%s5 + $0x350] sm:$0xff] %vm1310, %v10643
    %10858 = vst.msk [vmem:[%s5 + $0x358] sm:$0xff] %vm1310, %v10648
    %10859 = vst.msk [vmem:[%s5 + $0x360] sm:$0xff] %vm1310, %v10653
    %10860 = vst.msk [vmem:[%s5 + $0x368] sm:$0xff] %vm1310, %v10658
    %10861 = vst.msk [vmem:[%s5 + $0x370] sm:$0xff] %vm1310, %v10663
    %10862 = vst.msk [vmem:[%s5 + $0x378] sm:$0xff] %vm1310, %v10668
    %10863 = vst.msk [vmem:[%s5 + $0x380] sm:$0xff] %vm1310, %v10673
    %10864 = vst.msk [vmem:[%s5 + $0x388] sm:$0xff] %vm1310, %v10678
    %10865 = vst.msk [vmem:[%s5 + $0x390] sm:$0xff] %vm1310, %v10683
    %10866 = vst.msk [vmem:[%s5 + $0x398] sm:$0xff] %vm1310, %v10688
    %10867 = vst.msk [vmem:[%s5 + $0x3a0] sm:$0xff] %vm1310, %v10693
    %10868 = vst.msk [vmem:[%s5 + $0x3a8] sm:$0xff] %vm1310, %v10698
    %10869 = vst.msk [vmem:[%s5 + $0x3b0] sm:$0xff] %vm1310, %v10703
    %10870 = vst.msk [vmem:[%s5 + $0x3b8] sm:$0xff] %vm1310, %v10708
    %10871 = vst.msk [vmem:[%s5 + $0x3c0] sm:$0xff] %vm1310, %v10713
    %10872 = vst.msk [vmem:[%s5 + $0x3c8] sm:$0xff] %vm1310, %v10718
    %10873 = vst.msk [vmem:[%s5 + $0x3d0] sm:$0xff] %vm1310, %v10723
    %10874 = vst.msk [vmem:[%s5 + $0x3d8] sm:$0xff] %vm1310, %v10728
    %10875 = vst.msk [vmem:[%s5 + $0x3e0] sm:$0xff] %vm1310, %v10733
    %10876 = vst.msk [vmem:[%s5 + $0x3e8] sm:$0xff] %vm1310, %v10738
    %10877 = vst.msk [vmem:[%s5 + $0x3f0] sm:$0xff] %vm1310, %v10743
    %10878 = vst.msk [vmem:[%s5 + $0x3f8] sm:$0xff] %vm1310, %v10748
    // Predicated region
    $region34: #{tpu_custom_call.1} parent=1 // pred_check
      _
    $region35: #{tpu_custom_call.1} parent=1 // pred_check_branch
      %10880 = sbr.rel (0) target = $region37
    $region36: #{tpu_custom_call.1} parent=1 // pred_region
      _
    $region37: #{tpu_custom_call.1} parent=1 // pred_fallthru
      _
    // Predicated region
    $region38: #{tpu_custom_call.1} parent=1 // pred_check
      _
    $region39: #{tpu_custom_call.1} parent=1 // pred_check_branch
      %10882 = sbr.rel (0) target = $region41
    $region40: #{tpu_custom_call.1} parent=1 // pred_region
      _
    $region41: #{tpu_custom_call.1} parent=1 // pred_fallthru
      _
    %10883 = vsyncpa [#allocation3], 1
    %10884 = vsyncpa [#allocation5], 1

</llo_original>
